<compile_context>
chip_gen: v7x
topology: tpu7x:2x2x1
jax: 0.10.0
libtpu: 0.0.40
codegen_flags: <defaults>
</compile_context>

<pallas_src>
import numpy as np
import jax
import jax.numpy as jnp
from jax import lax
from jax.experimental import pallas as pl
from jax.experimental.pallas import tpu as pltpu


def _round_up(x, m):
    return (x + m - 1) // m * m


# ---------------------------------------------------------------------------
# Fused kernel builder
# ---------------------------------------------------------------------------
def _build_fused_call(*, bn, h, w, dim, cin_pad, cout_pad, n_block):
    HP, WP = h + 2, w + 2
    R = HP * WP                                   # flattened padded spatial size
    R_SLAB = _round_up(R, 8)                      # rows computed per conv (extra rows masked)
    BASE = _round_up(WP + 1, 8)                   # row where padded position 0 lives
    R_EXT = _round_up(BASE + WP + 1 + R_SLAB, 8)  # extended activation buffer rows
    OFFS = tuple((dy - 1) * WP + (dx - 1) for dy in range(3) for dx in range(3))
    BF = jnp.bfloat16

    def kernel(alpha_ref, x_in_ref, w_in_ref, b_in_ref,
               w1_ref, b1_ref, w2_ref, b2_ref,
               w_out_ref, b_out_ref, skip_ref, mask_ref,
               o_ref, act_ref, stage_ref):
        maskf = mask_ref[...]                      # (R_SLAB, 1) f32, 1 = interior pixel

        def conv3x3(load_slab, tap_w, bias_row, cout):
            # 3x3 same-conv = 9 constant-offset row slabs x MXU matmul, f32 accumulate.
            acc = jnp.broadcast_to(bias_row, (R_SLAB, cout)).astype(jnp.float32)
            for k in range(9):
                s = BASE + OFFS[k]
                acc = acc + jnp.dot(load_slab(s), tap_w(k),
                                    preferred_element_type=jnp.float32)
            return acc

        # ---- init scratches + input conv (x already bf16) ----
        act_ref[...] = jnp.zeros_like(act_ref)      # f32 residual-path activation
        stage_ref[...] = jnp.zeros_like(stage_ref)  # bf16 conv-input mirror
        acc0 = conv3x3(lambda s: x_in_ref[0, s:s + R_SLAB, :],
                       lambda k: w_in_ref[k], b_in_ref[...], dim)
        h0 = acc0 * maskf
        act_ref[BASE:BASE + R_SLAB, :] = h0
        stage_ref[BASE:BASE + R_SLAB, :] = h0.astype(BF)

        # ---- n_block ResBlocks; weights VMEM-resident, one in-kernel loop ----
        def block_body(blk, carry):
            a1 = alpha_ref[3 * blk + 0]
            a2 = alpha_ref[3 * blk + 1]
            a3 = alpha_ref[3 * blk + 2]

            acc1 = conv3x3(lambda s: stage_ref[s:s + R_SLAB, :],
                           lambda k: w1_ref[9 * blk + k], b1_ref[blk], dim)
            y = jnp.where(acc1 >= 0.0, acc1, a1 * acc1) * maskf
            stage_ref[BASE:BASE + R_SLAB, :] = y.astype(BF)

            acc2 = conv3x3(lambda s: stage_ref[s:s + R_SLAB, :],
                           lambda k: w2_ref[9 * blk + k], b2_ref[blk], dim)
            z = jnp.where(acc2 >= 0.0, acc2, a2 * acc2)
            z = jnp.where(z >= 0.0, z, a3 * z)
            hn = (z + act_ref[BASE:BASE + R_SLAB, :]) * maskf   # exact f32 residual
            act_ref[BASE:BASE + R_SLAB, :] = hn
            stage_ref[BASE:BASE + R_SLAB, :] = hn.astype(BF)
            return carry

        lax.fori_loop(0, n_block, block_body, 0)

        # ---- output conv + skip, lane-dense (cout_pad=128) store ----
        acco = conv3x3(lambda s: stage_ref[s:s + R_SLAB, :],
                       lambda k: w_out_ref[k], b_out_ref[...], cout_pad)
        o_ref[0] = acco + skip_ref[0]

    in_specs = [
        # PReLU alphas, flat 1-D SMEM (avoids 2-D SMEM padding)
        pl.BlockSpec((n_block * 3,), lambda n: (0,), memory_space=pltpu.SMEM),
        # per-image bf16 input rows
        pl.BlockSpec((1, R_EXT, cin_pad), lambda n: (n, 0, 0)),
        # input conv weights/bias (resident)
        pl.BlockSpec((9, cin_pad, dim), lambda n: (0, 0, 0)),
        pl.BlockSpec((1, dim), lambda n: (0, 0)),
        # ALL block conv weights/biases resident in VMEM (constant index_map)
        pl.BlockSpec((n_block * 9, dim, dim), lambda n: (0, 0, 0)),
        pl.BlockSpec((n_block, 1, dim), lambda n: (0, 0, 0)),
        pl.BlockSpec((n_block * 9, dim, dim), lambda n: (0, 0, 0)),
        pl.BlockSpec((n_block, 1, dim), lambda n: (0, 0, 0)),
        # output conv weights/bias (resident)
        pl.BlockSpec((9, dim, cout_pad), lambda n: (0, 0, 0)),
        pl.BlockSpec((1, cout_pad), lambda n: (0, 0)),
        # per-image skip connection (f32 for an exact final add)
        pl.BlockSpec((1, R_SLAB, cout_pad), lambda n: (n, 0, 0)),
        # interior mask
        pl.BlockSpec((R_SLAB, 1), lambda n: (0, 0)),
    ]

    fused = pl.pallas_call(
        kernel,
        out_shape=jax.ShapeDtypeStruct((bn, R_SLAB, cout_pad), jnp.float32),
        grid=(bn,),
        in_specs=in_specs,
        out_specs=pl.BlockSpec((1, R_SLAB, cout_pad), lambda n: (n, 0, 0)),
        scratch_shapes=[pltpu.VMEM((R_EXT, dim), jnp.float32),    # f32 activation (residual path)
                        pltpu.VMEM((R_EXT, dim), jnp.bfloat16)],  # bf16 conv-input mirror
        compiler_params=pltpu.CompilerParams(
            dimension_semantics=("parallel",)),
    )
    geom = dict(HP=HP, WP=WP, R=R, R_SLAB=R_SLAB, BASE=BASE, R_EXT=R_EXT)
    return fused, geom


# ---------------------------------------------------------------------------
# Model forward (single fused Pallas call; JAX glue is layout plumbing only)
# ---------------------------------------------------------------------------
def model_forward(x5, params):
    bn, ch, sq, h, w = x5.shape
    inch = ch * sq
    dim = params["in_w"].shape[3]
    outch = params["out_w"].shape[3]
    n_block = params["blk_w1"].shape[0]

    cin_pad = _round_up(inch, 8)
    cout_pad = 128          # lane-dense final HBM store; extra channels are zero

    fused, g = _build_fused_call(bn=bn, h=h, w=w, dim=dim, cin_pad=cin_pad,
                                 cout_pad=cout_pad, n_block=n_block)
    HP, WP, R, R_SLAB, BASE, R_EXT = (g["HP"], g["WP"], g["R"],
                                      g["R_SLAB"], g["BASE"], g["R_EXT"])

    # input image -> flat zero-padded rows, already bf16 (kernel feeds MXU directly)
    x_nhwc = jnp.transpose(x5.reshape(bn, inch, h, w), (0, 2, 3, 1))
    xp = jnp.pad(x_nhwc, ((0, 0), (1, 1), (1, 1), (0, cin_pad - inch)))
    x_flat = jnp.pad(xp.reshape(bn, R, cin_pad),
                     ((0, 0), (BASE, R_EXT - BASE - R), (0, 0))).astype(jnp.bfloat16)

    # weights (bf16 MXU operands), biases f32
    w_in = jnp.pad(params["in_w"], ((0, 0), (0, 0), (0, cin_pad - inch), (0, 0)))
    w_in = w_in.reshape(9, cin_pad, dim).astype(jnp.bfloat16)
    b_in = params["in_b"].reshape(1, dim).astype(jnp.float32)

    w1 = params["blk_w1"].reshape(n_block * 9, dim, dim).astype(jnp.bfloat16)
    b1 = params["blk_b1"].reshape(n_block, 1, dim).astype(jnp.float32)
    w2 = params["blk_w2"].reshape(n_block * 9, dim, dim).astype(jnp.bfloat16)
    b2 = params["blk_b2"].reshape(n_block, 1, dim).astype(jnp.float32)

    w_out = jnp.pad(params["out_w"], ((0, 0), (0, 0), (0, 0), (0, cout_pad - outch)))
    w_out = w_out.reshape(9, dim, cout_pad).astype(jnp.bfloat16)
    b_out = jnp.pad(params["out_b"], ((0, cout_pad - outch),))
    b_out = b_out.reshape(1, cout_pad).astype(jnp.float32)

    # PReLU alphas, flat [a1_0, a2_0, a3_0, a1_1, ...]
    alphas = jnp.stack([params["blk_a1"], params["blk_a2"], params["blk_a3"]],
                       axis=1).reshape(-1).astype(jnp.float32)    # (n_block*3,)

    # skip connection x[:, :, 3] in the same flat layout / padded channels (f32)
    skip_nhwc = jnp.transpose(x5[:, :, 3], (0, 2, 3, 1))           # (bn, h, w, ch)
    sp = jnp.pad(skip_nhwc, ((0, 0), (1, 1), (1, 1), (0, cout_pad - ch)))
    skip_flat = jnp.pad(sp.reshape(bn, R, cout_pad),
                        ((0, 0), (0, R_SLAB - R), (0, 0))).astype(jnp.float32)

    # interior mask (1 where the flat row is a real, non-padding pixel)
    rr = np.arange(R_SLAB)
    yy, xx = rr // WP, rr % WP
    m = (rr < R) & (yy >= 1) & (yy <= h) & (xx >= 1) & (xx <= w)
    mask = jnp.asarray(m.astype(np.float32)).reshape(R_SLAB, 1)

    out_flat = fused(alphas, x_flat, w_in, b_in, w1, b1, w2, b2,
                     w_out, b_out, skip_flat, mask)

    out = out_flat[:, :R, :].reshape(bn, HP, WP, cout_pad)[:, 1:h + 1, 1:w + 1, :outch]
    out = jnp.transpose(out, (0, 3, 1, 2))                         # back to NCHW
    # TODO(synk): ifSoftMedian=True branch (softMedian reduce) not implemented; the
    # reference module's default (ifSoftMedian=False) path is what is reproduced here.
    return out, []


# ---------------------------------------------------------------------------
# Deterministic parameter init (PyTorch default-style shapes)
# ---------------------------------------------------------------------------
def init_params(key, dim=64, inch=21, outch=3, n_block=20):
    def conv_init(k, cin, cout):
        kw, kb = jax.random.split(k)
        bound = 1.0 / np.sqrt(cin * 9.0)
        w = jax.random.uniform(kw, (3, 3, cin, cout), jnp.float32, -bound, bound)
        b = jax.random.uniform(kb, (cout,), jnp.float32, -bound, bound)
        return w, b

    keys = jax.random.split(key, 2 + n_block)
    params = {}
    params["in_w"], params["in_b"] = conv_init(keys[0], inch, dim)
    params["out_w"], params["out_b"] = conv_init(keys[1], dim, outch)

    w1s, b1s, w2s, b2s = [], [], [], []
    for i in range(n_block):
        k1, k2 = jax.random.split(keys[2 + i])
        w1, b1 = conv_init(k1, dim, dim)
        w2, b2 = conv_init(k2, dim, dim)
        w1s.append(w1); b1s.append(b1); w2s.append(w2); b2s.append(b2)

    params["blk_w1"] = jnp.stack(w1s); params["blk_b1"] = jnp.stack(b1s)
    params["blk_w2"] = jnp.stack(w2s); params["blk_b2"] = jnp.stack(b2s)
    # PReLU default init: single parameter, value 0.25
    params["blk_a1"] = jnp.full((n_block,), 0.25, jnp.float32)
    params["blk_a2"] = jnp.full((n_block,), 0.25, jnp.float32)
    params["blk_a3"] = jnp.full((n_block,), 0.25, jnp.float32)
    return params


# ---------------------------------------------------------------------------
# Pure-JAX f32 reference (for correctness check)
# ---------------------------------------------------------------------------
def _conv_ref(x, w, b):
    y = lax.conv_general_dilated(x, w, (1, 1), "SAME",
                                 dimension_numbers=("NHWC", "HWIO", "NHWC"),
                                 precision=lax.Precision.HIGHEST)
    return y + b


def _prelu_ref(x, a):
    return jnp.where(x >= 0, x, a * x)


def model_forward_ref(x5, params):
    bn, ch, sq, h, w = x5.shape
    x_nhwc = jnp.transpose(x5.reshape(bn, ch * sq, h, w), (0, 2, 3, 1))
    hcur = _conv_ref(x_nhwc, params["in_w"], params["in_b"])
    n_block = params["blk_w1"].shape[0]
    for i in range(n_block):
        y = _prelu_ref(_conv_ref(hcur, params["blk_w1"][i], params["blk_b1"][i]),
                       params["blk_a1"][i])
        y = _prelu_ref(_conv_ref(y, params["blk_w2"][i], params["blk_b2"][i]),
                       params["blk_a2"][i])
        hcur = _prelu_ref(y, params["blk_a3"][i]) + hcur
    out = _conv_ref(hcur, params["out_w"], params["out_b"])
    out = out + jnp.transpose(x5[:, :, 3], (0, 2, 3, 1))
    return jnp.transpose(out, (0, 3, 1, 2)), []


# ---------------------------------------------------------------------------
if __name__ == "__main__":
    key = jax.random.PRNGKey(0)
    kp, kx = jax.random.split(key)

    # Small shapes consistent with the module: inch = ch*sq = 21, outch = ch = 3
    bn, ch, sq, h, w = 2, 3, 7, 8, 8
    dim, inch, outch, n_block = 64, 21, 3, 20

    params = init_params(kp, dim=dim, inch=inch, outch=outch, n_block=n_block)
    x5 = jax.random.normal(kx, (bn, ch, sq, h, w), jnp.float32)

    fwd = jax.jit(lambda xx: model_forward(xx, params))
    out, aux = fwd(x5)
    out = jax.block_until_ready(out)

    out_ref, _ = model_forward_ref(x5, params)
    np.testing.assert_allclose(np.asarray(out), np.asarray(out_ref),
                               rtol=4e-2, atol=4e-2)
    assert out.shape == (bn, outch, h, w)
    assert aux == []

    print("KERNEL_OK")
</pallas_src>

<mosaic_0001>
module attributes {stable_mosaic.version = 11 : i64} {
  func.func @kernel(%arg0: i32, %arg1: memref<60xf32, #tpu.memory_space<smem>>, %arg2: memref<1x136x24xbf16, #tpu.memory_space<vmem>>, %arg3: memref<9x24x64xbf16, #tpu.memory_space<vmem>>, %arg4: memref<1x64xf32, #tpu.memory_space<vmem>>, %arg5: memref<180x64x64xbf16, #tpu.memory_space<vmem>>, %arg6: memref<20x1x64xf32, #tpu.memory_space<vmem>>, %arg7: memref<180x64x64xbf16, #tpu.memory_space<vmem>>, %arg8: memref<20x1x64xf32, #tpu.memory_space<vmem>>, %arg9: memref<9x64x128xbf16, #tpu.memory_space<vmem>>, %arg10: memref<1x128xf32, #tpu.memory_space<vmem>>, %arg11: memref<1x104x128xf32, #tpu.memory_space<vmem>>, %arg12: memref<104x1xf32, #tpu.memory_space<vmem>>, %arg13: memref<1x104x128xf32, #tpu.memory_space<vmem>>, %arg14: memref<136x64xf32, #tpu.memory_space<vmem>>, %arg15: memref<136x64xbf16, #tpu.memory_space<vmem>>) attributes {dimension_semantics = [#tpu.dimension_semantics<parallel>], iteration_bounds = array<i64: 2>, scalar_prefetch = 0 : i64, scratch_operands = 2 : i64, tpu.core_type = #tpu.core_type<tc>, window_params = [{transform_indices = @transform_0, window_bounds = array<i64: 60>}, {transform_indices = @transform_1, window_bounds = array<i64: 1, 136, 24>}, {pipeline_mode = #tpu.pipeline_mode<synchronous>, transform_indices = @transform_2, window_bounds = array<i64: 9, 24, 64>}, {pipeline_mode = #tpu.pipeline_mode<synchronous>, transform_indices = @transform_3, window_bounds = array<i64: 1, 64>}, {pipeline_mode = #tpu.pipeline_mode<synchronous>, transform_indices = @transform_4, window_bounds = array<i64: 180, 64, 64>}, {pipeline_mode = #tpu.pipeline_mode<synchronous>, transform_indices = @transform_5, window_bounds = array<i64: 20, 1, 64>}, {pipeline_mode = #tpu.pipeline_mode<synchronous>, transform_indices = @transform_6, window_bounds = array<i64: 180, 64, 64>}, {pipeline_mode = #tpu.pipeline_mode<synchronous>, transform_indices = @transform_7, window_bounds = array<i64: 20, 1, 64>}, {pipeline_mode = #tpu.pipeline_mode<synchronous>, transform_indices = @transform_8, window_bounds = array<i64: 9, 64, 128>}, {pipeline_mode = #tpu.pipeline_mode<synchronous>, transform_indices = @transform_9, window_bounds = array<i64: 1, 128>}, {transform_indices = @transform_10, window_bounds = array<i64: 1, 104, 128>}, {pipeline_mode = #tpu.pipeline_mode<synchronous>, transform_indices = @transform_11, window_bounds = array<i64: 104, 1>}, {transform_indices = @transform_12, window_bounds = array<i64: 1, 104, 128>}]} {
    %c0 = arith.constant 0 : index
    %c0_0 = arith.constant 0 : index
    %0 = vector.load %arg12[%c0, %c0_0] : memref<104x1xf32, #tpu.memory_space<vmem>>, vector<104x1xf32>
    %cst = arith.constant 0.000000e+00 : f32
    %1 = vector.broadcast %cst : f32 to vector<136x64xf32>
    %c0_1 = arith.constant 0 : index
    %c0_2 = arith.constant 0 : index
    %2 = vector.load %arg14[%c0_1, %c0_2] : memref<136x64xf32, #tpu.memory_space<vmem>>, vector<136x64xf32>
    tpu.vector_store %arg14[%c0_1, %c0_2], %1 {strides = array<i32>} : memref<136x64xf32, #tpu.memory_space<vmem>>, vector<136x64xf32>,
    %cst_3 = arith.constant 0.000000e+00 : bf16
    %3 = vector.broadcast %cst_3 : bf16 to vector<136x64xbf16>
    %c0_4 = arith.constant 0 : index
    %c0_5 = arith.constant 0 : index
    %4 = vector.load %arg15[%c0_4, %c0_5] : memref<136x64xbf16, #tpu.memory_space<vmem>>, vector<136x64xbf16>
    tpu.vector_store %arg15[%c0_4, %c0_5], %3 {strides = array<i32>} : memref<136x64xbf16, #tpu.memory_space<vmem>>, vector<136x64xbf16>,
    %c0_6 = arith.constant 0 : index
    %c0_7 = arith.constant 0 : index
    %5 = vector.load %arg4[%c0_6, %c0_7] : memref<1x64xf32, #tpu.memory_space<vmem>>, vector<1x64xf32>
    %6 = vector.shape_cast %5 : vector<1x64xf32> to vector<1x64xf32>
    %7 = vector.broadcast %6 : vector<1x64xf32> to vector<104x64xf32>
    %c0_8 = arith.constant 0 : index
    %c5 = arith.constant 5 : index
    %c0_9 = arith.constant 0 : index
    %8 = vector.load %arg2[%c0_8, %c5, %c0_9] : memref<1x136x24xbf16, #tpu.memory_space<vmem>>, vector<1x104x24xbf16>
    %9 = vector.shape_cast %8 : vector<1x104x24xbf16> to vector<104x24xbf16>
    %c0_10 = arith.constant 0 : index
    %c0_11 = arith.constant 0 : index
    %c0_12 = arith.constant 0 : index
    %10 = vector.load %arg3[%c0_10, %c0_11, %c0_12] : memref<9x24x64xbf16, #tpu.memory_space<vmem>>, vector<1x24x64xbf16>
    %11 = vector.shape_cast %10 : vector<1x24x64xbf16> to vector<24x64xbf16>
    %cst_13 = arith.constant dense<0.000000e+00> : vector<104x64xf32>
    %12 = tpu.matmul %9, %11, %cst_13 {dimension_numbers = #tpu.dot_dimension_numbers<[1], [0], [0], [1], [0, 0, 1, 1], [], []>} : vector<104x24xbf16>, vector<24x64xbf16>, vector<104x64xf32> -> vector<104x64xf32>
    %13 = arith.addf %7, %12 : vector<104x64xf32>
    %c0_14 = arith.constant 0 : index
    %c6 = arith.constant 6 : index
    %c0_15 = arith.constant 0 : index
    %14 = vector.load %arg2[%c0_14, %c6, %c0_15] : memref<1x136x24xbf16, #tpu.memory_space<vmem>>, vector<1x104x24xbf16>
    %15 = vector.shape_cast %14 : vector<1x104x24xbf16> to vector<104x24xbf16>
    %c1 = arith.constant 1 : index
    %c0_16 = arith.constant 0 : index
    %c0_17 = arith.constant 0 : index
    %16 = vector.load %arg3[%c1, %c0_16, %c0_17] : memref<9x24x64xbf16, #tpu.memory_space<vmem>>, vector<1x24x64xbf16>
    %17 = vector.shape_cast %16 : vector<1x24x64xbf16> to vector<24x64xbf16>
    %cst_18 = arith.constant dense<0.000000e+00> : vector<104x64xf32>
    %18 = tpu.matmul %15, %17, %cst_18 {dimension_numbers = #tpu.dot_dimension_numbers<[1], [0], [0], [1], [0, 0, 1, 1], [], []>} : vector<104x24xbf16>, vector<24x64xbf16>, vector<104x64xf32> -> vector<104x64xf32>
    %19 = arith.addf %13, %18 : vector<104x64xf32>
    %c0_19 = arith.constant 0 : index
    %c7 = arith.constant 7 : index
    %c0_20 = arith.constant 0 : index
    %20 = vector.load %arg2[%c0_19, %c7, %c0_20] : memref<1x136x24xbf16, #tpu.memory_space<vmem>>, vector<1x104x24xbf16>
    %21 = vector.shape_cast %20 : vector<1x104x24xbf16> to vector<104x24xbf16>
    %c2 = arith.constant 2 : index
    %c0_21 = arith.constant 0 : index
    %c0_22 = arith.constant 0 : index
    %22 = vector.load %arg3[%c2, %c0_21, %c0_22] : memref<9x24x64xbf16, #tpu.memory_space<vmem>>, vector<1x24x64xbf16>
    %23 = vector.shape_cast %22 : vector<1x24x64xbf16> to vector<24x64xbf16>
    %cst_23 = arith.constant dense<0.000000e+00> : vector<104x64xf32>
    %24 = tpu.matmul %21, %23, %cst_23 {dimension_numbers = #tpu.dot_dimension_numbers<[1], [0], [0], [1], [0, 0, 1, 1], [], []>} : vector<104x24xbf16>, vector<24x64xbf16>, vector<104x64xf32> -> vector<104x64xf32>
    %25 = arith.addf %19, %24 : vector<104x64xf32>
    %c0_24 = arith.constant 0 : index
    %c15 = arith.constant 15 : index
    %c0_25 = arith.constant 0 : index
    %26 = vector.load %arg2[%c0_24, %c15, %c0_25] : memref<1x136x24xbf16, #tpu.memory_space<vmem>>, vector<1x104x24xbf16>
    %27 = vector.shape_cast %26 : vector<1x104x24xbf16> to vector<104x24xbf16>
    %c3 = arith.constant 3 : index
    %c0_26 = arith.constant 0 : index
    %c0_27 = arith.constant 0 : index
    %28 = vector.load %arg3[%c3, %c0_26, %c0_27] : memref<9x24x64xbf16, #tpu.memory_space<vmem>>, vector<1x24x64xbf16>
    %29 = vector.shape_cast %28 : vector<1x24x64xbf16> to vector<24x64xbf16>
    %cst_28 = arith.constant dense<0.000000e+00> : vector<104x64xf32>
    %30 = tpu.matmul %27, %29, %cst_28 {dimension_numbers = #tpu.dot_dimension_numbers<[1], [0], [0], [1], [0, 0, 1, 1], [], []>} : vector<104x24xbf16>, vector<24x64xbf16>, vector<104x64xf32> -> vector<104x64xf32>
    %31 = arith.addf %25, %30 : vector<104x64xf32>
    %c0_29 = arith.constant 0 : index
    %c16 = arith.constant 16 : index
    %c0_30 = arith.constant 0 : index
    %32 = vector.load %arg2[%c0_29, %c16, %c0_30] : memref<1x136x24xbf16, #tpu.memory_space<vmem>>, vector<1x104x24xbf16>
    %33 = vector.shape_cast %32 : vector<1x104x24xbf16> to vector<104x24xbf16>
    %c4 = arith.constant 4 : index
    %c0_31 = arith.constant 0 : index
    %c0_32 = arith.constant 0 : index
    %34 = vector.load %arg3[%c4, %c0_31, %c0_32] : memref<9x24x64xbf16, #tpu.memory_space<vmem>>, vector<1x24x64xbf16>
    %35 = vector.shape_cast %34 : vector<1x24x64xbf16> to vector<24x64xbf16>
    %cst_33 = arith.constant dense<0.000000e+00> : vector<104x64xf32>
    %36 = tpu.matmul %33, %35, %cst_33 {dimension_numbers = #tpu.dot_dimension_numbers<[1], [0], [0], [1], [0, 0, 1, 1], [], []>} : vector<104x24xbf16>, vector<24x64xbf16>, vector<104x64xf32> -> vector<104x64xf32>
    %37 = arith.addf %31, %36 : vector<104x64xf32>
    %c0_34 = arith.constant 0 : index
    %c17 = arith.constant 17 : index
    %c0_35 = arith.constant 0 : index
    %38 = vector.load %arg2[%c0_34, %c17, %c0_35] : memref<1x136x24xbf16, #tpu.memory_space<vmem>>, vector<1x104x24xbf16>
    %39 = vector.shape_cast %38 : vector<1x104x24xbf16> to vector<104x24xbf16>
    %c5_36 = arith.constant 5 : index
    %c0_37 = arith.constant 0 : index
    %c0_38 = arith.constant 0 : index
    %40 = vector.load %arg3[%c5_36, %c0_37, %c0_38] : memref<9x24x64xbf16, #tpu.memory_space<vmem>>, vector<1x24x64xbf16>
    %41 = vector.shape_cast %40 : vector<1x24x64xbf16> to vector<24x64xbf16>
    %cst_39 = arith.constant dense<0.000000e+00> : vector<104x64xf32>
    %42 = tpu.matmul %39, %41, %cst_39 {dimension_numbers = #tpu.dot_dimension_numbers<[1], [0], [0], [1], [0, 0, 1, 1], [], []>} : vector<104x24xbf16>, vector<24x64xbf16>, vector<104x64xf32> -> vector<104x64xf32>
    %43 = arith.addf %37, %42 : vector<104x64xf32>
    %c0_40 = arith.constant 0 : index
    %c25 = arith.constant 25 : index
    %c0_41 = arith.constant 0 : index
    %44 = vector.load %arg2[%c0_40, %c25, %c0_41] : memref<1x136x24xbf16, #tpu.memory_space<vmem>>, vector<1x104x24xbf16>
    %45 = vector.shape_cast %44 : vector<1x104x24xbf16> to vector<104x24xbf16>
    %c6_42 = arith.constant 6 : index
    %c0_43 = arith.constant 0 : index
    %c0_44 = arith.constant 0 : index
    %46 = vector.load %arg3[%c6_42, %c0_43, %c0_44] : memref<9x24x64xbf16, #tpu.memory_space<vmem>>, vector<1x24x64xbf16>
    %47 = vector.shape_cast %46 : vector<1x24x64xbf16> to vector<24x64xbf16>
    %cst_45 = arith.constant dense<0.000000e+00> : vector<104x64xf32>
    %48 = tpu.matmul %45, %47, %cst_45 {dimension_numbers = #tpu.dot_dimension_numbers<[1], [0], [0], [1], [0, 0, 1, 1], [], []>} : vector<104x24xbf16>, vector<24x64xbf16>, vector<104x64xf32> -> vector<104x64xf32>
    %49 = arith.addf %43, %48 : vector<104x64xf32>
    %c0_46 = arith.constant 0 : index
    %c26 = arith.constant 26 : index
    %c0_47 = arith.constant 0 : index
    %50 = vector.load %arg2[%c0_46, %c26, %c0_47] : memref<1x136x24xbf16, #tpu.memory_space<vmem>>, vector<1x104x24xbf16>
    %51 = vector.shape_cast %50 : vector<1x104x24xbf16> to vector<104x24xbf16>
    %c7_48 = arith.constant 7 : index
    %c0_49 = arith.constant 0 : index
    %c0_50 = arith.constant 0 : index
    %52 = vector.load %arg3[%c7_48, %c0_49, %c0_50] : memref<9x24x64xbf16, #tpu.memory_space<vmem>>, vector<1x24x64xbf16>
    %53 = vector.shape_cast %52 : vector<1x24x64xbf16> to vector<24x64xbf16>
    %cst_51 = arith.constant dense<0.000000e+00> : vector<104x64xf32>
    %54 = tpu.matmul %51, %53, %cst_51 {dimension_numbers = #tpu.dot_dimension_numbers<[1], [0], [0], [1], [0, 0, 1, 1], [], []>} : vector<104x24xbf16>, vector<24x64xbf16>, vector<104x64xf32> -> vector<104x64xf32>
    %55 = arith.addf %49, %54 : vector<104x64xf32>
    %c0_52 = arith.constant 0 : index
    %c27 = arith.constant 27 : index
    %c0_53 = arith.constant 0 : index
    %56 = vector.load %arg2[%c0_52, %c27, %c0_53] : memref<1x136x24xbf16, #tpu.memory_space<vmem>>, vector<1x104x24xbf16>
    %57 = vector.shape_cast %56 : vector<1x104x24xbf16> to vector<104x24xbf16>
    %c8 = arith.constant 8 : index
    %c0_54 = arith.constant 0 : index
    %c0_55 = arith.constant 0 : index
    %58 = vector.load %arg3[%c8, %c0_54, %c0_55] : memref<9x24x64xbf16, #tpu.memory_space<vmem>>, vector<1x24x64xbf16>
    %59 = vector.shape_cast %58 : vector<1x24x64xbf16> to vector<24x64xbf16>
    %cst_56 = arith.constant dense<0.000000e+00> : vector<104x64xf32>
    %60 = tpu.matmul %57, %59, %cst_56 {dimension_numbers = #tpu.dot_dimension_numbers<[1], [0], [0], [1], [0, 0, 1, 1], [], []>} : vector<104x24xbf16>, vector<24x64xbf16>, vector<104x64xf32> -> vector<104x64xf32>
    %61 = arith.addf %55, %60 : vector<104x64xf32>
    %62 = vector.broadcast %0 : vector<104x1xf32> to vector<104x64xf32>
    %63 = arith.mulf %61, %62 : vector<104x64xf32>
    %c16_57 = arith.constant 16 : index
    %c0_58 = arith.constant 0 : index
    %64 = vector.load %arg14[%c16_57, %c0_58] : memref<136x64xf32, #tpu.memory_space<vmem>>, vector<104x64xf32>
    tpu.vector_store %arg14[%c16_57, %c0_58], %63 {strides = array<i32>} : memref<136x64xf32, #tpu.memory_space<vmem>>, vector<104x64xf32>,
    %65 = arith.truncf %63 : vector<104x64xf32> to vector<104x64xbf16>
    %c16_59 = arith.constant 16 : index
    %c0_60 = arith.constant 0 : index
    %66 = vector.load %arg15[%c16_59, %c0_60] : memref<136x64xbf16, #tpu.memory_space<vmem>>, vector<104x64xbf16>
    tpu.vector_store %arg15[%c16_59, %c0_60], %65 {strides = array<i32>} : memref<136x64xbf16, #tpu.memory_space<vmem>>, vector<104x64xbf16>,
    %c0_i32 = arith.constant 0 : i32
    %c20_i32 = arith.constant 20 : i32
    %67 = arith.addi %c0_i32, %c20_i32 : i32
    %c1_i32 = arith.constant 1 : i32
    scf.for %arg16 = %c0_i32 to %67 step %c1_i32  : i32 {
      %c3_i32 = arith.constant 3 : i32
      %122 = arith.muli %c3_i32, %arg16 : i32
      %c0_i32_124 = arith.constant 0 : i32
      %123 = arith.addi %122, %c0_i32_124 : i32
      %124 = arith.index_cast %123 : i32 to index
      %125 = memref.load %arg1[%124] : memref<60xf32, #tpu.memory_space<smem>>
      %c3_i32_125 = arith.constant 3 : i32
      %126 = arith.muli %c3_i32_125, %arg16 : i32
      %c1_i32_126 = arith.constant 1 : i32
      %127 = arith.addi %126, %c1_i32_126 : i32
      %128 = arith.index_cast %127 : i32 to index
      %129 = memref.load %arg1[%128] : memref<60xf32, #tpu.memory_space<smem>>
      %c3_i32_127 = arith.constant 3 : i32
      %130 = arith.muli %c3_i32_127, %arg16 : i32
      %c2_i32 = arith.constant 2 : i32
      %131 = arith.addi %130, %c2_i32 : i32
      %132 = arith.index_cast %131 : i32 to index
      %133 = memref.load %arg1[%132] : memref<60xf32, #tpu.memory_space<smem>>
      %134 = arith.index_cast %arg16 : i32 to index
      %c0_128 = arith.constant 0 : index
      %c0_129 = arith.constant 0 : index
      %135 = vector.load %arg6[%134, %c0_128, %c0_129] : memref<20x1x64xf32, #tpu.memory_space<vmem>>, vector<1x1x64xf32>
      %136 = vector.shape_cast %135 : vector<1x1x64xf32> to vector<1x64xf32>
      %137 = vector.shape_cast %136 : vector<1x64xf32> to vector<1x64xf32>
      %138 = vector.broadcast %137 : vector<1x64xf32> to vector<104x64xf32>
      %c5_130 = arith.constant 5 : index
      %c0_131 = arith.constant 0 : index
      %139 = vector.load %arg15[%c5_130, %c0_131] : memref<136x64xbf16, #tpu.memory_space<vmem>>, vector<104x64xbf16>
      %c9_i32 = arith.constant 9 : i32
      %140 = arith.muli %c9_i32, %arg16 : i32
      %c0_i32_132 = arith.constant 0 : i32
      %141 = arith.addi %140, %c0_i32_132 : i32
      %142 = arith.index_cast %141 : i32 to index
      %c0_133 = arith.constant 0 : index
      %c0_134 = arith.constant 0 : index
      %143 = vector.load %arg5[%142, %c0_133, %c0_134] : memref<180x64x64xbf16, #tpu.memory_space<vmem>>, vector<1x64x64xbf16>
      %144 = vector.shape_cast %143 : vector<1x64x64xbf16> to vector<64x64xbf16>
      %cst_135 = arith.constant dense<0.000000e+00> : vector<104x64xf32>
      %145 = tpu.matmul %139, %144, %cst_135 {dimension_numbers = #tpu.dot_dimension_numbers<[1], [0], [0], [1], [0, 0, 1, 1], [], []>} : vector<104x64xbf16>, vector<64x64xbf16>, vector<104x64xf32> -> vector<104x64xf32>
      %146 = arith.addf %138, %145 : vector<104x64xf32>
      %c6_136 = arith.constant 6 : index
      %c0_137 = arith.constant 0 : index
      %147 = vector.load %arg15[%c6_136, %c0_137] : memref<136x64xbf16, #tpu.memory_space<vmem>>, vector<104x64xbf16>
      %c9_i32_138 = arith.constant 9 : i32
      %148 = arith.muli %c9_i32_138, %arg16 : i32
      %c1_i32_139 = arith.constant 1 : i32
      %149 = arith.addi %148, %c1_i32_139 : i32
      %150 = arith.index_cast %149 : i32 to index
      %c0_140 = arith.constant 0 : index
      %c0_141 = arith.constant 0 : index
      %151 = vector.load %arg5[%150, %c0_140, %c0_141] : memref<180x64x64xbf16, #tpu.memory_space<vmem>>, vector<1x64x64xbf16>
      %152 = vector.shape_cast %151 : vector<1x64x64xbf16> to vector<64x64xbf16>
      %cst_142 = arith.constant dense<0.000000e+00> : vector<104x64xf32>
      %153 = tpu.matmul %147, %152, %cst_142 {dimension_numbers = #tpu.dot_dimension_numbers<[1], [0], [0], [1], [0, 0, 1, 1], [], []>} : vector<104x64xbf16>, vector<64x64xbf16>, vector<104x64xf32> -> vector<104x64xf32>
      %154 = arith.addf %146, %153 : vector<104x64xf32>
      %c7_143 = arith.constant 7 : index
      %c0_144 = arith.constant 0 : index
      %155 = vector.load %arg15[%c7_143, %c0_144] : memref<136x64xbf16, #tpu.memory_space<vmem>>, vector<104x64xbf16>
      %c9_i32_145 = arith.constant 9 : i32
      %156 = arith.muli %c9_i32_145, %arg16 : i32
      %c2_i32_146 = arith.constant 2 : i32
      %157 = arith.addi %156, %c2_i32_146 : i32
      %158 = arith.index_cast %157 : i32 to index
      %c0_147 = arith.constant 0 : index
      %c0_148 = arith.constant 0 : index
      %159 = vector.load %arg5[%158, %c0_147, %c0_148] : memref<180x64x64xbf16, #tpu.memory_space<vmem>>, vector<1x64x64xbf16>
      %160 = vector.shape_cast %159 : vector<1x64x64xbf16> to vector<64x64xbf16>
      %cst_149 = arith.constant dense<0.000000e+00> : vector<104x64xf32>
      %161 = tpu.matmul %155, %160, %cst_149 {dimension_numbers = #tpu.dot_dimension_numbers<[1], [0], [0], [1], [0, 0, 1, 1], [], []>} : vector<104x64xbf16>, vector<64x64xbf16>, vector<104x64xf32> -> vector<104x64xf32>
      %162 = arith.addf %154, %161 : vector<104x64xf32>
      %c15_150 = arith.constant 15 : index
      %c0_151 = arith.constant 0 : index
      %163 = vector.load %arg15[%c15_150, %c0_151] : memref<136x64xbf16, #tpu.memory_space<vmem>>, vector<104x64xbf16>
      %c9_i32_152 = arith.constant 9 : i32
      %164 = arith.muli %c9_i32_152, %arg16 : i32
      %c3_i32_153 = arith.constant 3 : i32
      %165 = arith.addi %164, %c3_i32_153 : i32
      %166 = arith.index_cast %165 : i32 to index
      %c0_154 = arith.constant 0 : index
      %c0_155 = arith.constant 0 : index
      %167 = vector.load %arg5[%166, %c0_154, %c0_155] : memref<180x64x64xbf16, #tpu.memory_space<vmem>>, vector<1x64x64xbf16>
      %168 = vector.shape_cast %167 : vector<1x64x64xbf16> to vector<64x64xbf16>
      %cst_156 = arith.constant dense<0.000000e+00> : vector<104x64xf32>
      %169 = tpu.matmul %163, %168, %cst_156 {dimension_numbers = #tpu.dot_dimension_numbers<[1], [0], [0], [1], [0, 0, 1, 1], [], []>} : vector<104x64xbf16>, vector<64x64xbf16>, vector<104x64xf32> -> vector<104x64xf32>
      %170 = arith.addf %162, %169 : vector<104x64xf32>
      %c16_157 = arith.constant 16 : index
      %c0_158 = arith.constant 0 : index
      %171 = vector.load %arg15[%c16_157, %c0_158] : memref<136x64xbf16, #tpu.memory_space<vmem>>, vector<104x64xbf16>
      %c9_i32_159 = arith.constant 9 : i32
      %172 = arith.muli %c9_i32_159, %arg16 : i32
      %c4_i32 = arith.constant 4 : i32
      %173 = arith.addi %172, %c4_i32 : i32
      %174 = arith.index_cast %173 : i32 to index
      %c0_160 = arith.constant 0 : index
      %c0_161 = arith.constant 0 : index
      %175 = vector.load %arg5[%174, %c0_160, %c0_161] : memref<180x64x64xbf16, #tpu.memory_space<vmem>>, vector<1x64x64xbf16>
      %176 = vector.shape_cast %175 : vector<1x64x64xbf16> to vector<64x64xbf16>
      %cst_162 = arith.constant dense<0.000000e+00> : vector<104x64xf32>
      %177 = tpu.matmul %171, %176, %cst_162 {dimension_numbers = #tpu.dot_dimension_numbers<[1], [0], [0], [1], [0, 0, 1, 1], [], []>} : vector<104x64xbf16>, vector<64x64xbf16>, vector<104x64xf32> -> vector<104x64xf32>
      %178 = arith.addf %170, %177 : vector<104x64xf32>
      %c17_163 = arith.constant 17 : index
      %c0_164 = arith.constant 0 : index
      %179 = vector.load %arg15[%c17_163, %c0_164] : memref<136x64xbf16, #tpu.memory_space<vmem>>, vector<104x64xbf16>
      %c9_i32_165 = arith.constant 9 : i32
      %180 = arith.muli %c9_i32_165, %arg16 : i32
      %c5_i32 = arith.constant 5 : i32
      %181 = arith.addi %180, %c5_i32 : i32
      %182 = arith.index_cast %181 : i32 to index
      %c0_166 = arith.constant 0 : index
      %c0_167 = arith.constant 0 : index
      %183 = vector.load %arg5[%182, %c0_166, %c0_167] : memref<180x64x64xbf16, #tpu.memory_space<vmem>>, vector<1x64x64xbf16>
      %184 = vector.shape_cast %183 : vector<1x64x64xbf16> to vector<64x64xbf16>
      %cst_168 = arith.constant dense<0.000000e+00> : vector<104x64xf32>
      %185 = tpu.matmul %179, %184, %cst_168 {dimension_numbers = #tpu.dot_dimension_numbers<[1], [0], [0], [1], [0, 0, 1, 1], [], []>} : vector<104x64xbf16>, vector<64x64xbf16>, vector<104x64xf32> -> vector<104x64xf32>
      %186 = arith.addf %178, %185 : vector<104x64xf32>
      %c25_169 = arith.constant 25 : index
      %c0_170 = arith.constant 0 : index
      %187 = vector.load %arg15[%c25_169, %c0_170] : memref<136x64xbf16, #tpu.memory_space<vmem>>, vector<104x64xbf16>
      %c9_i32_171 = arith.constant 9 : i32
      %188 = arith.muli %c9_i32_171, %arg16 : i32
      %c6_i32 = arith.constant 6 : i32
      %189 = arith.addi %188, %c6_i32 : i32
      %190 = arith.index_cast %189 : i32 to index
      %c0_172 = arith.constant 0 : index
      %c0_173 = arith.constant 0 : index
      %191 = vector.load %arg5[%190, %c0_172, %c0_173] : memref<180x64x64xbf16, #tpu.memory_space<vmem>>, vector<1x64x64xbf16>
      %192 = vector.shape_cast %191 : vector<1x64x64xbf16> to vector<64x64xbf16>
      %cst_174 = arith.constant dense<0.000000e+00> : vector<104x64xf32>
      %193 = tpu.matmul %187, %192, %cst_174 {dimension_numbers = #tpu.dot_dimension_numbers<[1], [0], [0], [1], [0, 0, 1, 1], [], []>} : vector<104x64xbf16>, vector<64x64xbf16>, vector<104x64xf32> -> vector<104x64xf32>
      %194 = arith.addf %186, %193 : vector<104x64xf32>
      %c26_175 = arith.constant 26 : index
      %c0_176 = arith.constant 0 : index
      %195 = vector.load %arg15[%c26_175, %c0_176] : memref<136x64xbf16, #tpu.memory_space<vmem>>, vector<104x64xbf16>
      %c9_i32_177 = arith.constant 9 : i32
      %196 = arith.muli %c9_i32_177, %arg16 : i32
      %c7_i32 = arith.constant 7 : i32
      %197 = arith.addi %196, %c7_i32 : i32
      %198 = arith.index_cast %197 : i32 to index
      %c0_178 = arith.constant 0 : index
      %c0_179 = arith.constant 0 : index
      %199 = vector.load %arg5[%198, %c0_178, %c0_179] : memref<180x64x64xbf16, #tpu.memory_space<vmem>>, vector<1x64x64xbf16>
      %200 = vector.shape_cast %199 : vector<1x64x64xbf16> to vector<64x64xbf16>
      %cst_180 = arith.constant dense<0.000000e+00> : vector<104x64xf32>
      %201 = tpu.matmul %195, %200, %cst_180 {dimension_numbers = #tpu.dot_dimension_numbers<[1], [0], [0], [1], [0, 0, 1, 1], [], []>} : vector<104x64xbf16>, vector<64x64xbf16>, vector<104x64xf32> -> vector<104x64xf32>
      %202 = arith.addf %194, %201 : vector<104x64xf32>
      %c27_181 = arith.constant 27 : index
      %c0_182 = arith.constant 0 : index
      %203 = vector.load %arg15[%c27_181, %c0_182] : memref<136x64xbf16, #tpu.memory_space<vmem>>, vector<104x64xbf16>
      %c9_i32_183 = arith.constant 9 : i32
      %204 = arith.muli %c9_i32_183, %arg16 : i32
      %c8_i32 = arith.constant 8 : i32
      %205 = arith.addi %204, %c8_i32 : i32
      %206 = arith.index_cast %205 : i32 to index
      %c0_184 = arith.constant 0 : index
      %c0_185 = arith.constant 0 : index
      %207 = vector.load %arg5[%206, %c0_184, %c0_185] : memref<180x64x64xbf16, #tpu.memory_space<vmem>>, vector<1x64x64xbf16>
      %208 = vector.shape_cast %207 : vector<1x64x64xbf16> to vector<64x64xbf16>
      %cst_186 = arith.constant dense<0.000000e+00> : vector<104x64xf32>
      %209 = tpu.matmul %203, %208, %cst_186 {dimension_numbers = #tpu.dot_dimension_numbers<[1], [0], [0], [1], [0, 0, 1, 1], [], []>} : vector<104x64xbf16>, vector<64x64xbf16>, vector<104x64xf32> -> vector<104x64xf32>
      %210 = arith.addf %202, %209 : vector<104x64xf32>
      %cst_187 = arith.constant 0.000000e+00 : f32
      %211 = vector.broadcast %cst_187 : f32 to vector<104x64xf32>
      %212 = arith.cmpf oge, %210, %211 : vector<104x64xf32>
      %213 = vector.broadcast %125 : f32 to vector<104x64xf32>
      %214 = arith.mulf %213, %210 : vector<104x64xf32>
      %215 = arith.select %212, %210, %214 : vector<104x64xi1>, vector<104x64xf32>
      %216 = vector.broadcast %0 : vector<104x1xf32> to vector<104x64xf32>
      %217 = arith.mulf %215, %216 : vector<104x64xf32>
      %218 = arith.truncf %217 : vector<104x64xf32> to vector<104x64xbf16>
      %c16_188 = arith.constant 16 : index
      %c0_189 = arith.constant 0 : index
      %219 = vector.load %arg15[%c16_188, %c0_189] : memref<136x64xbf16, #tpu.memory_space<vmem>>, vector<104x64xbf16>
      tpu.vector_store %arg15[%c16_188, %c0_189], %218 {strides = array<i32>} : memref<136x64xbf16, #tpu.memory_space<vmem>>, vector<104x64xbf16>,
      %220 = arith.index_cast %arg16 : i32 to index
      %c0_190 = arith.constant 0 : index
      %c0_191 = arith.constant 0 : index
      %221 = vector.load %arg8[%220, %c0_190, %c0_191] : memref<20x1x64xf32, #tpu.memory_space<vmem>>, vector<1x1x64xf32>
      %222 = vector.shape_cast %221 : vector<1x1x64xf32> to vector<1x64xf32>
      %223 = vector.shape_cast %222 : vector<1x64xf32> to vector<1x64xf32>
      %224 = vector.broadcast %223 : vector<1x64xf32> to vector<104x64xf32>
      %c5_192 = arith.constant 5 : index
      %c0_193 = arith.constant 0 : index
      %225 = vector.load %arg15[%c5_192, %c0_193] : memref<136x64xbf16, #tpu.memory_space<vmem>>, vector<104x64xbf16>
      %c9_i32_194 = arith.constant 9 : i32
      %226 = arith.muli %c9_i32_194, %arg16 : i32
      %c0_i32_195 = arith.constant 0 : i32
      %227 = arith.addi %226, %c0_i32_195 : i32
      %228 = arith.index_cast %227 : i32 to index
      %c0_196 = arith.constant 0 : index
      %c0_197 = arith.constant 0 : index
      %229 = vector.load %arg7[%228, %c0_196, %c0_197] : memref<180x64x64xbf16, #tpu.memory_space<vmem>>, vector<1x64x64xbf16>
      %230 = vector.shape_cast %229 : vector<1x64x64xbf16> to vector<64x64xbf16>
      %cst_198 = arith.constant dense<0.000000e+00> : vector<104x64xf32>
      %231 = tpu.matmul %225, %230, %cst_198 {dimension_numbers = #tpu.dot_dimension_numbers<[1], [0], [0], [1], [0, 0, 1, 1], [], []>} : vector<104x64xbf16>, vector<64x64xbf16>, vector<104x64xf32> -> vector<104x64xf32>
      %232 = arith.addf %224, %231 : vector<104x64xf32>
      %c6_199 = arith.constant 6 : index
      %c0_200 = arith.constant 0 : index
      %233 = vector.load %arg15[%c6_199, %c0_200] : memref<136x64xbf16, #tpu.memory_space<vmem>>, vector<104x64xbf16>
      %c9_i32_201 = arith.constant 9 : i32
      %234 = arith.muli %c9_i32_201, %arg16 : i32
      %c1_i32_202 = arith.constant 1 : i32
      %235 = arith.addi %234, %c1_i32_202 : i32
      %236 = arith.index_cast %235 : i32 to index
      %c0_203 = arith.constant 0 : index
      %c0_204 = arith.constant 0 : index
      %237 = vector.load %arg7[%236, %c0_203, %c0_204] : memref<180x64x64xbf16, #tpu.memory_space<vmem>>, vector<1x64x64xbf16>
      %238 = vector.shape_cast %237 : vector<1x64x64xbf16> to vector<64x64xbf16>
      %cst_205 = arith.constant dense<0.000000e+00> : vector<104x64xf32>
      %239 = tpu.matmul %233, %238, %cst_205 {dimension_numbers = #tpu.dot_dimension_numbers<[1], [0], [0], [1], [0, 0, 1, 1], [], []>} : vector<104x64xbf16>, vector<64x64xbf16>, vector<104x64xf32> -> vector<104x64xf32>
      %240 = arith.addf %232, %239 : vector<104x64xf32>
      %c7_206 = arith.constant 7 : index
      %c0_207 = arith.constant 0 : index
      %241 = vector.load %arg15[%c7_206, %c0_207] : memref<136x64xbf16, #tpu.memory_space<vmem>>, vector<104x64xbf16>
      %c9_i32_208 = arith.constant 9 : i32
      %242 = arith.muli %c9_i32_208, %arg16 : i32
      %c2_i32_209 = arith.constant 2 : i32
      %243 = arith.addi %242, %c2_i32_209 : i32
      %244 = arith.index_cast %243 : i32 to index
      %c0_210 = arith.constant 0 : index
      %c0_211 = arith.constant 0 : index
      %245 = vector.load %arg7[%244, %c0_210, %c0_211] : memref<180x64x64xbf16, #tpu.memory_space<vmem>>, vector<1x64x64xbf16>
      %246 = vector.shape_cast %245 : vector<1x64x64xbf16> to vector<64x64xbf16>
      %cst_212 = arith.constant dense<0.000000e+00> : vector<104x64xf32>
      %247 = tpu.matmul %241, %246, %cst_212 {dimension_numbers = #tpu.dot_dimension_numbers<[1], [0], [0], [1], [0, 0, 1, 1], [], []>} : vector<104x64xbf16>, vector<64x64xbf16>, vector<104x64xf32> -> vector<104x64xf32>
      %248 = arith.addf %240, %247 : vector<104x64xf32>
      %c15_213 = arith.constant 15 : index
      %c0_214 = arith.constant 0 : index
      %249 = vector.load %arg15[%c15_213, %c0_214] : memref<136x64xbf16, #tpu.memory_space<vmem>>, vector<104x64xbf16>
      %c9_i32_215 = arith.constant 9 : i32
      %250 = arith.muli %c9_i32_215, %arg16 : i32
      %c3_i32_216 = arith.constant 3 : i32
      %251 = arith.addi %250, %c3_i32_216 : i32
      %252 = arith.index_cast %251 : i32 to index
      %c0_217 = arith.constant 0 : index
      %c0_218 = arith.constant 0 : index
      %253 = vector.load %arg7[%252, %c0_217, %c0_218] : memref<180x64x64xbf16, #tpu.memory_space<vmem>>, vector<1x64x64xbf16>
      %254 = vector.shape_cast %253 : vector<1x64x64xbf16> to vector<64x64xbf16>
      %cst_219 = arith.constant dense<0.000000e+00> : vector<104x64xf32>
      %255 = tpu.matmul %249, %254, %cst_219 {dimension_numbers = #tpu.dot_dimension_numbers<[1], [0], [0], [1], [0, 0, 1, 1], [], []>} : vector<104x64xbf16>, vector<64x64xbf16>, vector<104x64xf32> -> vector<104x64xf32>
      %256 = arith.addf %248, %255 : vector<104x64xf32>
      %c16_220 = arith.constant 16 : index
      %c0_221 = arith.constant 0 : index
      %257 = vector.load %arg15[%c16_220, %c0_221] : memref<136x64xbf16, #tpu.memory_space<vmem>>, vector<104x64xbf16>
      %c9_i32_222 = arith.constant 9 : i32
      %258 = arith.muli %c9_i32_222, %arg16 : i32
      %c4_i32_223 = arith.constant 4 : i32
      %259 = arith.addi %258, %c4_i32_223 : i32
      %260 = arith.index_cast %259 : i32 to index
      %c0_224 = arith.constant 0 : index
      %c0_225 = arith.constant 0 : index
      %261 = vector.load %arg7[%260, %c0_224, %c0_225] : memref<180x64x64xbf16, #tpu.memory_space<vmem>>, vector<1x64x64xbf16>
      %262 = vector.shape_cast %261 : vector<1x64x64xbf16> to vector<64x64xbf16>
      %cst_226 = arith.constant dense<0.000000e+00> : vector<104x64xf32>
      %263 = tpu.matmul %257, %262, %cst_226 {dimension_numbers = #tpu.dot_dimension_numbers<[1], [0], [0], [1], [0, 0, 1, 1], [], []>} : vector<104x64xbf16>, vector<64x64xbf16>, vector<104x64xf32> -> vector<104x64xf32>
      %264 = arith.addf %256, %263 : vector<104x64xf32>
      %c17_227 = arith.constant 17 : index
      %c0_228 = arith.constant 0 : index
      %265 = vector.load %arg15[%c17_227, %c0_228] : memref<136x64xbf16, #tpu.memory_space<vmem>>, vector<104x64xbf16>
      %c9_i32_229 = arith.constant 9 : i32
      %266 = arith.muli %c9_i32_229, %arg16 : i32
      %c5_i32_230 = arith.constant 5 : i32
      %267 = arith.addi %266, %c5_i32_230 : i32
      %268 = arith.index_cast %267 : i32 to index
      %c0_231 = arith.constant 0 : index
      %c0_232 = arith.constant 0 : index
      %269 = vector.load %arg7[%268, %c0_231, %c0_232] : memref<180x64x64xbf16, #tpu.memory_space<vmem>>, vector<1x64x64xbf16>
      %270 = vector.shape_cast %269 : vector<1x64x64xbf16> to vector<64x64xbf16>
      %cst_233 = arith.constant dense<0.000000e+00> : vector<104x64xf32>
      %271 = tpu.matmul %265, %270, %cst_233 {dimension_numbers = #tpu.dot_dimension_numbers<[1], [0], [0], [1], [0, 0, 1, 1], [], []>} : vector<104x64xbf16>, vector<64x64xbf16>, vector<104x64xf32> -> vector<104x64xf32>
      %272 = arith.addf %264, %271 : vector<104x64xf32>
      %c25_234 = arith.constant 25 : index
      %c0_235 = arith.constant 0 : index
      %273 = vector.load %arg15[%c25_234, %c0_235] : memref<136x64xbf16, #tpu.memory_space<vmem>>, vector<104x64xbf16>
      %c9_i32_236 = arith.constant 9 : i32
      %274 = arith.muli %c9_i32_236, %arg16 : i32
      %c6_i32_237 = arith.constant 6 : i32
      %275 = arith.addi %274, %c6_i32_237 : i32
      %276 = arith.index_cast %275 : i32 to index
      %c0_238 = arith.constant 0 : index
      %c0_239 = arith.constant 0 : index
      %277 = vector.load %arg7[%276, %c0_238, %c0_239] : memref<180x64x64xbf16, #tpu.memory_space<vmem>>, vector<1x64x64xbf16>
      %278 = vector.shape_cast %277 : vector<1x64x64xbf16> to vector<64x64xbf16>
      %cst_240 = arith.constant dense<0.000000e+00> : vector<104x64xf32>
      %279 = tpu.matmul %273, %278, %cst_240 {dimension_numbers = #tpu.dot_dimension_numbers<[1], [0], [0], [1], [0, 0, 1, 1], [], []>} : vector<104x64xbf16>, vector<64x64xbf16>, vector<104x64xf32> -> vector<104x64xf32>
      %280 = arith.addf %272, %279 : vector<104x64xf32>
      %c26_241 = arith.constant 26 : index
      %c0_242 = arith.constant 0 : index
      %281 = vector.load %arg15[%c26_241, %c0_242] : memref<136x64xbf16, #tpu.memory_space<vmem>>, vector<104x64xbf16>
      %c9_i32_243 = arith.constant 9 : i32
      %282 = arith.muli %c9_i32_243, %arg16 : i32
      %c7_i32_244 = arith.constant 7 : i32
      %283 = arith.addi %282, %c7_i32_244 : i32
      %284 = arith.index_cast %283 : i32 to index
      %c0_245 = arith.constant 0 : index
      %c0_246 = arith.constant 0 : index
      %285 = vector.load %arg7[%284, %c0_245, %c0_246] : memref<180x64x64xbf16, #tpu.memory_space<vmem>>, vector<1x64x64xbf16>
      %286 = vector.shape_cast %285 : vector<1x64x64xbf16> to vector<64x64xbf16>
      %cst_247 = arith.constant dense<0.000000e+00> : vector<104x64xf32>
      %287 = tpu.matmul %281, %286, %cst_247 {dimension_numbers = #tpu.dot_dimension_numbers<[1], [0], [0], [1], [0, 0, 1, 1], [], []>} : vector<104x64xbf16>, vector<64x64xbf16>, vector<104x64xf32> -> vector<104x64xf32>
      %288 = arith.addf %280, %287 : vector<104x64xf32>
      %c27_248 = arith.constant 27 : index
      %c0_249 = arith.constant 0 : index
      %289 = vector.load %arg15[%c27_248, %c0_249] : memref<136x64xbf16, #tpu.memory_space<vmem>>, vector<104x64xbf16>
      %c9_i32_250 = arith.constant 9 : i32
      %290 = arith.muli %c9_i32_250, %arg16 : i32
      %c8_i32_251 = arith.constant 8 : i32
      %291 = arith.addi %290, %c8_i32_251 : i32
      %292 = arith.index_cast %291 : i32 to index
      %c0_252 = arith.constant 0 : index
      %c0_253 = arith.constant 0 : index
      %293 = vector.load %arg7[%292, %c0_252, %c0_253] : memref<180x64x64xbf16, #tpu.memory_space<vmem>>, vector<1x64x64xbf16>
      %294 = vector.shape_cast %293 : vector<1x64x64xbf16> to vector<64x64xbf16>
      %cst_254 = arith.constant dense<0.000000e+00> : vector<104x64xf32>
      %295 = tpu.matmul %289, %294, %cst_254 {dimension_numbers = #tpu.dot_dimension_numbers<[1], [0], [0], [1], [0, 0, 1, 1], [], []>} : vector<104x64xbf16>, vector<64x64xbf16>, vector<104x64xf32> -> vector<104x64xf32>
      %296 = arith.addf %288, %295 : vector<104x64xf32>
      %cst_255 = arith.constant 0.000000e+00 : f32
      %297 = vector.broadcast %cst_255 : f32 to vector<104x64xf32>
      %298 = arith.cmpf oge, %296, %297 : vector<104x64xf32>
      %299 = vector.broadcast %129 : f32 to vector<104x64xf32>
      %300 = arith.mulf %299, %296 : vector<104x64xf32>
      %301 = arith.select %298, %296, %300 : vector<104x64xi1>, vector<104x64xf32>
      %cst_256 = arith.constant 0.000000e+00 : f32
      %302 = vector.broadcast %cst_256 : f32 to vector<104x64xf32>
      %303 = arith.cmpf oge, %301, %302 : vector<104x64xf32>
      %304 = vector.broadcast %133 : f32 to vector<104x64xf32>
      %305 = arith.mulf %304, %301 : vector<104x64xf32>
      %306 = arith.select %303, %301, %305 : vector<104x64xi1>, vector<104x64xf32>
      %c16_257 = arith.constant 16 : index
      %c0_258 = arith.constant 0 : index
      %307 = vector.load %arg14[%c16_257, %c0_258] : memref<136x64xf32, #tpu.memory_space<vmem>>, vector<104x64xf32>
      %308 = arith.addf %306, %307 : vector<104x64xf32>
      %309 = vector.broadcast %0 : vector<104x1xf32> to vector<104x64xf32>
      %310 = arith.mulf %308, %309 : vector<104x64xf32>
      %c16_259 = arith.constant 16 : index
      %c0_260 = arith.constant 0 : index
      %311 = vector.load %arg14[%c16_259, %c0_260] : memref<136x64xf32, #tpu.memory_space<vmem>>, vector<104x64xf32>
      tpu.vector_store %arg14[%c16_259, %c0_260], %310 {strides = array<i32>} : memref<136x64xf32, #tpu.memory_space<vmem>>, vector<104x64xf32>,
      %312 = arith.truncf %310 : vector<104x64xf32> to vector<104x64xbf16>
      %c16_261 = arith.constant 16 : index
      %c0_262 = arith.constant 0 : index
      %313 = vector.load %arg15[%c16_261, %c0_262] : memref<136x64xbf16, #tpu.memory_space<vmem>>, vector<104x64xbf16>
      tpu.vector_store %arg15[%c16_261, %c0_262], %312 {strides = array<i32>} : memref<136x64xbf16, #tpu.memory_space<vmem>>, vector<104x64xbf16>,
    }
    %c20_i32_61 = arith.constant 20 : i32
    %c0_62 = arith.constant 0 : index
    %c0_63 = arith.constant 0 : index
    %68 = vector.load %arg10[%c0_62, %c0_63] : memref<1x128xf32, #tpu.memory_space<vmem>>, vector<1x128xf32>
    %69 = vector.shape_cast %68 : vector<1x128xf32> to vector<1x128xf32>
    %70 = vector.broadcast %69 : vector<1x128xf32> to vector<104x128xf32>
    %c5_64 = arith.constant 5 : index
    %c0_65 = arith.constant 0 : index
    %71 = vector.load %arg15[%c5_64, %c0_65] : memref<136x64xbf16, #tpu.memory_space<vmem>>, vector<104x64xbf16>
    %c0_66 = arith.constant 0 : index
    %c0_67 = arith.constant 0 : index
    %c0_68 = arith.constant 0 : index
    %72 = vector.load %arg9[%c0_66, %c0_67, %c0_68] : memref<9x64x128xbf16, #tpu.memory_space<vmem>>, vector<1x64x128xbf16>
    %73 = vector.shape_cast %72 : vector<1x64x128xbf16> to vector<64x128xbf16>
    %cst_69 = arith.constant dense<0.000000e+00> : vector<104x128xf32>
    %74 = tpu.matmul %71, %73, %cst_69 {dimension_numbers = #tpu.dot_dimension_numbers<[1], [0], [0], [1], [0, 0, 1, 1], [], []>} : vector<104x64xbf16>, vector<64x128xbf16>, vector<104x128xf32> -> vector<104x128xf32>
    %75 = arith.addf %70, %74 : vector<104x128xf32>
    %c6_70 = arith.constant 6 : index
    %c0_71 = arith.constant 0 : index
    %76 = vector.load %arg15[%c6_70, %c0_71] : memref<136x64xbf16, #tpu.memory_space<vmem>>, vector<104x64xbf16>
    %c1_72 = arith.constant 1 : index
    %c0_73 = arith.constant 0 : index
    %c0_74 = arith.constant 0 : index
    %77 = vector.load %arg9[%c1_72, %c0_73, %c0_74] : memref<9x64x128xbf16, #tpu.memory_space<vmem>>, vector<1x64x128xbf16>
    %78 = vector.shape_cast %77 : vector<1x64x128xbf16> to vector<64x128xbf16>
    %cst_75 = arith.constant dense<0.000000e+00> : vector<104x128xf32>
    %79 = tpu.matmul %76, %78, %cst_75 {dimension_numbers = #tpu.dot_dimension_numbers<[1], [0], [0], [1], [0, 0, 1, 1], [], []>} : vector<104x64xbf16>, vector<64x128xbf16>, vector<104x128xf32> -> vector<104x128xf32>
    %80 = arith.addf %75, %79 : vector<104x128xf32>
    %c7_76 = arith.constant 7 : index
    %c0_77 = arith.constant 0 : index
    %81 = vector.load %arg15[%c7_76, %c0_77] : memref<136x64xbf16, #tpu.memory_space<vmem>>, vector<104x64xbf16>
    %c2_78 = arith.constant 2 : index
    %c0_79 = arith.constant 0 : index
    %c0_80 = arith.constant 0 : index
    %82 = vector.load %arg9[%c2_78, %c0_79, %c0_80] : memref<9x64x128xbf16, #tpu.memory_space<vmem>>, vector<1x64x128xbf16>
    %83 = vector.shape_cast %82 : vector<1x64x128xbf16> to vector<64x128xbf16>
    %cst_81 = arith.constant dense<0.000000e+00> : vector<104x128xf32>
    %84 = tpu.matmul %81, %83, %cst_81 {dimension_numbers = #tpu.dot_dimension_numbers<[1], [0], [0], [1], [0, 0, 1, 1], [], []>} : vector<104x64xbf16>, vector<64x128xbf16>, vector<104x128xf32> -> vector<104x128xf32>
    %85 = arith.addf %80, %84 : vector<104x128xf32>
    %c15_82 = arith.constant 15 : index
    %c0_83 = arith.constant 0 : index
    %86 = vector.load %arg15[%c15_82, %c0_83] : memref<136x64xbf16, #tpu.memory_space<vmem>>, vector<104x64xbf16>
    %c3_84 = arith.constant 3 : index
    %c0_85 = arith.constant 0 : index
    %c0_86 = arith.constant 0 : index
    %87 = vector.load %arg9[%c3_84, %c0_85, %c0_86] : memref<9x64x128xbf16, #tpu.memory_space<vmem>>, vector<1x64x128xbf16>
    %88 = vector.shape_cast %87 : vector<1x64x128xbf16> to vector<64x128xbf16>
    %cst_87 = arith.constant dense<0.000000e+00> : vector<104x128xf32>
    %89 = tpu.matmul %86, %88, %cst_87 {dimension_numbers = #tpu.dot_dimension_numbers<[1], [0], [0], [1], [0, 0, 1, 1], [], []>} : vector<104x64xbf16>, vector<64x128xbf16>, vector<104x128xf32> -> vector<104x128xf32>
    %90 = arith.addf %85, %89 : vector<104x128xf32>
    %c16_88 = arith.constant 16 : index
    %c0_89 = arith.constant 0 : index
    %91 = vector.load %arg15[%c16_88, %c0_89] : memref<136x64xbf16, #tpu.memory_space<vmem>>, vector<104x64xbf16>
    %c4_90 = arith.constant 4 : index
    %c0_91 = arith.constant 0 : index
    %c0_92 = arith.constant 0 : index
    %92 = vector.load %arg9[%c4_90, %c0_91, %c0_92] : memref<9x64x128xbf16, #tpu.memory_space<vmem>>, vector<1x64x128xbf16>
    %93 = vector.shape_cast %92 : vector<1x64x128xbf16> to vector<64x128xbf16>
    %cst_93 = arith.constant dense<0.000000e+00> : vector<104x128xf32>
    %94 = tpu.matmul %91, %93, %cst_93 {dimension_numbers = #tpu.dot_dimension_numbers<[1], [0], [0], [1], [0, 0, 1, 1], [], []>} : vector<104x64xbf16>, vector<64x128xbf16>, vector<104x128xf32> -> vector<104x128xf32>
    %95 = arith.addf %90, %94 : vector<104x128xf32>
    %c17_94 = arith.constant 17 : index
    %c0_95 = arith.constant 0 : index
    %96 = vector.load %arg15[%c17_94, %c0_95] : memref<136x64xbf16, #tpu.memory_space<vmem>>, vector<104x64xbf16>
    %c5_96 = arith.constant 5 : index
    %c0_97 = arith.constant 0 : index
    %c0_98 = arith.constant 0 : index
    %97 = vector.load %arg9[%c5_96, %c0_97, %c0_98] : memref<9x64x128xbf16, #tpu.memory_space<vmem>>, vector<1x64x128xbf16>
    %98 = vector.shape_cast %97 : vector<1x64x128xbf16> to vector<64x128xbf16>
    %cst_99 = arith.constant dense<0.000000e+00> : vector<104x128xf32>
    %99 = tpu.matmul %96, %98, %cst_99 {dimension_numbers = #tpu.dot_dimension_numbers<[1], [0], [0], [1], [0, 0, 1, 1], [], []>} : vector<104x64xbf16>, vector<64x128xbf16>, vector<104x128xf32> -> vector<104x128xf32>
    %100 = arith.addf %95, %99 : vector<104x128xf32>
    %c25_100 = arith.constant 25 : index
    %c0_101 = arith.constant 0 : index
    %101 = vector.load %arg15[%c25_100, %c0_101] : memref<136x64xbf16, #tpu.memory_space<vmem>>, vector<104x64xbf16>
    %c6_102 = arith.constant 6 : index
    %c0_103 = arith.constant 0 : index
    %c0_104 = arith.constant 0 : index
    %102 = vector.load %arg9[%c6_102, %c0_103, %c0_104] : memref<9x64x128xbf16, #tpu.memory_space<vmem>>, vector<1x64x128xbf16>
    %103 = vector.shape_cast %102 : vector<1x64x128xbf16> to vector<64x128xbf16>
    %cst_105 = arith.constant dense<0.000000e+00> : vector<104x128xf32>
    %104 = tpu.matmul %101, %103, %cst_105 {dimension_numbers = #tpu.dot_dimension_numbers<[1], [0], [0], [1], [0, 0, 1, 1], [], []>} : vector<104x64xbf16>, vector<64x128xbf16>, vector<104x128xf32> -> vector<104x128xf32>
    %105 = arith.addf %100, %104 : vector<104x128xf32>
    %c26_106 = arith.constant 26 : index
    %c0_107 = arith.constant 0 : index
    %106 = vector.load %arg15[%c26_106, %c0_107] : memref<136x64xbf16, #tpu.memory_space<vmem>>, vector<104x64xbf16>
    %c7_108 = arith.constant 7 : index
    %c0_109 = arith.constant 0 : index
    %c0_110 = arith.constant 0 : index
    %107 = vector.load %arg9[%c7_108, %c0_109, %c0_110] : memref<9x64x128xbf16, #tpu.memory_space<vmem>>, vector<1x64x128xbf16>
    %108 = vector.shape_cast %107 : vector<1x64x128xbf16> to vector<64x128xbf16>
    %cst_111 = arith.constant dense<0.000000e+00> : vector<104x128xf32>
    %109 = tpu.matmul %106, %108, %cst_111 {dimension_numbers = #tpu.dot_dimension_numbers<[1], [0], [0], [1], [0, 0, 1, 1], [], []>} : vector<104x64xbf16>, vector<64x128xbf16>, vector<104x128xf32> -> vector<104x128xf32>
    %110 = arith.addf %105, %109 : vector<104x128xf32>
    %c27_112 = arith.constant 27 : index
    %c0_113 = arith.constant 0 : index
    %111 = vector.load %arg15[%c27_112, %c0_113] : memref<136x64xbf16, #tpu.memory_space<vmem>>, vector<104x64xbf16>
    %c8_114 = arith.constant 8 : index
    %c0_115 = arith.constant 0 : index
    %c0_116 = arith.constant 0 : index
    %112 = vector.load %arg9[%c8_114, %c0_115, %c0_116] : memref<9x64x128xbf16, #tpu.memory_space<vmem>>, vector<1x64x128xbf16>
    %113 = vector.shape_cast %112 : vector<1x64x128xbf16> to vector<64x128xbf16>
    %cst_117 = arith.constant dense<0.000000e+00> : vector<104x128xf32>
    %114 = tpu.matmul %111, %113, %cst_117 {dimension_numbers = #tpu.dot_dimension_numbers<[1], [0], [0], [1], [0, 0, 1, 1], [], []>} : vector<104x64xbf16>, vector<64x128xbf16>, vector<104x128xf32> -> vector<104x128xf32>
    %115 = arith.addf %110, %114 : vector<104x128xf32>
    %c0_118 = arith.constant 0 : index
    %c0_119 = arith.constant 0 : index
    %c0_120 = arith.constant 0 : index
    %116 = vector.load %arg11[%c0_118, %c0_119, %c0_120] : memref<1x104x128xf32, #tpu.memory_space<vmem>>, vector<1x104x128xf32>
    %117 = vector.shape_cast %116 : vector<1x104x128xf32> to vector<104x128xf32>
    %118 = arith.addf %115, %117 : vector<104x128xf32>
    %c0_121 = arith.constant 0 : index
    %c0_122 = arith.constant 0 : index
    %c0_123 = arith.constant 0 : index
    %119 = vector.load %arg13[%c0_121, %c0_122, %c0_123] : memref<1x104x128xf32, #tpu.memory_space<vmem>>, vector<1x104x128xf32>
    %120 = vector.shape_cast %119 : vector<1x104x128xf32> to vector<104x128xf32>
    %121 = vector.shape_cast %118 : vector<104x128xf32> to vector<1x104x128xf32>
    tpu.vector_store %arg13[%c0_121, %c0_122, %c0_123], %121 {strides = array<i32>} : memref<1x104x128xf32, #tpu.memory_space<vmem>>, vector<1x104x128xf32>,
    return
  }
  func.func @transform_0(%arg0: i32) -> i32 {
    %c0_i32 = arith.constant 0 : i32
    %c0_i32_0 = arith.constant 0 : i32
    return %c0_i32 : i32
  }
  func.func @transform_1(%arg0: i32) -> (i32, i32, i32) {
    %c0_i32 = arith.constant 0 : i32
    %c0_i32_0 = arith.constant 0 : i32
    %c0_i32_1 = arith.constant 0 : i32
    return %arg0, %c0_i32, %c0_i32_0 : i32, i32, i32
  }
  func.func @transform_2(%arg0: i32) -> (i32, i32, i32) {
    %c0_i32 = arith.constant 0 : i32
    %c0_i32_0 = arith.constant 0 : i32
    %c0_i32_1 = arith.constant 0 : i32
    %c0_i32_2 = arith.constant 0 : i32
    return %c0_i32, %c0_i32_0, %c0_i32_1 : i32, i32, i32
  }
  func.func @transform_3(%arg0: i32) -> (i32, i32) {
    %c0_i32 = arith.constant 0 : i32
    %c0_i32_0 = arith.constant 0 : i32
    %c0_i32_1 = arith.constant 0 : i32
    return %c0_i32, %c0_i32_0 : i32, i32
  }
  func.func @transform_4(%arg0: i32) -> (i32, i32, i32) {
    %c0_i32 = arith.constant 0 : i32
    %c0_i32_0 = arith.constant 0 : i32
    %c0_i32_1 = arith.constant 0 : i32
    %c0_i32_2 = arith.constant 0 : i32
    return %c0_i32, %c0_i32_0, %c0_i32_1 : i32, i32, i32
  }
  func.func @transform_5(%arg0: i32) -> (i32, i32, i32) {
    %c0_i32 = arith.constant 0 : i32
    %c0_i32_0 = arith.constant 0 : i32
    %c0_i32_1 = arith.constant 0 : i32
    %c0_i32_2 = arith.constant 0 : i32
    return %c0_i32, %c0_i32_0, %c0_i32_1 : i32, i32, i32
  }
  func.func @transform_6(%arg0: i32) -> (i32, i32, i32) {
    %c0_i32 = arith.constant 0 : i32
    %c0_i32_0 = arith.constant 0 : i32
    %c0_i32_1 = arith.constant 0 : i32
    %c0_i32_2 = arith.constant 0 : i32
    return %c0_i32, %c0_i32_0, %c0_i32_1 : i32, i32, i32
  }
  func.func @transform_7(%arg0: i32) -> (i32, i32, i32) {
    %c0_i32 = arith.constant 0 : i32
    %c0_i32_0 = arith.constant 0 : i32
    %c0_i32_1 = arith.constant 0 : i32
    %c0_i32_2 = arith.constant 0 : i32
    return %c0_i32, %c0_i32_0, %c0_i32_1 : i32, i32, i32
  }
  func.func @transform_8(%arg0: i32) -> (i32, i32, i32) {
    %c0_i32 = arith.constant 0 : i32
    %c0_i32_0 = arith.constant 0 : i32
    %c0_i32_1 = arith.constant 0 : i32
    %c0_i32_2 = arith.constant 0 : i32
    return %c0_i32, %c0_i32_0, %c0_i32_1 : i32, i32, i32
  }
  func.func @transform_9(%arg0: i32) -> (i32, i32) {
    %c0_i32 = arith.constant 0 : i32
    %c0_i32_0 = arith.constant 0 : i32
    %c0_i32_1 = arith.constant 0 : i32
    return %c0_i32, %c0_i32_0 : i32, i32
  }
  func.func @transform_10(%arg0: i32) -> (i32, i32, i32) {
    %c0_i32 = arith.constant 0 : i32
    %c0_i32_0 = arith.constant 0 : i32
    %c0_i32_1 = arith.constant 0 : i32
    return %arg0, %c0_i32, %c0_i32_0 : i32, i32, i32
  }
  func.func @transform_11(%arg0: i32) -> (i32, i32) {
    %c0_i32 = arith.constant 0 : i32
    %c0_i32_0 = arith.constant 0 : i32
    %c0_i32_1 = arith.constant 0 : i32
    return %c0_i32, %c0_i32_0 : i32, i32
  }
  func.func @transform_12(%arg0: i32) -> (i32, i32, i32) {
    %c0_i32 = arith.constant 0 : i32
    %c0_i32_0 = arith.constant 0 : i32
    %c0_i32_1 = arith.constant 0 : i32
    return %arg0, %c0_i32, %c0_i32_0 : i32, i32, i32
  }
}

</mosaic_0001>

<llo_original>
// kernel: _lambda_.1
$region0: #{_lambda_.1}
  #allocation0 [shape = 'u32[]', space=smem, size = 0x4, offset = 0x4, fixed_abs, tag = 'smem constant byte address 0x4 - core index']
  #allocation1 [shape = 'u32[144,128]{1,0:T(1,128)}', space=vmem, size = 0x12000, scoped, tag = 'internal scratch']
  #allocation2 [shape = 'f32[136,64]{1,0:T(8,128)}', space=vmem, size = 0x11000, scoped, tag = 'scratch operand']
  #allocation3 [shape = 'bf16[136,64]{1,0:T(8,128)(2,1)}', space=vmem, size = 0x8800, scoped, tag = 'scratch operand']
  %s0 = inlined_call_operand.vmem [shape: f32[60], index: 0, kind: input, shape index: {}]
  %s1 = inlined_call_operand.vmem [shape: bf16[2,136,24], index: 1, kind: input, shape index: {}]
  %s2 = inlined_call_operand.hbm [shape: bf16[9,24,64], index: 2, kind: input, shape index: {}]
  %s3 = inlined_call_operand.hbm [shape: f32[1,64], index: 3, kind: input, shape index: {}]
  %s4 = inlined_call_operand.hbm [shape: bf16[180,64,64], index: 4, kind: input, shape index: {}]
  %s5 = inlined_call_operand.hbm [shape: f32[20,1,64], index: 5, kind: input, shape index: {}]
  %s6 = inlined_call_operand.hbm [shape: bf16[180,64,64], index: 6, kind: input, shape index: {}]
  %s7 = inlined_call_operand.hbm [shape: f32[20,1,64], index: 7, kind: input, shape index: {}]
  %s8 = inlined_call_operand.hbm [shape: bf16[9,64,128], index: 8, kind: input, shape index: {}]
  %s9 = inlined_call_operand.hbm [shape: f32[1,128], index: 9, kind: input, shape index: {}]
  %s10 = inlined_call_operand.vmem [shape: f32[2,104,128], index: 10, kind: input, shape index: {}]
  %s11 = inlined_call_operand.hbm [shape: f32[104,1], index: 11, kind: input, shape index: {}]
  %s12 = inlined_call_operand.vmem [shape: f32[2,104,128], index: 12, kind: output, shape index: {}]
  %s13 = sld [smem:[#allocation0]]
  $region128: #{_lambda_.1} parent=0
    _
  %s15 = ssub.s32 1, %s13
  %s16 = scalar_select 0, %s15, %s13
  $region1: #{_lambda_.1} parent=0
    #allocation4 [shape = 'u8[512]{0}', space=smem, size = 0x200, scoped, tag = 'input window, operand 0, single buffered']
    #allocation5 [shape = 's32[2]{0}', space=sflag, size = 0x8, scoped, tag = 'scoped memory for _lambda_.1']
    #allocation6 [shape = 's32[2]{0}', space=sflag, size = 0x8, scoped, tag = 'scoped memory for _lambda_.1']
    #allocation7 [shape = 'u8[55296]{0}', space=vmem, size = 0xd800, scoped, tag = 'input window, operand 2, single buffered']
    #allocation8 [shape = 'u8[512]{0}', space=vmem, size = 0x400, scoped, tag = 'input window, operand 3, single buffered']
    #allocation9 [shape = 's32[1]{0}', space=sflag, size = 0x4, scoped, tag = 'scoped memory for _lambda_.1']
    #allocation10 [shape = 'u8[2949120]{0}', space=vmem, size = 0x2d0000, scoped, tag = 'input window, operand 4, single buffered']
    #allocation11 [shape = 'u8[10240]{0}', space=vmem, size = 0x2800, scoped, tag = 'input window, operand 5, single buffered']
    #allocation12 [shape = 's32[1]{0}', space=sflag, size = 0x4, scoped, tag = 'scoped memory for _lambda_.1']
    #allocation13 [shape = 'u8[2949120]{0}', space=vmem, size = 0x2d0000, scoped, tag = 'input window, operand 6, single buffered']
    #allocation14 [shape = 'u8[10240]{0}', space=vmem, size = 0x2800, scoped, tag = 'input window, operand 7, single buffered']
    #allocation15 [shape = 's32[1]{0}', space=sflag, size = 0x4, scoped, tag = 'scoped memory for _lambda_.1']
    #allocation16 [shape = 'u8[147456]{0}', space=vmem, size = 0x24000, scoped, tag = 'input window, operand 8, single buffered']
    #allocation17 [shape = 'u8[512]{0}', space=vmem, size = 0x400, scoped, tag = 'input window, operand 9, single buffered']
    #allocation18 [shape = 's32[1]{0}', space=sflag, size = 0x4, scoped, tag = 'scoped memory for _lambda_.1']
    #allocation19 [shape = 'u8[53248]{0}', space=vmem, size = 0xd000, scoped, tag = 'input window, operand 11, single buffered']
    %17 = vsyncpa [#allocation6], 0
    %18 = vsyncpa [#allocation5], 0
    %19 = vsyncpa [#allocation9], 0
    %20 = vsyncpa [#allocation12], 0
    %21 = vsyncpa [#allocation15], 0
    %22 = vsyncpa [#allocation18], 0
    loop: start=0, step=1, limit=4
    $region2: #{_lambda_.1} parent=1 // loop_pre_header
      _
    $region3: #{_lambda_.1} parent=1 // loop_header
      %s24 = sphi 0, %s28
      %p25 = scmp.ge.s32.totalorder %s24, 4
      %s32 = sphi 0, %s32
      %s34 = sphi 0, %s32
      %s35 = sphi 0, %s34
      %s49 = sphi 0, %s35
      %s55 = sphi 0, %s57
      %s58 = sphi 0, %s55
      %s59 = sphi 0, %s58
      %s75 = sphi 0, %s59
      %s79 = sphi 0, %s79
      %s81 = sphi 0, %s79
      %s82 = sphi 0, %s81
      %s96 = sphi 0, %s82
      %s100 = sphi 0, %s100
      %s102 = sphi 0, %s100
      %s103 = sphi 0, %s102
      %s117 = sphi 0, %s103
      %s121 = sphi 0, %s121
      %s123 = sphi 0, %s121
      %s124 = sphi 0, %s123
      %s138 = sphi 0, %s124
      %s142 = sphi 0, %s142
      %s144 = sphi 0, %s142
      %s145 = sphi 0, %s144
      %s159 = sphi 0, %s145
      %s163 = sphi 0, %s163
      %s165 = sphi 0, %s163
      %s166 = sphi 0, %s165
      %s180 = sphi 0, %s166
      %s184 = sphi 0, %s184
      %s186 = sphi 0, %s184
      %s187 = sphi 0, %s186
      %s201 = sphi 0, %s187
      %s205 = sphi 0, %s205
      %s207 = sphi 0, %s205
      %s208 = sphi 0, %s207
      %s222 = sphi 0, %s208
      %s226 = sphi 0, %s226
      %s228 = sphi 0, %s226
      %s229 = sphi 0, %s228
      %s243 = sphi 0, %s229
      %s249 = sphi 0, %s251
      %s252 = sphi 0, %s249
      %s253 = sphi 0, %s252
      %s269 = sphi 0, %s253
      %s273 = sphi 0, %s273
      %s275 = sphi 0, %s273
      %s276 = sphi 0, %s275
      %s290 = sphi 0, %s276
      %s296 = sphi 0, %s298
      %s299 = sphi 0, %s296
      %s300 = sphi 0, %s299
      %s316 = sphi 0, %s300
    $region4: #{_lambda_.1} parent=1 // loop_header_branch
      %27 = sbr.rel (%p25) target = $region8
    $region5: #{_lambda_.1} parent=1 // loop_body
      %s29 = ssub.s32 %s24, 1
      %s30 = ssub.s32 %s24, 2
      %s31 = sadd.s32 %s24, 1
      %s33 = sadd.s32 %s32, 1
      %p36 = scmp.eq.s32.totalorder %s24, 1
      %p37 = scmp.ne.s32.totalorder %s32, %s34
      %p38 = scmp.eq.s32.totalorder %s24, 0
      %p39 = por %p37, %p38
      %p40 = scmp.ne.s32.totalorder %s32, %s34
      %p41 = scmp.eq.s32.totalorder %s29, 1
      %p42 = por %p40, %p41
      %p43 = scmp.ne.s32.totalorder %s34, %s35
      %p44 = scmp.eq.s32.totalorder %s29, 0
      %p45 = por %p43, %p44
      %p46 = scmp.ne.s32.totalorder %s34, %s35
      %p47 = scmp.eq.s32.totalorder %s30, 1
      %p48 = por %p46, %p47
      %p50 = scmp.ne.s32.totalorder %s35, %s49
      %p51 = scmp.eq.s32.totalorder %s30, 0
      %p52 = por %p50, %p51
      %s53 = ssub.s32 %s24, %s31
      %p54 = scmp.eq.s32.totalorder %s53, 0
      %s56 = sadd.s32 %s55, 1
      %s57 = scalar_select %p54, %s55, %s56
      %p60 = pneg %p54
      %p61 = scmp.eq.s32.totalorder %s24, 1
      %p62 = por %p60, %p61
      %p63 = scmp.ne.s32.totalorder %s55, %s58
      %p64 = scmp.eq.s32.totalorder %s24, 0
      %p65 = por %p63, %p64
      %p66 = scmp.ne.s32.totalorder %s55, %s58
      %p67 = scmp.eq.s32.totalorder %s29, 1
      %p68 = por %p66, %p67
      %p69 = scmp.ne.s32.totalorder %s58, %s59
      %p70 = scmp.eq.s32.totalorder %s29, 0
      %p71 = por %p69, %p70
      %p72 = scmp.ne.s32.totalorder %s58, %s59
      %p73 = scmp.eq.s32.totalorder %s30, 1
      %p74 = por %p72, %p73
      %p76 = scmp.ne.s32.totalorder %s59, %s75
      %p77 = scmp.eq.s32.totalorder %s30, 0
      %p78 = por %p76, %p77
      %s80 = sadd.s32 %s79, 1
      %p83 = scmp.eq.s32.totalorder %s24, 1
      %p84 = scmp.ne.s32.totalorder %s79, %s81
      %p85 = scmp.eq.s32.totalorder %s24, 0
      %p86 = por %p84, %p85
      %p87 = scmp.ne.s32.totalorder %s79, %s81
      %p88 = scmp.eq.s32.totalorder %s29, 1
      %p89 = por %p87, %p88
      %p90 = scmp.ne.s32.totalorder %s81, %s82
      %p91 = scmp.eq.s32.totalorder %s29, 0
      %p92 = por %p90, %p91
      %p93 = scmp.ne.s32.totalorder %s81, %s82
      %p94 = scmp.eq.s32.totalorder %s30, 1
      %p95 = por %p93, %p94
      %p97 = scmp.ne.s32.totalorder %s82, %s96
      %p98 = scmp.eq.s32.totalorder %s30, 0
      %p99 = por %p97, %p98
      %s101 = sadd.s32 %s100, 1
      %p104 = scmp.eq.s32.totalorder %s24, 1
      %p105 = scmp.ne.s32.totalorder %s100, %s102
      %p106 = scmp.eq.s32.totalorder %s24, 0
      %p107 = por %p105, %p106
      %p108 = scmp.ne.s32.totalorder %s100, %s102
      %p109 = scmp.eq.s32.totalorder %s29, 1
      %p110 = por %p108, %p109
      %p111 = scmp.ne.s32.totalorder %s102, %s103
      %p112 = scmp.eq.s32.totalorder %s29, 0
      %p113 = por %p111, %p112
      %p114 = scmp.ne.s32.totalorder %s102, %s103
      %p115 = scmp.eq.s32.totalorder %s30, 1
      %p116 = por %p114, %p115
      %p118 = scmp.ne.s32.totalorder %s103, %s117
      %p119 = scmp.eq.s32.totalorder %s30, 0
      %p120 = por %p118, %p119
      %s122 = sadd.s32 %s121, 1
      %p125 = scmp.eq.s32.totalorder %s24, 1
      %p126 = scmp.ne.s32.totalorder %s121, %s123
      %p127 = scmp.eq.s32.totalorder %s24, 0
      %p128 = por %p126, %p127
      %p129 = scmp.ne.s32.totalorder %s121, %s123
      %p130 = scmp.eq.s32.totalorder %s29, 1
      %p131 = por %p129, %p130
      %p132 = scmp.ne.s32.totalorder %s123, %s124
      %p133 = scmp.eq.s32.totalorder %s29, 0
      %p134 = por %p132, %p133
      %p135 = scmp.ne.s32.totalorder %s123, %s124
      %p136 = scmp.eq.s32.totalorder %s30, 1
      %p137 = por %p135, %p136
      %p139 = scmp.ne.s32.totalorder %s124, %s138
      %p140 = scmp.eq.s32.totalorder %s30, 0
      %p141 = por %p139, %p140
      %s143 = sadd.s32 %s142, 1
      %p146 = scmp.eq.s32.totalorder %s24, 1
      %p147 = scmp.ne.s32.totalorder %s142, %s144
      %p148 = scmp.eq.s32.totalorder %s24, 0
      %p149 = por %p147, %p148
      %p150 = scmp.ne.s32.totalorder %s142, %s144
      %p151 = scmp.eq.s32.totalorder %s29, 1
      %p152 = por %p150, %p151
      %p153 = scmp.ne.s32.totalorder %s144, %s145
      %p154 = scmp.eq.s32.totalorder %s29, 0
      %p155 = por %p153, %p154
      %p156 = scmp.ne.s32.totalorder %s144, %s145
      %p157 = scmp.eq.s32.totalorder %s30, 1
      %p158 = por %p156, %p157
      %p160 = scmp.ne.s32.totalorder %s145, %s159
      %p161 = scmp.eq.s32.totalorder %s30, 0
      %p162 = por %p160, %p161
      %s164 = sadd.s32 %s163, 1
      %p167 = scmp.eq.s32.totalorder %s24, 1
      %p168 = scmp.ne.s32.totalorder %s163, %s165
      %p169 = scmp.eq.s32.totalorder %s24, 0
      %p170 = por %p168, %p169
      %p171 = scmp.ne.s32.totalorder %s163, %s165
      %p172 = scmp.eq.s32.totalorder %s29, 1
      %p173 = por %p171, %p172
      %p174 = scmp.ne.s32.totalorder %s165, %s166
      %p175 = scmp.eq.s32.totalorder %s29, 0
      %p176 = por %p174, %p175
      %p177 = scmp.ne.s32.totalorder %s165, %s166
      %p178 = scmp.eq.s32.totalorder %s30, 1
      %p179 = por %p177, %p178
      %p181 = scmp.ne.s32.totalorder %s166, %s180
      %p182 = scmp.eq.s32.totalorder %s30, 0
      %p183 = por %p181, %p182
      %s185 = sadd.s32 %s184, 1
      %p188 = scmp.eq.s32.totalorder %s24, 1
      %p189 = scmp.ne.s32.totalorder %s184, %s186
      %p190 = scmp.eq.s32.totalorder %s24, 0
      %p191 = por %p189, %p190
      %p192 = scmp.ne.s32.totalorder %s184, %s186
      %p193 = scmp.eq.s32.totalorder %s29, 1
      %p194 = por %p192, %p193
      %p195 = scmp.ne.s32.totalorder %s186, %s187
      %p196 = scmp.eq.s32.totalorder %s29, 0
      %p197 = por %p195, %p196
      %p198 = scmp.ne.s32.totalorder %s186, %s187
      %p199 = scmp.eq.s32.totalorder %s30, 1
      %p200 = por %p198, %p199
      %p202 = scmp.ne.s32.totalorder %s187, %s201
      %p203 = scmp.eq.s32.totalorder %s30, 0
      %p204 = por %p202, %p203
      %s206 = sadd.s32 %s205, 1
      %p209 = scmp.eq.s32.totalorder %s24, 1
      %p210 = scmp.ne.s32.totalorder %s205, %s207
      %p211 = scmp.eq.s32.totalorder %s24, 0
      %p212 = por %p210, %p211
      %p213 = scmp.ne.s32.totalorder %s205, %s207
      %p214 = scmp.eq.s32.totalorder %s29, 1
      %p215 = por %p213, %p214
      %p216 = scmp.ne.s32.totalorder %s207, %s208
      %p217 = scmp.eq.s32.totalorder %s29, 0
      %p218 = por %p216, %p217
      %p219 = scmp.ne.s32.totalorder %s207, %s208
      %p220 = scmp.eq.s32.totalorder %s30, 1
      %p221 = por %p219, %p220
      %p223 = scmp.ne.s32.totalorder %s208, %s222
      %p224 = scmp.eq.s32.totalorder %s30, 0
      %p225 = por %p223, %p224
      %s227 = sadd.s32 %s226, 1
      %p230 = scmp.eq.s32.totalorder %s24, 1
      %p231 = scmp.ne.s32.totalorder %s226, %s228
      %p232 = scmp.eq.s32.totalorder %s24, 0
      %p233 = por %p231, %p232
      %p234 = scmp.ne.s32.totalorder %s226, %s228
      %p235 = scmp.eq.s32.totalorder %s29, 1
      %p236 = por %p234, %p235
      %p237 = scmp.ne.s32.totalorder %s228, %s229
      %p238 = scmp.eq.s32.totalorder %s29, 0
      %p239 = por %p237, %p238
      %p240 = scmp.ne.s32.totalorder %s228, %s229
      %p241 = scmp.eq.s32.totalorder %s30, 1
      %p242 = por %p240, %p241
      %p244 = scmp.ne.s32.totalorder %s229, %s243
      %p245 = scmp.eq.s32.totalorder %s30, 0
      %p246 = por %p244, %p245
      %s247 = ssub.s32 %s24, %s31
      %p248 = scmp.eq.s32.totalorder %s247, 0
      %s250 = sadd.s32 %s249, 1
      %s251 = scalar_select %p248, %s249, %s250
      %p254 = pneg %p248
      %p255 = scmp.eq.s32.totalorder %s24, 1
      %p256 = por %p254, %p255
      %p257 = scmp.ne.s32.totalorder %s249, %s252
      %p258 = scmp.eq.s32.totalorder %s24, 0
      %p259 = por %p257, %p258
      %p260 = scmp.ne.s32.totalorder %s249, %s252
      %p261 = scmp.eq.s32.totalorder %s29, 1
      %p262 = por %p260, %p261
      %p263 = scmp.ne.s32.totalorder %s252, %s253
      %p264 = scmp.eq.s32.totalorder %s29, 0
      %p265 = por %p263, %p264
      %p266 = scmp.ne.s32.totalorder %s252, %s253
      %p267 = scmp.eq.s32.totalorder %s30, 1
      %p268 = por %p266, %p267
      %p270 = scmp.ne.s32.totalorder %s253, %s269
      %p271 = scmp.eq.s32.totalorder %s30, 0
      %p272 = por %p270, %p271
      %s274 = sadd.s32 %s273, 1
      %p277 = scmp.eq.s32.totalorder %s24, 1
      %p278 = scmp.ne.s32.totalorder %s273, %s275
      %p279 = scmp.eq.s32.totalorder %s24, 0
      %p280 = por %p278, %p279
      %p281 = scmp.ne.s32.totalorder %s273, %s275
      %p282 = scmp.eq.s32.totalorder %s29, 1
      %p283 = por %p281, %p282
      %p284 = scmp.ne.s32.totalorder %s275, %s276
      %p285 = scmp.eq.s32.totalorder %s29, 0
      %p286 = por %p284, %p285
      %p287 = scmp.ne.s32.totalorder %s275, %s276
      %p288 = scmp.eq.s32.totalorder %s30, 1
      %p289 = por %p287, %p288
      %p291 = scmp.ne.s32.totalorder %s276, %s290
      %p292 = scmp.eq.s32.totalorder %s30, 0
      %p293 = por %p291, %p292
      %s294 = ssub.s32 %s24, %s31
      %p295 = scmp.eq.s32.totalorder %s294, 0
      %s297 = sadd.s32 %s296, 1
      %s298 = scalar_select %p295, %s296, %s297
      %p301 = pneg %p295
      %p302 = scmp.eq.s32.totalorder %s24, 1
      %p303 = por %p301, %p302
      %p304 = scmp.ne.s32.totalorder %s296, %s299
      %p305 = scmp.eq.s32.totalorder %s24, 0
      %p306 = por %p304, %p305
      %p307 = scmp.ne.s32.totalorder %s296, %s299
      %p308 = scmp.eq.s32.totalorder %s29, 1
      %p309 = por %p307, %p308
      %p310 = scmp.ne.s32.totalorder %s299, %s300
      %p311 = scmp.eq.s32.totalorder %s29, 0
      %p312 = por %p310, %p311
      %p313 = scmp.ne.s32.totalorder %s299, %s300
      %p314 = scmp.eq.s32.totalorder %s30, 1
      %p315 = por %p313, %p314
      %p317 = scmp.ne.s32.totalorder %s300, %s316
      %p318 = scmp.eq.s32.totalorder %s30, 0
      %p319 = por %p317, %p318
      %p320 = scmp.le.s32.totalorder 1, %s24
      %p321 = scmp.lt.s32.totalorder %s24, 3
      %p322 = pnand %p320, %p321
      %p323 = pneg %p322
      // Predicated region
      $region9: #{_lambda_.1} parent=5 // pred_check
        _
      $region10: #{_lambda_.1} parent=5 // pred_check_branch
        %325 = sbr.rel (%p322) target = $region12
      $region11: #{_lambda_.1} parent=5 // pred_region
        %s326 = ssub.s32 %s24, 1
        // Predicated region
        $region13: #{_lambda_.1} parent=11 // pred_check
          %p327 = pneg %p45
        $region14: #{_lambda_.1} parent=11 // pred_check_branch
          %329 = sbr.rel (%p327) target = $region16
        $region15: #{_lambda_.1} parent=11 // pred_region
          %s331 = ssub.s32 16, 16
          %332 = vsyncadd [#allocation6], %s331
          %s334 = sshll.u32 %s0, 4
          %s335 = int_to_ptr.vmem [resolvable:$true] %s334
          %337 = dma.vmem_to_smem %s335, 16, [#allocation4], [#allocation6]
        $region16: #{_lambda_.1} parent=11 // pred_fallthru
          _
        // Predicated region
        $region17: #{_lambda_.1} parent=11 // pred_check
          %p338 = pneg %p92
        $region18: #{_lambda_.1} parent=11 // pred_check_branch
          %340 = sbr.rel (%p338) target = $region20
        $region19: #{_lambda_.1} parent=11 // pred_region
          %s342 = ssub.s32 1728, 1728
          %343 = vsyncadd [#allocation5], %s342
          %s344 = sshll.u32 [#allocation7], 4
          %s345 = int_to_ptr.vmem [resolvable:$true] %s344
          %350 = dma.hbm_to_vmem [thread:$0]  %s2, 1728, %s345, [#allocation5], 64, 64, 4
        $region20: #{_lambda_.1} parent=11 // pred_fallthru
          _
        // Predicated region
        $region21: #{_lambda_.1} parent=11 // pred_check
          %p351 = pneg %p113
        $region22: #{_lambda_.1} parent=11 // pred_check_branch
          %353 = sbr.rel (%p351) target = $region24
        $region23: #{_lambda_.1} parent=11 // pred_region
          %s355 = ssub.s32 16, 16
          %356 = vsyncadd [#allocation9], %s355
          %s358 = sshll.u32 [#allocation8], 4
          %s359 = int_to_ptr.vmem [resolvable:$true] %s358
          %361 = dma.hbm_to_vmem [thread:$0]  %s3, 16, %s359, [#allocation9]
        $region24: #{_lambda_.1} parent=11 // pred_fallthru
          _
        // Predicated region
        $region25: #{_lambda_.1} parent=11 // pred_check
          %p362 = pneg %p134
        $region26: #{_lambda_.1} parent=11 // pred_check_branch
          %364 = sbr.rel (%p362) target = $region28
        $region27: #{_lambda_.1} parent=11 // pred_region
          %s366 = ssub.s32 92160, 92160
          %367 = vsyncadd [#allocation9], %s366
          %s368 = sshll.u32 [#allocation10], 4
          %s369 = int_to_ptr.vmem [resolvable:$true] %s368
          %374 = dma.hbm_to_vmem [thread:$0]  %s4, 92160, %s369, [#allocation9], 64, 64, 4
        $region28: #{_lambda_.1} parent=11 // pred_fallthru
          _
        // Predicated region
        $region29: #{_lambda_.1} parent=11 // pred_check
          %p375 = pneg %p155
        $region30: #{_lambda_.1} parent=11 // pred_check_branch
          %377 = sbr.rel (%p375) target = $region32
        $region31: #{_lambda_.1} parent=11 // pred_region
          %s379 = ssub.s32 320, 320
          %380 = vsyncadd [#allocation12], %s379
          %s381 = sshll.u32 [#allocation11], 4
          %s382 = int_to_ptr.vmem [resolvable:$true] %s381
          %387 = dma.hbm_to_vmem [thread:$0]  %s5, 320, %s382, [#allocation12], 16, 16, 1
        $region32: #{_lambda_.1} parent=11 // pred_fallthru
          _
        // Predicated region
        $region33: #{_lambda_.1} parent=11 // pred_check
          %p388 = pneg %p176
        $region34: #{_lambda_.1} parent=11 // pred_check_branch
          %390 = sbr.rel (%p388) target = $region36
        $region35: #{_lambda_.1} parent=11 // pred_region
          %s392 = ssub.s32 92160, 92160
          %393 = vsyncadd [#allocation12], %s392
          %s394 = sshll.u32 [#allocation13], 4
          %s395 = int_to_ptr.vmem [resolvable:$true] %s394
          %400 = dma.hbm_to_vmem [thread:$0]  %s6, 92160, %s395, [#allocation12], 64, 64, 4
        $region36: #{_lambda_.1} parent=11 // pred_fallthru
          _
        // Predicated region
        $region37: #{_lambda_.1} parent=11 // pred_check
          %p401 = pneg %p197
        $region38: #{_lambda_.1} parent=11 // pred_check_branch
          %403 = sbr.rel (%p401) target = $region40
        $region39: #{_lambda_.1} parent=11 // pred_region
          %s405 = ssub.s32 320, 320
          %406 = vsyncadd [#allocation15], %s405
          %s407 = sshll.u32 [#allocation14], 4
          %s408 = int_to_ptr.vmem [resolvable:$true] %s407
          %413 = dma.hbm_to_vmem [thread:$0]  %s7, 320, %s408, [#allocation15], 16, 16, 1
        $region40: #{_lambda_.1} parent=11 // pred_fallthru
          _
        // Predicated region
        $region41: #{_lambda_.1} parent=11 // pred_check
          %p414 = pneg %p218
        $region42: #{_lambda_.1} parent=11 // pred_check_branch
          %416 = sbr.rel (%p414) target = $region44
        $region43: #{_lambda_.1} parent=11 // pred_region
          %s418 = ssub.s32 4608, 4608
          %419 = vsyncadd [#allocation15], %s418
          %s420 = sshll.u32 [#allocation16], 4
          %s421 = int_to_ptr.vmem [resolvable:$true] %s420
          %426 = dma.hbm_to_vmem [thread:$0]  %s8, 4608, %s421, [#allocation15], 64, 64, 4
        $region44: #{_lambda_.1} parent=11 // pred_fallthru
          _
        // Predicated region
        $region45: #{_lambda_.1} parent=11 // pred_check
          %p427 = pneg %p239
        $region46: #{_lambda_.1} parent=11 // pred_check_branch
          %429 = sbr.rel (%p427) target = $region48
        $region47: #{_lambda_.1} parent=11 // pred_region
          %s431 = ssub.s32 16, 16
          %432 = vsyncadd [#allocation18], %s431
          %s434 = sshll.u32 [#allocation17], 4
          %s435 = int_to_ptr.vmem [resolvable:$true] %s434
          %437 = dma.hbm_to_vmem [thread:$0]  %s9, 16, %s435, [#allocation18]
        $region48: #{_lambda_.1} parent=11 // pred_fallthru
          _
        // Predicated region
        $region49: #{_lambda_.1} parent=11 // pred_check
          %p438 = pneg %p286
        $region50: #{_lambda_.1} parent=11 // pred_check_branch
          %440 = sbr.rel (%p438) target = $region52
        $region51: #{_lambda_.1} parent=11 // pred_region
          %s442 = ssub.s32 1664, 1664
          %443 = vsyncadd [#allocation18], %s442
          %s444 = sshll.u32 [#allocation19], 4
          %s445 = int_to_ptr.vmem [resolvable:$true] %s444
          %450 = dma.hbm_to_vmem [thread:$0]  %s11, 1664, %s445, [#allocation18], 128, 128, 8
        $region52: #{_lambda_.1} parent=11 // pred_fallthru
          _
      $region12: #{_lambda_.1} parent=5 // pred_fallthru
        _
      %p451 = scmp.lt.s32.totalorder %s24, 2
      // Predicated region
      $region53: #{_lambda_.1} parent=5 // pred_check
        %p452 = pneg %p451
      $region54: #{_lambda_.1} parent=5 // pred_check_branch
        %454 = sbr.rel (%p452) target = $region56
      $region55: #{_lambda_.1} parent=5 // pred_region
        // Predicated region
        $region57: #{_lambda_.1} parent=55 // pred_check
          %p455 = pneg %p65
        $region58: #{_lambda_.1} parent=55 // pred_check_branch
          %457 = sbr.rel (%p455) target = $region60
        $region59: #{_lambda_.1} parent=55 // pred_region
          %p458 = scmp.lt.s32.totalorder %s24, 1
          %s459 = scalar_select %p458, %s24, 1
          %s460 = smul.addr %s459, 17
          %s461 = smul.addr %s460, 4
          %s462 = scalar_lea.vmem %s1, %s461
        $region60: #{_lambda_.1} parent=55 // pred_fallthru
          _
        // Predicated region
        $region61: #{_lambda_.1} parent=55 // pred_check
          %p463 = pneg %p259
        $region62: #{_lambda_.1} parent=55 // pred_check_branch
          %465 = sbr.rel (%p463) target = $region64
        $region63: #{_lambda_.1} parent=55 // pred_region
          %p466 = scmp.lt.s32.totalorder %s24, 1
          %s467 = scalar_select %p466, %s24, 1
          %s468 = smul.addr %s467, 13
          %s469 = smul.addr %s468, 8
          %s470 = scalar_lea.vmem %s10, %s469
        $region64: #{_lambda_.1} parent=55 // pred_fallthru
          _
      $region56: #{_lambda_.1} parent=5 // pred_fallthru
        _
      %p471 = scmp.le.s32.totalorder 1, %s24
      %p472 = scmp.lt.s32.totalorder %s24, 3
      %p473 = pnand %p471, %p472
      %p474 = pneg %p473
      // Predicated region
      $region65: #{_lambda_.1} parent=5 // pred_check
        _
      $region66: #{_lambda_.1} parent=5 // pred_check_branch
        %476 = sbr.rel (%p473) target = $region68
      $region67: #{_lambda_.1} parent=5 // pred_region
        %s477 = ssub.s32 %s24, 1
        // Predicated region
        $region69: #{_lambda_.1} parent=67 // pred_check
          %p478 = pneg %p45
        $region70: #{_lambda_.1} parent=67 // pred_check_branch
          %480 = sbr.rel (%p478) target = $region72
        $region71: #{_lambda_.1} parent=67 // pred_region
          %481 = dma.done [#allocation6], 16
        $region72: #{_lambda_.1} parent=67 // pred_fallthru
          _
        // Predicated region
        $region73: #{_lambda_.1} parent=67 // pred_check
          %p482 = pneg %p92
        $region74: #{_lambda_.1} parent=67 // pred_check_branch
          %484 = sbr.rel (%p482) target = $region76
        $region75: #{_lambda_.1} parent=67 // pred_region
          %485 = dma.done [#allocation5], 1728
        $region76: #{_lambda_.1} parent=67 // pred_fallthru
          _
        // Predicated region
        $region77: #{_lambda_.1} parent=67 // pred_check
          %p486 = pneg %p113
        $region78: #{_lambda_.1} parent=67 // pred_check_branch
          %488 = sbr.rel (%p486) target = $region80
        $region79: #{_lambda_.1} parent=67 // pred_region
          %489 = dma.done [#allocation9], 16
        $region80: #{_lambda_.1} parent=67 // pred_fallthru
          _
        // Predicated region
        $region81: #{_lambda_.1} parent=67 // pred_check
          %p490 = pneg %p134
        $region82: #{_lambda_.1} parent=67 // pred_check_branch
          %492 = sbr.rel (%p490) target = $region84
        $region83: #{_lambda_.1} parent=67 // pred_region
          %493 = dma.done [#allocation9], 92160
        $region84: #{_lambda_.1} parent=67 // pred_fallthru
          _
        // Predicated region
        $region85: #{_lambda_.1} parent=67 // pred_check
          %p494 = pneg %p155
        $region86: #{_lambda_.1} parent=67 // pred_check_branch
          %496 = sbr.rel (%p494) target = $region88
        $region87: #{_lambda_.1} parent=67 // pred_region
          %497 = dma.done [#allocation12], 320
        $region88: #{_lambda_.1} parent=67 // pred_fallthru
          _
        // Predicated region
        $region89: #{_lambda_.1} parent=67 // pred_check
          %p498 = pneg %p176
        $region90: #{_lambda_.1} parent=67 // pred_check_branch
          %500 = sbr.rel (%p498) target = $region92
        $region91: #{_lambda_.1} parent=67 // pred_region
          %501 = dma.done [#allocation12], 92160
        $region92: #{_lambda_.1} parent=67 // pred_fallthru
          _
        // Predicated region
        $region93: #{_lambda_.1} parent=67 // pred_check
          %p502 = pneg %p197
        $region94: #{_lambda_.1} parent=67 // pred_check_branch
          %504 = sbr.rel (%p502) target = $region96
        $region95: #{_lambda_.1} parent=67 // pred_region
          %505 = dma.done [#allocation15], 320
        $region96: #{_lambda_.1} parent=67 // pred_fallthru
          _
        // Predicated region
        $region97: #{_lambda_.1} parent=67 // pred_check
          %p506 = pneg %p218
        $region98: #{_lambda_.1} parent=67 // pred_check_branch
          %508 = sbr.rel (%p506) target = $region100
        $region99: #{_lambda_.1} parent=67 // pred_region
          %509 = dma.done [#allocation15], 4608
        $region100: #{_lambda_.1} parent=67 // pred_fallthru
          _
        // Predicated region
        $region101: #{_lambda_.1} parent=67 // pred_check
          %p510 = pneg %p239
        $region102: #{_lambda_.1} parent=67 // pred_check_branch
          %512 = sbr.rel (%p510) target = $region104
        $region103: #{_lambda_.1} parent=67 // pred_region
          %513 = dma.done [#allocation18], 16
        $region104: #{_lambda_.1} parent=67 // pred_fallthru
          _
        // Predicated region
        $region105: #{_lambda_.1} parent=67 // pred_check
          %p514 = pneg %p286
        $region106: #{_lambda_.1} parent=67 // pred_check_branch
          %516 = sbr.rel (%p514) target = $region108
        $region107: #{_lambda_.1} parent=67 // pred_region
          %517 = dma.done [#allocation18], 1664
        $region108: #{_lambda_.1} parent=67 // pred_fallthru
          _
        %518 = sfence
        %p519 = pneg %p45
        %p520 = pneg %p42
        %p521 = scmp.lt.s32.totalorder %s29, 1
        %s522 = scalar_select %p521, %s29, 1
        %s523 = smul.addr %s522, 17
        %s524 = smul.addr %s523, 4
        %s525 = scalar_lea.vmem %s1, %s524
        %p526 = pneg %p71
        %p527 = pneg %p68
        %p528 = pneg %p92
        %p529 = pneg %p89
        %p530 = pneg %p113
        %p531 = pneg %p110
        %p532 = pneg %p134
        %p533 = pneg %p131
        %p534 = pneg %p155
        %p535 = pneg %p152
        %p536 = pneg %p176
        %p537 = pneg %p173
        %p538 = pneg %p197
        %p539 = pneg %p194
        %p540 = pneg %p218
        %p541 = pneg %p215
        %p542 = pneg %p239
        %p543 = pneg %p236
        %p544 = scmp.lt.s32.totalorder %s29, 1
        %s545 = scalar_select %p544, %s29, 1
        %s546 = smul.addr %s545, 13
        %s547 = smul.addr %s546, 8
        %s548 = scalar_lea.vmem %s10, %s547
        %p549 = pneg %p265
        %p550 = pneg %p262
        %p551 = pneg %p286
        %p552 = pneg %p283
        %p553 = pneg %p312
        %p554 = pneg %p309
        %p555 = scmp.lt.s32.totalorder %s29, 1
        %s556 = scalar_select %p555, %s29, 1
        %s557 = smul.addr %s556, 13
        %s558 = smul.addr %s557, 8
        %s559 = scalar_lea.vmem %s12, %s558
        %p560 = scmp.lt.s32.totalorder %s29, 1
        %s561 = scalar_select %p560, %s29, 1
        %s562 = smul.addr %s561, 17
        %s563 = smul.addr %s562, 4
        %s564 = scalar_lea.vmem %s1, %s563
        %p565 = scmp.lt.s32.totalorder %s29, 1
        %s566 = scalar_select %p565, %s29, 1
        %s567 = smul.addr %s566, 13
        %s568 = smul.addr %s567, 8
        %s569 = scalar_lea.vmem %s10, %s568
        %p570 = scmp.lt.s32.totalorder %s29, 1
        %s571 = scalar_select %p570, %s29, 1
        %s572 = smul.addr %s571, 13
        %s573 = smul.addr %s572, 8
        %s574 = scalar_lea.vmem %s12, %s573
        %v576 = vld [vmem:[#allocation19] sm:$0xff]
        %v577 = vld [vmem:[#allocation19 + $0x8] sm:$0xff]
        %v578 = vld [vmem:[#allocation19 + $0x10] sm:$0xff]
        %v579 = vld [vmem:[#allocation19 + $0x18] sm:$0xff]
        %v580 = vld [vmem:[#allocation19 + $0x20] sm:$0xff]
        %v581 = vld [vmem:[#allocation19 + $0x28] sm:$0xff]
        %v582 = vld [vmem:[#allocation19 + $0x30] sm:$0xff]
        %v583 = vld [vmem:[#allocation19 + $0x38] sm:$0xff]
        %v584 = vld [vmem:[#allocation19 + $0x40] sm:$0xff]
        %v585 = vld [vmem:[#allocation19 + $0x48] sm:$0xff]
        %v586 = vld [vmem:[#allocation19 + $0x50] sm:$0xff]
        %v587 = vld [vmem:[#allocation19 + $0x58] sm:$0xff]
        %v588 = vld [vmem:[#allocation19 + $0x60] sm:$0xff]
        %vm589 = vcmask 523264
        %590 = vst.msk [vmem:[#allocation2] sm:$0xff] %vm589, 0.0
        %591 = vst.msk [vmem:[#allocation2 + $0x8] sm:$0xff] %vm589, 0.0
        %592 = vst.msk [vmem:[#allocation2 + $0x10] sm:$0xff] %vm589, 0.0
        %593 = vst.msk [vmem:[#allocation2 + $0x18] sm:$0xff] %vm589, 0.0
        %594 = vst.msk [vmem:[#allocation2 + $0x20] sm:$0xff] %vm589, 0.0
        %595 = vst.msk [vmem:[#allocation2 + $0x28] sm:$0xff] %vm589, 0.0
        %596 = vst.msk [vmem:[#allocation2 + $0x30] sm:$0xff] %vm589, 0.0
        %597 = vst.msk [vmem:[#allocation2 + $0x38] sm:$0xff] %vm589, 0.0
        %598 = vst.msk [vmem:[#allocation2 + $0x40] sm:$0xff] %vm589, 0.0
        %599 = vst.msk [vmem:[#allocation2 + $0x48] sm:$0xff] %vm589, 0.0
        %600 = vst.msk [vmem:[#allocation2 + $0x50] sm:$0xff] %vm589, 0.0
        %601 = vst.msk [vmem:[#allocation2 + $0x58] sm:$0xff] %vm589, 0.0
        %602 = vst.msk [vmem:[#allocation2 + $0x60] sm:$0xff] %vm589, 0.0
        %603 = vst.msk [vmem:[#allocation2 + $0x68] sm:$0xff] %vm589, 0.0
        %604 = vst.msk [vmem:[#allocation2 + $0x70] sm:$0xff] %vm589, 0.0
        %605 = vst.msk [vmem:[#allocation2 + $0x78] sm:$0xff] %vm589, 0.0
        %606 = vst.msk [vmem:[#allocation2 + $0x80] sm:$0xff] %vm589, 0.0
        %vm607 = vcmask 519168
        %608 = vst.msk [vmem:[#allocation3] sm:$0xf] %vm607, 0
        %609 = vst.msk [vmem:[#allocation3 + $0x4] sm:$0xf] %vm607, 0
        %610 = vst.msk [vmem:[#allocation3 + $0x8] sm:$0xf] %vm607, 0
        %611 = vst.msk [vmem:[#allocation3 + $0xc] sm:$0xf] %vm607, 0
        %612 = vst.msk [vmem:[#allocation3 + $0x10] sm:$0xf] %vm607, 0
        %613 = vst.msk [vmem:[#allocation3 + $0x14] sm:$0xf] %vm607, 0
        %614 = vst.msk [vmem:[#allocation3 + $0x18] sm:$0xf] %vm607, 0
        %615 = vst.msk [vmem:[#allocation3 + $0x1c] sm:$0xf] %vm607, 0
        %616 = vst.msk [vmem:[#allocation3 + $0x20] sm:$0xf] %vm607, 0
        %617 = vst.msk [vmem:[#allocation3 + $0x24] sm:$0xf] %vm607, 0
        %618 = vst.msk [vmem:[#allocation3 + $0x28] sm:$0xf] %vm607, 0
        %619 = vst.msk [vmem:[#allocation3 + $0x2c] sm:$0xf] %vm607, 0
        %620 = vst.msk [vmem:[#allocation3 + $0x30] sm:$0xf] %vm607, 0
        %621 = vst.msk [vmem:[#allocation3 + $0x34] sm:$0xf] %vm607, 0
        %622 = vst.msk [vmem:[#allocation3 + $0x38] sm:$0xf] %vm607, 0
        %623 = vst.msk [vmem:[#allocation3 + $0x3c] sm:$0xf] %vm607, 0
        %624 = vst.msk [vmem:[#allocation3 + $0x40] sm:$0xf] %vm607, 0
        %v625 = vld [vmem:[#allocation8] sm:$0x1]
        %v627 = vlaneseq
        %v628 = vshrl.u32 %v627, 7
        %v629 = vsub.s32 0, %v628
        %v630 = vrot.slane %v625, %v629
        %v632 = vld [vmem:[%s564] sm:$0xc]
        %v633 = vld [vmem:[%s564 + $0x4] sm:$0xf]
        %v634 = vld [vmem:[%s564 + $0x8] sm:$0xf]
        %v635 = vld [vmem:[%s564 + $0xc] sm:$0xf]
        %v636 = vld [vmem:[%s564 + $0x10] sm:$0xf]
        %v637 = vld [vmem:[%s564 + $0x14] sm:$0xf]
        %v638 = vld [vmem:[%s564 + $0x18] sm:$0xf]
        %v639 = vld [vmem:[%s564 + $0x1c] sm:$0xf]
        %v640 = vld [vmem:[%s564 + $0x20] sm:$0xf]
        %v641 = vld [vmem:[%s564 + $0x24] sm:$0xf]
        %v642 = vld [vmem:[%s564 + $0x28] sm:$0xf]
        %v643 = vld [vmem:[%s564 + $0x2c] sm:$0xf]
        %v644 = vld [vmem:[%s564 + $0x30] sm:$0xf]
        %v645 = vld [vmem:[%s564 + $0x34] sm:$0x7]
        %v646 = vld [vmem:[#allocation7] sm:$0xf]
        %v647 = vld [vmem:[#allocation7 + $0x4] sm:$0xf]
        %v648 = vld [vmem:[#allocation7 + $0x8] sm:$0xf]
        %v663 = vunpack.c.l.b16 %v632
        %v664 = vunpack.c.l.b16 %v633
        %v665 = vunpack.c.l.b16 %v634
        %v666 = vunpack.c.l.b16 %v635
        %v667 = vunpack.c.l.b16 %v636
        %v668 = vunpack.c.l.b16 %v637
        %v669 = vunpack.c.l.b16 %v638
        %v670 = vunpack.c.l.b16 %v639
        %v671 = vunpack.c.l.b16 %v640
        %v672 = vunpack.c.l.b16 %v641
        %v673 = vunpack.c.l.b16 %v642
        %v674 = vunpack.c.l.b16 %v643
        %v675 = vunpack.c.l.b16 %v644
        %v676 = vunpack.c.l.b16 %v645
        %v677 = vpack.c.b16 %v664, %v663
        %v678 = vpack.c.b16 %v666, %v665
        %v679 = vpack.c.b16 %v668, %v667
        %v680 = vpack.c.b16 %v670, %v669
        %v681 = vpack.c.b16 %v672, %v671
        %v682 = vpack.c.b16 %v674, %v673
        %v683 = vpack.c.b16 %v676, %v675
        %vm684 = vsmask.f32 5376
        %v686 = vshrl.u32 %v677, 16
        %v688 = vrot.slane %v686, 2
        %v689 = vshll.u32 %v677, 16
        %v691 = vrot.slane %v689, 3
        %v692 = vor.u32 %v688, %v691
        %v694 = vshrl.u32 %v678, 16
        %v696 = vrot.slane %v694, 2
        %v697 = vshll.u32 %v678, 16
        %v699 = vrot.slane %v697, 3
        %v700 = vor.u32 %v696, %v699
        %v701 = vsel %vm684, %v692, %v700
        %v703 = vshrl.u32 %v679, 16
        %v705 = vrot.slane %v703, 2
        %v706 = vshll.u32 %v679, 16
        %v708 = vrot.slane %v706, 3
        %v709 = vor.u32 %v705, %v708
        %v710 = vsel %vm684, %v700, %v709
        %v712 = vshrl.u32 %v680, 16
        %v714 = vrot.slane %v712, 2
        %v715 = vshll.u32 %v680, 16
        %v717 = vrot.slane %v715, 3
        %v718 = vor.u32 %v714, %v717
        %v719 = vsel %vm684, %v709, %v718
        %v721 = vshrl.u32 %v681, 16
        %v723 = vrot.slane %v721, 2
        %v724 = vshll.u32 %v681, 16
        %v726 = vrot.slane %v724, 3
        %v727 = vor.u32 %v723, %v726
        %v728 = vsel %vm684, %v718, %v727
        %v730 = vshrl.u32 %v682, 16
        %v732 = vrot.slane %v730, 2
        %v733 = vshll.u32 %v682, 16
        %v735 = vrot.slane %v733, 3
        %v736 = vor.u32 %v732, %v735
        %v737 = vsel %vm684, %v727, %v736
        %v739 = vshrl.u32 %v683, 16
        %v741 = vrot.slane %v739, 2
        %v742 = vshll.u32 %v683, 16
        %v744 = vrot.slane %v742, 3
        %v745 = vor.u32 %v741, %v744
        %v746 = vsel %vm684, %v736, %v745
        %v750 = vunpack.c.l.b16 %v646
        %v751 = vunpack.c.l.b16 %v647
        %v752 = vunpack.c.l.b16 %v648
        %v753 = vpack.c.b16 %v751, %v750
        %v754 = vpack.c.b16 %v752, %v752
        %vm756 = vcmask 195584
        %v758 = vsel %vm756, %v701, 0
        %v761 = vsel %vm756, %v710, 0
        %v764 = vsel %vm756, %v719, 0
        %v767 = vsel %vm756, %v728, 0
        %v770 = vsel %vm756, %v737, 0
        %v773 = vsel %vm756, %v746, 0
        %v776 = vsel %vm756, %v745, 0
        %vm778 = vcmask 1043456
        %v780 = vsel %vm778, %v754, 0
        %782 = vmatprep.subr.bf16.mxu0 0
        %783 = vmatpush1.bf16.msra.mxu0 %v753
        %784 = vmatprep.subr.bf16.mxu0 0
        %785 = vmatpush1.bf16.msra.mxu0 %v780
        %786 = vmatprep.subr.bf16.mxu0 0
        %787 = vmatpush1.bf16.msra.mxu0 0
        %788 = vmatprep.subr.bf16.mxu0 0
        %789 = vmatpush1.bf16.msra.mxu0 0
        %790 = vmatprep.subr.bf16.mxu0 0
        %791 = vmatpush1.bf16.msra.mxu0 0
        %792 = vmatprep.subr.bf16.mxu0 0
        %793 = vmatpush1.bf16.msra.mxu0 0
        %794 = vmatprep.subr.bf16.mxu0 0
        %795 = vmatpush1.bf16.msra.mxu0 0
        %796 = vmatprep.subr.bf16.mxu0 0
        %797 = vmatpush1.bf16.msra.mxu0 0
        %798 = vmatprep.subr.bf16.mxu0 0
        %799 = vmatpush1.bf16.msra.mxu0 0
        %800 = vmatprep.subr.bf16.mxu0 0
        %801 = vmatpush1.bf16.msra.mxu0 0
        %802 = vmatprep.subr.bf16.mxu0 0
        %803 = vmatpush1.bf16.msra.mxu0 0
        %804 = vmatprep.subr.bf16.mxu0 0
        %805 = vmatpush1.bf16.msra.mxu0 0
        %806 = vmatprep.subr.bf16.mxu0 0
        %807 = vmatpush1.bf16.msra.mxu0 0
        %808 = vmatprep.subr.bf16.mxu0 0
        %809 = vmatpush1.bf16.msra.mxu0 0
        %810 = vmatprep.subr.bf16.mxu0 0
        %811 = vmatpush1.bf16.msra.mxu0 0
        %812 = vmatprep.subr.bf16.mxu0 0
        %813 = vmatpush1.bf16.msra.mxu0 0
        %814 = vmatprep.mubr.bf16.mxu0 0
        %815 = vmatmul.mubr.bf16.gmra.mrb[0].mxu0 %v758
        %v816 = vpop.f32.mrb[0].mxu0
        %v817 = vadd.f32 0.0, %v816
        %v818 = vpop.f32.mrb[0].mxu0
        %v819 = vpop.f32.mrb[0].mxu0
        %v820 = vadd.f32 0.0, %v819
        %v821 = vpop.f32.mrb[0].mxu0
        %822 = vmatprep.mubr.bf16.mxu0 0
        %823 = vmatmul.mubr.bf16.gmra.mrb[0].mxu0 %v761
        %v824 = vpop.f32.mrb[0].mxu0
        %v825 = vadd.f32 0.0, %v824
        %v826 = vpop.f32.mrb[0].mxu0
        %v827 = vpop.f32.mrb[0].mxu0
        %v828 = vadd.f32 0.0, %v827
        %v829 = vpop.f32.mrb[0].mxu0
        %830 = vmatprep.mubr.bf16.mxu0 0
        %831 = vmatmul.mubr.bf16.gmra.mrb[0].mxu0 %v764
        %v832 = vpop.f32.mrb[0].mxu0
        %v833 = vadd.f32 0.0, %v832
        %v834 = vpop.f32.mrb[0].mxu0
        %v835 = vpop.f32.mrb[0].mxu0
        %v836 = vadd.f32 0.0, %v835
        %v837 = vpop.f32.mrb[0].mxu0
        %838 = vmatprep.mubr.bf16.mxu0 0
        %839 = vmatmul.mubr.bf16.gmra.mrb[0].mxu0 %v767
        %v840 = vpop.f32.mrb[0].mxu0
        %v841 = vadd.f32 0.0, %v840
        %v842 = vpop.f32.mrb[0].mxu0
        %v843 = vpop.f32.mrb[0].mxu0
        %v844 = vadd.f32 0.0, %v843
        %v845 = vpop.f32.mrb[0].mxu0
        %846 = vmatprep.mubr.bf16.mxu0 0
        %847 = vmatmul.mubr.bf16.gmra.mrb[0].mxu0 %v770
        %v848 = vpop.f32.mrb[0].mxu0
        %v849 = vadd.f32 0.0, %v848
        %v850 = vpop.f32.mrb[0].mxu0
        %v851 = vpop.f32.mrb[0].mxu0
        %v852 = vadd.f32 0.0, %v851
        %v853 = vpop.f32.mrb[0].mxu0
        %854 = vmatprep.mubr.bf16.mxu0 0
        %855 = vmatmul.mubr.bf16.gmra.mrb[0].mxu0 %v773
        %v856 = vpop.f32.mrb[0].mxu0
        %v857 = vadd.f32 0.0, %v856
        %v858 = vpop.f32.mrb[0].mxu0
        %v859 = vpop.f32.mrb[0].mxu0
        %v860 = vadd.f32 0.0, %v859
        %v861 = vpop.f32.mrb[0].mxu0
        %862 = vmatprep.mubr.bf16.mxu0 0
        %863 = vmatmul.mubr.bf16.gmra.mrb[0].mxu0 %v776
        %v864 = vpop.f32.mrb[0].mxu0
        %v865 = vadd.f32 0.0, %v864
        %v866 = vpop.f32.mrb[0].mxu0
        %v867 = vpop.f32.mrb[0].mxu0
        %v868 = vpop.f32.mrb[0].mxu0
        %869 = vdwg.mxu0
        %v870 = vadd.f32 %v630, %v817
        %v871 = vadd.f32 %v630, %v820
        %v872 = vadd.f32 %v630, %v825
        %v873 = vadd.f32 %v630, %v828
        %v874 = vadd.f32 %v630, %v833
        %v875 = vadd.f32 %v630, %v836
        %v876 = vadd.f32 %v630, %v841
        %v877 = vadd.f32 %v630, %v844
        %v878 = vadd.f32 %v630, %v849
        %v879 = vadd.f32 %v630, %v852
        %v880 = vadd.f32 %v630, %v857
        %v881 = vadd.f32 %v630, %v860
        %v882 = vadd.f32 %v630, %v865
        %v883 = vld [vmem:[%s564] sm:$0x8]
        %s884 = scalar_lea.vmem [#allocation7], 12
        %v885 = vld [vmem:[%s884] sm:$0xf]
        %v886 = vld [vmem:[%s884 + $0x4] sm:$0xf]
        %v887 = vld [vmem:[%s884 + $0x8] sm:$0xf]
        %v889 = vunpack.c.l.b16 %v883
        %v890 = vpack.c.b16 %v664, %v889
        %vm891 = vcmask 1044480
        %v892 = vrot.slane %v890, 3
        %v893 = vrot.slane %v678, 3
        %v894 = vsel %vm891, %v892, %v893
        %v895 = vrot.slane %v679, 3
        %v896 = vsel %vm891, %v893, %v895
        %v897 = vrot.slane %v680, 3
        %v898 = vsel %vm891, %v895, %v897
        %v899 = vrot.slane %v681, 3
        %v900 = vsel %vm891, %v897, %v899
        %v901 = vrot.slane %v682, 3
        %v902 = vsel %vm891, %v899, %v901
        %v903 = vrot.slane %v683, 3
        %v904 = vsel %vm891, %v901, %v903
        %v908 = vunpack.c.l.b16 %v885
        %v909 = vunpack.c.l.b16 %v886
        %v910 = vunpack.c.l.b16 %v887
        %v911 = vpack.c.b16 %v909, %v908
        %v912 = vpack.c.b16 %v910, %v910
        %v915 = vsel %vm756, %v894, 0
        %v918 = vsel %vm756, %v896, 0
        %v921 = vsel %vm756, %v898, 0
        %v924 = vsel %vm756, %v900, 0
        %v927 = vsel %vm756, %v902, 0
        %v930 = vsel %vm756, %v904, 0
        %v933 = vsel %vm756, %v903, 0
        %v936 = vsel %vm778, %v912, 0
        %938 = vmatprep.subr.bf16.mxu0 0
        %939 = vmatpush1.bf16.msra.mxu0 %v911
        %940 = vmatprep.subr.bf16.mxu0 0
        %941 = vmatpush1.bf16.msra.mxu0 %v936
        %942 = vmatprep.subr.bf16.mxu0 0
        %943 = vmatpush1.bf16.msra.mxu0 0
        %944 = vmatprep.subr.bf16.mxu0 0
        %945 = vmatpush1.bf16.msra.mxu0 0
        %946 = vmatprep.subr.bf16.mxu0 0
        %947 = vmatpush1.bf16.msra.mxu0 0
        %948 = vmatprep.subr.bf16.mxu0 0
        %949 = vmatpush1.bf16.msra.mxu0 0
        %950 = vmatprep.subr.bf16.mxu0 0
        %951 = vmatpush1.bf16.msra.mxu0 0
        %952 = vmatprep.subr.bf16.mxu0 0
        %953 = vmatpush1.bf16.msra.mxu0 0
        %954 = vmatprep.subr.bf16.mxu0 0
        %955 = vmatpush1.bf16.msra.mxu0 0
        %956 = vmatprep.subr.bf16.mxu0 0
        %957 = vmatpush1.bf16.msra.mxu0 0
        %958 = vmatprep.subr.bf16.mxu0 0
        %959 = vmatpush1.bf16.msra.mxu0 0
        %960 = vmatprep.subr.bf16.mxu0 0
        %961 = vmatpush1.bf16.msra.mxu0 0
        %962 = vmatprep.subr.bf16.mxu0 0
        %963 = vmatpush1.bf16.msra.mxu0 0
        %964 = vmatprep.subr.bf16.mxu0 0
        %965 = vmatpush1.bf16.msra.mxu0 0
        %966 = vmatprep.subr.bf16.mxu0 0
        %967 = vmatpush1.bf16.msra.mxu0 0
        %968 = vmatprep.subr.bf16.mxu0 0
        %969 = vmatpush1.bf16.msra.mxu0 0
        %970 = vmatprep.mubr.bf16.mxu0 0
        %971 = vmatmul.mubr.bf16.gmra.mrb[0].mxu0 %v915
        %v972 = vpop.f32.mrb[0].mxu0
        %v973 = vadd.f32 0.0, %v972
        %v974 = vpop.f32.mrb[0].mxu0
        %v975 = vpop.f32.mrb[0].mxu0
        %v976 = vadd.f32 0.0, %v975
        %v977 = vpop.f32.mrb[0].mxu0
        %978 = vmatprep.mubr.bf16.mxu0 0
        %979 = vmatmul.mubr.bf16.gmra.mrb[0].mxu0 %v918
        %v980 = vpop.f32.mrb[0].mxu0
        %v981 = vadd.f32 0.0, %v980
        %v982 = vpop.f32.mrb[0].mxu0
        %v983 = vpop.f32.mrb[0].mxu0
        %v984 = vadd.f32 0.0, %v983
        %v985 = vpop.f32.mrb[0].mxu0
        %986 = vmatprep.mubr.bf16.mxu0 0
        %987 = vmatmul.mubr.bf16.gmra.mrb[0].mxu0 %v921
        %v988 = vpop.f32.mrb[0].mxu0
        %v989 = vadd.f32 0.0, %v988
        %v990 = vpop.f32.mrb[0].mxu0
        %v991 = vpop.f32.mrb[0].mxu0
        %v992 = vadd.f32 0.0, %v991
        %v993 = vpop.f32.mrb[0].mxu0
        %994 = vmatprep.mubr.bf16.mxu0 0
        %995 = vmatmul.mubr.bf16.gmra.mrb[0].mxu0 %v924
        %v996 = vpop.f32.mrb[0].mxu0
        %v997 = vadd.f32 0.0, %v996
        %v998 = vpop.f32.mrb[0].mxu0
        %v999 = vpop.f32.mrb[0].mxu0
        %v1000 = vadd.f32 0.0, %v999
        %v1001 = vpop.f32.mrb[0].mxu0
        %1002 = vmatprep.mubr.bf16.mxu0 0
        %1003 = vmatmul.mubr.bf16.gmra.mrb[0].mxu0 %v927
        %v1004 = vpop.f32.mrb[0].mxu0
        %v1005 = vadd.f32 0.0, %v1004
        %v1006 = vpop.f32.mrb[0].mxu0
        %v1007 = vpop.f32.mrb[0].mxu0
        %v1008 = vadd.f32 0.0, %v1007
        %v1009 = vpop.f32.mrb[0].mxu0
        %1010 = vmatprep.mubr.bf16.mxu0 0
        %1011 = vmatmul.mubr.bf16.gmra.mrb[0].mxu0 %v930
        %v1012 = vpop.f32.mrb[0].mxu0
        %v1013 = vadd.f32 0.0, %v1012
        %v1014 = vpop.f32.mrb[0].mxu0
        %v1015 = vpop.f32.mrb[0].mxu0
        %v1016 = vadd.f32 0.0, %v1015
        %v1017 = vpop.f32.mrb[0].mxu0
        %1018 = vmatprep.mubr.bf16.mxu0 0
        %1019 = vmatmul.mubr.bf16.gmra.mrb[0].mxu0 %v933
        %v1020 = vpop.f32.mrb[0].mxu0
        %v1021 = vadd.f32 0.0, %v1020
        %v1022 = vpop.f32.mrb[0].mxu0
        %v1023 = vpop.f32.mrb[0].mxu0
        %v1024 = vpop.f32.mrb[0].mxu0
        %1025 = vdwg.mxu0
        %v1026 = vadd.f32 %v870, %v973
        %v1027 = vadd.f32 %v871, %v976
        %v1028 = vadd.f32 %v872, %v981
        %v1029 = vadd.f32 %v873, %v984
        %v1030 = vadd.f32 %v874, %v989
        %v1031 = vadd.f32 %v875, %v992
        %v1032 = vadd.f32 %v876, %v997
        %v1033 = vadd.f32 %v877, %v1000
        %v1034 = vadd.f32 %v878, %v1005
        %v1035 = vadd.f32 %v879, %v1008
        %v1036 = vadd.f32 %v880, %v1013
        %v1037 = vadd.f32 %v881, %v1016
        %v1038 = vadd.f32 %v882, %v1021
        %v1039 = vld [vmem:[%s564 + $0x34] sm:$0xf]
        %s1040 = scalar_lea.vmem [#allocation7], 24
        %v1041 = vld [vmem:[%s1040] sm:$0xf]
        %v1042 = vld [vmem:[%s1040 + $0x4] sm:$0xf]
        %v1043 = vld [vmem:[%s1040 + $0x8] sm:$0xf]
        %v1045 = vunpack.c.l.b16 %v1039
        %v1046 = vpack.c.b16 %v1045, %v675
        %vm1047 = vsmask.f32 4352
        %v1049 = vshrl.u32 %v890, 16
        %v1051 = vrot.slane %v1049, 3
        %v1052 = vshll.u32 %v890, 16
        %v1054 = vrot.slane %v1052, 4
        %v1055 = vor.u32 %v1051, %v1054
        %v1056 = vrot.slane %v694, 3
        %v1057 = vrot.slane %v697, 4
        %v1058 = vor.u32 %v1056, %v1057
        %v1059 = vsel %vm1047, %v1055, %v1058
        %v1060 = vrot.slane %v703, 3
        %v1061 = vrot.slane %v706, 4
        %v1062 = vor.u32 %v1060, %v1061
        %v1063 = vsel %vm1047, %v1058, %v1062
        %v1064 = vrot.slane %v712, 3
        %v1065 = vrot.slane %v715, 4
        %v1066 = vor.u32 %v1064, %v1065
        %v1067 = vsel %vm1047, %v1062, %v1066
        %v1068 = vrot.slane %v721, 3
        %v1069 = vrot.slane %v724, 4
        %v1070 = vor.u32 %v1068, %v1069
        %v1071 = vsel %vm1047, %v1066, %v1070
        %v1072 = vrot.slane %v730, 3
        %v1073 = vrot.slane %v733, 4
        %v1074 = vor.u32 %v1072, %v1073
        %v1075 = vsel %vm1047, %v1070, %v1074
        %v1077 = vshrl.u32 %v1046, 16
        %v1079 = vrot.slane %v1077, 3
        %v1080 = vshll.u32 %v1046, 16
        %v1082 = vrot.slane %v1080, 4
        %v1083 = vor.u32 %v1079, %v1082
        %v1084 = vsel %vm1047, %v1074, %v1083
        %v1088 = vunpack.c.l.b16 %v1041
        %v1089 = vunpack.c.l.b16 %v1042
        %v1090 = vunpack.c.l.b16 %v1043
        %v1091 = vpack.c.b16 %v1089, %v1088
        %v1092 = vpack.c.b16 %v1090, %v1090
        %v1095 = vsel %vm756, %v1059, 0
        %v1098 = vsel %vm756, %v1063, 0
        %v1101 = vsel %vm756, %v1067, 0
        %v1104 = vsel %vm756, %v1071, 0
        %v1107 = vsel %vm756, %v1075, 0
        %v1110 = vsel %vm756, %v1084, 0
        %v1113 = vsel %vm756, %v1083, 0
        %v1116 = vsel %vm778, %v1092, 0
        %1118 = vmatprep.subr.bf16.mxu0 0
        %1119 = vmatpush1.bf16.msra.mxu0 %v1091
        %1120 = vmatprep.subr.bf16.mxu0 0
        %1121 = vmatpush1.bf16.msra.mxu0 %v1116
        %1122 = vmatprep.subr.bf16.mxu0 0
        %1123 = vmatpush1.bf16.msra.mxu0 0
        %1124 = vmatprep.subr.bf16.mxu0 0
        %1125 = vmatpush1.bf16.msra.mxu0 0
        %1126 = vmatprep.subr.bf16.mxu0 0
        %1127 = vmatpush1.bf16.msra.mxu0 0
        %1128 = vmatprep.subr.bf16.mxu0 0
        %1129 = vmatpush1.bf16.msra.mxu0 0
        %1130 = vmatprep.subr.bf16.mxu0 0
        %1131 = vmatpush1.bf16.msra.mxu0 0
        %1132 = vmatprep.subr.bf16.mxu0 0
        %1133 = vmatpush1.bf16.msra.mxu0 0
        %1134 = vmatprep.subr.bf16.mxu0 0
        %1135 = vmatpush1.bf16.msra.mxu0 0
        %1136 = vmatprep.subr.bf16.mxu0 0
        %1137 = vmatpush1.bf16.msra.mxu0 0
        %1138 = vmatprep.subr.bf16.mxu0 0
        %1139 = vmatpush1.bf16.msra.mxu0 0
        %1140 = vmatprep.subr.bf16.mxu0 0
        %1141 = vmatpush1.bf16.msra.mxu0 0
        %1142 = vmatprep.subr.bf16.mxu0 0
        %1143 = vmatpush1.bf16.msra.mxu0 0
        %1144 = vmatprep.subr.bf16.mxu0 0
        %1145 = vmatpush1.bf16.msra.mxu0 0
        %1146 = vmatprep.subr.bf16.mxu0 0
        %1147 = vmatpush1.bf16.msra.mxu0 0
        %1148 = vmatprep.subr.bf16.mxu0 0
        %1149 = vmatpush1.bf16.msra.mxu0 0
        %1150 = vmatprep.mubr.bf16.mxu0 0
        %1151 = vmatmul.mubr.bf16.gmra.mrb[0].mxu0 %v1095
        %v1152 = vpop.f32.mrb[0].mxu0
        %v1153 = vadd.f32 0.0, %v1152
        %v1154 = vpop.f32.mrb[0].mxu0
        %v1155 = vpop.f32.mrb[0].mxu0
        %v1156 = vadd.f32 0.0, %v1155
        %v1157 = vpop.f32.mrb[0].mxu0
        %1158 = vmatprep.mubr.bf16.mxu0 0
        %1159 = vmatmul.mubr.bf16.gmra.mrb[0].mxu0 %v1098
        %v1160 = vpop.f32.mrb[0].mxu0
        %v1161 = vadd.f32 0.0, %v1160
        %v1162 = vpop.f32.mrb[0].mxu0
        %v1163 = vpop.f32.mrb[0].mxu0
        %v1164 = vadd.f32 0.0, %v1163
        %v1165 = vpop.f32.mrb[0].mxu0
        %1166 = vmatprep.mubr.bf16.mxu0 0
        %1167 = vmatmul.mubr.bf16.gmra.mrb[0].mxu0 %v1101
        %v1168 = vpop.f32.mrb[0].mxu0
        %v1169 = vadd.f32 0.0, %v1168
        %v1170 = vpop.f32.mrb[0].mxu0
        %v1171 = vpop.f32.mrb[0].mxu0
        %v1172 = vadd.f32 0.0, %v1171
        %v1173 = vpop.f32.mrb[0].mxu0
        %1174 = vmatprep.mubr.bf16.mxu0 0
        %1175 = vmatmul.mubr.bf16.gmra.mrb[0].mxu0 %v1104
        %v1176 = vpop.f32.mrb[0].mxu0
        %v1177 = vadd.f32 0.0, %v1176
        %v1178 = vpop.f32.mrb[0].mxu0
        %v1179 = vpop.f32.mrb[0].mxu0
        %v1180 = vadd.f32 0.0, %v1179
        %v1181 = vpop.f32.mrb[0].mxu0
        %1182 = vmatprep.mubr.bf16.mxu0 0
        %1183 = vmatmul.mubr.bf16.gmra.mrb[0].mxu0 %v1107
        %v1184 = vpop.f32.mrb[0].mxu0
        %v1185 = vadd.f32 0.0, %v1184
        %v1186 = vpop.f32.mrb[0].mxu0
        %v1187 = vpop.f32.mrb[0].mxu0
        %v1188 = vadd.f32 0.0, %v1187
        %v1189 = vpop.f32.mrb[0].mxu0
        %1190 = vmatprep.mubr.bf16.mxu0 0
        %1191 = vmatmul.mubr.bf16.gmra.mrb[0].mxu0 %v1110
        %v1192 = vpop.f32.mrb[0].mxu0
        %v1193 = vadd.f32 0.0, %v1192
        %v1194 = vpop.f32.mrb[0].mxu0
        %v1195 = vpop.f32.mrb[0].mxu0
        %v1196 = vadd.f32 0.0, %v1195
        %v1197 = vpop.f32.mrb[0].mxu0
        %1198 = vmatprep.mubr.bf16.mxu0 0
        %1199 = vmatmul.mubr.bf16.gmra.mrb[0].mxu0 %v1113
        %v1200 = vpop.f32.mrb[0].mxu0
        %v1201 = vadd.f32 0.0, %v1200
        %v1202 = vpop.f32.mrb[0].mxu0
        %v1203 = vpop.f32.mrb[0].mxu0
        %v1204 = vpop.f32.mrb[0].mxu0
        %1205 = vdwg.mxu0
        %v1206 = vadd.f32 %v1026, %v1153
        %v1207 = vadd.f32 %v1027, %v1156
        %v1208 = vadd.f32 %v1028, %v1161
        %v1209 = vadd.f32 %v1029, %v1164
        %v1210 = vadd.f32 %v1030, %v1169
        %v1211 = vadd.f32 %v1031, %v1172
        %v1212 = vadd.f32 %v1032, %v1177
        %v1213 = vadd.f32 %v1033, %v1180
        %v1214 = vadd.f32 %v1034, %v1185
        %v1215 = vadd.f32 %v1035, %v1188
        %v1216 = vadd.f32 %v1036, %v1193
        %v1217 = vadd.f32 %v1037, %v1196
        %v1218 = vadd.f32 %v1038, %v1201
        %v1219 = vld [vmem:[%s564 + $0x4] sm:$0x8]
        %v1220 = vld [vmem:[%s564 + $0x8] sm:$0xf]
        %v1221 = vld [vmem:[%s564 + $0xc] sm:$0xf]
        %v1222 = vld [vmem:[%s564 + $0x10] sm:$0xf]
        %v1223 = vld [vmem:[%s564 + $0x14] sm:$0xf]
        %v1224 = vld [vmem:[%s564 + $0x18] sm:$0xf]
        %v1225 = vld [vmem:[%s564 + $0x1c] sm:$0xf]
        %v1226 = vld [vmem:[%s564 + $0x20] sm:$0xf]
        %v1227 = vld [vmem:[%s564 + $0x24] sm:$0xf]
        %v1228 = vld [vmem:[%s564 + $0x28] sm:$0xf]
        %v1229 = vld [vmem:[%s564 + $0x2c] sm:$0xf]
        %v1230 = vld [vmem:[%s564 + $0x30] sm:$0xf]
        %v1231 = vld [vmem:[%s564 + $0x34] sm:$0xf]
        %v1232 = vld [vmem:[%s564 + $0x38] sm:$0xf]
        %s1233 = scalar_lea.vmem [#allocation7], 36
        %v1234 = vld [vmem:[%s1233] sm:$0xf]
        %v1235 = vld [vmem:[%s1233 + $0x4] sm:$0xf]
        %v1236 = vld [vmem:[%s1233 + $0x8] sm:$0xf]
        %v1251 = vunpack.c.l.b16 %v1219
        %v1252 = vunpack.c.l.b16 %v1220
        %v1253 = vunpack.c.l.b16 %v1221
        %v1254 = vunpack.c.l.b16 %v1222
        %v1255 = vunpack.c.l.b16 %v1223
        %v1256 = vunpack.c.l.b16 %v1224
        %v1257 = vunpack.c.l.b16 %v1225
        %v1258 = vunpack.c.l.b16 %v1226
        %v1259 = vunpack.c.l.b16 %v1227
        %v1260 = vunpack.c.l.b16 %v1228
        %v1261 = vunpack.c.l.b16 %v1229
        %v1262 = vunpack.c.l.b16 %v1230
        %v1263 = vunpack.c.l.b16 %v1231
        %v1264 = vunpack.c.l.b16 %v1232
        %v1265 = vpack.c.b16 %v1252, %v1251
        %v1266 = vpack.c.b16 %v1254, %v1253
        %v1267 = vpack.c.b16 %v1256, %v1255
        %v1268 = vpack.c.b16 %v1258, %v1257
        %v1269 = vpack.c.b16 %v1260, %v1259
        %v1270 = vpack.c.b16 %v1262, %v1261
        %v1271 = vpack.c.b16 %v1264, %v1263
        %v1273 = vshrl.u32 %v1265, 16
        %v1275 = vrot.slane %v1273, 3
        %v1276 = vshll.u32 %v1265, 16
        %v1278 = vrot.slane %v1276, 4
        %v1279 = vor.u32 %v1275, %v1278
        %v1281 = vshrl.u32 %v1266, 16
        %v1283 = vrot.slane %v1281, 3
        %v1284 = vshll.u32 %v1266, 16
        %v1286 = vrot.slane %v1284, 4
        %v1287 = vor.u32 %v1283, %v1286
        %v1288 = vsel %vm1047, %v1279, %v1287
        %v1290 = vshrl.u32 %v1267, 16
        %v1292 = vrot.slane %v1290, 3
        %v1293 = vshll.u32 %v1267, 16
        %v1295 = vrot.slane %v1293, 4
        %v1296 = vor.u32 %v1292, %v1295
        %v1297 = vsel %vm1047, %v1287, %v1296
        %v1299 = vshrl.u32 %v1268, 16
        %v1301 = vrot.slane %v1299, 3
        %v1302 = vshll.u32 %v1268, 16
        %v1304 = vrot.slane %v1302, 4
        %v1305 = vor.u32 %v1301, %v1304
        %v1306 = vsel %vm1047, %v1296, %v1305
        %v1308 = vshrl.u32 %v1269, 16
        %v1310 = vrot.slane %v1308, 3
        %v1311 = vshll.u32 %v1269, 16
        %v1313 = vrot.slane %v1311, 4
        %v1314 = vor.u32 %v1310, %v1313
        %v1315 = vsel %vm1047, %v1305, %v1314
        %v1317 = vshrl.u32 %v1270, 16
        %v1319 = vrot.slane %v1317, 3
        %v1320 = vshll.u32 %v1270, 16
        %v1322 = vrot.slane %v1320, 4
        %v1323 = vor.u32 %v1319, %v1322
        %v1324 = vsel %vm1047, %v1314, %v1323
        %v1326 = vshrl.u32 %v1271, 16
        %v1328 = vrot.slane %v1326, 3
        %v1329 = vshll.u32 %v1271, 16
        %v1331 = vrot.slane %v1329, 4
        %v1332 = vor.u32 %v1328, %v1331
        %v1333 = vsel %vm1047, %v1323, %v1332
        %v1337 = vunpack.c.l.b16 %v1234
        %v1338 = vunpack.c.l.b16 %v1235
        %v1339 = vunpack.c.l.b16 %v1236
        %v1340 = vpack.c.b16 %v1338, %v1337
        %v1341 = vpack.c.b16 %v1339, %v1339
        %v1344 = vsel %vm756, %v1288, 0
        %v1347 = vsel %vm756, %v1297, 0
        %v1350 = vsel %vm756, %v1306, 0
        %v1353 = vsel %vm756, %v1315, 0
        %v1356 = vsel %vm756, %v1324, 0
        %v1359 = vsel %vm756, %v1333, 0
        %v1362 = vsel %vm756, %v1332, 0
        %v1365 = vsel %vm778, %v1341, 0
        %1367 = vmatprep.subr.bf16.mxu0 0
        %1368 = vmatpush1.bf16.msra.mxu0 %v1340
        %1369 = vmatprep.subr.bf16.mxu0 0
        %1370 = vmatpush1.bf16.msra.mxu0 %v1365
        %1371 = vmatprep.subr.bf16.mxu0 0
        %1372 = vmatpush1.bf16.msra.mxu0 0
        %1373 = vmatprep.subr.bf16.mxu0 0
        %1374 = vmatpush1.bf16.msra.mxu0 0
        %1375 = vmatprep.subr.bf16.mxu0 0
        %1376 = vmatpush1.bf16.msra.mxu0 0
        %1377 = vmatprep.subr.bf16.mxu0 0
        %1378 = vmatpush1.bf16.msra.mxu0 0
        %1379 = vmatprep.subr.bf16.mxu0 0
        %1380 = vmatpush1.bf16.msra.mxu0 0
        %1381 = vmatprep.subr.bf16.mxu0 0
        %1382 = vmatpush1.bf16.msra.mxu0 0
        %1383 = vmatprep.subr.bf16.mxu0 0
        %1384 = vmatpush1.bf16.msra.mxu0 0
        %1385 = vmatprep.subr.bf16.mxu0 0
        %1386 = vmatpush1.bf16.msra.mxu0 0
        %1387 = vmatprep.subr.bf16.mxu0 0
        %1388 = vmatpush1.bf16.msra.mxu0 0
        %1389 = vmatprep.subr.bf16.mxu0 0
        %1390 = vmatpush1.bf16.msra.mxu0 0
        %1391 = vmatprep.subr.bf16.mxu0 0
        %1392 = vmatpush1.bf16.msra.mxu0 0
        %1393 = vmatprep.subr.bf16.mxu0 0
        %1394 = vmatpush1.bf16.msra.mxu0 0
        %1395 = vmatprep.subr.bf16.mxu0 0
        %1396 = vmatpush1.bf16.msra.mxu0 0
        %1397 = vmatprep.subr.bf16.mxu0 0
        %1398 = vmatpush1.bf16.msra.mxu0 0
        %1399 = vmatprep.mubr.bf16.mxu0 0
        %1400 = vmatmul.mubr.bf16.gmra.mrb[0].mxu0 %v1344
        %v1401 = vpop.f32.mrb[0].mxu0
        %v1402 = vadd.f32 0.0, %v1401
        %v1403 = vpop.f32.mrb[0].mxu0
        %v1404 = vpop.f32.mrb[0].mxu0
        %v1405 = vadd.f32 0.0, %v1404
        %v1406 = vpop.f32.mrb[0].mxu0
        %1407 = vmatprep.mubr.bf16.mxu0 0
        %1408 = vmatmul.mubr.bf16.gmra.mrb[0].mxu0 %v1347
        %v1409 = vpop.f32.mrb[0].mxu0
        %v1410 = vadd.f32 0.0, %v1409
        %v1411 = vpop.f32.mrb[0].mxu0
        %v1412 = vpop.f32.mrb[0].mxu0
        %v1413 = vadd.f32 0.0, %v1412
        %v1414 = vpop.f32.mrb[0].mxu0
        %1415 = vmatprep.mubr.bf16.mxu0 0
        %1416 = vmatmul.mubr.bf16.gmra.mrb[0].mxu0 %v1350
        %v1417 = vpop.f32.mrb[0].mxu0
        %v1418 = vadd.f32 0.0, %v1417
        %v1419 = vpop.f32.mrb[0].mxu0
        %v1420 = vpop.f32.mrb[0].mxu0
        %v1421 = vadd.f32 0.0, %v1420
        %v1422 = vpop.f32.mrb[0].mxu0
        %1423 = vmatprep.mubr.bf16.mxu0 0
        %1424 = vmatmul.mubr.bf16.gmra.mrb[0].mxu0 %v1353
        %v1425 = vpop.f32.mrb[0].mxu0
        %v1426 = vadd.f32 0.0, %v1425
        %v1427 = vpop.f32.mrb[0].mxu0
        %v1428 = vpop.f32.mrb[0].mxu0
        %v1429 = vadd.f32 0.0, %v1428
        %v1430 = vpop.f32.mrb[0].mxu0
        %1431 = vmatprep.mubr.bf16.mxu0 0
        %1432 = vmatmul.mubr.bf16.gmra.mrb[0].mxu0 %v1356
        %v1433 = vpop.f32.mrb[0].mxu0
        %v1434 = vadd.f32 0.0, %v1433
        %v1435 = vpop.f32.mrb[0].mxu0
        %v1436 = vpop.f32.mrb[0].mxu0
        %v1437 = vadd.f32 0.0, %v1436
        %v1438 = vpop.f32.mrb[0].mxu0
        %1439 = vmatprep.mubr.bf16.mxu0 0
        %1440 = vmatmul.mubr.bf16.gmra.mrb[0].mxu0 %v1359
        %v1441 = vpop.f32.mrb[0].mxu0
        %v1442 = vadd.f32 0.0, %v1441
        %v1443 = vpop.f32.mrb[0].mxu0
        %v1444 = vpop.f32.mrb[0].mxu0
        %v1445 = vadd.f32 0.0, %v1444
        %v1446 = vpop.f32.mrb[0].mxu0
        %1447 = vmatprep.mubr.bf16.mxu0 0
        %1448 = vmatmul.mubr.bf16.gmra.mrb[0].mxu0 %v1362
        %v1449 = vpop.f32.mrb[0].mxu0
        %v1450 = vadd.f32 0.0, %v1449
        %v1451 = vpop.f32.mrb[0].mxu0
        %v1452 = vpop.f32.mrb[0].mxu0
        %v1453 = vpop.f32.mrb[0].mxu0
        %1454 = vdwg.mxu0
        %v1455 = vadd.f32 %v1206, %v1402
        %v1456 = vadd.f32 %v1207, %v1405
        %v1457 = vadd.f32 %v1208, %v1410
        %v1458 = vadd.f32 %v1209, %v1413
        %v1459 = vadd.f32 %v1210, %v1418
        %v1460 = vadd.f32 %v1211, %v1421
        %v1461 = vadd.f32 %v1212, %v1426
        %v1462 = vadd.f32 %v1213, %v1429
        %v1463 = vadd.f32 %v1214, %v1434
        %v1464 = vadd.f32 %v1215, %v1437
        %v1465 = vadd.f32 %v1216, %v1442
        %v1466 = vadd.f32 %v1217, %v1445
        %v1467 = vadd.f32 %v1218, %v1450
        %s1468 = scalar_lea.vmem [#allocation7], 48
        %v1469 = vld [vmem:[%s1468] sm:$0xf]
        %v1470 = vld [vmem:[%s1468 + $0x4] sm:$0xf]
        %v1471 = vld [vmem:[%s1468 + $0x8] sm:$0xf]
        %v1472 = vpack.c.b16 %v1253, %v1252
        %v1473 = vpack.c.b16 %v1255, %v1254
        %v1474 = vpack.c.b16 %v1257, %v1256
        %v1475 = vpack.c.b16 %v1259, %v1258
        %v1476 = vpack.c.b16 %v1261, %v1260
        %v1477 = vpack.c.b16 %v1263, %v1262
        %v1478 = vpack.c.b16 %v1264, %v1264
        %v1482 = vunpack.c.l.b16 %v1469
        %v1483 = vunpack.c.l.b16 %v1470
        %v1484 = vunpack.c.l.b16 %v1471
        %v1485 = vpack.c.b16 %v1483, %v1482
        %v1486 = vpack.c.b16 %v1484, %v1484
        %v1489 = vsel %vm756, %v1472, 0
        %v1492 = vsel %vm756, %v1473, 0
        %v1495 = vsel %vm756, %v1474, 0
        %v1498 = vsel %vm756, %v1475, 0
        %v1501 = vsel %vm756, %v1476, 0
        %v1504 = vsel %vm756, %v1477, 0
        %v1507 = vsel %vm756, %v1478, 0
        %v1510 = vsel %vm778, %v1486, 0
        %1512 = vmatprep.subr.bf16.mxu0 0
        %1513 = vmatpush1.bf16.msra.mxu0 %v1485
        %1514 = vmatprep.subr.bf16.mxu0 0
        %1515 = vmatpush1.bf16.msra.mxu0 %v1510
        %1516 = vmatprep.subr.bf16.mxu0 0
        %1517 = vmatpush1.bf16.msra.mxu0 0
        %1518 = vmatprep.subr.bf16.mxu0 0
        %1519 = vmatpush1.bf16.msra.mxu0 0
        %1520 = vmatprep.subr.bf16.mxu0 0
        %1521 = vmatpush1.bf16.msra.mxu0 0
        %1522 = vmatprep.subr.bf16.mxu0 0
        %1523 = vmatpush1.bf16.msra.mxu0 0
        %1524 = vmatprep.subr.bf16.mxu0 0
        %1525 = vmatpush1.bf16.msra.mxu0 0
        %1526 = vmatprep.subr.bf16.mxu0 0
        %1527 = vmatpush1.bf16.msra.mxu0 0
        %1528 = vmatprep.subr.bf16.mxu0 0
        %1529 = vmatpush1.bf16.msra.mxu0 0
        %1530 = vmatprep.subr.bf16.mxu0 0
        %1531 = vmatpush1.bf16.msra.mxu0 0
        %1532 = vmatprep.subr.bf16.mxu0 0
        %1533 = vmatpush1.bf16.msra.mxu0 0
        %1534 = vmatprep.subr.bf16.mxu0 0
        %1535 = vmatpush1.bf16.msra.mxu0 0
        %1536 = vmatprep.subr.bf16.mxu0 0
        %1537 = vmatpush1.bf16.msra.mxu0 0
        %1538 = vmatprep.subr.bf16.mxu0 0
        %1539 = vmatpush1.bf16.msra.mxu0 0
        %1540 = vmatprep.subr.bf16.mxu0 0
        %1541 = vmatpush1.bf16.msra.mxu0 0
        %1542 = vmatprep.subr.bf16.mxu0 0
        %1543 = vmatpush1.bf16.msra.mxu0 0
        %1544 = vmatprep.mubr.bf16.mxu0 0
        %1545 = vmatmul.mubr.bf16.gmra.mrb[0].mxu0 %v1489
        %v1546 = vpop.f32.mrb[0].mxu0
        %v1547 = vadd.f32 0.0, %v1546
        %v1548 = vpop.f32.mrb[0].mxu0
        %v1549 = vpop.f32.mrb[0].mxu0
        %v1550 = vadd.f32 0.0, %v1549
        %v1551 = vpop.f32.mrb[0].mxu0
        %1552 = vmatprep.mubr.bf16.mxu0 0
        %1553 = vmatmul.mubr.bf16.gmra.mrb[0].mxu0 %v1492
        %v1554 = vpop.f32.mrb[0].mxu0
        %v1555 = vadd.f32 0.0, %v1554
        %v1556 = vpop.f32.mrb[0].mxu0
        %v1557 = vpop.f32.mrb[0].mxu0
        %v1558 = vadd.f32 0.0, %v1557
        %v1559 = vpop.f32.mrb[0].mxu0
        %1560 = vmatprep.mubr.bf16.mxu0 0
        %1561 = vmatmul.mubr.bf16.gmra.mrb[0].mxu0 %v1495
        %v1562 = vpop.f32.mrb[0].mxu0
        %v1563 = vadd.f32 0.0, %v1562
        %v1564 = vpop.f32.mrb[0].mxu0
        %v1565 = vpop.f32.mrb[0].mxu0
        %v1566 = vadd.f32 0.0, %v1565
        %v1567 = vpop.f32.mrb[0].mxu0
        %1568 = vmatprep.mubr.bf16.mxu0 0
        %1569 = vmatmul.mubr.bf16.gmra.mrb[0].mxu0 %v1498
        %v1570 = vpop.f32.mrb[0].mxu0
        %v1571 = vadd.f32 0.0, %v1570
        %v1572 = vpop.f32.mrb[0].mxu0
        %v1573 = vpop.f32.mrb[0].mxu0
        %v1574 = vadd.f32 0.0, %v1573
        %v1575 = vpop.f32.mrb[0].mxu0
        %1576 = vmatprep.mubr.bf16.mxu0 0
        %1577 = vmatmul.mubr.bf16.gmra.mrb[0].mxu0 %v1501
        %v1578 = vpop.f32.mrb[0].mxu0
        %v1579 = vadd.f32 0.0, %v1578
        %v1580 = vpop.f32.mrb[0].mxu0
        %v1581 = vpop.f32.mrb[0].mxu0
        %v1582 = vadd.f32 0.0, %v1581
        %v1583 = vpop.f32.mrb[0].mxu0
        %1584 = vmatprep.mubr.bf16.mxu0 0
        %1585 = vmatmul.mubr.bf16.gmra.mrb[0].mxu0 %v1504
        %v1586 = vpop.f32.mrb[0].mxu0
        %v1587 = vadd.f32 0.0, %v1586
        %v1588 = vpop.f32.mrb[0].mxu0
        %v1589 = vpop.f32.mrb[0].mxu0
        %v1590 = vadd.f32 0.0, %v1589
        %v1591 = vpop.f32.mrb[0].mxu0
        %1592 = vmatprep.mubr.bf16.mxu0 0
        %1593 = vmatmul.mubr.bf16.gmra.mrb[0].mxu0 %v1507
        %v1594 = vpop.f32.mrb[0].mxu0
        %v1595 = vadd.f32 0.0, %v1594
        %v1596 = vpop.f32.mrb[0].mxu0
        %v1597 = vpop.f32.mrb[0].mxu0
        %v1598 = vpop.f32.mrb[0].mxu0
        %1599 = vdwg.mxu0
        %v1600 = vadd.f32 %v1455, %v1547
        %v1601 = vadd.f32 %v1456, %v1550
        %v1602 = vadd.f32 %v1457, %v1555
        %v1603 = vadd.f32 %v1458, %v1558
        %v1604 = vadd.f32 %v1459, %v1563
        %v1605 = vadd.f32 %v1460, %v1566
        %v1606 = vadd.f32 %v1461, %v1571
        %v1607 = vadd.f32 %v1462, %v1574
        %v1608 = vadd.f32 %v1463, %v1579
        %v1609 = vadd.f32 %v1464, %v1582
        %v1610 = vadd.f32 %v1465, %v1587
        %v1611 = vadd.f32 %v1466, %v1590
        %v1612 = vadd.f32 %v1467, %v1595
        %v1613 = vld [vmem:[%s564 + $0x8] sm:$0xf]
        %v1614 = vld [vmem:[%s564 + $0xc] sm:$0xf]
        %v1615 = vld [vmem:[%s564 + $0x10] sm:$0xf]
        %v1616 = vld [vmem:[%s564 + $0x14] sm:$0xf]
        %v1617 = vld [vmem:[%s564 + $0x18] sm:$0xf]
        %v1618 = vld [vmem:[%s564 + $0x1c] sm:$0xf]
        %v1619 = vld [vmem:[%s564 + $0x20] sm:$0xf]
        %v1620 = vld [vmem:[%s564 + $0x24] sm:$0xf]
        %v1621 = vld [vmem:[%s564 + $0x28] sm:$0xf]
        %v1622 = vld [vmem:[%s564 + $0x2c] sm:$0xf]
        %v1623 = vld [vmem:[%s564 + $0x30] sm:$0xf]
        %v1624 = vld [vmem:[%s564 + $0x34] sm:$0xf]
        %v1625 = vld [vmem:[%s564 + $0x38] sm:$0xf]
        %v1626 = vld [vmem:[%s564 + $0x3c] sm:$0x1]
        %s1627 = scalar_lea.vmem [#allocation7], 60
        %v1628 = vld [vmem:[%s1627] sm:$0xf]
        %v1629 = vld [vmem:[%s1627 + $0x4] sm:$0xf]
        %v1630 = vld [vmem:[%s1627 + $0x8] sm:$0xf]
        %v1645 = vunpack.c.l.b16 %v1613
        %v1646 = vunpack.c.l.b16 %v1614
        %v1647 = vunpack.c.l.b16 %v1615
        %v1648 = vunpack.c.l.b16 %v1616
        %v1649 = vunpack.c.l.b16 %v1617
        %v1650 = vunpack.c.l.b16 %v1618
        %v1651 = vunpack.c.l.b16 %v1619
        %v1652 = vunpack.c.l.b16 %v1620
        %v1653 = vunpack.c.l.b16 %v1621
        %v1654 = vunpack.c.l.b16 %v1622
        %v1655 = vunpack.c.l.b16 %v1623
        %v1656 = vunpack.c.l.b16 %v1624
        %v1657 = vunpack.c.l.b16 %v1625
        %v1658 = vunpack.c.l.b16 %v1626
        %v1659 = vpack.c.b16 %v1646, %v1645
        %v1660 = vpack.c.b16 %v1648, %v1647
        %v1661 = vpack.c.b16 %v1650, %v1649
        %v1662 = vpack.c.b16 %v1652, %v1651
        %v1663 = vpack.c.b16 %v1654, %v1653
        %v1664 = vpack.c.b16 %v1656, %v1655
        %v1665 = vpack.c.b16 %v1658, %v1657
        %vm1666 = vsmask.f32 7424
        %v1668 = vshrl.u32 %v1659, 16
        %v1670 = vshll.u32 %v1659, 16
        %v1672 = vrot.slane %v1670, 1
        %v1673 = vor.u32 %v1668, %v1672
        %v1675 = vshll.u32 %v1660, 16
        %v1677 = vrot.slane %v1675, 1
        %v1678 = vsel %vm1666, %v1673, %v1677
        %v1679 = vshrl.u32 %v1660, 16
        %v1681 = vor.u32 %v1679, %v1677
        %v1683 = vshll.u32 %v1661, 16
        %v1685 = vrot.slane %v1683, 1
        %v1686 = vsel %vm1666, %v1681, %v1685
        %v1687 = vshrl.u32 %v1661, 16
        %v1689 = vor.u32 %v1687, %v1685
        %v1691 = vshll.u32 %v1662, 16
        %v1693 = vrot.slane %v1691, 1
        %v1694 = vsel %vm1666, %v1689, %v1693
        %v1695 = vshrl.u32 %v1662, 16
        %v1697 = vor.u32 %v1695, %v1693
        %v1699 = vshll.u32 %v1663, 16
        %v1701 = vrot.slane %v1699, 1
        %v1702 = vsel %vm1666, %v1697, %v1701
        %v1703 = vshrl.u32 %v1663, 16
        %v1705 = vor.u32 %v1703, %v1701
        %v1707 = vshll.u32 %v1664, 16
        %v1709 = vrot.slane %v1707, 1
        %v1710 = vsel %vm1666, %v1705, %v1709
        %v1711 = vshrl.u32 %v1664, 16
        %v1713 = vor.u32 %v1711, %v1709
        %v1715 = vshll.u32 %v1665, 16
        %v1717 = vrot.slane %v1715, 1
        %v1718 = vsel %vm1666, %v1713, %v1717
        %v1719 = vshrl.u32 %v1665, 16
        %v1721 = vor.u32 %v1719, %v1717
        %v1725 = vunpack.c.l.b16 %v1628
        %v1726 = vunpack.c.l.b16 %v1629
        %v1727 = vunpack.c.l.b16 %v1630
        %v1728 = vpack.c.b16 %v1726, %v1725
        %v1729 = vpack.c.b16 %v1727, %v1727
        %v1732 = vsel %vm756, %v1678, 0
        %v1735 = vsel %vm756, %v1686, 0
        %v1738 = vsel %vm756, %v1694, 0
        %v1741 = vsel %vm756, %v1702, 0
        %v1744 = vsel %vm756, %v1710, 0
        %v1747 = vsel %vm756, %v1718, 0
        %v1750 = vsel %vm756, %v1721, 0
        %v1753 = vsel %vm778, %v1729, 0
        %1755 = vmatprep.subr.bf16.mxu0 0
        %1756 = vmatpush1.bf16.msra.mxu0 %v1728
        %1757 = vmatprep.subr.bf16.mxu0 0
        %1758 = vmatpush1.bf16.msra.mxu0 %v1753
        %1759 = vmatprep.subr.bf16.mxu0 0
        %1760 = vmatpush1.bf16.msra.mxu0 0
        %1761 = vmatprep.subr.bf16.mxu0 0
        %1762 = vmatpush1.bf16.msra.mxu0 0
        %1763 = vmatprep.subr.bf16.mxu0 0
        %1764 = vmatpush1.bf16.msra.mxu0 0
        %1765 = vmatprep.subr.bf16.mxu0 0
        %1766 = vmatpush1.bf16.msra.mxu0 0
        %1767 = vmatprep.subr.bf16.mxu0 0
        %1768 = vmatpush1.bf16.msra.mxu0 0
        %1769 = vmatprep.subr.bf16.mxu0 0
        %1770 = vmatpush1.bf16.msra.mxu0 0
        %1771 = vmatprep.subr.bf16.mxu0 0
        %1772 = vmatpush1.bf16.msra.mxu0 0
        %1773 = vmatprep.subr.bf16.mxu0 0
        %1774 = vmatpush1.bf16.msra.mxu0 0
        %1775 = vmatprep.subr.bf16.mxu0 0
        %1776 = vmatpush1.bf16.msra.mxu0 0
        %1777 = vmatprep.subr.bf16.mxu0 0
        %1778 = vmatpush1.bf16.msra.mxu0 0
        %1779 = vmatprep.subr.bf16.mxu0 0
        %1780 = vmatpush1.bf16.msra.mxu0 0
        %1781 = vmatprep.subr.bf16.mxu0 0
        %1782 = vmatpush1.bf16.msra.mxu0 0
        %1783 = vmatprep.subr.bf16.mxu0 0
        %1784 = vmatpush1.bf16.msra.mxu0 0
        %1785 = vmatprep.subr.bf16.mxu0 0
        %1786 = vmatpush1.bf16.msra.mxu0 0
        %1787 = vmatprep.mubr.bf16.mxu0 0
        %1788 = vmatmul.mubr.bf16.gmra.mrb[0].mxu0 %v1732
        %v1789 = vpop.f32.mrb[0].mxu0
        %v1790 = vadd.f32 0.0, %v1789
        %v1791 = vpop.f32.mrb[0].mxu0
        %v1792 = vpop.f32.mrb[0].mxu0
        %v1793 = vadd.f32 0.0, %v1792
        %v1794 = vpop.f32.mrb[0].mxu0
        %1795 = vmatprep.mubr.bf16.mxu0 0
        %1796 = vmatmul.mubr.bf16.gmra.mrb[0].mxu0 %v1735
        %v1797 = vpop.f32.mrb[0].mxu0
        %v1798 = vadd.f32 0.0, %v1797
        %v1799 = vpop.f32.mrb[0].mxu0
        %v1800 = vpop.f32.mrb[0].mxu0
        %v1801 = vadd.f32 0.0, %v1800
        %v1802 = vpop.f32.mrb[0].mxu0
        %1803 = vmatprep.mubr.bf16.mxu0 0
        %1804 = vmatmul.mubr.bf16.gmra.mrb[0].mxu0 %v1738
        %v1805 = vpop.f32.mrb[0].mxu0
        %v1806 = vadd.f32 0.0, %v1805
        %v1807 = vpop.f32.mrb[0].mxu0
        %v1808 = vpop.f32.mrb[0].mxu0
        %v1809 = vadd.f32 0.0, %v1808
        %v1810 = vpop.f32.mrb[0].mxu0
        %1811 = vmatprep.mubr.bf16.mxu0 0
        %1812 = vmatmul.mubr.bf16.gmra.mrb[0].mxu0 %v1741
        %v1813 = vpop.f32.mrb[0].mxu0
        %v1814 = vadd.f32 0.0, %v1813
        %v1815 = vpop.f32.mrb[0].mxu0
        %v1816 = vpop.f32.mrb[0].mxu0
        %v1817 = vadd.f32 0.0, %v1816
        %v1818 = vpop.f32.mrb[0].mxu0
        %1819 = vmatprep.mubr.bf16.mxu0 0
        %1820 = vmatmul.mubr.bf16.gmra.mrb[0].mxu0 %v1744
        %v1821 = vpop.f32.mrb[0].mxu0
        %v1822 = vadd.f32 0.0, %v1821
        %v1823 = vpop.f32.mrb[0].mxu0
        %v1824 = vpop.f32.mrb[0].mxu0
        %v1825 = vadd.f32 0.0, %v1824
        %v1826 = vpop.f32.mrb[0].mxu0
        %1827 = vmatprep.mubr.bf16.mxu0 0
        %1828 = vmatmul.mubr.bf16.gmra.mrb[0].mxu0 %v1747
        %v1829 = vpop.f32.mrb[0].mxu0
        %v1830 = vadd.f32 0.0, %v1829
        %v1831 = vpop.f32.mrb[0].mxu0
        %v1832 = vpop.f32.mrb[0].mxu0
        %v1833 = vadd.f32 0.0, %v1832
        %v1834 = vpop.f32.mrb[0].mxu0
        %1835 = vmatprep.mubr.bf16.mxu0 0
        %1836 = vmatmul.mubr.bf16.gmra.mrb[0].mxu0 %v1750
        %v1837 = vpop.f32.mrb[0].mxu0
        %v1838 = vadd.f32 0.0, %v1837
        %v1839 = vpop.f32.mrb[0].mxu0
        %v1840 = vpop.f32.mrb[0].mxu0
        %v1841 = vpop.f32.mrb[0].mxu0
        %1842 = vdwg.mxu0
        %v1843 = vadd.f32 %v1600, %v1790
        %v1844 = vadd.f32 %v1601, %v1793
        %v1845 = vadd.f32 %v1602, %v1798
        %v1846 = vadd.f32 %v1603, %v1801
        %v1847 = vadd.f32 %v1604, %v1806
        %v1848 = vadd.f32 %v1605, %v1809
        %v1849 = vadd.f32 %v1606, %v1814
        %v1850 = vadd.f32 %v1607, %v1817
        %v1851 = vadd.f32 %v1608, %v1822
        %v1852 = vadd.f32 %v1609, %v1825
        %v1853 = vadd.f32 %v1610, %v1830
        %v1854 = vadd.f32 %v1611, %v1833
        %v1855 = vadd.f32 %v1612, %v1838
        %v1856 = vld [vmem:[%s564 + $0xc] sm:$0xf]
        %v1857 = vld [vmem:[%s564 + $0x10] sm:$0xf]
        %v1858 = vld [vmem:[%s564 + $0x14] sm:$0xf]
        %v1859 = vld [vmem:[%s564 + $0x18] sm:$0xf]
        %v1860 = vld [vmem:[%s564 + $0x1c] sm:$0xf]
        %v1861 = vld [vmem:[%s564 + $0x20] sm:$0xf]
        %v1862 = vld [vmem:[%s564 + $0x24] sm:$0xf]
        %v1863 = vld [vmem:[%s564 + $0x28] sm:$0xf]
        %v1864 = vld [vmem:[%s564 + $0x2c] sm:$0xf]
        %v1865 = vld [vmem:[%s564 + $0x30] sm:$0xf]
        %v1866 = vld [vmem:[%s564 + $0x34] sm:$0xf]
        %v1867 = vld [vmem:[%s564 + $0x38] sm:$0xf]
        %v1868 = vld [vmem:[%s564 + $0x3c] sm:$0xf]
        %v1869 = vld [vmem:[%s564 + $0x40] sm:$0x1]
        %s1870 = scalar_lea.vmem [#allocation7], 72
        %v1871 = vld [vmem:[%s1870] sm:$0xf]
        %v1872 = vld [vmem:[%s1870 + $0x4] sm:$0xf]
        %v1873 = vld [vmem:[%s1870 + $0x8] sm:$0xf]
        %v1888 = vunpack.c.l.b16 %v1856
        %v1889 = vunpack.c.l.b16 %v1857
        %v1890 = vunpack.c.l.b16 %v1858
        %v1891 = vunpack.c.l.b16 %v1859
        %v1892 = vunpack.c.l.b16 %v1860
        %v1893 = vunpack.c.l.b16 %v1861
        %v1894 = vunpack.c.l.b16 %v1862
        %v1895 = vunpack.c.l.b16 %v1863
        %v1896 = vunpack.c.l.b16 %v1864
        %v1897 = vunpack.c.l.b16 %v1865
        %v1898 = vunpack.c.l.b16 %v1866
        %v1899 = vunpack.c.l.b16 %v1867
        %v1900 = vunpack.c.l.b16 %v1868
        %v1901 = vunpack.c.l.b16 %v1869
        %v1902 = vpack.c.b16 %v1889, %v1888
        %v1903 = vpack.c.b16 %v1891, %v1890
        %v1904 = vpack.c.b16 %v1893, %v1892
        %v1905 = vpack.c.b16 %v1895, %v1894
        %v1906 = vpack.c.b16 %v1897, %v1896
        %v1907 = vpack.c.b16 %v1899, %v1898
        %v1908 = vpack.c.b16 %v1901, %v1900
        %v1910 = vshrl.u32 %v1902, 16
        %v1912 = vshll.u32 %v1902, 16
        %v1914 = vrot.slane %v1912, 1
        %v1915 = vor.u32 %v1910, %v1914
        %v1917 = vshll.u32 %v1903, 16
        %v1919 = vrot.slane %v1917, 1
        %v1920 = vsel %vm1666, %v1915, %v1919
        %v1921 = vshrl.u32 %v1903, 16
        %v1923 = vor.u32 %v1921, %v1919
        %v1925 = vshll.u32 %v1904, 16
        %v1927 = vrot.slane %v1925, 1
        %v1928 = vsel %vm1666, %v1923, %v1927
        %v1929 = vshrl.u32 %v1904, 16
        %v1931 = vor.u32 %v1929, %v1927
        %v1933 = vshll.u32 %v1905, 16
        %v1935 = vrot.slane %v1933, 1
        %v1936 = vsel %vm1666, %v1931, %v1935
        %v1937 = vshrl.u32 %v1905, 16
        %v1939 = vor.u32 %v1937, %v1935
        %v1941 = vshll.u32 %v1906, 16
        %v1943 = vrot.slane %v1941, 1
        %v1944 = vsel %vm1666, %v1939, %v1943
        %v1945 = vshrl.u32 %v1906, 16
        %v1947 = vor.u32 %v1945, %v1943
        %v1949 = vshll.u32 %v1907, 16
        %v1951 = vrot.slane %v1949, 1
        %v1952 = vsel %vm1666, %v1947, %v1951
        %v1953 = vshrl.u32 %v1907, 16
        %v1955 = vor.u32 %v1953, %v1951
        %v1957 = vshll.u32 %v1908, 16
        %v1959 = vrot.slane %v1957, 1
        %v1960 = vsel %vm1666, %v1955, %v1959
        %v1961 = vshrl.u32 %v1908, 16
        %v1963 = vor.u32 %v1961, %v1959
        %v1967 = vunpack.c.l.b16 %v1871
        %v1968 = vunpack.c.l.b16 %v1872
        %v1969 = vunpack.c.l.b16 %v1873
        %v1970 = vpack.c.b16 %v1968, %v1967
        %v1971 = vpack.c.b16 %v1969, %v1969
        %v1974 = vsel %vm756, %v1920, 0
        %v1977 = vsel %vm756, %v1928, 0
        %v1980 = vsel %vm756, %v1936, 0
        %v1983 = vsel %vm756, %v1944, 0
        %v1986 = vsel %vm756, %v1952, 0
        %v1989 = vsel %vm756, %v1960, 0
        %v1992 = vsel %vm756, %v1963, 0
        %v1995 = vsel %vm778, %v1971, 0
        %1997 = vmatprep.subr.bf16.mxu0 0
        %1998 = vmatpush1.bf16.msra.mxu0 %v1970
        %1999 = vmatprep.subr.bf16.mxu0 0
        %2000 = vmatpush1.bf16.msra.mxu0 %v1995
        %2001 = vmatprep.subr.bf16.mxu0 0
        %2002 = vmatpush1.bf16.msra.mxu0 0
        %2003 = vmatprep.subr.bf16.mxu0 0
        %2004 = vmatpush1.bf16.msra.mxu0 0
        %2005 = vmatprep.subr.bf16.mxu0 0
        %2006 = vmatpush1.bf16.msra.mxu0 0
        %2007 = vmatprep.subr.bf16.mxu0 0
        %2008 = vmatpush1.bf16.msra.mxu0 0
        %2009 = vmatprep.subr.bf16.mxu0 0
        %2010 = vmatpush1.bf16.msra.mxu0 0
        %2011 = vmatprep.subr.bf16.mxu0 0
        %2012 = vmatpush1.bf16.msra.mxu0 0
        %2013 = vmatprep.subr.bf16.mxu0 0
        %2014 = vmatpush1.bf16.msra.mxu0 0
        %2015 = vmatprep.subr.bf16.mxu0 0
        %2016 = vmatpush1.bf16.msra.mxu0 0
        %2017 = vmatprep.subr.bf16.mxu0 0
        %2018 = vmatpush1.bf16.msra.mxu0 0
        %2019 = vmatprep.subr.bf16.mxu0 0
        %2020 = vmatpush1.bf16.msra.mxu0 0
        %2021 = vmatprep.subr.bf16.mxu0 0
        %2022 = vmatpush1.bf16.msra.mxu0 0
        %2023 = vmatprep.subr.bf16.mxu0 0
        %2024 = vmatpush1.bf16.msra.mxu0 0
        %2025 = vmatprep.subr.bf16.mxu0 0
        %2026 = vmatpush1.bf16.msra.mxu0 0
        %2027 = vmatprep.subr.bf16.mxu0 0
        %2028 = vmatpush1.bf16.msra.mxu0 0
        %2029 = vmatprep.mubr.bf16.mxu0 0
        %2030 = vmatmul.mubr.bf16.gmra.mrb[0].mxu0 %v1974
        %v2031 = vpop.f32.mrb[0].mxu0
        %v2032 = vadd.f32 0.0, %v2031
        %v2033 = vpop.f32.mrb[0].mxu0
        %v2034 = vpop.f32.mrb[0].mxu0
        %v2035 = vadd.f32 0.0, %v2034
        %v2036 = vpop.f32.mrb[0].mxu0
        %2037 = vmatprep.mubr.bf16.mxu0 0
        %2038 = vmatmul.mubr.bf16.gmra.mrb[0].mxu0 %v1977
        %v2039 = vpop.f32.mrb[0].mxu0
        %v2040 = vadd.f32 0.0, %v2039
        %v2041 = vpop.f32.mrb[0].mxu0
        %v2042 = vpop.f32.mrb[0].mxu0
        %v2043 = vadd.f32 0.0, %v2042
        %v2044 = vpop.f32.mrb[0].mxu0
        %2045 = vmatprep.mubr.bf16.mxu0 0
        %2046 = vmatmul.mubr.bf16.gmra.mrb[0].mxu0 %v1980
        %v2047 = vpop.f32.mrb[0].mxu0
        %v2048 = vadd.f32 0.0, %v2047
        %v2049 = vpop.f32.mrb[0].mxu0
        %v2050 = vpop.f32.mrb[0].mxu0
        %v2051 = vadd.f32 0.0, %v2050
        %v2052 = vpop.f32.mrb[0].mxu0
        %2053 = vmatprep.mubr.bf16.mxu0 0
        %2054 = vmatmul.mubr.bf16.gmra.mrb[0].mxu0 %v1983
        %v2055 = vpop.f32.mrb[0].mxu0
        %v2056 = vadd.f32 0.0, %v2055
        %v2057 = vpop.f32.mrb[0].mxu0
        %v2058 = vpop.f32.mrb[0].mxu0
        %v2059 = vadd.f32 0.0, %v2058
        %v2060 = vpop.f32.mrb[0].mxu0
        %2061 = vmatprep.mubr.bf16.mxu0 0
        %2062 = vmatmul.mubr.bf16.gmra.mrb[0].mxu0 %v1986
        %v2063 = vpop.f32.mrb[0].mxu0
        %v2064 = vadd.f32 0.0, %v2063
        %v2065 = vpop.f32.mrb[0].mxu0
        %v2066 = vpop.f32.mrb[0].mxu0
        %v2067 = vadd.f32 0.0, %v2066
        %v2068 = vpop.f32.mrb[0].mxu0
        %2069 = vmatprep.mubr.bf16.mxu0 0
        %2070 = vmatmul.mubr.bf16.gmra.mrb[0].mxu0 %v1989
        %v2071 = vpop.f32.mrb[0].mxu0
        %v2072 = vadd.f32 0.0, %v2071
        %v2073 = vpop.f32.mrb[0].mxu0
        %v2074 = vpop.f32.mrb[0].mxu0
        %v2075 = vadd.f32 0.0, %v2074
        %v2076 = vpop.f32.mrb[0].mxu0
        %2077 = vmatprep.mubr.bf16.mxu0 0
        %2078 = vmatmul.mubr.bf16.gmra.mrb[0].mxu0 %v1992
        %v2079 = vpop.f32.mrb[0].mxu0
        %v2080 = vadd.f32 0.0, %v2079
        %v2081 = vpop.f32.mrb[0].mxu0
        %v2082 = vpop.f32.mrb[0].mxu0
        %v2083 = vpop.f32.mrb[0].mxu0
        %2084 = vdwg.mxu0
        %v2085 = vadd.f32 %v1843, %v2032
        %v2086 = vadd.f32 %v1844, %v2035
        %v2087 = vadd.f32 %v1845, %v2040
        %v2088 = vadd.f32 %v1846, %v2043
        %v2089 = vadd.f32 %v1847, %v2048
        %v2090 = vadd.f32 %v1848, %v2051
        %v2091 = vadd.f32 %v1849, %v2056
        %v2092 = vadd.f32 %v1850, %v2059
        %v2093 = vadd.f32 %v1851, %v2064
        %v2094 = vadd.f32 %v1852, %v2067
        %v2095 = vadd.f32 %v1853, %v2072
        %v2096 = vadd.f32 %v1854, %v2075
        %v2097 = vadd.f32 %v1855, %v2080
        %v2098 = vld [vmem:[%s564 + $0xc] sm:$0xe]
        %s2099 = scalar_lea.vmem [#allocation7], 84
        %v2100 = vld [vmem:[%s2099] sm:$0xf]
        %v2101 = vld [vmem:[%s2099 + $0x4] sm:$0xf]
        %v2102 = vld [vmem:[%s2099 + $0x8] sm:$0xf]
        %v2104 = vunpack.c.l.b16 %v2098
        %v2105 = vpack.c.b16 %v1889, %v2104
        %vm2106 = vcmask 1046528
        %v2107 = vrot.slane %v2105, 1
        %v2108 = vrot.slane %v1903, 1
        %v2109 = vsel %vm2106, %v2107, %v2108
        %v2110 = vrot.slane %v1904, 1
        %v2111 = vsel %vm2106, %v2108, %v2110
        %v2112 = vrot.slane %v1905, 1
        %v2113 = vsel %vm2106, %v2110, %v2112
        %v2114 = vrot.slane %v1906, 1
        %v2115 = vsel %vm2106, %v2112, %v2114
        %v2116 = vrot.slane %v1907, 1
        %v2117 = vsel %vm2106, %v2114, %v2116
        %v2118 = vrot.slane %v1908, 1
        %v2119 = vsel %vm2106, %v2116, %v2118
        %v2123 = vunpack.c.l.b16 %v2100
        %v2124 = vunpack.c.l.b16 %v2101
        %v2125 = vunpack.c.l.b16 %v2102
        %v2126 = vpack.c.b16 %v2124, %v2123
        %v2127 = vpack.c.b16 %v2125, %v2125
        %v2130 = vsel %vm756, %v2109, 0
        %v2133 = vsel %vm756, %v2111, 0
        %v2136 = vsel %vm756, %v2113, 0
        %v2139 = vsel %vm756, %v2115, 0
        %v2142 = vsel %vm756, %v2117, 0
        %v2145 = vsel %vm756, %v2119, 0
        %v2148 = vsel %vm756, %v2118, 0
        %v2151 = vsel %vm778, %v2127, 0
        %2153 = vmatprep.subr.bf16.mxu0 0
        %2154 = vmatpush1.bf16.msra.mxu0 %v2126
        %2155 = vmatprep.subr.bf16.mxu0 0
        %2156 = vmatpush1.bf16.msra.mxu0 %v2151
        %2157 = vmatprep.subr.bf16.mxu0 0
        %2158 = vmatpush1.bf16.msra.mxu0 0
        %2159 = vmatprep.subr.bf16.mxu0 0
        %2160 = vmatpush1.bf16.msra.mxu0 0
        %2161 = vmatprep.subr.bf16.mxu0 0
        %2162 = vmatpush1.bf16.msra.mxu0 0
        %2163 = vmatprep.subr.bf16.mxu0 0
        %2164 = vmatpush1.bf16.msra.mxu0 0
        %2165 = vmatprep.subr.bf16.mxu0 0
        %2166 = vmatpush1.bf16.msra.mxu0 0
        %2167 = vmatprep.subr.bf16.mxu0 0
        %2168 = vmatpush1.bf16.msra.mxu0 0
        %2169 = vmatprep.subr.bf16.mxu0 0
        %2170 = vmatpush1.bf16.msra.mxu0 0
        %2171 = vmatprep.subr.bf16.mxu0 0
        %2172 = vmatpush1.bf16.msra.mxu0 0
        %2173 = vmatprep.subr.bf16.mxu0 0
        %2174 = vmatpush1.bf16.msra.mxu0 0
        %2175 = vmatprep.subr.bf16.mxu0 0
        %2176 = vmatpush1.bf16.msra.mxu0 0
        %2177 = vmatprep.subr.bf16.mxu0 0
        %2178 = vmatpush1.bf16.msra.mxu0 0
        %2179 = vmatprep.subr.bf16.mxu0 0
        %2180 = vmatpush1.bf16.msra.mxu0 0
        %2181 = vmatprep.subr.bf16.mxu0 0
        %2182 = vmatpush1.bf16.msra.mxu0 0
        %2183 = vmatprep.subr.bf16.mxu0 0
        %2184 = vmatpush1.bf16.msra.mxu0 0
        %2185 = vmatprep.mubr.bf16.mxu0 0
        %2186 = vmatmul.mubr.bf16.gmra.mrb[0].mxu0 %v2130
        %v2187 = vpop.f32.mrb[0].mxu0
        %v2188 = vadd.f32 0.0, %v2187
        %v2189 = vpop.f32.mrb[0].mxu0
        %v2190 = vpop.f32.mrb[0].mxu0
        %v2191 = vadd.f32 0.0, %v2190
        %v2192 = vpop.f32.mrb[0].mxu0
        %2193 = vmatprep.mubr.bf16.mxu0 0
        %2194 = vmatmul.mubr.bf16.gmra.mrb[0].mxu0 %v2133
        %v2195 = vpop.f32.mrb[0].mxu0
        %v2196 = vadd.f32 0.0, %v2195
        %v2197 = vpop.f32.mrb[0].mxu0
        %v2198 = vpop.f32.mrb[0].mxu0
        %v2199 = vadd.f32 0.0, %v2198
        %v2200 = vpop.f32.mrb[0].mxu0
        %2201 = vmatprep.mubr.bf16.mxu0 0
        %2202 = vmatmul.mubr.bf16.gmra.mrb[0].mxu0 %v2136
        %v2203 = vpop.f32.mrb[0].mxu0
        %v2204 = vadd.f32 0.0, %v2203
        %v2205 = vpop.f32.mrb[0].mxu0
        %v2206 = vpop.f32.mrb[0].mxu0
        %v2207 = vadd.f32 0.0, %v2206
        %v2208 = vpop.f32.mrb[0].mxu0
        %2209 = vmatprep.mubr.bf16.mxu0 0
        %2210 = vmatmul.mubr.bf16.gmra.mrb[0].mxu0 %v2139
        %v2211 = vpop.f32.mrb[0].mxu0
        %v2212 = vadd.f32 0.0, %v2211
        %v2213 = vpop.f32.mrb[0].mxu0
        %v2214 = vpop.f32.mrb[0].mxu0
        %v2215 = vadd.f32 0.0, %v2214
        %v2216 = vpop.f32.mrb[0].mxu0
        %2217 = vmatprep.mubr.bf16.mxu0 0
        %2218 = vmatmul.mubr.bf16.gmra.mrb[0].mxu0 %v2142
        %v2219 = vpop.f32.mrb[0].mxu0
        %v2220 = vadd.f32 0.0, %v2219
        %v2221 = vpop.f32.mrb[0].mxu0
        %v2222 = vpop.f32.mrb[0].mxu0
        %v2223 = vadd.f32 0.0, %v2222
        %v2224 = vpop.f32.mrb[0].mxu0
        %2225 = vmatprep.mubr.bf16.mxu0 0
        %2226 = vmatmul.mubr.bf16.gmra.mrb[0].mxu0 %v2145
        %v2227 = vpop.f32.mrb[0].mxu0
        %v2228 = vadd.f32 0.0, %v2227
        %v2229 = vpop.f32.mrb[0].mxu0
        %v2230 = vpop.f32.mrb[0].mxu0
        %v2231 = vadd.f32 0.0, %v2230
        %v2232 = vpop.f32.mrb[0].mxu0
        %2233 = vmatprep.mubr.bf16.mxu0 0
        %2234 = vmatmul.mubr.bf16.gmra.mrb[0].mxu0 %v2148
        %v2235 = vpop.f32.mrb[0].mxu0
        %v2236 = vadd.f32 0.0, %v2235
        %v2237 = vpop.f32.mrb[0].mxu0
        %v2238 = vpop.f32.mrb[0].mxu0
        %v2239 = vpop.f32.mrb[0].mxu0
        %2240 = vdwg.mxu0
        %v2241 = vadd.f32 %v2085, %v2188
        %v2242 = vadd.f32 %v2086, %v2191
        %v2243 = vadd.f32 %v2087, %v2196
        %v2244 = vadd.f32 %v2088, %v2199
        %v2245 = vadd.f32 %v2089, %v2204
        %v2246 = vadd.f32 %v2090, %v2207
        %v2247 = vadd.f32 %v2091, %v2212
        %v2248 = vadd.f32 %v2092, %v2215
        %v2249 = vadd.f32 %v2093, %v2220
        %v2250 = vadd.f32 %v2094, %v2223
        %v2251 = vadd.f32 %v2095, %v2228
        %v2252 = vadd.f32 %v2096, %v2231
        %v2253 = vadd.f32 %v2097, %v2236
        %v2254 = vld [vmem:[%s564 + $0x40] sm:$0x3]
        %s2255 = scalar_lea.vmem [#allocation7], 96
        %v2256 = vld [vmem:[%s2255] sm:$0xf]
        %v2257 = vld [vmem:[%s2255 + $0x4] sm:$0xf]
        %v2258 = vld [vmem:[%s2255 + $0x8] sm:$0xf]
        %v2260 = vunpack.c.l.b16 %v2254
        %v2261 = vpack.c.b16 %v2260, %v1900
        %vm2262 = vsmask.f32 6400
        %v2264 = vshrl.u32 %v2105, 16
        %v2266 = vrot.slane %v2264, 1
        %v2267 = vshll.u32 %v2105, 16
        %v2269 = vrot.slane %v2267, 2
        %v2270 = vor.u32 %v2266, %v2269
        %v2271 = vrot.slane %v1921, 1
        %v2272 = vrot.slane %v1917, 2
        %v2273 = vor.u32 %v2271, %v2272
        %v2274 = vsel %vm2262, %v2270, %v2273
        %v2275 = vrot.slane %v1929, 1
        %v2276 = vrot.slane %v1925, 2
        %v2277 = vor.u32 %v2275, %v2276
        %v2278 = vsel %vm2262, %v2273, %v2277
        %v2279 = vrot.slane %v1937, 1
        %v2280 = vrot.slane %v1933, 2
        %v2281 = vor.u32 %v2279, %v2280
        %v2282 = vsel %vm2262, %v2277, %v2281
        %v2283 = vrot.slane %v1945, 1
        %v2284 = vrot.slane %v1941, 2
        %v2285 = vor.u32 %v2283, %v2284
        %v2286 = vsel %vm2262, %v2281, %v2285
        %v2287 = vrot.slane %v1953, 1
        %v2288 = vrot.slane %v1949, 2
        %v2289 = vor.u32 %v2287, %v2288
        %v2290 = vsel %vm2262, %v2285, %v2289
        %v2292 = vshrl.u32 %v2261, 16
        %v2294 = vrot.slane %v2292, 1
        %v2295 = vshll.u32 %v2261, 16
        %v2297 = vrot.slane %v2295, 2
        %v2298 = vor.u32 %v2294, %v2297
        %v2299 = vsel %vm2262, %v2289, %v2298
        %v2303 = vunpack.c.l.b16 %v2256
        %v2304 = vunpack.c.l.b16 %v2257
        %v2305 = vunpack.c.l.b16 %v2258
        %v2306 = vpack.c.b16 %v2304, %v2303
        %v2307 = vpack.c.b16 %v2305, %v2305
        %v2310 = vsel %vm756, %v2274, 0
        %v2313 = vsel %vm756, %v2278, 0
        %v2316 = vsel %vm756, %v2282, 0
        %v2319 = vsel %vm756, %v2286, 0
        %v2322 = vsel %vm756, %v2290, 0
        %v2325 = vsel %vm756, %v2299, 0
        %v2328 = vsel %vm756, %v2298, 0
        %v2331 = vsel %vm778, %v2307, 0
        %2333 = vmatprep.subr.bf16.mxu0 0
        %2334 = vmatpush1.bf16.msra.mxu0 %v2306
        %2335 = vmatprep.subr.bf16.mxu0 0
        %2336 = vmatpush1.bf16.msra.mxu0 %v2331
        %2337 = vmatprep.subr.bf16.mxu0 0
        %2338 = vmatpush1.bf16.msra.mxu0 0
        %2339 = vmatprep.subr.bf16.mxu0 0
        %2340 = vmatpush1.bf16.msra.mxu0 0
        %2341 = vmatprep.subr.bf16.mxu0 0
        %2342 = vmatpush1.bf16.msra.mxu0 0
        %2343 = vmatprep.subr.bf16.mxu0 0
        %2344 = vmatpush1.bf16.msra.mxu0 0
        %2345 = vmatprep.subr.bf16.mxu0 0
        %2346 = vmatpush1.bf16.msra.mxu0 0
        %2347 = vmatprep.subr.bf16.mxu0 0
        %2348 = vmatpush1.bf16.msra.mxu0 0
        %2349 = vmatprep.subr.bf16.mxu0 0
        %2350 = vmatpush1.bf16.msra.mxu0 0
        %2351 = vmatprep.subr.bf16.mxu0 0
        %2352 = vmatpush1.bf16.msra.mxu0 0
        %2353 = vmatprep.subr.bf16.mxu0 0
        %2354 = vmatpush1.bf16.msra.mxu0 0
        %2355 = vmatprep.subr.bf16.mxu0 0
        %2356 = vmatpush1.bf16.msra.mxu0 0
        %2357 = vmatprep.subr.bf16.mxu0 0
        %2358 = vmatpush1.bf16.msra.mxu0 0
        %2359 = vmatprep.subr.bf16.mxu0 0
        %2360 = vmatpush1.bf16.msra.mxu0 0
        %2361 = vmatprep.subr.bf16.mxu0 0
        %2362 = vmatpush1.bf16.msra.mxu0 0
        %2363 = vmatprep.subr.bf16.mxu0 0
        %2364 = vmatpush1.bf16.msra.mxu0 0
        %2365 = vmatprep.mubr.bf16.mxu0 0
        %2366 = vmatmul.mubr.bf16.gmra.mrb[0].mxu0 %v2310
        %v2367 = vpop.f32.mrb[0].mxu0
        %v2368 = vadd.f32 0.0, %v2367
        %v2369 = vpop.f32.mrb[0].mxu0
        %v2370 = vpop.f32.mrb[0].mxu0
        %v2371 = vadd.f32 0.0, %v2370
        %v2372 = vpop.f32.mrb[0].mxu0
        %2373 = vmatprep.mubr.bf16.mxu0 0
        %2374 = vmatmul.mubr.bf16.gmra.mrb[0].mxu0 %v2313
        %v2375 = vpop.f32.mrb[0].mxu0
        %v2376 = vadd.f32 0.0, %v2375
        %v2377 = vpop.f32.mrb[0].mxu0
        %v2378 = vpop.f32.mrb[0].mxu0
        %v2379 = vadd.f32 0.0, %v2378
        %v2380 = vpop.f32.mrb[0].mxu0
        %2381 = vmatprep.mubr.bf16.mxu0 0
        %2382 = vmatmul.mubr.bf16.gmra.mrb[0].mxu0 %v2316
        %v2383 = vpop.f32.mrb[0].mxu0
        %v2384 = vadd.f32 0.0, %v2383
        %v2385 = vpop.f32.mrb[0].mxu0
        %v2386 = vpop.f32.mrb[0].mxu0
        %v2387 = vadd.f32 0.0, %v2386
        %v2388 = vpop.f32.mrb[0].mxu0
        %2389 = vmatprep.mubr.bf16.mxu0 0
        %2390 = vmatmul.mubr.bf16.gmra.mrb[0].mxu0 %v2319
        %v2391 = vpop.f32.mrb[0].mxu0
        %v2392 = vadd.f32 0.0, %v2391
        %v2393 = vpop.f32.mrb[0].mxu0
        %v2394 = vpop.f32.mrb[0].mxu0
        %v2395 = vadd.f32 0.0, %v2394
        %v2396 = vpop.f32.mrb[0].mxu0
        %2397 = vmatprep.mubr.bf16.mxu0 0
        %2398 = vmatmul.mubr.bf16.gmra.mrb[0].mxu0 %v2322
        %v2399 = vpop.f32.mrb[0].mxu0
        %v2400 = vadd.f32 0.0, %v2399
        %v2401 = vpop.f32.mrb[0].mxu0
        %v2402 = vpop.f32.mrb[0].mxu0
        %v2403 = vadd.f32 0.0, %v2402
        %v2404 = vpop.f32.mrb[0].mxu0
        %2405 = vmatprep.mubr.bf16.mxu0 0
        %2406 = vmatmul.mubr.bf16.gmra.mrb[0].mxu0 %v2325
        %v2407 = vpop.f32.mrb[0].mxu0
        %v2408 = vadd.f32 0.0, %v2407
        %v2409 = vpop.f32.mrb[0].mxu0
        %v2410 = vpop.f32.mrb[0].mxu0
        %v2411 = vadd.f32 0.0, %v2410
        %v2412 = vpop.f32.mrb[0].mxu0
        %2413 = vmatprep.mubr.bf16.mxu0 0
        %2414 = vmatmul.mubr.bf16.gmra.mrb[0].mxu0 %v2328
        %v2415 = vpop.f32.mrb[0].mxu0
        %v2416 = vadd.f32 0.0, %v2415
        %v2417 = vpop.f32.mrb[0].mxu0
        %v2418 = vpop.f32.mrb[0].mxu0
        %v2419 = vpop.f32.mrb[0].mxu0
        %2420 = vdwg.mxu0
        %v2421 = vadd.f32 %v2241, %v2368
        %v2422 = vadd.f32 %v2242, %v2371
        %v2423 = vadd.f32 %v2243, %v2376
        %v2424 = vadd.f32 %v2244, %v2379
        %v2425 = vadd.f32 %v2245, %v2384
        %v2426 = vadd.f32 %v2246, %v2387
        %v2427 = vadd.f32 %v2247, %v2392
        %v2428 = vadd.f32 %v2248, %v2395
        %v2429 = vadd.f32 %v2249, %v2400
        %v2430 = vadd.f32 %v2250, %v2403
        %v2431 = vadd.f32 %v2251, %v2408
        %v2432 = vadd.f32 %v2252, %v2411
        %v2433 = vadd.f32 %v2253, %v2416
        %2435 = vset.pattern.permute.xlu0 0
        %2436 = vperm.xlu0 %2435, %v576
        %v2437 = vpop.permute.xlu0 %2436
        %2440 = vset.pattern.permute.xlu0 0
        %2441 = vperm.xlu0 %2440, %v577
        %v2442 = vpop.permute.xlu0 %2441
        %2445 = vset.pattern.permute.xlu0 0
        %2446 = vperm.xlu0 %2445, %v578
        %v2447 = vpop.permute.xlu0 %2446
        %2450 = vset.pattern.permute.xlu0 0
        %2451 = vperm.xlu0 %2450, %v579
        %v2452 = vpop.permute.xlu0 %2451
        %2455 = vset.pattern.permute.xlu0 0
        %2456 = vperm.xlu0 %2455, %v580
        %v2457 = vpop.permute.xlu0 %2456
        %2460 = vset.pattern.permute.xlu0 0
        %2461 = vperm.xlu0 %2460, %v581
        %v2462 = vpop.permute.xlu0 %2461
        %2465 = vset.pattern.permute.xlu0 0
        %2466 = vperm.xlu0 %2465, %v582
        %v2467 = vpop.permute.xlu0 %2466
        %2470 = vset.pattern.permute.xlu0 0
        %2471 = vperm.xlu0 %2470, %v583
        %v2472 = vpop.permute.xlu0 %2471
        %2475 = vset.pattern.permute.xlu0 0
        %2476 = vperm.xlu0 %2475, %v584
        %v2477 = vpop.permute.xlu0 %2476
        %2480 = vset.pattern.permute.xlu0 0
        %2481 = vperm.xlu0 %2480, %v585
        %v2482 = vpop.permute.xlu0 %2481
        %2485 = vset.pattern.permute.xlu0 0
        %2486 = vperm.xlu0 %2485, %v586
        %v2487 = vpop.permute.xlu0 %2486
        %2490 = vset.pattern.permute.xlu0 0
        %2491 = vperm.xlu0 %2490, %v587
        %v2492 = vpop.permute.xlu0 %2491
        %2495 = vset.pattern.permute.xlu0 0
        %2496 = vperm.xlu0 %2495, %v588
        %v2497 = vpop.permute.xlu0 %2496
        %v2499 = vmul.f32 %v2421, %v2437
        %v2500 = vmul.f32 %v2422, %v2442
        %v2501 = vmul.f32 %v2423, %v2447
        %v2502 = vmul.f32 %v2424, %v2452
        %v2503 = vmul.f32 %v2425, %v2457
        %v2504 = vmul.f32 %v2426, %v2462
        %v2505 = vmul.f32 %v2427, %v2467
        %v2506 = vmul.f32 %v2428, %v2472
        %v2507 = vmul.f32 %v2429, %v2477
        %v2508 = vmul.f32 %v2430, %v2482
        %v2509 = vmul.f32 %v2431, %v2487
        %v2510 = vmul.f32 %v2432, %v2492
        %v2511 = vmul.f32 %v2433, %v2497
        %2512 = vst.msk [vmem:[#allocation2 + $0x10] sm:$0xff] %vm589, %v2499
        %2513 = vst.msk [vmem:[#allocation2 + $0x18] sm:$0xff] %vm589, %v2500
        %2514 = vst.msk [vmem:[#allocation2 + $0x20] sm:$0xff] %vm589, %v2501
        %2515 = vst.msk [vmem:[#allocation2 + $0x28] sm:$0xff] %vm589, %v2502
        %2516 = vst.msk [vmem:[#allocation2 + $0x30] sm:$0xff] %vm589, %v2503
        %2517 = vst.msk [vmem:[#allocation2 + $0x38] sm:$0xff] %vm589, %v2504
        %2518 = vst.msk [vmem:[#allocation2 + $0x40] sm:$0xff] %vm589, %v2505
        %2519 = vst.msk [vmem:[#allocation2 + $0x48] sm:$0xff] %vm589, %v2506
        %2520 = vst.msk [vmem:[#allocation2 + $0x50] sm:$0xff] %vm589, %v2507
        %2521 = vst.msk [vmem:[#allocation2 + $0x58] sm:$0xff] %vm589, %v2508
        %2522 = vst.msk [vmem:[#allocation2 + $0x60] sm:$0xff] %vm589, %v2509
        %2523 = vst.msk [vmem:[#allocation2 + $0x68] sm:$0xff] %vm589, %v2510
        %2524 = vst.msk [vmem:[#allocation2 + $0x70] sm:$0xff] %vm589, %v2511
        %v2525 = vpack.c.bf16 %v2500, %v2499
        %v2526 = vpack.c.bf16 %v2502, %v2501
        %v2527 = vpack.c.bf16 %v2504, %v2503
        %v2528 = vpack.c.bf16 %v2506, %v2505
        %v2529 = vpack.c.bf16 %v2508, %v2507
        %v2530 = vpack.c.bf16 %v2510, %v2509
        %v2531 = vpack.c.bf16 %v2511, %v2511
        %v2539 = vunpack.c.l.b16 %v2525
        %v2540 = vunpack.c.h.b16 %v2525
        %v2541 = vunpack.c.l.b16 %v2526
        %v2542 = vunpack.c.h.b16 %v2526
        %v2543 = vunpack.c.l.b16 %v2527
        %v2544 = vunpack.c.h.b16 %v2527
        %v2545 = vunpack.c.l.b16 %v2528
        %v2546 = vunpack.c.h.b16 %v2528
        %v2547 = vunpack.c.l.b16 %v2529
        %v2548 = vunpack.c.h.b16 %v2529
        %v2549 = vunpack.c.l.b16 %v2530
        %v2550 = vunpack.c.h.b16 %v2530
        %v2551 = vunpack.c.l.b16 %v2531
        %v2552 = vpack.c.b16 %v2539, %v2539
        %v2553 = vpack.c.b16 %v2540, %v2540
        %v2554 = vpack.c.b16 %v2541, %v2541
        %v2555 = vpack.c.b16 %v2542, %v2542
        %v2556 = vpack.c.b16 %v2543, %v2543
        %v2557 = vpack.c.b16 %v2544, %v2544
        %v2558 = vpack.c.b16 %v2545, %v2545
        %v2559 = vpack.c.b16 %v2546, %v2546
        %v2560 = vpack.c.b16 %v2547, %v2547
        %v2561 = vpack.c.b16 %v2548, %v2548
        %v2562 = vpack.c.b16 %v2549, %v2549
        %v2563 = vpack.c.b16 %v2550, %v2550
        %v2564 = vpack.c.b16 %v2551, %v2551
        %2578 = vst.msk [vmem:[#allocation3 + $0x8] sm:$0xf] %vm607, %v2552
        %2579 = vst.msk [vmem:[#allocation3 + $0xc] sm:$0xf] %vm607, %v2553
        %2580 = vst.msk [vmem:[#allocation3 + $0x10] sm:$0xf] %vm607, %v2554
        %2581 = vst.msk [vmem:[#allocation3 + $0x14] sm:$0xf] %vm607, %v2555
        %2582 = vst.msk [vmem:[#allocation3 + $0x18] sm:$0xf] %vm607, %v2556
        %2583 = vst.msk [vmem:[#allocation3 + $0x1c] sm:$0xf] %vm607, %v2557
        %2584 = vst.msk [vmem:[#allocation3 + $0x20] sm:$0xf] %vm607, %v2558
        %2585 = vst.msk [vmem:[#allocation3 + $0x24] sm:$0xf] %vm607, %v2559
        %2586 = vst.msk [vmem:[#allocation3 + $0x28] sm:$0xf] %vm607, %v2560
        %2587 = vst.msk [vmem:[#allocation3 + $0x2c] sm:$0xf] %vm607, %v2561
        %2588 = vst.msk [vmem:[#allocation3 + $0x30] sm:$0xf] %vm607, %v2562
        %2589 = vst.msk [vmem:[#allocation3 + $0x34] sm:$0xf] %vm607, %v2563
        %2590 = vst.msk [vmem:[#allocation3 + $0x38] sm:$0xf] %vm607, %v2564
        loop: start=0, step=1, limit=20
        $region109: #{_lambda_.1} parent=67 // loop_pre_header
          _
        $region110: #{_lambda_.1} parent=67 // loop_header
          %s2592 = sphi 0, %s2596
          %p2593 = scmp.ge.s32.totalorder %s2592, 20
        $region111: #{_lambda_.1} parent=67 // loop_header_branch
          %2595 = sbr.rel (%p2593) target = $region115
        $region112: #{_lambda_.1} parent=67 // loop_body
          %s2597 = smul.u32 %s2592, 3
          %s2598 = sld [smem:[#allocation4 + %s2597]]
          %s2599 = sadd.s32 %s2597, 1
          %s2600 = sld [smem:[#allocation4 + %s2599]]
          %s2601 = sadd.s32 %s2597, 2
          %s2602 = sld [smem:[#allocation4 + %s2601]]
          %s2603 = scalar_lea.vmem [#allocation11], %s2592
          %v2604 = vld [vmem:[%s2603] sm:$0x1]
          %v2606 = vlaneseq
          %v2607 = vshrl.u32 %v2606, 7
          %v2608 = vsub.s32 0, %v2607
          %v2609 = vrot.slane %v2604, %v2608
          %v2611 = vld [vmem:[#allocation3] sm:$0xc]
          %v2612 = vld [vmem:[#allocation3 + $0x4] sm:$0xf]
          %v2613 = vld [vmem:[#allocation3 + $0x8] sm:$0xf]
          %v2614 = vld [vmem:[#allocation3 + $0xc] sm:$0xf]
          %v2615 = vld [vmem:[#allocation3 + $0x10] sm:$0xf]
          %v2616 = vld [vmem:[#allocation3 + $0x14] sm:$0xf]
          %v2617 = vld [vmem:[#allocation3 + $0x18] sm:$0xf]
          %v2618 = vld [vmem:[#allocation3 + $0x1c] sm:$0xf]
          %v2619 = vld [vmem:[#allocation3 + $0x20] sm:$0xf]
          %v2620 = vld [vmem:[#allocation3 + $0x24] sm:$0xf]
          %v2621 = vld [vmem:[#allocation3 + $0x28] sm:$0xf]
          %v2622 = vld [vmem:[#allocation3 + $0x2c] sm:$0xf]
          %v2623 = vld [vmem:[#allocation3 + $0x30] sm:$0xf]
          %v2624 = vld [vmem:[#allocation3 + $0x34] sm:$0x7]
          %s2625 = smul.u32 %s2592, 9
          %s2626 = smul.u32 %s2625, 8
          %s2627 = smul.addr %s2626, 4
          %s2628 = scalar_lea.vmem [#allocation10], %s2627
          %v2629 = vld [vmem:[%s2628] sm:$0xf]
          %v2630 = vld [vmem:[%s2628 + $0x4] sm:$0xf]
          %v2631 = vld [vmem:[%s2628 + $0x8] sm:$0xf]
          %v2632 = vld [vmem:[%s2628 + $0xc] sm:$0xf]
          %v2633 = vld [vmem:[%s2628 + $0x10] sm:$0xf]
          %v2634 = vld [vmem:[%s2628 + $0x14] sm:$0xf]
          %v2635 = vld [vmem:[%s2628 + $0x18] sm:$0xf]
          %v2636 = vld [vmem:[%s2628 + $0x1c] sm:$0xf]
          %v2651 = vunpack.c.l.b16 %v2611
          %v2652 = vunpack.c.l.b16 %v2612
          %v2653 = vunpack.c.l.b16 %v2613
          %v2654 = vunpack.c.l.b16 %v2614
          %v2655 = vunpack.c.l.b16 %v2615
          %v2656 = vunpack.c.l.b16 %v2616
          %v2657 = vunpack.c.l.b16 %v2617
          %v2658 = vunpack.c.l.b16 %v2618
          %v2659 = vunpack.c.l.b16 %v2619
          %v2660 = vunpack.c.l.b16 %v2620
          %v2661 = vunpack.c.l.b16 %v2621
          %v2662 = vunpack.c.l.b16 %v2622
          %v2663 = vunpack.c.l.b16 %v2623
          %v2664 = vunpack.c.l.b16 %v2624
          %v2665 = vpack.c.b16 %v2652, %v2651
          %v2666 = vpack.c.b16 %v2654, %v2653
          %v2667 = vpack.c.b16 %v2656, %v2655
          %v2668 = vpack.c.b16 %v2658, %v2657
          %v2669 = vpack.c.b16 %v2660, %v2659
          %v2670 = vpack.c.b16 %v2662, %v2661
          %v2671 = vpack.c.b16 %v2664, %v2663
          %v2673 = vshrl.u32 %v2665, 16
          %v2675 = vrot.slane %v2673, 2
          %v2676 = vshll.u32 %v2665, 16
          %v2678 = vrot.slane %v2676, 3
          %v2679 = vor.u32 %v2675, %v2678
          %v2681 = vshrl.u32 %v2666, 16
          %v2683 = vrot.slane %v2681, 2
          %v2684 = vshll.u32 %v2666, 16
          %v2686 = vrot.slane %v2684, 3
          %v2687 = vor.u32 %v2683, %v2686
          %v2688 = vsel %vm684, %v2679, %v2687
          %v2690 = vshrl.u32 %v2667, 16
          %v2692 = vrot.slane %v2690, 2
          %v2693 = vshll.u32 %v2667, 16
          %v2695 = vrot.slane %v2693, 3
          %v2696 = vor.u32 %v2692, %v2695
          %v2697 = vsel %vm684, %v2687, %v2696
          %v2699 = vshrl.u32 %v2668, 16
          %v2701 = vrot.slane %v2699, 2
          %v2702 = vshll.u32 %v2668, 16
          %v2704 = vrot.slane %v2702, 3
          %v2705 = vor.u32 %v2701, %v2704
          %v2706 = vsel %vm684, %v2696, %v2705
          %v2708 = vshrl.u32 %v2669, 16
          %v2710 = vrot.slane %v2708, 2
          %v2711 = vshll.u32 %v2669, 16
          %v2713 = vrot.slane %v2711, 3
          %v2714 = vor.u32 %v2710, %v2713
          %v2715 = vsel %vm684, %v2705, %v2714
          %v2717 = vshrl.u32 %v2670, 16
          %v2719 = vrot.slane %v2717, 2
          %v2720 = vshll.u32 %v2670, 16
          %v2722 = vrot.slane %v2720, 3
          %v2723 = vor.u32 %v2719, %v2722
          %v2724 = vsel %vm684, %v2714, %v2723
          %v2726 = vshrl.u32 %v2671, 16
          %v2728 = vrot.slane %v2726, 2
          %v2729 = vshll.u32 %v2671, 16
          %v2731 = vrot.slane %v2729, 3
          %v2732 = vor.u32 %v2728, %v2731
          %v2733 = vsel %vm684, %v2723, %v2732
          %v2742 = vunpack.c.l.b16 %v2629
          %v2743 = vunpack.c.l.b16 %v2630
          %v2744 = vunpack.c.l.b16 %v2631
          %v2745 = vunpack.c.l.b16 %v2632
          %v2746 = vunpack.c.l.b16 %v2633
          %v2747 = vunpack.c.l.b16 %v2634
          %v2748 = vunpack.c.l.b16 %v2635
          %v2749 = vunpack.c.l.b16 %v2636
          %v2750 = vpack.c.b16 %v2743, %v2742
          %v2751 = vpack.c.b16 %v2745, %v2744
          %v2752 = vpack.c.b16 %v2747, %v2746
          %v2753 = vpack.c.b16 %v2749, %v2748
          %v2759 = vsel %vm589, %v2688, 0
          %v2762 = vsel %vm589, %v2697, 0
          %v2765 = vsel %vm589, %v2706, 0
          %v2768 = vsel %vm589, %v2715, 0
          %v2771 = vsel %vm589, %v2724, 0
          %v2774 = vsel %vm589, %v2733, 0
          %v2777 = vsel %vm589, %v2732, 0
          %2779 = vmatprep.subr.bf16.mxu0 0
          %2780 = vmatpush1.bf16.msra.mxu0 %v2750
          %2781 = vmatprep.subr.bf16.mxu0 0
          %2782 = vmatpush1.bf16.msra.mxu0 %v2751
          %2783 = vmatprep.subr.bf16.mxu0 0
          %2784 = vmatpush1.bf16.msra.mxu0 %v2752
          %2785 = vmatprep.subr.bf16.mxu0 0
          %2786 = vmatpush1.bf16.msra.mxu0 %v2753
          %2787 = vmatprep.subr.bf16.mxu0 0
          %2788 = vmatpush1.bf16.msra.mxu0 0
          %2789 = vmatprep.subr.bf16.mxu0 0
          %2790 = vmatpush1.bf16.msra.mxu0 0
          %2791 = vmatprep.subr.bf16.mxu0 0
          %2792 = vmatpush1.bf16.msra.mxu0 0
          %2793 = vmatprep.subr.bf16.mxu0 0
          %2794 = vmatpush1.bf16.msra.mxu0 0
          %2795 = vmatprep.subr.bf16.mxu0 0
          %2796 = vmatpush1.bf16.msra.mxu0 0
          %2797 = vmatprep.subr.bf16.mxu0 0
          %2798 = vmatpush1.bf16.msra.mxu0 0
          %2799 = vmatprep.subr.bf16.mxu0 0
          %2800 = vmatpush1.bf16.msra.mxu0 0
          %2801 = vmatprep.subr.bf16.mxu0 0
          %2802 = vmatpush1.bf16.msra.mxu0 0
          %2803 = vmatprep.subr.bf16.mxu0 0
          %2804 = vmatpush1.bf16.msra.mxu0 0
          %2805 = vmatprep.subr.bf16.mxu0 0
          %2806 = vmatpush1.bf16.msra.mxu0 0
          %2807 = vmatprep.subr.bf16.mxu0 0
          %2808 = vmatpush1.bf16.msra.mxu0 0
          %2809 = vmatprep.subr.bf16.mxu0 0
          %2810 = vmatpush1.bf16.msra.mxu0 0
          %2811 = vmatprep.mubr.bf16.mxu0 0
          %2812 = vmatmul.mubr.bf16.gmra.mrb[0].mxu0 %v2759
          %v2813 = vpop.f32.mrb[0].mxu0
          %v2814 = vadd.f32 0.0, %v2813
          %v2815 = vpop.f32.mrb[0].mxu0
          %v2816 = vpop.f32.mrb[0].mxu0
          %v2817 = vadd.f32 0.0, %v2816
          %v2818 = vpop.f32.mrb[0].mxu0
          %2819 = vmatprep.mubr.bf16.mxu0 0
          %2820 = vmatmul.mubr.bf16.gmra.mrb[0].mxu0 %v2762
          %v2821 = vpop.f32.mrb[0].mxu0
          %v2822 = vadd.f32 0.0, %v2821
          %v2823 = vpop.f32.mrb[0].mxu0
          %v2824 = vpop.f32.mrb[0].mxu0
          %v2825 = vadd.f32 0.0, %v2824
          %v2826 = vpop.f32.mrb[0].mxu0
          %2827 = vmatprep.mubr.bf16.mxu0 0
          %2828 = vmatmul.mubr.bf16.gmra.mrb[0].mxu0 %v2765
          %v2829 = vpop.f32.mrb[0].mxu0
          %v2830 = vadd.f32 0.0, %v2829
          %v2831 = vpop.f32.mrb[0].mxu0
          %v2832 = vpop.f32.mrb[0].mxu0
          %v2833 = vadd.f32 0.0, %v2832
          %v2834 = vpop.f32.mrb[0].mxu0
          %2835 = vmatprep.mubr.bf16.mxu0 0
          %2836 = vmatmul.mubr.bf16.gmra.mrb[0].mxu0 %v2768
          %v2837 = vpop.f32.mrb[0].mxu0
          %v2838 = vadd.f32 0.0, %v2837
          %v2839 = vpop.f32.mrb[0].mxu0
          %v2840 = vpop.f32.mrb[0].mxu0
          %v2841 = vadd.f32 0.0, %v2840
          %v2842 = vpop.f32.mrb[0].mxu0
          %2843 = vmatprep.mubr.bf16.mxu0 0
          %2844 = vmatmul.mubr.bf16.gmra.mrb[0].mxu0 %v2771
          %v2845 = vpop.f32.mrb[0].mxu0
          %v2846 = vadd.f32 0.0, %v2845
          %v2847 = vpop.f32.mrb[0].mxu0
          %v2848 = vpop.f32.mrb[0].mxu0
          %v2849 = vadd.f32 0.0, %v2848
          %v2850 = vpop.f32.mrb[0].mxu0
          %2851 = vmatprep.mubr.bf16.mxu0 0
          %2852 = vmatmul.mubr.bf16.gmra.mrb[0].mxu0 %v2774
          %v2853 = vpop.f32.mrb[0].mxu0
          %v2854 = vadd.f32 0.0, %v2853
          %v2855 = vpop.f32.mrb[0].mxu0
          %v2856 = vpop.f32.mrb[0].mxu0
          %v2857 = vadd.f32 0.0, %v2856
          %v2858 = vpop.f32.mrb[0].mxu0
          %2859 = vmatprep.mubr.bf16.mxu0 0
          %2860 = vmatmul.mubr.bf16.gmra.mrb[0].mxu0 %v2777
          %v2861 = vpop.f32.mrb[0].mxu0
          %v2862 = vadd.f32 0.0, %v2861
          %v2863 = vpop.f32.mrb[0].mxu0
          %v2864 = vpop.f32.mrb[0].mxu0
          %v2865 = vpop.f32.mrb[0].mxu0
          %2866 = vdwg.mxu0
          %v2867 = vadd.f32 %v2609, %v2814
          %v2868 = vadd.f32 %v2609, %v2817
          %v2869 = vadd.f32 %v2609, %v2822
          %v2870 = vadd.f32 %v2609, %v2825
          %v2871 = vadd.f32 %v2609, %v2830
          %v2872 = vadd.f32 %v2609, %v2833
          %v2873 = vadd.f32 %v2609, %v2838
          %v2874 = vadd.f32 %v2609, %v2841
          %v2875 = vadd.f32 %v2609, %v2846
          %v2876 = vadd.f32 %v2609, %v2849
          %v2877 = vadd.f32 %v2609, %v2854
          %v2878 = vadd.f32 %v2609, %v2857
          %v2879 = vadd.f32 %v2609, %v2862
          %v2880 = vld [vmem:[#allocation3] sm:$0x8]
          %s2881 = sadd.s32 %s2625, 1
          %s2882 = smul.u32 %s2881, 8
          %s2883 = smul.addr %s2882, 4
          %s2884 = scalar_lea.vmem [#allocation10], %s2883
          %v2885 = vld [vmem:[%s2884] sm:$0xf]
          %v2886 = vld [vmem:[%s2884 + $0x4] sm:$0xf]
          %v2887 = vld [vmem:[%s2884 + $0x8] sm:$0xf]
          %v2888 = vld [vmem:[%s2884 + $0xc] sm:$0xf]
          %v2889 = vld [vmem:[%s2884 + $0x10] sm:$0xf]
          %v2890 = vld [vmem:[%s2884 + $0x14] sm:$0xf]
          %v2891 = vld [vmem:[%s2884 + $0x18] sm:$0xf]
          %v2892 = vld [vmem:[%s2884 + $0x1c] sm:$0xf]
          %v2894 = vunpack.c.l.b16 %v2880
          %v2895 = vpack.c.b16 %v2652, %v2894
          %v2896 = vrot.slane %v2895, 3
          %v2897 = vrot.slane %v2666, 3
          %v2898 = vsel %vm891, %v2896, %v2897
          %v2899 = vrot.slane %v2667, 3
          %v2900 = vsel %vm891, %v2897, %v2899
          %v2901 = vrot.slane %v2668, 3
          %v2902 = vsel %vm891, %v2899, %v2901
          %v2903 = vrot.slane %v2669, 3
          %v2904 = vsel %vm891, %v2901, %v2903
          %v2905 = vrot.slane %v2670, 3
          %v2906 = vsel %vm891, %v2903, %v2905
          %v2907 = vrot.slane %v2671, 3
          %v2908 = vsel %vm891, %v2905, %v2907
          %v2917 = vunpack.c.l.b16 %v2885
          %v2918 = vunpack.c.l.b16 %v2886
          %v2919 = vunpack.c.l.b16 %v2887
          %v2920 = vunpack.c.l.b16 %v2888
          %v2921 = vunpack.c.l.b16 %v2889
          %v2922 = vunpack.c.l.b16 %v2890
          %v2923 = vunpack.c.l.b16 %v2891
          %v2924 = vunpack.c.l.b16 %v2892
          %v2925 = vpack.c.b16 %v2918, %v2917
          %v2926 = vpack.c.b16 %v2920, %v2919
          %v2927 = vpack.c.b16 %v2922, %v2921
          %v2928 = vpack.c.b16 %v2924, %v2923
          %v2934 = vsel %vm589, %v2898, 0
          %v2937 = vsel %vm589, %v2900, 0
          %v2940 = vsel %vm589, %v2902, 0
          %v2943 = vsel %vm589, %v2904, 0
          %v2946 = vsel %vm589, %v2906, 0
          %v2949 = vsel %vm589, %v2908, 0
          %v2952 = vsel %vm589, %v2907, 0
          %2954 = vmatprep.subr.bf16.mxu0 0
          %2955 = vmatpush1.bf16.msra.mxu0 %v2925
          %2956 = vmatprep.subr.bf16.mxu0 0
          %2957 = vmatpush1.bf16.msra.mxu0 %v2926
          %2958 = vmatprep.subr.bf16.mxu0 0
          %2959 = vmatpush1.bf16.msra.mxu0 %v2927
          %2960 = vmatprep.subr.bf16.mxu0 0
          %2961 = vmatpush1.bf16.msra.mxu0 %v2928
          %2962 = vmatprep.subr.bf16.mxu0 0
          %2963 = vmatpush1.bf16.msra.mxu0 0
          %2964 = vmatprep.subr.bf16.mxu0 0
          %2965 = vmatpush1.bf16.msra.mxu0 0
          %2966 = vmatprep.subr.bf16.mxu0 0
          %2967 = vmatpush1.bf16.msra.mxu0 0
          %2968 = vmatprep.subr.bf16.mxu0 0
          %2969 = vmatpush1.bf16.msra.mxu0 0
          %2970 = vmatprep.subr.bf16.mxu0 0
          %2971 = vmatpush1.bf16.msra.mxu0 0
          %2972 = vmatprep.subr.bf16.mxu0 0
          %2973 = vmatpush1.bf16.msra.mxu0 0
          %2974 = vmatprep.subr.bf16.mxu0 0
          %2975 = vmatpush1.bf16.msra.mxu0 0
          %2976 = vmatprep.subr.bf16.mxu0 0
          %2977 = vmatpush1.bf16.msra.mxu0 0
          %2978 = vmatprep.subr.bf16.mxu0 0
          %2979 = vmatpush1.bf16.msra.mxu0 0
          %2980 = vmatprep.subr.bf16.mxu0 0
          %2981 = vmatpush1.bf16.msra.mxu0 0
          %2982 = vmatprep.subr.bf16.mxu0 0
          %2983 = vmatpush1.bf16.msra.mxu0 0
          %2984 = vmatprep.subr.bf16.mxu0 0
          %2985 = vmatpush1.bf16.msra.mxu0 0
          %2986 = vmatprep.mubr.bf16.mxu0 0
          %2987 = vmatmul.mubr.bf16.gmra.mrb[0].mxu0 %v2934
          %v2988 = vpop.f32.mrb[0].mxu0
          %v2989 = vadd.f32 0.0, %v2988
          %v2990 = vpop.f32.mrb[0].mxu0
          %v2991 = vpop.f32.mrb[0].mxu0
          %v2992 = vadd.f32 0.0, %v2991
          %v2993 = vpop.f32.mrb[0].mxu0
          %2994 = vmatprep.mubr.bf16.mxu0 0
          %2995 = vmatmul.mubr.bf16.gmra.mrb[0].mxu0 %v2937
          %v2996 = vpop.f32.mrb[0].mxu0
          %v2997 = vadd.f32 0.0, %v2996
          %v2998 = vpop.f32.mrb[0].mxu0
          %v2999 = vpop.f32.mrb[0].mxu0
          %v3000 = vadd.f32 0.0, %v2999
          %v3001 = vpop.f32.mrb[0].mxu0
          %3002 = vmatprep.mubr.bf16.mxu0 0
          %3003 = vmatmul.mubr.bf16.gmra.mrb[0].mxu0 %v2940
          %v3004 = vpop.f32.mrb[0].mxu0
          %v3005 = vadd.f32 0.0, %v3004
          %v3006 = vpop.f32.mrb[0].mxu0
          %v3007 = vpop.f32.mrb[0].mxu0
          %v3008 = vadd.f32 0.0, %v3007
          %v3009 = vpop.f32.mrb[0].mxu0
          %3010 = vmatprep.mubr.bf16.mxu0 0
          %3011 = vmatmul.mubr.bf16.gmra.mrb[0].mxu0 %v2943
          %v3012 = vpop.f32.mrb[0].mxu0
          %v3013 = vadd.f32 0.0, %v3012
          %v3014 = vpop.f32.mrb[0].mxu0
          %v3015 = vpop.f32.mrb[0].mxu0
          %v3016 = vadd.f32 0.0, %v3015
          %v3017 = vpop.f32.mrb[0].mxu0
          %3018 = vmatprep.mubr.bf16.mxu0 0
          %3019 = vmatmul.mubr.bf16.gmra.mrb[0].mxu0 %v2946
          %v3020 = vpop.f32.mrb[0].mxu0
          %v3021 = vadd.f32 0.0, %v3020
          %v3022 = vpop.f32.mrb[0].mxu0
          %v3023 = vpop.f32.mrb[0].mxu0
          %v3024 = vadd.f32 0.0, %v3023
          %v3025 = vpop.f32.mrb[0].mxu0
          %3026 = vmatprep.mubr.bf16.mxu0 0
          %3027 = vmatmul.mubr.bf16.gmra.mrb[0].mxu0 %v2949
          %v3028 = vpop.f32.mrb[0].mxu0
          %v3029 = vadd.f32 0.0, %v3028
          %v3030 = vpop.f32.mrb[0].mxu0
          %v3031 = vpop.f32.mrb[0].mxu0
          %v3032 = vadd.f32 0.0, %v3031
          %v3033 = vpop.f32.mrb[0].mxu0
          %3034 = vmatprep.mubr.bf16.mxu0 0
          %3035 = vmatmul.mubr.bf16.gmra.mrb[0].mxu0 %v2952
          %v3036 = vpop.f32.mrb[0].mxu0
          %v3037 = vadd.f32 0.0, %v3036
          %v3038 = vpop.f32.mrb[0].mxu0
          %v3039 = vpop.f32.mrb[0].mxu0
          %v3040 = vpop.f32.mrb[0].mxu0
          %3041 = vdwg.mxu0
          %v3042 = vadd.f32 %v2867, %v2989
          %v3043 = vadd.f32 %v2868, %v2992
          %v3044 = vadd.f32 %v2869, %v2997
          %v3045 = vadd.f32 %v2870, %v3000
          %v3046 = vadd.f32 %v2871, %v3005
          %v3047 = vadd.f32 %v2872, %v3008
          %v3048 = vadd.f32 %v2873, %v3013
          %v3049 = vadd.f32 %v2874, %v3016
          %v3050 = vadd.f32 %v2875, %v3021
          %v3051 = vadd.f32 %v2876, %v3024
          %v3052 = vadd.f32 %v2877, %v3029
          %v3053 = vadd.f32 %v2878, %v3032
          %v3054 = vadd.f32 %v2879, %v3037
          %v3055 = vld [vmem:[#allocation3 + $0x34] sm:$0xf]
          %s3056 = sadd.s32 %s2625, 2
          %s3057 = smul.u32 %s3056, 8
          %s3058 = smul.addr %s3057, 4
          %s3059 = scalar_lea.vmem [#allocation10], %s3058
          %v3060 = vld [vmem:[%s3059] sm:$0xf]
          %v3061 = vld [vmem:[%s3059 + $0x4] sm:$0xf]
          %v3062 = vld [vmem:[%s3059 + $0x8] sm:$0xf]
          %v3063 = vld [vmem:[%s3059 + $0xc] sm:$0xf]
          %v3064 = vld [vmem:[%s3059 + $0x10] sm:$0xf]
          %v3065 = vld [vmem:[%s3059 + $0x14] sm:$0xf]
          %v3066 = vld [vmem:[%s3059 + $0x18] sm:$0xf]
          %v3067 = vld [vmem:[%s3059 + $0x1c] sm:$0xf]
          %v3069 = vunpack.c.l.b16 %v3055
          %v3070 = vpack.c.b16 %v3069, %v2663
          %v3072 = vshrl.u32 %v2895, 16
          %v3074 = vrot.slane %v3072, 3
          %v3075 = vshll.u32 %v2895, 16
          %v3077 = vrot.slane %v3075, 4
          %v3078 = vor.u32 %v3074, %v3077
          %v3079 = vrot.slane %v2681, 3
          %v3080 = vrot.slane %v2684, 4
          %v3081 = vor.u32 %v3079, %v3080
          %v3082 = vsel %vm1047, %v3078, %v3081
          %v3083 = vrot.slane %v2690, 3
          %v3084 = vrot.slane %v2693, 4
          %v3085 = vor.u32 %v3083, %v3084
          %v3086 = vsel %vm1047, %v3081, %v3085
          %v3087 = vrot.slane %v2699, 3
          %v3088 = vrot.slane %v2702, 4
          %v3089 = vor.u32 %v3087, %v3088
          %v3090 = vsel %vm1047, %v3085, %v3089
          %v3091 = vrot.slane %v2708, 3
          %v3092 = vrot.slane %v2711, 4
          %v3093 = vor.u32 %v3091, %v3092
          %v3094 = vsel %vm1047, %v3089, %v3093
          %v3095 = vrot.slane %v2717, 3
          %v3096 = vrot.slane %v2720, 4
          %v3097 = vor.u32 %v3095, %v3096
          %v3098 = vsel %vm1047, %v3093, %v3097
          %v3100 = vshrl.u32 %v3070, 16
          %v3102 = vrot.slane %v3100, 3
          %v3103 = vshll.u32 %v3070, 16
          %v3105 = vrot.slane %v3103, 4
          %v3106 = vor.u32 %v3102, %v3105
          %v3107 = vsel %vm1047, %v3097, %v3106
          %v3116 = vunpack.c.l.b16 %v3060
          %v3117 = vunpack.c.l.b16 %v3061
          %v3118 = vunpack.c.l.b16 %v3062
          %v3119 = vunpack.c.l.b16 %v3063
          %v3120 = vunpack.c.l.b16 %v3064
          %v3121 = vunpack.c.l.b16 %v3065
          %v3122 = vunpack.c.l.b16 %v3066
          %v3123 = vunpack.c.l.b16 %v3067
          %v3124 = vpack.c.b16 %v3117, %v3116
          %v3125 = vpack.c.b16 %v3119, %v3118
          %v3126 = vpack.c.b16 %v3121, %v3120
          %v3127 = vpack.c.b16 %v3123, %v3122
          %v3133 = vsel %vm589, %v3082, 0
          %v3136 = vsel %vm589, %v3086, 0
          %v3139 = vsel %vm589, %v3090, 0
          %v3142 = vsel %vm589, %v3094, 0
          %v3145 = vsel %vm589, %v3098, 0
          %v3148 = vsel %vm589, %v3107, 0
          %v3151 = vsel %vm589, %v3106, 0
          %3153 = vmatprep.subr.bf16.mxu0 0
          %3154 = vmatpush1.bf16.msra.mxu0 %v3124
          %3155 = vmatprep.subr.bf16.mxu0 0
          %3156 = vmatpush1.bf16.msra.mxu0 %v3125
          %3157 = vmatprep.subr.bf16.mxu0 0
          %3158 = vmatpush1.bf16.msra.mxu0 %v3126
          %3159 = vmatprep.subr.bf16.mxu0 0
          %3160 = vmatpush1.bf16.msra.mxu0 %v3127
          %3161 = vmatprep.subr.bf16.mxu0 0
          %3162 = vmatpush1.bf16.msra.mxu0 0
          %3163 = vmatprep.subr.bf16.mxu0 0
          %3164 = vmatpush1.bf16.msra.mxu0 0
          %3165 = vmatprep.subr.bf16.mxu0 0
          %3166 = vmatpush1.bf16.msra.mxu0 0
          %3167 = vmatprep.subr.bf16.mxu0 0
          %3168 = vmatpush1.bf16.msra.mxu0 0
          %3169 = vmatprep.subr.bf16.mxu0 0
          %3170 = vmatpush1.bf16.msra.mxu0 0
          %3171 = vmatprep.subr.bf16.mxu0 0
          %3172 = vmatpush1.bf16.msra.mxu0 0
          %3173 = vmatprep.subr.bf16.mxu0 0
          %3174 = vmatpush1.bf16.msra.mxu0 0
          %3175 = vmatprep.subr.bf16.mxu0 0
          %3176 = vmatpush1.bf16.msra.mxu0 0
          %3177 = vmatprep.subr.bf16.mxu0 0
          %3178 = vmatpush1.bf16.msra.mxu0 0
          %3179 = vmatprep.subr.bf16.mxu0 0
          %3180 = vmatpush1.bf16.msra.mxu0 0
          %3181 = vmatprep.subr.bf16.mxu0 0
          %3182 = vmatpush1.bf16.msra.mxu0 0
          %3183 = vmatprep.subr.bf16.mxu0 0
          %3184 = vmatpush1.bf16.msra.mxu0 0
          %3185 = vmatprep.mubr.bf16.mxu0 0
          %3186 = vmatmul.mubr.bf16.gmra.mrb[0].mxu0 %v3133
          %v3187 = vpop.f32.mrb[0].mxu0
          %v3188 = vadd.f32 0.0, %v3187
          %v3189 = vpop.f32.mrb[0].mxu0
          %v3190 = vpop.f32.mrb[0].mxu0
          %v3191 = vadd.f32 0.0, %v3190
          %v3192 = vpop.f32.mrb[0].mxu0
          %3193 = vmatprep.mubr.bf16.mxu0 0
          %3194 = vmatmul.mubr.bf16.gmra.mrb[0].mxu0 %v3136
          %v3195 = vpop.f32.mrb[0].mxu0
          %v3196 = vadd.f32 0.0, %v3195
          %v3197 = vpop.f32.mrb[0].mxu0
          %v3198 = vpop.f32.mrb[0].mxu0
          %v3199 = vadd.f32 0.0, %v3198
          %v3200 = vpop.f32.mrb[0].mxu0
          %3201 = vmatprep.mubr.bf16.mxu0 0
          %3202 = vmatmul.mubr.bf16.gmra.mrb[0].mxu0 %v3139
          %v3203 = vpop.f32.mrb[0].mxu0
          %v3204 = vadd.f32 0.0, %v3203
          %v3205 = vpop.f32.mrb[0].mxu0
          %v3206 = vpop.f32.mrb[0].mxu0
          %v3207 = vadd.f32 0.0, %v3206
          %v3208 = vpop.f32.mrb[0].mxu0
          %3209 = vmatprep.mubr.bf16.mxu0 0
          %3210 = vmatmul.mubr.bf16.gmra.mrb[0].mxu0 %v3142
          %v3211 = vpop.f32.mrb[0].mxu0
          %v3212 = vadd.f32 0.0, %v3211
          %v3213 = vpop.f32.mrb[0].mxu0
          %v3214 = vpop.f32.mrb[0].mxu0
          %v3215 = vadd.f32 0.0, %v3214
          %v3216 = vpop.f32.mrb[0].mxu0
          %3217 = vmatprep.mubr.bf16.mxu0 0
          %3218 = vmatmul.mubr.bf16.gmra.mrb[0].mxu0 %v3145
          %v3219 = vpop.f32.mrb[0].mxu0
          %v3220 = vadd.f32 0.0, %v3219
          %v3221 = vpop.f32.mrb[0].mxu0
          %v3222 = vpop.f32.mrb[0].mxu0
          %v3223 = vadd.f32 0.0, %v3222
          %v3224 = vpop.f32.mrb[0].mxu0
          %3225 = vmatprep.mubr.bf16.mxu0 0
          %3226 = vmatmul.mubr.bf16.gmra.mrb[0].mxu0 %v3148
          %v3227 = vpop.f32.mrb[0].mxu0
          %v3228 = vadd.f32 0.0, %v3227
          %v3229 = vpop.f32.mrb[0].mxu0
          %v3230 = vpop.f32.mrb[0].mxu0
          %v3231 = vadd.f32 0.0, %v3230
          %v3232 = vpop.f32.mrb[0].mxu0
          %3233 = vmatprep.mubr.bf16.mxu0 0
          %3234 = vmatmul.mubr.bf16.gmra.mrb[0].mxu0 %v3151
          %v3235 = vpop.f32.mrb[0].mxu0
          %v3236 = vadd.f32 0.0, %v3235
          %v3237 = vpop.f32.mrb[0].mxu0
          %v3238 = vpop.f32.mrb[0].mxu0
          %v3239 = vpop.f32.mrb[0].mxu0
          %3240 = vdwg.mxu0
          %v3241 = vadd.f32 %v3042, %v3188
          %v3242 = vadd.f32 %v3043, %v3191
          %v3243 = vadd.f32 %v3044, %v3196
          %v3244 = vadd.f32 %v3045, %v3199
          %v3245 = vadd.f32 %v3046, %v3204
          %v3246 = vadd.f32 %v3047, %v3207
          %v3247 = vadd.f32 %v3048, %v3212
          %v3248 = vadd.f32 %v3049, %v3215
          %v3249 = vadd.f32 %v3050, %v3220
          %v3250 = vadd.f32 %v3051, %v3223
          %v3251 = vadd.f32 %v3052, %v3228
          %v3252 = vadd.f32 %v3053, %v3231
          %v3253 = vadd.f32 %v3054, %v3236
          %v3254 = vld [vmem:[#allocation3 + $0x4] sm:$0x8]
          %v3255 = vld [vmem:[#allocation3 + $0x8] sm:$0xf]
          %v3256 = vld [vmem:[#allocation3 + $0xc] sm:$0xf]
          %v3257 = vld [vmem:[#allocation3 + $0x10] sm:$0xf]
          %v3258 = vld [vmem:[#allocation3 + $0x14] sm:$0xf]
          %v3259 = vld [vmem:[#allocation3 + $0x18] sm:$0xf]
          %v3260 = vld [vmem:[#allocation3 + $0x1c] sm:$0xf]
          %v3261 = vld [vmem:[#allocation3 + $0x20] sm:$0xf]
          %v3262 = vld [vmem:[#allocation3 + $0x24] sm:$0xf]
          %v3263 = vld [vmem:[#allocation3 + $0x28] sm:$0xf]
          %v3264 = vld [vmem:[#allocation3 + $0x2c] sm:$0xf]
          %v3265 = vld [vmem:[#allocation3 + $0x30] sm:$0xf]
          %v3266 = vld [vmem:[#allocation3 + $0x34] sm:$0xf]
          %v3267 = vld [vmem:[#allocation3 + $0x38] sm:$0xf]
          %s3268 = sadd.s32 %s2625, 3
          %s3269 = smul.u32 %s3268, 8
          %s3270 = smul.addr %s3269, 4
          %s3271 = scalar_lea.vmem [#allocation10], %s3270
          %v3272 = vld [vmem:[%s3271] sm:$0xf]
          %v3273 = vld [vmem:[%s3271 + $0x4] sm:$0xf]
          %v3274 = vld [vmem:[%s3271 + $0x8] sm:$0xf]
          %v3275 = vld [vmem:[%s3271 + $0xc] sm:$0xf]
          %v3276 = vld [vmem:[%s3271 + $0x10] sm:$0xf]
          %v3277 = vld [vmem:[%s3271 + $0x14] sm:$0xf]
          %v3278 = vld [vmem:[%s3271 + $0x18] sm:$0xf]
          %v3279 = vld [vmem:[%s3271 + $0x1c] sm:$0xf]
          %v3294 = vunpack.c.l.b16 %v3254
          %v3295 = vunpack.c.l.b16 %v3255
          %v3296 = vunpack.c.l.b16 %v3256
          %v3297 = vunpack.c.l.b16 %v3257
          %v3298 = vunpack.c.l.b16 %v3258
          %v3299 = vunpack.c.l.b16 %v3259
          %v3300 = vunpack.c.l.b16 %v3260
          %v3301 = vunpack.c.l.b16 %v3261
          %v3302 = vunpack.c.l.b16 %v3262
          %v3303 = vunpack.c.l.b16 %v3263
          %v3304 = vunpack.c.l.b16 %v3264
          %v3305 = vunpack.c.l.b16 %v3265
          %v3306 = vunpack.c.l.b16 %v3266
          %v3307 = vunpack.c.l.b16 %v3267
          %v3308 = vpack.c.b16 %v3295, %v3294
          %v3309 = vpack.c.b16 %v3297, %v3296
          %v3310 = vpack.c.b16 %v3299, %v3298
          %v3311 = vpack.c.b16 %v3301, %v3300
          %v3312 = vpack.c.b16 %v3303, %v3302
          %v3313 = vpack.c.b16 %v3305, %v3304
          %v3314 = vpack.c.b16 %v3307, %v3306
          %v3316 = vshrl.u32 %v3308, 16
          %v3318 = vrot.slane %v3316, 3
          %v3319 = vshll.u32 %v3308, 16
          %v3321 = vrot.slane %v3319, 4
          %v3322 = vor.u32 %v3318, %v3321
          %v3324 = vshrl.u32 %v3309, 16
          %v3326 = vrot.slane %v3324, 3
          %v3327 = vshll.u32 %v3309, 16
          %v3329 = vrot.slane %v3327, 4
          %v3330 = vor.u32 %v3326, %v3329
          %v3331 = vsel %vm1047, %v3322, %v3330
          %v3333 = vshrl.u32 %v3310, 16
          %v3335 = vrot.slane %v3333, 3
          %v3336 = vshll.u32 %v3310, 16
          %v3338 = vrot.slane %v3336, 4
          %v3339 = vor.u32 %v3335, %v3338
          %v3340 = vsel %vm1047, %v3330, %v3339
          %v3342 = vshrl.u32 %v3311, 16
          %v3344 = vrot.slane %v3342, 3
          %v3345 = vshll.u32 %v3311, 16
          %v3347 = vrot.slane %v3345, 4
          %v3348 = vor.u32 %v3344, %v3347
          %v3349 = vsel %vm1047, %v3339, %v3348
          %v3351 = vshrl.u32 %v3312, 16
          %v3353 = vrot.slane %v3351, 3
          %v3354 = vshll.u32 %v3312, 16
          %v3356 = vrot.slane %v3354, 4
          %v3357 = vor.u32 %v3353, %v3356
          %v3358 = vsel %vm1047, %v3348, %v3357
          %v3360 = vshrl.u32 %v3313, 16
          %v3362 = vrot.slane %v3360, 3
          %v3363 = vshll.u32 %v3313, 16
          %v3365 = vrot.slane %v3363, 4
          %v3366 = vor.u32 %v3362, %v3365
          %v3367 = vsel %vm1047, %v3357, %v3366
          %v3369 = vshrl.u32 %v3314, 16
          %v3371 = vrot.slane %v3369, 3
          %v3372 = vshll.u32 %v3314, 16
          %v3374 = vrot.slane %v3372, 4
          %v3375 = vor.u32 %v3371, %v3374
          %v3376 = vsel %vm1047, %v3366, %v3375
          %v3385 = vunpack.c.l.b16 %v3272
          %v3386 = vunpack.c.l.b16 %v3273
          %v3387 = vunpack.c.l.b16 %v3274
          %v3388 = vunpack.c.l.b16 %v3275
          %v3389 = vunpack.c.l.b16 %v3276
          %v3390 = vunpack.c.l.b16 %v3277
          %v3391 = vunpack.c.l.b16 %v3278
          %v3392 = vunpack.c.l.b16 %v3279
          %v3393 = vpack.c.b16 %v3386, %v3385
          %v3394 = vpack.c.b16 %v3388, %v3387
          %v3395 = vpack.c.b16 %v3390, %v3389
          %v3396 = vpack.c.b16 %v3392, %v3391
          %v3402 = vsel %vm589, %v3331, 0
          %v3405 = vsel %vm589, %v3340, 0
          %v3408 = vsel %vm589, %v3349, 0
          %v3411 = vsel %vm589, %v3358, 0
          %v3414 = vsel %vm589, %v3367, 0
          %v3417 = vsel %vm589, %v3376, 0
          %v3420 = vsel %vm589, %v3375, 0
          %3422 = vmatprep.subr.bf16.mxu0 0
          %3423 = vmatpush1.bf16.msra.mxu0 %v3393
          %3424 = vmatprep.subr.bf16.mxu0 0
          %3425 = vmatpush1.bf16.msra.mxu0 %v3394
          %3426 = vmatprep.subr.bf16.mxu0 0
          %3427 = vmatpush1.bf16.msra.mxu0 %v3395
          %3428 = vmatprep.subr.bf16.mxu0 0
          %3429 = vmatpush1.bf16.msra.mxu0 %v3396
          %3430 = vmatprep.subr.bf16.mxu0 0
          %3431 = vmatpush1.bf16.msra.mxu0 0
          %3432 = vmatprep.subr.bf16.mxu0 0
          %3433 = vmatpush1.bf16.msra.mxu0 0
          %3434 = vmatprep.subr.bf16.mxu0 0
          %3435 = vmatpush1.bf16.msra.mxu0 0
          %3436 = vmatprep.subr.bf16.mxu0 0
          %3437 = vmatpush1.bf16.msra.mxu0 0
          %3438 = vmatprep.subr.bf16.mxu0 0
          %3439 = vmatpush1.bf16.msra.mxu0 0
          %3440 = vmatprep.subr.bf16.mxu0 0
          %3441 = vmatpush1.bf16.msra.mxu0 0
          %3442 = vmatprep.subr.bf16.mxu0 0
          %3443 = vmatpush1.bf16.msra.mxu0 0
          %3444 = vmatprep.subr.bf16.mxu0 0
          %3445 = vmatpush1.bf16.msra.mxu0 0
          %3446 = vmatprep.subr.bf16.mxu0 0
          %3447 = vmatpush1.bf16.msra.mxu0 0
          %3448 = vmatprep.subr.bf16.mxu0 0
          %3449 = vmatpush1.bf16.msra.mxu0 0
          %3450 = vmatprep.subr.bf16.mxu0 0
          %3451 = vmatpush1.bf16.msra.mxu0 0
          %3452 = vmatprep.subr.bf16.mxu0 0
          %3453 = vmatpush1.bf16.msra.mxu0 0
          %3454 = vmatprep.mubr.bf16.mxu0 0
          %3455 = vmatmul.mubr.bf16.gmra.mrb[0].mxu0 %v3402
          %v3456 = vpop.f32.mrb[0].mxu0
          %v3457 = vadd.f32 0.0, %v3456
          %v3458 = vpop.f32.mrb[0].mxu0
          %v3459 = vpop.f32.mrb[0].mxu0
          %v3460 = vadd.f32 0.0, %v3459
          %v3461 = vpop.f32.mrb[0].mxu0
          %3462 = vmatprep.mubr.bf16.mxu0 0
          %3463 = vmatmul.mubr.bf16.gmra.mrb[0].mxu0 %v3405
          %v3464 = vpop.f32.mrb[0].mxu0
          %v3465 = vadd.f32 0.0, %v3464
          %v3466 = vpop.f32.mrb[0].mxu0
          %v3467 = vpop.f32.mrb[0].mxu0
          %v3468 = vadd.f32 0.0, %v3467
          %v3469 = vpop.f32.mrb[0].mxu0
          %3470 = vmatprep.mubr.bf16.mxu0 0
          %3471 = vmatmul.mubr.bf16.gmra.mrb[0].mxu0 %v3408
          %v3472 = vpop.f32.mrb[0].mxu0
          %v3473 = vadd.f32 0.0, %v3472
          %v3474 = vpop.f32.mrb[0].mxu0
          %v3475 = vpop.f32.mrb[0].mxu0
          %v3476 = vadd.f32 0.0, %v3475
          %v3477 = vpop.f32.mrb[0].mxu0
          %3478 = vmatprep.mubr.bf16.mxu0 0
          %3479 = vmatmul.mubr.bf16.gmra.mrb[0].mxu0 %v3411
          %v3480 = vpop.f32.mrb[0].mxu0
          %v3481 = vadd.f32 0.0, %v3480
          %v3482 = vpop.f32.mrb[0].mxu0
          %v3483 = vpop.f32.mrb[0].mxu0
          %v3484 = vadd.f32 0.0, %v3483
          %v3485 = vpop.f32.mrb[0].mxu0
          %3486 = vmatprep.mubr.bf16.mxu0 0
          %3487 = vmatmul.mubr.bf16.gmra.mrb[0].mxu0 %v3414
          %v3488 = vpop.f32.mrb[0].mxu0
          %v3489 = vadd.f32 0.0, %v3488
          %v3490 = vpop.f32.mrb[0].mxu0
          %v3491 = vpop.f32.mrb[0].mxu0
          %v3492 = vadd.f32 0.0, %v3491
          %v3493 = vpop.f32.mrb[0].mxu0
          %3494 = vmatprep.mubr.bf16.mxu0 0
          %3495 = vmatmul.mubr.bf16.gmra.mrb[0].mxu0 %v3417
          %v3496 = vpop.f32.mrb[0].mxu0
          %v3497 = vadd.f32 0.0, %v3496
          %v3498 = vpop.f32.mrb[0].mxu0
          %v3499 = vpop.f32.mrb[0].mxu0
          %v3500 = vadd.f32 0.0, %v3499
          %v3501 = vpop.f32.mrb[0].mxu0
          %3502 = vmatprep.mubr.bf16.mxu0 0
          %3503 = vmatmul.mubr.bf16.gmra.mrb[0].mxu0 %v3420
          %v3504 = vpop.f32.mrb[0].mxu0
          %v3505 = vadd.f32 0.0, %v3504
          %v3506 = vpop.f32.mrb[0].mxu0
          %v3507 = vpop.f32.mrb[0].mxu0
          %v3508 = vpop.f32.mrb[0].mxu0
          %3509 = vdwg.mxu0
          %v3510 = vadd.f32 %v3241, %v3457
          %v3511 = vadd.f32 %v3242, %v3460
          %v3512 = vadd.f32 %v3243, %v3465
          %v3513 = vadd.f32 %v3244, %v3468
          %v3514 = vadd.f32 %v3245, %v3473
          %v3515 = vadd.f32 %v3246, %v3476
          %v3516 = vadd.f32 %v3247, %v3481
          %v3517 = vadd.f32 %v3248, %v3484
          %v3518 = vadd.f32 %v3249, %v3489
          %v3519 = vadd.f32 %v3250, %v3492
          %v3520 = vadd.f32 %v3251, %v3497
          %v3521 = vadd.f32 %v3252, %v3500
          %v3522 = vadd.f32 %v3253, %v3505
          %s3523 = sadd.s32 %s2625, 4
          %s3524 = smul.u32 %s3523, 8
          %s3525 = smul.addr %s3524, 4
          %s3526 = scalar_lea.vmem [#allocation10], %s3525
          %v3527 = vld [vmem:[%s3526] sm:$0xf]
          %v3528 = vld [vmem:[%s3526 + $0x4] sm:$0xf]
          %v3529 = vld [vmem:[%s3526 + $0x8] sm:$0xf]
          %v3530 = vld [vmem:[%s3526 + $0xc] sm:$0xf]
          %v3531 = vld [vmem:[%s3526 + $0x10] sm:$0xf]
          %v3532 = vld [vmem:[%s3526 + $0x14] sm:$0xf]
          %v3533 = vld [vmem:[%s3526 + $0x18] sm:$0xf]
          %v3534 = vld [vmem:[%s3526 + $0x1c] sm:$0xf]
          %v3535 = vpack.c.b16 %v3296, %v3295
          %v3536 = vpack.c.b16 %v3298, %v3297
          %v3537 = vpack.c.b16 %v3300, %v3299
          %v3538 = vpack.c.b16 %v3302, %v3301
          %v3539 = vpack.c.b16 %v3304, %v3303
          %v3540 = vpack.c.b16 %v3306, %v3305
          %v3541 = vpack.c.b16 %v3307, %v3307
          %v3550 = vunpack.c.l.b16 %v3527
          %v3551 = vunpack.c.l.b16 %v3528
          %v3552 = vunpack.c.l.b16 %v3529
          %v3553 = vunpack.c.l.b16 %v3530
          %v3554 = vunpack.c.l.b16 %v3531
          %v3555 = vunpack.c.l.b16 %v3532
          %v3556 = vunpack.c.l.b16 %v3533
          %v3557 = vunpack.c.l.b16 %v3534
          %v3558 = vpack.c.b16 %v3551, %v3550
          %v3559 = vpack.c.b16 %v3553, %v3552
          %v3560 = vpack.c.b16 %v3555, %v3554
          %v3561 = vpack.c.b16 %v3557, %v3556
          %v3567 = vsel %vm589, %v3535, 0
          %v3570 = vsel %vm589, %v3536, 0
          %v3573 = vsel %vm589, %v3537, 0
          %v3576 = vsel %vm589, %v3538, 0
          %v3579 = vsel %vm589, %v3539, 0
          %v3582 = vsel %vm589, %v3540, 0
          %v3585 = vsel %vm589, %v3541, 0
          %3587 = vmatprep.subr.bf16.mxu0 0
          %3588 = vmatpush1.bf16.msra.mxu0 %v3558
          %3589 = vmatprep.subr.bf16.mxu0 0
          %3590 = vmatpush1.bf16.msra.mxu0 %v3559
          %3591 = vmatprep.subr.bf16.mxu0 0
          %3592 = vmatpush1.bf16.msra.mxu0 %v3560
          %3593 = vmatprep.subr.bf16.mxu0 0
          %3594 = vmatpush1.bf16.msra.mxu0 %v3561
          %3595 = vmatprep.subr.bf16.mxu0 0
          %3596 = vmatpush1.bf16.msra.mxu0 0
          %3597 = vmatprep.subr.bf16.mxu0 0
          %3598 = vmatpush1.bf16.msra.mxu0 0
          %3599 = vmatprep.subr.bf16.mxu0 0
          %3600 = vmatpush1.bf16.msra.mxu0 0
          %3601 = vmatprep.subr.bf16.mxu0 0
          %3602 = vmatpush1.bf16.msra.mxu0 0
          %3603 = vmatprep.subr.bf16.mxu0 0
          %3604 = vmatpush1.bf16.msra.mxu0 0
          %3605 = vmatprep.subr.bf16.mxu0 0
          %3606 = vmatpush1.bf16.msra.mxu0 0
          %3607 = vmatprep.subr.bf16.mxu0 0
          %3608 = vmatpush1.bf16.msra.mxu0 0
          %3609 = vmatprep.subr.bf16.mxu0 0
          %3610 = vmatpush1.bf16.msra.mxu0 0
          %3611 = vmatprep.subr.bf16.mxu0 0
          %3612 = vmatpush1.bf16.msra.mxu0 0
          %3613 = vmatprep.subr.bf16.mxu0 0
          %3614 = vmatpush1.bf16.msra.mxu0 0
          %3615 = vmatprep.subr.bf16.mxu0 0
          %3616 = vmatpush1.bf16.msra.mxu0 0
          %3617 = vmatprep.subr.bf16.mxu0 0
          %3618 = vmatpush1.bf16.msra.mxu0 0
          %3619 = vmatprep.mubr.bf16.mxu0 0
          %3620 = vmatmul.mubr.bf16.gmra.mrb[0].mxu0 %v3567
          %v3621 = vpop.f32.mrb[0].mxu0
          %v3622 = vadd.f32 0.0, %v3621
          %v3623 = vpop.f32.mrb[0].mxu0
          %v3624 = vpop.f32.mrb[0].mxu0
          %v3625 = vadd.f32 0.0, %v3624
          %v3626 = vpop.f32.mrb[0].mxu0
          %3627 = vmatprep.mubr.bf16.mxu0 0
          %3628 = vmatmul.mubr.bf16.gmra.mrb[0].mxu0 %v3570
          %v3629 = vpop.f32.mrb[0].mxu0
          %v3630 = vadd.f32 0.0, %v3629
          %v3631 = vpop.f32.mrb[0].mxu0
          %v3632 = vpop.f32.mrb[0].mxu0
          %v3633 = vadd.f32 0.0, %v3632
          %v3634 = vpop.f32.mrb[0].mxu0
          %3635 = vmatprep.mubr.bf16.mxu0 0
          %3636 = vmatmul.mubr.bf16.gmra.mrb[0].mxu0 %v3573
          %v3637 = vpop.f32.mrb[0].mxu0
          %v3638 = vadd.f32 0.0, %v3637
          %v3639 = vpop.f32.mrb[0].mxu0
          %v3640 = vpop.f32.mrb[0].mxu0
          %v3641 = vadd.f32 0.0, %v3640
          %v3642 = vpop.f32.mrb[0].mxu0
          %3643 = vmatprep.mubr.bf16.mxu0 0
          %3644 = vmatmul.mubr.bf16.gmra.mrb[0].mxu0 %v3576
          %v3645 = vpop.f32.mrb[0].mxu0
          %v3646 = vadd.f32 0.0, %v3645
          %v3647 = vpop.f32.mrb[0].mxu0
          %v3648 = vpop.f32.mrb[0].mxu0
          %v3649 = vadd.f32 0.0, %v3648
          %v3650 = vpop.f32.mrb[0].mxu0
          %3651 = vmatprep.mubr.bf16.mxu0 0
          %3652 = vmatmul.mubr.bf16.gmra.mrb[0].mxu0 %v3579
          %v3653 = vpop.f32.mrb[0].mxu0
          %v3654 = vadd.f32 0.0, %v3653
          %v3655 = vpop.f32.mrb[0].mxu0
          %v3656 = vpop.f32.mrb[0].mxu0
          %v3657 = vadd.f32 0.0, %v3656
          %v3658 = vpop.f32.mrb[0].mxu0
          %3659 = vmatprep.mubr.bf16.mxu0 0
          %3660 = vmatmul.mubr.bf16.gmra.mrb[0].mxu0 %v3582
          %v3661 = vpop.f32.mrb[0].mxu0
          %v3662 = vadd.f32 0.0, %v3661
          %v3663 = vpop.f32.mrb[0].mxu0
          %v3664 = vpop.f32.mrb[0].mxu0
          %v3665 = vadd.f32 0.0, %v3664
          %v3666 = vpop.f32.mrb[0].mxu0
          %3667 = vmatprep.mubr.bf16.mxu0 0
          %3668 = vmatmul.mubr.bf16.gmra.mrb[0].mxu0 %v3585
          %v3669 = vpop.f32.mrb[0].mxu0
          %v3670 = vadd.f32 0.0, %v3669
          %v3671 = vpop.f32.mrb[0].mxu0
          %v3672 = vpop.f32.mrb[0].mxu0
          %v3673 = vpop.f32.mrb[0].mxu0
          %3674 = vdwg.mxu0
          %v3675 = vadd.f32 %v3510, %v3622
          %v3676 = vadd.f32 %v3511, %v3625
          %v3677 = vadd.f32 %v3512, %v3630
          %v3678 = vadd.f32 %v3513, %v3633
          %v3679 = vadd.f32 %v3514, %v3638
          %v3680 = vadd.f32 %v3515, %v3641
          %v3681 = vadd.f32 %v3516, %v3646
          %v3682 = vadd.f32 %v3517, %v3649
          %v3683 = vadd.f32 %v3518, %v3654
          %v3684 = vadd.f32 %v3519, %v3657
          %v3685 = vadd.f32 %v3520, %v3662
          %v3686 = vadd.f32 %v3521, %v3665
          %v3687 = vadd.f32 %v3522, %v3670
          %v3688 = vld [vmem:[#allocation3 + $0x8] sm:$0xf]
          %v3689 = vld [vmem:[#allocation3 + $0xc] sm:$0xf]
          %v3690 = vld [vmem:[#allocation3 + $0x10] sm:$0xf]
          %v3691 = vld [vmem:[#allocation3 + $0x14] sm:$0xf]
          %v3692 = vld [vmem:[#allocation3 + $0x18] sm:$0xf]
          %v3693 = vld [vmem:[#allocation3 + $0x1c] sm:$0xf]
          %v3694 = vld [vmem:[#allocation3 + $0x20] sm:$0xf]
          %v3695 = vld [vmem:[#allocation3 + $0x24] sm:$0xf]
          %v3696 = vld [vmem:[#allocation3 + $0x28] sm:$0xf]
          %v3697 = vld [vmem:[#allocation3 + $0x2c] sm:$0xf]
          %v3698 = vld [vmem:[#allocation3 + $0x30] sm:$0xf]
          %v3699 = vld [vmem:[#allocation3 + $0x34] sm:$0xf]
          %v3700 = vld [vmem:[#allocation3 + $0x38] sm:$0xf]
          %v3701 = vld [vmem:[#allocation3 + $0x3c] sm:$0x1]
          %s3702 = sadd.s32 %s2625, 5
          %s3703 = smul.u32 %s3702, 8
          %s3704 = smul.addr %s3703, 4
          %s3705 = scalar_lea.vmem [#allocation10], %s3704
          %v3706 = vld [vmem:[%s3705] sm:$0xf]
          %v3707 = vld [vmem:[%s3705 + $0x4] sm:$0xf]
          %v3708 = vld [vmem:[%s3705 + $0x8] sm:$0xf]
          %v3709 = vld [vmem:[%s3705 + $0xc] sm:$0xf]
          %v3710 = vld [vmem:[%s3705 + $0x10] sm:$0xf]
          %v3711 = vld [vmem:[%s3705 + $0x14] sm:$0xf]
          %v3712 = vld [vmem:[%s3705 + $0x18] sm:$0xf]
          %v3713 = vld [vmem:[%s3705 + $0x1c] sm:$0xf]
          %v3728 = vunpack.c.l.b16 %v3688
          %v3729 = vunpack.c.l.b16 %v3689
          %v3730 = vunpack.c.l.b16 %v3690
          %v3731 = vunpack.c.l.b16 %v3691
          %v3732 = vunpack.c.l.b16 %v3692
          %v3733 = vunpack.c.l.b16 %v3693
          %v3734 = vunpack.c.l.b16 %v3694
          %v3735 = vunpack.c.l.b16 %v3695
          %v3736 = vunpack.c.l.b16 %v3696
          %v3737 = vunpack.c.l.b16 %v3697
          %v3738 = vunpack.c.l.b16 %v3698
          %v3739 = vunpack.c.l.b16 %v3699
          %v3740 = vunpack.c.l.b16 %v3700
          %v3741 = vunpack.c.l.b16 %v3701
          %v3742 = vpack.c.b16 %v3729, %v3728
          %v3743 = vpack.c.b16 %v3731, %v3730
          %v3744 = vpack.c.b16 %v3733, %v3732
          %v3745 = vpack.c.b16 %v3735, %v3734
          %v3746 = vpack.c.b16 %v3737, %v3736
          %v3747 = vpack.c.b16 %v3739, %v3738
          %v3748 = vpack.c.b16 %v3741, %v3740
          %v3750 = vshrl.u32 %v3742, 16
          %v3752 = vshll.u32 %v3742, 16
          %v3754 = vrot.slane %v3752, 1
          %v3755 = vor.u32 %v3750, %v3754
          %v3757 = vshll.u32 %v3743, 16
          %v3759 = vrot.slane %v3757, 1
          %v3760 = vsel %vm1666, %v3755, %v3759
          %v3761 = vshrl.u32 %v3743, 16
          %v3763 = vor.u32 %v3761, %v3759
          %v3765 = vshll.u32 %v3744, 16
          %v3767 = vrot.slane %v3765, 1
          %v3768 = vsel %vm1666, %v3763, %v3767
          %v3769 = vshrl.u32 %v3744, 16
          %v3771 = vor.u32 %v3769, %v3767
          %v3773 = vshll.u32 %v3745, 16
          %v3775 = vrot.slane %v3773, 1
          %v3776 = vsel %vm1666, %v3771, %v3775
          %v3777 = vshrl.u32 %v3745, 16
          %v3779 = vor.u32 %v3777, %v3775
          %v3781 = vshll.u32 %v3746, 16
          %v3783 = vrot.slane %v3781, 1
          %v3784 = vsel %vm1666, %v3779, %v3783
          %v3785 = vshrl.u32 %v3746, 16
          %v3787 = vor.u32 %v3785, %v3783
          %v3789 = vshll.u32 %v3747, 16
          %v3791 = vrot.slane %v3789, 1
          %v3792 = vsel %vm1666, %v3787, %v3791
          %v3793 = vshrl.u32 %v3747, 16
          %v3795 = vor.u32 %v3793, %v3791
          %v3797 = vshll.u32 %v3748, 16
          %v3799 = vrot.slane %v3797, 1
          %v3800 = vsel %vm1666, %v3795, %v3799
          %v3801 = vshrl.u32 %v3748, 16
          %v3803 = vor.u32 %v3801, %v3799
          %v3812 = vunpack.c.l.b16 %v3706
          %v3813 = vunpack.c.l.b16 %v3707
          %v3814 = vunpack.c.l.b16 %v3708
          %v3815 = vunpack.c.l.b16 %v3709
          %v3816 = vunpack.c.l.b16 %v3710
          %v3817 = vunpack.c.l.b16 %v3711
          %v3818 = vunpack.c.l.b16 %v3712
          %v3819 = vunpack.c.l.b16 %v3713
          %v3820 = vpack.c.b16 %v3813, %v3812
          %v3821 = vpack.c.b16 %v3815, %v3814
          %v3822 = vpack.c.b16 %v3817, %v3816
          %v3823 = vpack.c.b16 %v3819, %v3818
          %v3829 = vsel %vm589, %v3760, 0
          %v3832 = vsel %vm589, %v3768, 0
          %v3835 = vsel %vm589, %v3776, 0
          %v3838 = vsel %vm589, %v3784, 0
          %v3841 = vsel %vm589, %v3792, 0
          %v3844 = vsel %vm589, %v3800, 0
          %v3847 = vsel %vm589, %v3803, 0
          %3849 = vmatprep.subr.bf16.mxu0 0
          %3850 = vmatpush1.bf16.msra.mxu0 %v3820
          %3851 = vmatprep.subr.bf16.mxu0 0
          %3852 = vmatpush1.bf16.msra.mxu0 %v3821
          %3853 = vmatprep.subr.bf16.mxu0 0
          %3854 = vmatpush1.bf16.msra.mxu0 %v3822
          %3855 = vmatprep.subr.bf16.mxu0 0
          %3856 = vmatpush1.bf16.msra.mxu0 %v3823
          %3857 = vmatprep.subr.bf16.mxu0 0
          %3858 = vmatpush1.bf16.msra.mxu0 0
          %3859 = vmatprep.subr.bf16.mxu0 0
          %3860 = vmatpush1.bf16.msra.mxu0 0
          %3861 = vmatprep.subr.bf16.mxu0 0
          %3862 = vmatpush1.bf16.msra.mxu0 0
          %3863 = vmatprep.subr.bf16.mxu0 0
          %3864 = vmatpush1.bf16.msra.mxu0 0
          %3865 = vmatprep.subr.bf16.mxu0 0
          %3866 = vmatpush1.bf16.msra.mxu0 0
          %3867 = vmatprep.subr.bf16.mxu0 0
          %3868 = vmatpush1.bf16.msra.mxu0 0
          %3869 = vmatprep.subr.bf16.mxu0 0
          %3870 = vmatpush1.bf16.msra.mxu0 0
          %3871 = vmatprep.subr.bf16.mxu0 0
          %3872 = vmatpush1.bf16.msra.mxu0 0
          %3873 = vmatprep.subr.bf16.mxu0 0
          %3874 = vmatpush1.bf16.msra.mxu0 0
          %3875 = vmatprep.subr.bf16.mxu0 0
          %3876 = vmatpush1.bf16.msra.mxu0 0
          %3877 = vmatprep.subr.bf16.mxu0 0
          %3878 = vmatpush1.bf16.msra.mxu0 0
          %3879 = vmatprep.subr.bf16.mxu0 0
          %3880 = vmatpush1.bf16.msra.mxu0 0
          %3881 = vmatprep.mubr.bf16.mxu0 0
          %3882 = vmatmul.mubr.bf16.gmra.mrb[0].mxu0 %v3829
          %v3883 = vpop.f32.mrb[0].mxu0
          %v3884 = vadd.f32 0.0, %v3883
          %v3885 = vpop.f32.mrb[0].mxu0
          %v3886 = vpop.f32.mrb[0].mxu0
          %v3887 = vadd.f32 0.0, %v3886
          %v3888 = vpop.f32.mrb[0].mxu0
          %3889 = vmatprep.mubr.bf16.mxu0 0
          %3890 = vmatmul.mubr.bf16.gmra.mrb[0].mxu0 %v3832
          %v3891 = vpop.f32.mrb[0].mxu0
          %v3892 = vadd.f32 0.0, %v3891
          %v3893 = vpop.f32.mrb[0].mxu0
          %v3894 = vpop.f32.mrb[0].mxu0
          %v3895 = vadd.f32 0.0, %v3894
          %v3896 = vpop.f32.mrb[0].mxu0
          %3897 = vmatprep.mubr.bf16.mxu0 0
          %3898 = vmatmul.mubr.bf16.gmra.mrb[0].mxu0 %v3835
          %v3899 = vpop.f32.mrb[0].mxu0
          %v3900 = vadd.f32 0.0, %v3899
          %v3901 = vpop.f32.mrb[0].mxu0
          %v3902 = vpop.f32.mrb[0].mxu0
          %v3903 = vadd.f32 0.0, %v3902
          %v3904 = vpop.f32.mrb[0].mxu0
          %3905 = vmatprep.mubr.bf16.mxu0 0
          %3906 = vmatmul.mubr.bf16.gmra.mrb[0].mxu0 %v3838
          %v3907 = vpop.f32.mrb[0].mxu0
          %v3908 = vadd.f32 0.0, %v3907
          %v3909 = vpop.f32.mrb[0].mxu0
          %v3910 = vpop.f32.mrb[0].mxu0
          %v3911 = vadd.f32 0.0, %v3910
          %v3912 = vpop.f32.mrb[0].mxu0
          %3913 = vmatprep.mubr.bf16.mxu0 0
          %3914 = vmatmul.mubr.bf16.gmra.mrb[0].mxu0 %v3841
          %v3915 = vpop.f32.mrb[0].mxu0
          %v3916 = vadd.f32 0.0, %v3915
          %v3917 = vpop.f32.mrb[0].mxu0
          %v3918 = vpop.f32.mrb[0].mxu0
          %v3919 = vadd.f32 0.0, %v3918
          %v3920 = vpop.f32.mrb[0].mxu0
          %3921 = vmatprep.mubr.bf16.mxu0 0
          %3922 = vmatmul.mubr.bf16.gmra.mrb[0].mxu0 %v3844
          %v3923 = vpop.f32.mrb[0].mxu0
          %v3924 = vadd.f32 0.0, %v3923
          %v3925 = vpop.f32.mrb[0].mxu0
          %v3926 = vpop.f32.mrb[0].mxu0
          %v3927 = vadd.f32 0.0, %v3926
          %v3928 = vpop.f32.mrb[0].mxu0
          %3929 = vmatprep.mubr.bf16.mxu0 0
          %3930 = vmatmul.mubr.bf16.gmra.mrb[0].mxu0 %v3847
          %v3931 = vpop.f32.mrb[0].mxu0
          %v3932 = vadd.f32 0.0, %v3931
          %v3933 = vpop.f32.mrb[0].mxu0
          %v3934 = vpop.f32.mrb[0].mxu0
          %v3935 = vpop.f32.mrb[0].mxu0
          %3936 = vdwg.mxu0
          %v3937 = vadd.f32 %v3675, %v3884
          %v3938 = vadd.f32 %v3676, %v3887
          %v3939 = vadd.f32 %v3677, %v3892
          %v3940 = vadd.f32 %v3678, %v3895
          %v3941 = vadd.f32 %v3679, %v3900
          %v3942 = vadd.f32 %v3680, %v3903
          %v3943 = vadd.f32 %v3681, %v3908
          %v3944 = vadd.f32 %v3682, %v3911
          %v3945 = vadd.f32 %v3683, %v3916
          %v3946 = vadd.f32 %v3684, %v3919
          %v3947 = vadd.f32 %v3685, %v3924
          %v3948 = vadd.f32 %v3686, %v3927
          %v3949 = vadd.f32 %v3687, %v3932
          %v3950 = vld [vmem:[#allocation3 + $0xc] sm:$0xf]
          %v3951 = vld [vmem:[#allocation3 + $0x10] sm:$0xf]
          %v3952 = vld [vmem:[#allocation3 + $0x14] sm:$0xf]
          %v3953 = vld [vmem:[#allocation3 + $0x18] sm:$0xf]
          %v3954 = vld [vmem:[#allocation3 + $0x1c] sm:$0xf]
          %v3955 = vld [vmem:[#allocation3 + $0x20] sm:$0xf]
          %v3956 = vld [vmem:[#allocation3 + $0x24] sm:$0xf]
          %v3957 = vld [vmem:[#allocation3 + $0x28] sm:$0xf]
          %v3958 = vld [vmem:[#allocation3 + $0x2c] sm:$0xf]
          %v3959 = vld [vmem:[#allocation3 + $0x30] sm:$0xf]
          %v3960 = vld [vmem:[#allocation3 + $0x34] sm:$0xf]
          %v3961 = vld [vmem:[#allocation3 + $0x38] sm:$0xf]
          %v3962 = vld [vmem:[#allocation3 + $0x3c] sm:$0xf]
          %v3963 = vld [vmem:[#allocation3 + $0x40] sm:$0x1]
          %s3964 = sadd.s32 %s2625, 6
          %s3965 = smul.u32 %s3964, 8
          %s3966 = smul.addr %s3965, 4
          %s3967 = scalar_lea.vmem [#allocation10], %s3966
          %v3968 = vld [vmem:[%s3967] sm:$0xf]
          %v3969 = vld [vmem:[%s3967 + $0x4] sm:$0xf]
          %v3970 = vld [vmem:[%s3967 + $0x8] sm:$0xf]
          %v3971 = vld [vmem:[%s3967 + $0xc] sm:$0xf]
          %v3972 = vld [vmem:[%s3967 + $0x10] sm:$0xf]
          %v3973 = vld [vmem:[%s3967 + $0x14] sm:$0xf]
          %v3974 = vld [vmem:[%s3967 + $0x18] sm:$0xf]
          %v3975 = vld [vmem:[%s3967 + $0x1c] sm:$0xf]
          %v3990 = vunpack.c.l.b16 %v3950
          %v3991 = vunpack.c.l.b16 %v3951
          %v3992 = vunpack.c.l.b16 %v3952
          %v3993 = vunpack.c.l.b16 %v3953
          %v3994 = vunpack.c.l.b16 %v3954
          %v3995 = vunpack.c.l.b16 %v3955
          %v3996 = vunpack.c.l.b16 %v3956
          %v3997 = vunpack.c.l.b16 %v3957
          %v3998 = vunpack.c.l.b16 %v3958
          %v3999 = vunpack.c.l.b16 %v3959
          %v4000 = vunpack.c.l.b16 %v3960
          %v4001 = vunpack.c.l.b16 %v3961
          %v4002 = vunpack.c.l.b16 %v3962
          %v4003 = vunpack.c.l.b16 %v3963
          %v4004 = vpack.c.b16 %v3991, %v3990
          %v4005 = vpack.c.b16 %v3993, %v3992
          %v4006 = vpack.c.b16 %v3995, %v3994
          %v4007 = vpack.c.b16 %v3997, %v3996
          %v4008 = vpack.c.b16 %v3999, %v3998
          %v4009 = vpack.c.b16 %v4001, %v4000
          %v4010 = vpack.c.b16 %v4003, %v4002
          %v4012 = vshrl.u32 %v4004, 16
          %v4014 = vshll.u32 %v4004, 16
          %v4016 = vrot.slane %v4014, 1
          %v4017 = vor.u32 %v4012, %v4016
          %v4019 = vshll.u32 %v4005, 16
          %v4021 = vrot.slane %v4019, 1
          %v4022 = vsel %vm1666, %v4017, %v4021
          %v4023 = vshrl.u32 %v4005, 16
          %v4025 = vor.u32 %v4023, %v4021
          %v4027 = vshll.u32 %v4006, 16
          %v4029 = vrot.slane %v4027, 1
          %v4030 = vsel %vm1666, %v4025, %v4029
          %v4031 = vshrl.u32 %v4006, 16
          %v4033 = vor.u32 %v4031, %v4029
          %v4035 = vshll.u32 %v4007, 16
          %v4037 = vrot.slane %v4035, 1
          %v4038 = vsel %vm1666, %v4033, %v4037
          %v4039 = vshrl.u32 %v4007, 16
          %v4041 = vor.u32 %v4039, %v4037
          %v4043 = vshll.u32 %v4008, 16
          %v4045 = vrot.slane %v4043, 1
          %v4046 = vsel %vm1666, %v4041, %v4045
          %v4047 = vshrl.u32 %v4008, 16
          %v4049 = vor.u32 %v4047, %v4045
          %v4051 = vshll.u32 %v4009, 16
          %v4053 = vrot.slane %v4051, 1
          %v4054 = vsel %vm1666, %v4049, %v4053
          %v4055 = vshrl.u32 %v4009, 16
          %v4057 = vor.u32 %v4055, %v4053
          %v4059 = vshll.u32 %v4010, 16
          %v4061 = vrot.slane %v4059, 1
          %v4062 = vsel %vm1666, %v4057, %v4061
          %v4063 = vshrl.u32 %v4010, 16
          %v4065 = vor.u32 %v4063, %v4061
          %v4074 = vunpack.c.l.b16 %v3968
          %v4075 = vunpack.c.l.b16 %v3969
          %v4076 = vunpack.c.l.b16 %v3970
          %v4077 = vunpack.c.l.b16 %v3971
          %v4078 = vunpack.c.l.b16 %v3972
          %v4079 = vunpack.c.l.b16 %v3973
          %v4080 = vunpack.c.l.b16 %v3974
          %v4081 = vunpack.c.l.b16 %v3975
          %v4082 = vpack.c.b16 %v4075, %v4074
          %v4083 = vpack.c.b16 %v4077, %v4076
          %v4084 = vpack.c.b16 %v4079, %v4078
          %v4085 = vpack.c.b16 %v4081, %v4080
          %v4091 = vsel %vm589, %v4022, 0
          %v4094 = vsel %vm589, %v4030, 0
          %v4097 = vsel %vm589, %v4038, 0
          %v4100 = vsel %vm589, %v4046, 0
          %v4103 = vsel %vm589, %v4054, 0
          %v4106 = vsel %vm589, %v4062, 0
          %v4109 = vsel %vm589, %v4065, 0
          %4111 = vmatprep.subr.bf16.mxu0 0
          %4112 = vmatpush1.bf16.msra.mxu0 %v4082
          %4113 = vmatprep.subr.bf16.mxu0 0
          %4114 = vmatpush1.bf16.msra.mxu0 %v4083
          %4115 = vmatprep.subr.bf16.mxu0 0
          %4116 = vmatpush1.bf16.msra.mxu0 %v4084
          %4117 = vmatprep.subr.bf16.mxu0 0
          %4118 = vmatpush1.bf16.msra.mxu0 %v4085
          %4119 = vmatprep.subr.bf16.mxu0 0
          %4120 = vmatpush1.bf16.msra.mxu0 0
          %4121 = vmatprep.subr.bf16.mxu0 0
          %4122 = vmatpush1.bf16.msra.mxu0 0
          %4123 = vmatprep.subr.bf16.mxu0 0
          %4124 = vmatpush1.bf16.msra.mxu0 0
          %4125 = vmatprep.subr.bf16.mxu0 0
          %4126 = vmatpush1.bf16.msra.mxu0 0
          %4127 = vmatprep.subr.bf16.mxu0 0
          %4128 = vmatpush1.bf16.msra.mxu0 0
          %4129 = vmatprep.subr.bf16.mxu0 0
          %4130 = vmatpush1.bf16.msra.mxu0 0
          %4131 = vmatprep.subr.bf16.mxu0 0
          %4132 = vmatpush1.bf16.msra.mxu0 0
          %4133 = vmatprep.subr.bf16.mxu0 0
          %4134 = vmatpush1.bf16.msra.mxu0 0
          %4135 = vmatprep.subr.bf16.mxu0 0
          %4136 = vmatpush1.bf16.msra.mxu0 0
          %4137 = vmatprep.subr.bf16.mxu0 0
          %4138 = vmatpush1.bf16.msra.mxu0 0
          %4139 = vmatprep.subr.bf16.mxu0 0
          %4140 = vmatpush1.bf16.msra.mxu0 0
          %4141 = vmatprep.subr.bf16.mxu0 0
          %4142 = vmatpush1.bf16.msra.mxu0 0
          %4143 = vmatprep.mubr.bf16.mxu0 0
          %4144 = vmatmul.mubr.bf16.gmra.mrb[0].mxu0 %v4091
          %v4145 = vpop.f32.mrb[0].mxu0
          %v4146 = vadd.f32 0.0, %v4145
          %v4147 = vpop.f32.mrb[0].mxu0
          %v4148 = vpop.f32.mrb[0].mxu0
          %v4149 = vadd.f32 0.0, %v4148
          %v4150 = vpop.f32.mrb[0].mxu0
          %4151 = vmatprep.mubr.bf16.mxu0 0
          %4152 = vmatmul.mubr.bf16.gmra.mrb[0].mxu0 %v4094
          %v4153 = vpop.f32.mrb[0].mxu0
          %v4154 = vadd.f32 0.0, %v4153
          %v4155 = vpop.f32.mrb[0].mxu0
          %v4156 = vpop.f32.mrb[0].mxu0
          %v4157 = vadd.f32 0.0, %v4156
          %v4158 = vpop.f32.mrb[0].mxu0
          %4159 = vmatprep.mubr.bf16.mxu0 0
          %4160 = vmatmul.mubr.bf16.gmra.mrb[0].mxu0 %v4097
          %v4161 = vpop.f32.mrb[0].mxu0
          %v4162 = vadd.f32 0.0, %v4161
          %v4163 = vpop.f32.mrb[0].mxu0
          %v4164 = vpop.f32.mrb[0].mxu0
          %v4165 = vadd.f32 0.0, %v4164
          %v4166 = vpop.f32.mrb[0].mxu0
          %4167 = vmatprep.mubr.bf16.mxu0 0
          %4168 = vmatmul.mubr.bf16.gmra.mrb[0].mxu0 %v4100
          %v4169 = vpop.f32.mrb[0].mxu0
          %v4170 = vadd.f32 0.0, %v4169
          %v4171 = vpop.f32.mrb[0].mxu0
          %v4172 = vpop.f32.mrb[0].mxu0
          %v4173 = vadd.f32 0.0, %v4172
          %v4174 = vpop.f32.mrb[0].mxu0
          %4175 = vmatprep.mubr.bf16.mxu0 0
          %4176 = vmatmul.mubr.bf16.gmra.mrb[0].mxu0 %v4103
          %v4177 = vpop.f32.mrb[0].mxu0
          %v4178 = vadd.f32 0.0, %v4177
          %v4179 = vpop.f32.mrb[0].mxu0
          %v4180 = vpop.f32.mrb[0].mxu0
          %v4181 = vadd.f32 0.0, %v4180
          %v4182 = vpop.f32.mrb[0].mxu0
          %4183 = vmatprep.mubr.bf16.mxu0 0
          %4184 = vmatmul.mubr.bf16.gmra.mrb[0].mxu0 %v4106
          %v4185 = vpop.f32.mrb[0].mxu0
          %v4186 = vadd.f32 0.0, %v4185
          %v4187 = vpop.f32.mrb[0].mxu0
          %v4188 = vpop.f32.mrb[0].mxu0
          %v4189 = vadd.f32 0.0, %v4188
          %v4190 = vpop.f32.mrb[0].mxu0
          %4191 = vmatprep.mubr.bf16.mxu0 0
          %4192 = vmatmul.mubr.bf16.gmra.mrb[0].mxu0 %v4109
          %v4193 = vpop.f32.mrb[0].mxu0
          %v4194 = vadd.f32 0.0, %v4193
          %v4195 = vpop.f32.mrb[0].mxu0
          %v4196 = vpop.f32.mrb[0].mxu0
          %v4197 = vpop.f32.mrb[0].mxu0
          %4198 = vdwg.mxu0
          %v4199 = vadd.f32 %v3937, %v4146
          %v4200 = vadd.f32 %v3938, %v4149
          %v4201 = vadd.f32 %v3939, %v4154
          %v4202 = vadd.f32 %v3940, %v4157
          %v4203 = vadd.f32 %v3941, %v4162
          %v4204 = vadd.f32 %v3942, %v4165
          %v4205 = vadd.f32 %v3943, %v4170
          %v4206 = vadd.f32 %v3944, %v4173
          %v4207 = vadd.f32 %v3945, %v4178
          %v4208 = vadd.f32 %v3946, %v4181
          %v4209 = vadd.f32 %v3947, %v4186
          %v4210 = vadd.f32 %v3948, %v4189
          %v4211 = vadd.f32 %v3949, %v4194
          %v4212 = vld [vmem:[#allocation3 + $0xc] sm:$0xe]
          %s4213 = sadd.s32 %s2625, 7
          %s4214 = smul.u32 %s4213, 8
          %s4215 = smul.addr %s4214, 4
          %s4216 = scalar_lea.vmem [#allocation10], %s4215
          %v4217 = vld [vmem:[%s4216] sm:$0xf]
          %v4218 = vld [vmem:[%s4216 + $0x4] sm:$0xf]
          %v4219 = vld [vmem:[%s4216 + $0x8] sm:$0xf]
          %v4220 = vld [vmem:[%s4216 + $0xc] sm:$0xf]
          %v4221 = vld [vmem:[%s4216 + $0x10] sm:$0xf]
          %v4222 = vld [vmem:[%s4216 + $0x14] sm:$0xf]
          %v4223 = vld [vmem:[%s4216 + $0x18] sm:$0xf]
          %v4224 = vld [vmem:[%s4216 + $0x1c] sm:$0xf]
          %v4226 = vunpack.c.l.b16 %v4212
          %v4227 = vpack.c.b16 %v3991, %v4226
          %v4228 = vrot.slane %v4227, 1
          %v4229 = vrot.slane %v4005, 1
          %v4230 = vsel %vm2106, %v4228, %v4229
          %v4231 = vrot.slane %v4006, 1
          %v4232 = vsel %vm2106, %v4229, %v4231
          %v4233 = vrot.slane %v4007, 1
          %v4234 = vsel %vm2106, %v4231, %v4233
          %v4235 = vrot.slane %v4008, 1
          %v4236 = vsel %vm2106, %v4233, %v4235
          %v4237 = vrot.slane %v4009, 1
          %v4238 = vsel %vm2106, %v4235, %v4237
          %v4239 = vrot.slane %v4010, 1
          %v4240 = vsel %vm2106, %v4237, %v4239
          %v4249 = vunpack.c.l.b16 %v4217
          %v4250 = vunpack.c.l.b16 %v4218
          %v4251 = vunpack.c.l.b16 %v4219
          %v4252 = vunpack.c.l.b16 %v4220
          %v4253 = vunpack.c.l.b16 %v4221
          %v4254 = vunpack.c.l.b16 %v4222
          %v4255 = vunpack.c.l.b16 %v4223
          %v4256 = vunpack.c.l.b16 %v4224
          %v4257 = vpack.c.b16 %v4250, %v4249
          %v4258 = vpack.c.b16 %v4252, %v4251
          %v4259 = vpack.c.b16 %v4254, %v4253
          %v4260 = vpack.c.b16 %v4256, %v4255
          %v4266 = vsel %vm589, %v4230, 0
          %v4269 = vsel %vm589, %v4232, 0
          %v4272 = vsel %vm589, %v4234, 0
          %v4275 = vsel %vm589, %v4236, 0
          %v4278 = vsel %vm589, %v4238, 0
          %v4281 = vsel %vm589, %v4240, 0
          %v4284 = vsel %vm589, %v4239, 0
          %4286 = vmatprep.subr.bf16.mxu0 0
          %4287 = vmatpush1.bf16.msra.mxu0 %v4257
          %4288 = vmatprep.subr.bf16.mxu0 0
          %4289 = vmatpush1.bf16.msra.mxu0 %v4258
          %4290 = vmatprep.subr.bf16.mxu0 0
          %4291 = vmatpush1.bf16.msra.mxu0 %v4259
          %4292 = vmatprep.subr.bf16.mxu0 0
          %4293 = vmatpush1.bf16.msra.mxu0 %v4260
          %4294 = vmatprep.subr.bf16.mxu0 0
          %4295 = vmatpush1.bf16.msra.mxu0 0
          %4296 = vmatprep.subr.bf16.mxu0 0
          %4297 = vmatpush1.bf16.msra.mxu0 0
          %4298 = vmatprep.subr.bf16.mxu0 0
          %4299 = vmatpush1.bf16.msra.mxu0 0
          %4300 = vmatprep.subr.bf16.mxu0 0
          %4301 = vmatpush1.bf16.msra.mxu0 0
          %4302 = vmatprep.subr.bf16.mxu0 0
          %4303 = vmatpush1.bf16.msra.mxu0 0
          %4304 = vmatprep.subr.bf16.mxu0 0
          %4305 = vmatpush1.bf16.msra.mxu0 0
          %4306 = vmatprep.subr.bf16.mxu0 0
          %4307 = vmatpush1.bf16.msra.mxu0 0
          %4308 = vmatprep.subr.bf16.mxu0 0
          %4309 = vmatpush1.bf16.msra.mxu0 0
          %4310 = vmatprep.subr.bf16.mxu0 0
          %4311 = vmatpush1.bf16.msra.mxu0 0
          %4312 = vmatprep.subr.bf16.mxu0 0
          %4313 = vmatpush1.bf16.msra.mxu0 0
          %4314 = vmatprep.subr.bf16.mxu0 0
          %4315 = vmatpush1.bf16.msra.mxu0 0
          %4316 = vmatprep.subr.bf16.mxu0 0
          %4317 = vmatpush1.bf16.msra.mxu0 0
          %4318 = vmatprep.mubr.bf16.mxu0 0
          %4319 = vmatmul.mubr.bf16.gmra.mrb[0].mxu0 %v4266
          %v4320 = vpop.f32.mrb[0].mxu0
          %v4321 = vadd.f32 0.0, %v4320
          %v4322 = vpop.f32.mrb[0].mxu0
          %v4323 = vpop.f32.mrb[0].mxu0
          %v4324 = vadd.f32 0.0, %v4323
          %v4325 = vpop.f32.mrb[0].mxu0
          %4326 = vmatprep.mubr.bf16.mxu0 0
          %4327 = vmatmul.mubr.bf16.gmra.mrb[0].mxu0 %v4269
          %v4328 = vpop.f32.mrb[0].mxu0
          %v4329 = vadd.f32 0.0, %v4328
          %v4330 = vpop.f32.mrb[0].mxu0
          %v4331 = vpop.f32.mrb[0].mxu0
          %v4332 = vadd.f32 0.0, %v4331
          %v4333 = vpop.f32.mrb[0].mxu0
          %4334 = vmatprep.mubr.bf16.mxu0 0
          %4335 = vmatmul.mubr.bf16.gmra.mrb[0].mxu0 %v4272
          %v4336 = vpop.f32.mrb[0].mxu0
          %v4337 = vadd.f32 0.0, %v4336
          %v4338 = vpop.f32.mrb[0].mxu0
          %v4339 = vpop.f32.mrb[0].mxu0
          %v4340 = vadd.f32 0.0, %v4339
          %v4341 = vpop.f32.mrb[0].mxu0
          %4342 = vmatprep.mubr.bf16.mxu0 0
          %4343 = vmatmul.mubr.bf16.gmra.mrb[0].mxu0 %v4275
          %v4344 = vpop.f32.mrb[0].mxu0
          %v4345 = vadd.f32 0.0, %v4344
          %v4346 = vpop.f32.mrb[0].mxu0
          %v4347 = vpop.f32.mrb[0].mxu0
          %v4348 = vadd.f32 0.0, %v4347
          %v4349 = vpop.f32.mrb[0].mxu0
          %4350 = vmatprep.mubr.bf16.mxu0 0
          %4351 = vmatmul.mubr.bf16.gmra.mrb[0].mxu0 %v4278
          %v4352 = vpop.f32.mrb[0].mxu0
          %v4353 = vadd.f32 0.0, %v4352
          %v4354 = vpop.f32.mrb[0].mxu0
          %v4355 = vpop.f32.mrb[0].mxu0
          %v4356 = vadd.f32 0.0, %v4355
          %v4357 = vpop.f32.mrb[0].mxu0
          %4358 = vmatprep.mubr.bf16.mxu0 0
          %4359 = vmatmul.mubr.bf16.gmra.mrb[0].mxu0 %v4281
          %v4360 = vpop.f32.mrb[0].mxu0
          %v4361 = vadd.f32 0.0, %v4360
          %v4362 = vpop.f32.mrb[0].mxu0
          %v4363 = vpop.f32.mrb[0].mxu0
          %v4364 = vadd.f32 0.0, %v4363
          %v4365 = vpop.f32.mrb[0].mxu0
          %4366 = vmatprep.mubr.bf16.mxu0 0
          %4367 = vmatmul.mubr.bf16.gmra.mrb[0].mxu0 %v4284
          %v4368 = vpop.f32.mrb[0].mxu0
          %v4369 = vadd.f32 0.0, %v4368
          %v4370 = vpop.f32.mrb[0].mxu0
          %v4371 = vpop.f32.mrb[0].mxu0
          %v4372 = vpop.f32.mrb[0].mxu0
          %4373 = vdwg.mxu0
          %v4374 = vadd.f32 %v4199, %v4321
          %v4375 = vadd.f32 %v4200, %v4324
          %v4376 = vadd.f32 %v4201, %v4329
          %v4377 = vadd.f32 %v4202, %v4332
          %v4378 = vadd.f32 %v4203, %v4337
          %v4379 = vadd.f32 %v4204, %v4340
          %v4380 = vadd.f32 %v4205, %v4345
          %v4381 = vadd.f32 %v4206, %v4348
          %v4382 = vadd.f32 %v4207, %v4353
          %v4383 = vadd.f32 %v4208, %v4356
          %v4384 = vadd.f32 %v4209, %v4361
          %v4385 = vadd.f32 %v4210, %v4364
          %v4386 = vadd.f32 %v4211, %v4369
          %v4387 = vld [vmem:[#allocation3 + $0x40] sm:$0x3]
          %s4388 = sadd.s32 %s2625, 8
          %s4389 = smul.u32 %s4388, 8
          %s4390 = smul.addr %s4389, 4
          %s4391 = scalar_lea.vmem [#allocation10], %s4390
          %v4392 = vld [vmem:[%s4391] sm:$0xf]
          %v4393 = vld [vmem:[%s4391 + $0x4] sm:$0xf]
          %v4394 = vld [vmem:[%s4391 + $0x8] sm:$0xf]
          %v4395 = vld [vmem:[%s4391 + $0xc] sm:$0xf]
          %v4396 = vld [vmem:[%s4391 + $0x10] sm:$0xf]
          %v4397 = vld [vmem:[%s4391 + $0x14] sm:$0xf]
          %v4398 = vld [vmem:[%s4391 + $0x18] sm:$0xf]
          %v4399 = vld [vmem:[%s4391 + $0x1c] sm:$0xf]
          %v4401 = vunpack.c.l.b16 %v4387
          %v4402 = vpack.c.b16 %v4401, %v4002
          %v4404 = vshrl.u32 %v4227, 16
          %v4406 = vrot.slane %v4404, 1
          %v4407 = vshll.u32 %v4227, 16
          %v4409 = vrot.slane %v4407, 2
          %v4410 = vor.u32 %v4406, %v4409
          %v4411 = vrot.slane %v4023, 1
          %v4412 = vrot.slane %v4019, 2
          %v4413 = vor.u32 %v4411, %v4412
          %v4414 = vsel %vm2262, %v4410, %v4413
          %v4415 = vrot.slane %v4031, 1
          %v4416 = vrot.slane %v4027, 2
          %v4417 = vor.u32 %v4415, %v4416
          %v4418 = vsel %vm2262, %v4413, %v4417
          %v4419 = vrot.slane %v4039, 1
          %v4420 = vrot.slane %v4035, 2
          %v4421 = vor.u32 %v4419, %v4420
          %v4422 = vsel %vm2262, %v4417, %v4421
          %v4423 = vrot.slane %v4047, 1
          %v4424 = vrot.slane %v4043, 2
          %v4425 = vor.u32 %v4423, %v4424
          %v4426 = vsel %vm2262, %v4421, %v4425
          %v4427 = vrot.slane %v4055, 1
          %v4428 = vrot.slane %v4051, 2
          %v4429 = vor.u32 %v4427, %v4428
          %v4430 = vsel %vm2262, %v4425, %v4429
          %v4432 = vshrl.u32 %v4402, 16
          %v4434 = vrot.slane %v4432, 1
          %v4435 = vshll.u32 %v4402, 16
          %v4437 = vrot.slane %v4435, 2
          %v4438 = vor.u32 %v4434, %v4437
          %v4439 = vsel %vm2262, %v4429, %v4438
          %v4448 = vunpack.c.l.b16 %v4392
          %v4449 = vunpack.c.l.b16 %v4393
          %v4450 = vunpack.c.l.b16 %v4394
          %v4451 = vunpack.c.l.b16 %v4395
          %v4452 = vunpack.c.l.b16 %v4396
          %v4453 = vunpack.c.l.b16 %v4397
          %v4454 = vunpack.c.l.b16 %v4398
          %v4455 = vunpack.c.l.b16 %v4399
          %v4456 = vpack.c.b16 %v4449, %v4448
          %v4457 = vpack.c.b16 %v4451, %v4450
          %v4458 = vpack.c.b16 %v4453, %v4452
          %v4459 = vpack.c.b16 %v4455, %v4454
          %v4465 = vsel %vm589, %v4414, 0
          %v4468 = vsel %vm589, %v4418, 0
          %v4471 = vsel %vm589, %v4422, 0
          %v4474 = vsel %vm589, %v4426, 0
          %v4477 = vsel %vm589, %v4430, 0
          %v4480 = vsel %vm589, %v4439, 0
          %v4483 = vsel %vm589, %v4438, 0
          %4485 = vmatprep.subr.bf16.mxu0 0
          %4486 = vmatpush1.bf16.msra.mxu0 %v4456
          %4487 = vmatprep.subr.bf16.mxu0 0
          %4488 = vmatpush1.bf16.msra.mxu0 %v4457
          %4489 = vmatprep.subr.bf16.mxu0 0
          %4490 = vmatpush1.bf16.msra.mxu0 %v4458
          %4491 = vmatprep.subr.bf16.mxu0 0
          %4492 = vmatpush1.bf16.msra.mxu0 %v4459
          %4493 = vmatprep.subr.bf16.mxu0 0
          %4494 = vmatpush1.bf16.msra.mxu0 0
          %4495 = vmatprep.subr.bf16.mxu0 0
          %4496 = vmatpush1.bf16.msra.mxu0 0
          %4497 = vmatprep.subr.bf16.mxu0 0
          %4498 = vmatpush1.bf16.msra.mxu0 0
          %4499 = vmatprep.subr.bf16.mxu0 0
          %4500 = vmatpush1.bf16.msra.mxu0 0
          %4501 = vmatprep.subr.bf16.mxu0 0
          %4502 = vmatpush1.bf16.msra.mxu0 0
          %4503 = vmatprep.subr.bf16.mxu0 0
          %4504 = vmatpush1.bf16.msra.mxu0 0
          %4505 = vmatprep.subr.bf16.mxu0 0
          %4506 = vmatpush1.bf16.msra.mxu0 0
          %4507 = vmatprep.subr.bf16.mxu0 0
          %4508 = vmatpush1.bf16.msra.mxu0 0
          %4509 = vmatprep.subr.bf16.mxu0 0
          %4510 = vmatpush1.bf16.msra.mxu0 0
          %4511 = vmatprep.subr.bf16.mxu0 0
          %4512 = vmatpush1.bf16.msra.mxu0 0
          %4513 = vmatprep.subr.bf16.mxu0 0
          %4514 = vmatpush1.bf16.msra.mxu0 0
          %4515 = vmatprep.subr.bf16.mxu0 0
          %4516 = vmatpush1.bf16.msra.mxu0 0
          %4517 = vmatprep.mubr.bf16.mxu0 0
          %4518 = vmatmul.mubr.bf16.gmra.mrb[0].mxu0 %v4465
          %v4519 = vpop.f32.mrb[0].mxu0
          %v4520 = vadd.f32 0.0, %v4519
          %v4521 = vpop.f32.mrb[0].mxu0
          %v4522 = vpop.f32.mrb[0].mxu0
          %v4523 = vadd.f32 0.0, %v4522
          %v4524 = vpop.f32.mrb[0].mxu0
          %4525 = vmatprep.mubr.bf16.mxu0 0
          %4526 = vmatmul.mubr.bf16.gmra.mrb[0].mxu0 %v4468
          %v4527 = vpop.f32.mrb[0].mxu0
          %v4528 = vadd.f32 0.0, %v4527
          %v4529 = vpop.f32.mrb[0].mxu0
          %v4530 = vpop.f32.mrb[0].mxu0
          %v4531 = vadd.f32 0.0, %v4530
          %v4532 = vpop.f32.mrb[0].mxu0
          %4533 = vmatprep.mubr.bf16.mxu0 0
          %4534 = vmatmul.mubr.bf16.gmra.mrb[0].mxu0 %v4471
          %v4535 = vpop.f32.mrb[0].mxu0
          %v4536 = vadd.f32 0.0, %v4535
          %v4537 = vpop.f32.mrb[0].mxu0
          %v4538 = vpop.f32.mrb[0].mxu0
          %v4539 = vadd.f32 0.0, %v4538
          %v4540 = vpop.f32.mrb[0].mxu0
          %4541 = vmatprep.mubr.bf16.mxu0 0
          %4542 = vmatmul.mubr.bf16.gmra.mrb[0].mxu0 %v4474
          %v4543 = vpop.f32.mrb[0].mxu0
          %v4544 = vadd.f32 0.0, %v4543
          %v4545 = vpop.f32.mrb[0].mxu0
          %v4546 = vpop.f32.mrb[0].mxu0
          %v4547 = vadd.f32 0.0, %v4546
          %v4548 = vpop.f32.mrb[0].mxu0
          %4549 = vmatprep.mubr.bf16.mxu0 0
          %4550 = vmatmul.mubr.bf16.gmra.mrb[0].mxu0 %v4477
          %v4551 = vpop.f32.mrb[0].mxu0
          %v4552 = vadd.f32 0.0, %v4551
          %v4553 = vpop.f32.mrb[0].mxu0
          %v4554 = vpop.f32.mrb[0].mxu0
          %v4555 = vadd.f32 0.0, %v4554
          %v4556 = vpop.f32.mrb[0].mxu0
          %4557 = vmatprep.mubr.bf16.mxu0 0
          %4558 = vmatmul.mubr.bf16.gmra.mrb[0].mxu0 %v4480
          %v4559 = vpop.f32.mrb[0].mxu0
          %v4560 = vadd.f32 0.0, %v4559
          %v4561 = vpop.f32.mrb[0].mxu0
          %v4562 = vpop.f32.mrb[0].mxu0
          %v4563 = vadd.f32 0.0, %v4562
          %v4564 = vpop.f32.mrb[0].mxu0
          %4565 = vmatprep.mubr.bf16.mxu0 0
          %4566 = vmatmul.mubr.bf16.gmra.mrb[0].mxu0 %v4483
          %v4567 = vpop.f32.mrb[0].mxu0
          %v4568 = vadd.f32 0.0, %v4567
          %v4569 = vpop.f32.mrb[0].mxu0
          %v4570 = vpop.f32.mrb[0].mxu0
          %v4571 = vpop.f32.mrb[0].mxu0
          %4572 = vdwg.mxu0
          %v4573 = vadd.f32 %v4374, %v4520
          %v4574 = vadd.f32 %v4375, %v4523
          %v4575 = vadd.f32 %v4376, %v4528
          %v4576 = vadd.f32 %v4377, %v4531
          %v4577 = vadd.f32 %v4378, %v4536
          %v4578 = vadd.f32 %v4379, %v4539
          %v4579 = vadd.f32 %v4380, %v4544
          %v4580 = vadd.f32 %v4381, %v4547
          %v4581 = vadd.f32 %v4382, %v4552
          %v4582 = vadd.f32 %v4383, %v4555
          %v4583 = vadd.f32 %v4384, %v4560
          %v4584 = vadd.f32 %v4385, %v4563
          %v4585 = vadd.f32 %v4386, %v4568
          %vm4586 = vcmp.ge.f32.partialorder %v4573, 0.0
          %vm4587 = vcmp.ge.f32.partialorder %v4574, 0.0
          %vm4588 = vcmp.ge.f32.partialorder %v4575, 0.0
          %vm4589 = vcmp.ge.f32.partialorder %v4576, 0.0
          %vm4590 = vcmp.ge.f32.partialorder %v4577, 0.0
          %vm4591 = vcmp.ge.f32.partialorder %v4578, 0.0
          %vm4592 = vcmp.ge.f32.partialorder %v4579, 0.0
          %vm4593 = vcmp.ge.f32.partialorder %v4580, 0.0
          %vm4594 = vcmp.ge.f32.partialorder %v4581, 0.0
          %vm4595 = vcmp.ge.f32.partialorder %v4582, 0.0
          %vm4596 = vcmp.ge.f32.partialorder %v4583, 0.0
          %vm4597 = vcmp.ge.f32.partialorder %v4584, 0.0
          %vm4598 = vcmp.ge.f32.partialorder %v4585, 0.0
          %v4599 = vstv %s2598
          %v4600 = vmul.f32 %v4599, %v4573
          %v4601 = vmul.f32 %v4599, %v4574
          %v4602 = vmul.f32 %v4599, %v4575
          %v4603 = vmul.f32 %v4599, %v4576
          %v4604 = vmul.f32 %v4599, %v4577
          %v4605 = vmul.f32 %v4599, %v4578
          %v4606 = vmul.f32 %v4599, %v4579
          %v4607 = vmul.f32 %v4599, %v4580
          %v4608 = vmul.f32 %v4599, %v4581
          %v4609 = vmul.f32 %v4599, %v4582
          %v4610 = vmul.f32 %v4599, %v4583
          %v4611 = vmul.f32 %v4599, %v4584
          %v4612 = vmul.f32 %v4599, %v4585
          %v4613 = vsel %vm4586, %v4573, %v4600
          %v4614 = vsel %vm4587, %v4574, %v4601
          %v4615 = vsel %vm4588, %v4575, %v4602
          %v4616 = vsel %vm4589, %v4576, %v4603
          %v4617 = vsel %vm4590, %v4577, %v4604
          %v4618 = vsel %vm4591, %v4578, %v4605
          %v4619 = vsel %vm4592, %v4579, %v4606
          %v4620 = vsel %vm4593, %v4580, %v4607
          %v4621 = vsel %vm4594, %v4581, %v4608
          %v4622 = vsel %vm4595, %v4582, %v4609
          %v4623 = vsel %vm4596, %v4583, %v4610
          %v4624 = vsel %vm4597, %v4584, %v4611
          %v4625 = vsel %vm4598, %v4585, %v4612
          %v4626 = vmul.f32 %v4613, %v2437
          %v4627 = vmul.f32 %v4614, %v2442
          %v4628 = vmul.f32 %v4615, %v2447
          %v4629 = vmul.f32 %v4616, %v2452
          %v4630 = vmul.f32 %v4617, %v2457
          %v4631 = vmul.f32 %v4618, %v2462
          %v4632 = vmul.f32 %v4619, %v2467
          %v4633 = vmul.f32 %v4620, %v2472
          %v4634 = vmul.f32 %v4621, %v2477
          %v4635 = vmul.f32 %v4622, %v2482
          %v4636 = vmul.f32 %v4623, %v2487
          %v4637 = vmul.f32 %v4624, %v2492
          %v4638 = vmul.f32 %v4625, %v2497
          %v4639 = vpack.c.bf16 %v4627, %v4626
          %v4640 = vpack.c.bf16 %v4629, %v4628
          %v4641 = vpack.c.bf16 %v4631, %v4630
          %v4642 = vpack.c.bf16 %v4633, %v4632
          %v4643 = vpack.c.bf16 %v4635, %v4634
          %v4644 = vpack.c.bf16 %v4637, %v4636
          %v4645 = vpack.c.bf16 %v4638, %v4638
          %v4653 = vunpack.c.l.b16 %v4639
          %v4654 = vunpack.c.h.b16 %v4639
          %v4655 = vunpack.c.l.b16 %v4640
          %v4656 = vunpack.c.h.b16 %v4640
          %v4657 = vunpack.c.l.b16 %v4641
          %v4658 = vunpack.c.h.b16 %v4641
          %v4659 = vunpack.c.l.b16 %v4642
          %v4660 = vunpack.c.h.b16 %v4642
          %v4661 = vunpack.c.l.b16 %v4643
          %v4662 = vunpack.c.h.b16 %v4643
          %v4663 = vunpack.c.l.b16 %v4644
          %v4664 = vunpack.c.h.b16 %v4644
          %v4665 = vunpack.c.l.b16 %v4645
          %v4666 = vpack.c.b16 %v4653, %v4653
          %v4667 = vpack.c.b16 %v4654, %v4654
          %v4668 = vpack.c.b16 %v4655, %v4655
          %v4669 = vpack.c.b16 %v4656, %v4656
          %v4670 = vpack.c.b16 %v4657, %v4657
          %v4671 = vpack.c.b16 %v4658, %v4658
          %v4672 = vpack.c.b16 %v4659, %v4659
          %v4673 = vpack.c.b16 %v4660, %v4660
          %v4674 = vpack.c.b16 %v4661, %v4661
          %v4675 = vpack.c.b16 %v4662, %v4662
          %v4676 = vpack.c.b16 %v4663, %v4663
          %v4677 = vpack.c.b16 %v4664, %v4664
          %v4678 = vpack.c.b16 %v4665, %v4665
          %4692 = vst.msk [vmem:[#allocation3 + $0x8] sm:$0xf] %vm607, %v4666
          %4693 = vst.msk [vmem:[#allocation3 + $0xc] sm:$0xf] %vm607, %v4667
          %4694 = vst.msk [vmem:[#allocation3 + $0x10] sm:$0xf] %vm607, %v4668
          %4695 = vst.msk [vmem:[#allocation3 + $0x14] sm:$0xf] %vm607, %v4669
          %4696 = vst.msk [vmem:[#allocation3 + $0x18] sm:$0xf] %vm607, %v4670
          %4697 = vst.msk [vmem:[#allocation3 + $0x1c] sm:$0xf] %vm607, %v4671
          %4698 = vst.msk [vmem:[#allocation3 + $0x20] sm:$0xf] %vm607, %v4672
          %4699 = vst.msk [vmem:[#allocation3 + $0x24] sm:$0xf] %vm607, %v4673
          %4700 = vst.msk [vmem:[#allocation3 + $0x28] sm:$0xf] %vm607, %v4674
          %4701 = vst.msk [vmem:[#allocation3 + $0x2c] sm:$0xf] %vm607, %v4675
          %4702 = vst.msk [vmem:[#allocation3 + $0x30] sm:$0xf] %vm607, %v4676
          %4703 = vst.msk [vmem:[#allocation3 + $0x34] sm:$0xf] %vm607, %v4677
          %4704 = vst.msk [vmem:[#allocation3 + $0x38] sm:$0xf] %vm607, %v4678
          %s4705 = scalar_lea.vmem [#allocation14], %s2592
          %v4706 = vld [vmem:[%s4705] sm:$0x1]
          %v4708 = vlaneseq
          %v4709 = vshrl.u32 %v4708, 7
          %v4710 = vsub.s32 0, %v4709
          %v4711 = vrot.slane %v4706, %v4710
          %v4713 = vld [vmem:[#allocation3] sm:$0xc]
          %v4714 = vld [vmem:[#allocation3 + $0x4] sm:$0xf]
          %v4715 = vld [vmem:[#allocation3 + $0x8] sm:$0xf]
          %v4716 = vld [vmem:[#allocation3 + $0xc] sm:$0xf]
          %v4717 = vld [vmem:[#allocation3 + $0x10] sm:$0xf]
          %v4718 = vld [vmem:[#allocation3 + $0x14] sm:$0xf]
          %v4719 = vld [vmem:[#allocation3 + $0x18] sm:$0xf]
          %v4720 = vld [vmem:[#allocation3 + $0x1c] sm:$0xf]
          %v4721 = vld [vmem:[#allocation3 + $0x20] sm:$0xf]
          %v4722 = vld [vmem:[#allocation3 + $0x24] sm:$0xf]
          %v4723 = vld [vmem:[#allocation3 + $0x28] sm:$0xf]
          %v4724 = vld [vmem:[#allocation3 + $0x2c] sm:$0xf]
          %v4725 = vld [vmem:[#allocation3 + $0x30] sm:$0xf]
          %v4726 = vld [vmem:[#allocation3 + $0x34] sm:$0x7]
          %s4727 = smul.addr %s2626, 4
          %s4728 = scalar_lea.vmem [#allocation13], %s4727
          %v4729 = vld [vmem:[%s4728] sm:$0xf]
          %v4730 = vld [vmem:[%s4728 + $0x4] sm:$0xf]
          %v4731 = vld [vmem:[%s4728 + $0x8] sm:$0xf]
          %v4732 = vld [vmem:[%s4728 + $0xc] sm:$0xf]
          %v4733 = vld [vmem:[%s4728 + $0x10] sm:$0xf]
          %v4734 = vld [vmem:[%s4728 + $0x14] sm:$0xf]
          %v4735 = vld [vmem:[%s4728 + $0x18] sm:$0xf]
          %v4736 = vld [vmem:[%s4728 + $0x1c] sm:$0xf]
          %v4751 = vunpack.c.l.b16 %v4713
          %v4752 = vunpack.c.l.b16 %v4714
          %v4753 = vunpack.c.l.b16 %v4715
          %v4754 = vunpack.c.l.b16 %v4716
          %v4755 = vunpack.c.l.b16 %v4717
          %v4756 = vunpack.c.l.b16 %v4718
          %v4757 = vunpack.c.l.b16 %v4719
          %v4758 = vunpack.c.l.b16 %v4720
          %v4759 = vunpack.c.l.b16 %v4721
          %v4760 = vunpack.c.l.b16 %v4722
          %v4761 = vunpack.c.l.b16 %v4723
          %v4762 = vunpack.c.l.b16 %v4724
          %v4763 = vunpack.c.l.b16 %v4725
          %v4764 = vunpack.c.l.b16 %v4726
          %v4765 = vpack.c.b16 %v4752, %v4751
          %v4766 = vpack.c.b16 %v4754, %v4753
          %v4767 = vpack.c.b16 %v4756, %v4755
          %v4768 = vpack.c.b16 %v4758, %v4757
          %v4769 = vpack.c.b16 %v4760, %v4759
          %v4770 = vpack.c.b16 %v4762, %v4761
          %v4771 = vpack.c.b16 %v4764, %v4763
          %v4773 = vshrl.u32 %v4765, 16
          %v4775 = vrot.slane %v4773, 2
          %v4776 = vshll.u32 %v4765, 16
          %v4778 = vrot.slane %v4776, 3
          %v4779 = vor.u32 %v4775, %v4778
          %v4781 = vshrl.u32 %v4766, 16
          %v4783 = vrot.slane %v4781, 2
          %v4784 = vshll.u32 %v4766, 16
          %v4786 = vrot.slane %v4784, 3
          %v4787 = vor.u32 %v4783, %v4786
          %v4788 = vsel %vm684, %v4779, %v4787
          %v4790 = vshrl.u32 %v4767, 16
          %v4792 = vrot.slane %v4790, 2
          %v4793 = vshll.u32 %v4767, 16
          %v4795 = vrot.slane %v4793, 3
          %v4796 = vor.u32 %v4792, %v4795
          %v4797 = vsel %vm684, %v4787, %v4796
          %v4799 = vshrl.u32 %v4768, 16
          %v4801 = vrot.slane %v4799, 2
          %v4802 = vshll.u32 %v4768, 16
          %v4804 = vrot.slane %v4802, 3
          %v4805 = vor.u32 %v4801, %v4804
          %v4806 = vsel %vm684, %v4796, %v4805
          %v4808 = vshrl.u32 %v4769, 16
          %v4810 = vrot.slane %v4808, 2
          %v4811 = vshll.u32 %v4769, 16
          %v4813 = vrot.slane %v4811, 3
          %v4814 = vor.u32 %v4810, %v4813
          %v4815 = vsel %vm684, %v4805, %v4814
          %v4817 = vshrl.u32 %v4770, 16
          %v4819 = vrot.slane %v4817, 2
          %v4820 = vshll.u32 %v4770, 16
          %v4822 = vrot.slane %v4820, 3
          %v4823 = vor.u32 %v4819, %v4822
          %v4824 = vsel %vm684, %v4814, %v4823
          %v4826 = vshrl.u32 %v4771, 16
          %v4828 = vrot.slane %v4826, 2
          %v4829 = vshll.u32 %v4771, 16
          %v4831 = vrot.slane %v4829, 3
          %v4832 = vor.u32 %v4828, %v4831
          %v4833 = vsel %vm684, %v4823, %v4832
          %v4842 = vunpack.c.l.b16 %v4729
          %v4843 = vunpack.c.l.b16 %v4730
          %v4844 = vunpack.c.l.b16 %v4731
          %v4845 = vunpack.c.l.b16 %v4732
          %v4846 = vunpack.c.l.b16 %v4733
          %v4847 = vunpack.c.l.b16 %v4734
          %v4848 = vunpack.c.l.b16 %v4735
          %v4849 = vunpack.c.l.b16 %v4736
          %v4850 = vpack.c.b16 %v4843, %v4842
          %v4851 = vpack.c.b16 %v4845, %v4844
          %v4852 = vpack.c.b16 %v4847, %v4846
          %v4853 = vpack.c.b16 %v4849, %v4848
          %v4859 = vsel %vm589, %v4788, 0
          %v4862 = vsel %vm589, %v4797, 0
          %v4865 = vsel %vm589, %v4806, 0
          %v4868 = vsel %vm589, %v4815, 0
          %v4871 = vsel %vm589, %v4824, 0
          %v4874 = vsel %vm589, %v4833, 0
          %v4877 = vsel %vm589, %v4832, 0
          %4879 = vmatprep.subr.bf16.mxu0 0
          %4880 = vmatpush1.bf16.msra.mxu0 %v4850
          %4881 = vmatprep.subr.bf16.mxu0 0
          %4882 = vmatpush1.bf16.msra.mxu0 %v4851
          %4883 = vmatprep.subr.bf16.mxu0 0
          %4884 = vmatpush1.bf16.msra.mxu0 %v4852
          %4885 = vmatprep.subr.bf16.mxu0 0
          %4886 = vmatpush1.bf16.msra.mxu0 %v4853
          %4887 = vmatprep.subr.bf16.mxu0 0
          %4888 = vmatpush1.bf16.msra.mxu0 0
          %4889 = vmatprep.subr.bf16.mxu0 0
          %4890 = vmatpush1.bf16.msra.mxu0 0
          %4891 = vmatprep.subr.bf16.mxu0 0
          %4892 = vmatpush1.bf16.msra.mxu0 0
          %4893 = vmatprep.subr.bf16.mxu0 0
          %4894 = vmatpush1.bf16.msra.mxu0 0
          %4895 = vmatprep.subr.bf16.mxu0 0
          %4896 = vmatpush1.bf16.msra.mxu0 0
          %4897 = vmatprep.subr.bf16.mxu0 0
          %4898 = vmatpush1.bf16.msra.mxu0 0
          %4899 = vmatprep.subr.bf16.mxu0 0
          %4900 = vmatpush1.bf16.msra.mxu0 0
          %4901 = vmatprep.subr.bf16.mxu0 0
          %4902 = vmatpush1.bf16.msra.mxu0 0
          %4903 = vmatprep.subr.bf16.mxu0 0
          %4904 = vmatpush1.bf16.msra.mxu0 0
          %4905 = vmatprep.subr.bf16.mxu0 0
          %4906 = vmatpush1.bf16.msra.mxu0 0
          %4907 = vmatprep.subr.bf16.mxu0 0
          %4908 = vmatpush1.bf16.msra.mxu0 0
          %4909 = vmatprep.subr.bf16.mxu0 0
          %4910 = vmatpush1.bf16.msra.mxu0 0
          %4911 = vmatprep.mubr.bf16.mxu0 0
          %4912 = vmatmul.mubr.bf16.gmra.mrb[0].mxu0 %v4859
          %v4913 = vpop.f32.mrb[0].mxu0
          %v4914 = vadd.f32 0.0, %v4913
          %v4915 = vpop.f32.mrb[0].mxu0
          %v4916 = vpop.f32.mrb[0].mxu0
          %v4917 = vadd.f32 0.0, %v4916
          %v4918 = vpop.f32.mrb[0].mxu0
          %4919 = vmatprep.mubr.bf16.mxu0 0
          %4920 = vmatmul.mubr.bf16.gmra.mrb[0].mxu0 %v4862
          %v4921 = vpop.f32.mrb[0].mxu0
          %v4922 = vadd.f32 0.0, %v4921
          %v4923 = vpop.f32.mrb[0].mxu0
          %v4924 = vpop.f32.mrb[0].mxu0
          %v4925 = vadd.f32 0.0, %v4924
          %v4926 = vpop.f32.mrb[0].mxu0
          %4927 = vmatprep.mubr.bf16.mxu0 0
          %4928 = vmatmul.mubr.bf16.gmra.mrb[0].mxu0 %v4865
          %v4929 = vpop.f32.mrb[0].mxu0
          %v4930 = vadd.f32 0.0, %v4929
          %v4931 = vpop.f32.mrb[0].mxu0
          %v4932 = vpop.f32.mrb[0].mxu0
          %v4933 = vadd.f32 0.0, %v4932
          %v4934 = vpop.f32.mrb[0].mxu0
          %4935 = vmatprep.mubr.bf16.mxu0 0
          %4936 = vmatmul.mubr.bf16.gmra.mrb[0].mxu0 %v4868
          %v4937 = vpop.f32.mrb[0].mxu0
          %v4938 = vadd.f32 0.0, %v4937
          %v4939 = vpop.f32.mrb[0].mxu0
          %v4940 = vpop.f32.mrb[0].mxu0
          %v4941 = vadd.f32 0.0, %v4940
          %v4942 = vpop.f32.mrb[0].mxu0
          %4943 = vmatprep.mubr.bf16.mxu0 0
          %4944 = vmatmul.mubr.bf16.gmra.mrb[0].mxu0 %v4871
          %v4945 = vpop.f32.mrb[0].mxu0
          %v4946 = vadd.f32 0.0, %v4945
          %v4947 = vpop.f32.mrb[0].mxu0
          %v4948 = vpop.f32.mrb[0].mxu0
          %v4949 = vadd.f32 0.0, %v4948
          %v4950 = vpop.f32.mrb[0].mxu0
          %4951 = vmatprep.mubr.bf16.mxu0 0
          %4952 = vmatmul.mubr.bf16.gmra.mrb[0].mxu0 %v4874
          %v4953 = vpop.f32.mrb[0].mxu0
          %v4954 = vadd.f32 0.0, %v4953
          %v4955 = vpop.f32.mrb[0].mxu0
          %v4956 = vpop.f32.mrb[0].mxu0
          %v4957 = vadd.f32 0.0, %v4956
          %v4958 = vpop.f32.mrb[0].mxu0
          %4959 = vmatprep.mubr.bf16.mxu0 0
          %4960 = vmatmul.mubr.bf16.gmra.mrb[0].mxu0 %v4877
          %v4961 = vpop.f32.mrb[0].mxu0
          %v4962 = vadd.f32 0.0, %v4961
          %v4963 = vpop.f32.mrb[0].mxu0
          %v4964 = vpop.f32.mrb[0].mxu0
          %v4965 = vpop.f32.mrb[0].mxu0
          %4966 = vdwg.mxu0
          %v4967 = vadd.f32 %v4711, %v4914
          %v4968 = vadd.f32 %v4711, %v4917
          %v4969 = vadd.f32 %v4711, %v4922
          %v4970 = vadd.f32 %v4711, %v4925
          %v4971 = vadd.f32 %v4711, %v4930
          %v4972 = vadd.f32 %v4711, %v4933
          %v4973 = vadd.f32 %v4711, %v4938
          %v4974 = vadd.f32 %v4711, %v4941
          %v4975 = vadd.f32 %v4711, %v4946
          %v4976 = vadd.f32 %v4711, %v4949
          %v4977 = vadd.f32 %v4711, %v4954
          %v4978 = vadd.f32 %v4711, %v4957
          %v4979 = vadd.f32 %v4711, %v4962
          %v4980 = vld [vmem:[#allocation3] sm:$0x8]
          %s4981 = smul.addr %s2882, 4
          %s4982 = scalar_lea.vmem [#allocation13], %s4981
          %v4983 = vld [vmem:[%s4982] sm:$0xf]
          %v4984 = vld [vmem:[%s4982 + $0x4] sm:$0xf]
          %v4985 = vld [vmem:[%s4982 + $0x8] sm:$0xf]
          %v4986 = vld [vmem:[%s4982 + $0xc] sm:$0xf]
          %v4987 = vld [vmem:[%s4982 + $0x10] sm:$0xf]
          %v4988 = vld [vmem:[%s4982 + $0x14] sm:$0xf]
          %v4989 = vld [vmem:[%s4982 + $0x18] sm:$0xf]
          %v4990 = vld [vmem:[%s4982 + $0x1c] sm:$0xf]
          %v4992 = vunpack.c.l.b16 %v4980
          %v4993 = vpack.c.b16 %v4752, %v4992
          %v4994 = vrot.slane %v4993, 3
          %v4995 = vrot.slane %v4766, 3
          %v4996 = vsel %vm891, %v4994, %v4995
          %v4997 = vrot.slane %v4767, 3
          %v4998 = vsel %vm891, %v4995, %v4997
          %v4999 = vrot.slane %v4768, 3
          %v5000 = vsel %vm891, %v4997, %v4999
          %v5001 = vrot.slane %v4769, 3
          %v5002 = vsel %vm891, %v4999, %v5001
          %v5003 = vrot.slane %v4770, 3
          %v5004 = vsel %vm891, %v5001, %v5003
          %v5005 = vrot.slane %v4771, 3
          %v5006 = vsel %vm891, %v5003, %v5005
          %v5015 = vunpack.c.l.b16 %v4983
          %v5016 = vunpack.c.l.b16 %v4984
          %v5017 = vunpack.c.l.b16 %v4985
          %v5018 = vunpack.c.l.b16 %v4986
          %v5019 = vunpack.c.l.b16 %v4987
          %v5020 = vunpack.c.l.b16 %v4988
          %v5021 = vunpack.c.l.b16 %v4989
          %v5022 = vunpack.c.l.b16 %v4990
          %v5023 = vpack.c.b16 %v5016, %v5015
          %v5024 = vpack.c.b16 %v5018, %v5017
          %v5025 = vpack.c.b16 %v5020, %v5019
          %v5026 = vpack.c.b16 %v5022, %v5021
          %v5032 = vsel %vm589, %v4996, 0
          %v5035 = vsel %vm589, %v4998, 0
          %v5038 = vsel %vm589, %v5000, 0
          %v5041 = vsel %vm589, %v5002, 0
          %v5044 = vsel %vm589, %v5004, 0
          %v5047 = vsel %vm589, %v5006, 0
          %v5050 = vsel %vm589, %v5005, 0
          %5052 = vmatprep.subr.bf16.mxu0 0
          %5053 = vmatpush1.bf16.msra.mxu0 %v5023
          %5054 = vmatprep.subr.bf16.mxu0 0
          %5055 = vmatpush1.bf16.msra.mxu0 %v5024
          %5056 = vmatprep.subr.bf16.mxu0 0
          %5057 = vmatpush1.bf16.msra.mxu0 %v5025
          %5058 = vmatprep.subr.bf16.mxu0 0
          %5059 = vmatpush1.bf16.msra.mxu0 %v5026
          %5060 = vmatprep.subr.bf16.mxu0 0
          %5061 = vmatpush1.bf16.msra.mxu0 0
          %5062 = vmatprep.subr.bf16.mxu0 0
          %5063 = vmatpush1.bf16.msra.mxu0 0
          %5064 = vmatprep.subr.bf16.mxu0 0
          %5065 = vmatpush1.bf16.msra.mxu0 0
          %5066 = vmatprep.subr.bf16.mxu0 0
          %5067 = vmatpush1.bf16.msra.mxu0 0
          %5068 = vmatprep.subr.bf16.mxu0 0
          %5069 = vmatpush1.bf16.msra.mxu0 0
          %5070 = vmatprep.subr.bf16.mxu0 0
          %5071 = vmatpush1.bf16.msra.mxu0 0
          %5072 = vmatprep.subr.bf16.mxu0 0
          %5073 = vmatpush1.bf16.msra.mxu0 0
          %5074 = vmatprep.subr.bf16.mxu0 0
          %5075 = vmatpush1.bf16.msra.mxu0 0
          %5076 = vmatprep.subr.bf16.mxu0 0
          %5077 = vmatpush1.bf16.msra.mxu0 0
          %5078 = vmatprep.subr.bf16.mxu0 0
          %5079 = vmatpush1.bf16.msra.mxu0 0
          %5080 = vmatprep.subr.bf16.mxu0 0
          %5081 = vmatpush1.bf16.msra.mxu0 0
          %5082 = vmatprep.subr.bf16.mxu0 0
          %5083 = vmatpush1.bf16.msra.mxu0 0
          %5084 = vmatprep.mubr.bf16.mxu0 0
          %5085 = vmatmul.mubr.bf16.gmra.mrb[0].mxu0 %v5032
          %v5086 = vpop.f32.mrb[0].mxu0
          %v5087 = vadd.f32 0.0, %v5086
          %v5088 = vpop.f32.mrb[0].mxu0
          %v5089 = vpop.f32.mrb[0].mxu0
          %v5090 = vadd.f32 0.0, %v5089
          %v5091 = vpop.f32.mrb[0].mxu0
          %5092 = vmatprep.mubr.bf16.mxu0 0
          %5093 = vmatmul.mubr.bf16.gmra.mrb[0].mxu0 %v5035
          %v5094 = vpop.f32.mrb[0].mxu0
          %v5095 = vadd.f32 0.0, %v5094
          %v5096 = vpop.f32.mrb[0].mxu0
          %v5097 = vpop.f32.mrb[0].mxu0
          %v5098 = vadd.f32 0.0, %v5097
          %v5099 = vpop.f32.mrb[0].mxu0
          %5100 = vmatprep.mubr.bf16.mxu0 0
          %5101 = vmatmul.mubr.bf16.gmra.mrb[0].mxu0 %v5038
          %v5102 = vpop.f32.mrb[0].mxu0
          %v5103 = vadd.f32 0.0, %v5102
          %v5104 = vpop.f32.mrb[0].mxu0
          %v5105 = vpop.f32.mrb[0].mxu0
          %v5106 = vadd.f32 0.0, %v5105
          %v5107 = vpop.f32.mrb[0].mxu0
          %5108 = vmatprep.mubr.bf16.mxu0 0
          %5109 = vmatmul.mubr.bf16.gmra.mrb[0].mxu0 %v5041
          %v5110 = vpop.f32.mrb[0].mxu0
          %v5111 = vadd.f32 0.0, %v5110
          %v5112 = vpop.f32.mrb[0].mxu0
          %v5113 = vpop.f32.mrb[0].mxu0
          %v5114 = vadd.f32 0.0, %v5113
          %v5115 = vpop.f32.mrb[0].mxu0
          %5116 = vmatprep.mubr.bf16.mxu0 0
          %5117 = vmatmul.mubr.bf16.gmra.mrb[0].mxu0 %v5044
          %v5118 = vpop.f32.mrb[0].mxu0
          %v5119 = vadd.f32 0.0, %v5118
          %v5120 = vpop.f32.mrb[0].mxu0
          %v5121 = vpop.f32.mrb[0].mxu0
          %v5122 = vadd.f32 0.0, %v5121
          %v5123 = vpop.f32.mrb[0].mxu0
          %5124 = vmatprep.mubr.bf16.mxu0 0
          %5125 = vmatmul.mubr.bf16.gmra.mrb[0].mxu0 %v5047
          %v5126 = vpop.f32.mrb[0].mxu0
          %v5127 = vadd.f32 0.0, %v5126
          %v5128 = vpop.f32.mrb[0].mxu0
          %v5129 = vpop.f32.mrb[0].mxu0
          %v5130 = vadd.f32 0.0, %v5129
          %v5131 = vpop.f32.mrb[0].mxu0
          %5132 = vmatprep.mubr.bf16.mxu0 0
          %5133 = vmatmul.mubr.bf16.gmra.mrb[0].mxu0 %v5050
          %v5134 = vpop.f32.mrb[0].mxu0
          %v5135 = vadd.f32 0.0, %v5134
          %v5136 = vpop.f32.mrb[0].mxu0
          %v5137 = vpop.f32.mrb[0].mxu0
          %v5138 = vpop.f32.mrb[0].mxu0
          %5139 = vdwg.mxu0
          %v5140 = vadd.f32 %v4967, %v5087
          %v5141 = vadd.f32 %v4968, %v5090
          %v5142 = vadd.f32 %v4969, %v5095
          %v5143 = vadd.f32 %v4970, %v5098
          %v5144 = vadd.f32 %v4971, %v5103
          %v5145 = vadd.f32 %v4972, %v5106
          %v5146 = vadd.f32 %v4973, %v5111
          %v5147 = vadd.f32 %v4974, %v5114
          %v5148 = vadd.f32 %v4975, %v5119
          %v5149 = vadd.f32 %v4976, %v5122
          %v5150 = vadd.f32 %v4977, %v5127
          %v5151 = vadd.f32 %v4978, %v5130
          %v5152 = vadd.f32 %v4979, %v5135
          %v5153 = vld [vmem:[#allocation3 + $0x34] sm:$0xf]
          %s5154 = smul.addr %s3057, 4
          %s5155 = scalar_lea.vmem [#allocation13], %s5154
          %v5156 = vld [vmem:[%s5155] sm:$0xf]
          %v5157 = vld [vmem:[%s5155 + $0x4] sm:$0xf]
          %v5158 = vld [vmem:[%s5155 + $0x8] sm:$0xf]
          %v5159 = vld [vmem:[%s5155 + $0xc] sm:$0xf]
          %v5160 = vld [vmem:[%s5155 + $0x10] sm:$0xf]
          %v5161 = vld [vmem:[%s5155 + $0x14] sm:$0xf]
          %v5162 = vld [vmem:[%s5155 + $0x18] sm:$0xf]
          %v5163 = vld [vmem:[%s5155 + $0x1c] sm:$0xf]
          %v5165 = vunpack.c.l.b16 %v5153
          %v5166 = vpack.c.b16 %v5165, %v4763
          %v5168 = vshrl.u32 %v4993, 16
          %v5170 = vrot.slane %v5168, 3
          %v5171 = vshll.u32 %v4993, 16
          %v5173 = vrot.slane %v5171, 4
          %v5174 = vor.u32 %v5170, %v5173
          %v5175 = vrot.slane %v4781, 3
          %v5176 = vrot.slane %v4784, 4
          %v5177 = vor.u32 %v5175, %v5176
          %v5178 = vsel %vm1047, %v5174, %v5177
          %v5179 = vrot.slane %v4790, 3
          %v5180 = vrot.slane %v4793, 4
          %v5181 = vor.u32 %v5179, %v5180
          %v5182 = vsel %vm1047, %v5177, %v5181
          %v5183 = vrot.slane %v4799, 3
          %v5184 = vrot.slane %v4802, 4
          %v5185 = vor.u32 %v5183, %v5184
          %v5186 = vsel %vm1047, %v5181, %v5185
          %v5187 = vrot.slane %v4808, 3
          %v5188 = vrot.slane %v4811, 4
          %v5189 = vor.u32 %v5187, %v5188
          %v5190 = vsel %vm1047, %v5185, %v5189
          %v5191 = vrot.slane %v4817, 3
          %v5192 = vrot.slane %v4820, 4
          %v5193 = vor.u32 %v5191, %v5192
          %v5194 = vsel %vm1047, %v5189, %v5193
          %v5196 = vshrl.u32 %v5166, 16
          %v5198 = vrot.slane %v5196, 3
          %v5199 = vshll.u32 %v5166, 16
          %v5201 = vrot.slane %v5199, 4
          %v5202 = vor.u32 %v5198, %v5201
          %v5203 = vsel %vm1047, %v5193, %v5202
          %v5212 = vunpack.c.l.b16 %v5156
          %v5213 = vunpack.c.l.b16 %v5157
          %v5214 = vunpack.c.l.b16 %v5158
          %v5215 = vunpack.c.l.b16 %v5159
          %v5216 = vunpack.c.l.b16 %v5160
          %v5217 = vunpack.c.l.b16 %v5161
          %v5218 = vunpack.c.l.b16 %v5162
          %v5219 = vunpack.c.l.b16 %v5163
          %v5220 = vpack.c.b16 %v5213, %v5212
          %v5221 = vpack.c.b16 %v5215, %v5214
          %v5222 = vpack.c.b16 %v5217, %v5216
          %v5223 = vpack.c.b16 %v5219, %v5218
          %v5229 = vsel %vm589, %v5178, 0
          %v5232 = vsel %vm589, %v5182, 0
          %v5235 = vsel %vm589, %v5186, 0
          %v5238 = vsel %vm589, %v5190, 0
          %v5241 = vsel %vm589, %v5194, 0
          %v5244 = vsel %vm589, %v5203, 0
          %v5247 = vsel %vm589, %v5202, 0
          %5249 = vmatprep.subr.bf16.mxu0 0
          %5250 = vmatpush1.bf16.msra.mxu0 %v5220
          %5251 = vmatprep.subr.bf16.mxu0 0
          %5252 = vmatpush1.bf16.msra.mxu0 %v5221
          %5253 = vmatprep.subr.bf16.mxu0 0
          %5254 = vmatpush1.bf16.msra.mxu0 %v5222
          %5255 = vmatprep.subr.bf16.mxu0 0
          %5256 = vmatpush1.bf16.msra.mxu0 %v5223
          %5257 = vmatprep.subr.bf16.mxu0 0
          %5258 = vmatpush1.bf16.msra.mxu0 0
          %5259 = vmatprep.subr.bf16.mxu0 0
          %5260 = vmatpush1.bf16.msra.mxu0 0
          %5261 = vmatprep.subr.bf16.mxu0 0
          %5262 = vmatpush1.bf16.msra.mxu0 0
          %5263 = vmatprep.subr.bf16.mxu0 0
          %5264 = vmatpush1.bf16.msra.mxu0 0
          %5265 = vmatprep.subr.bf16.mxu0 0
          %5266 = vmatpush1.bf16.msra.mxu0 0
          %5267 = vmatprep.subr.bf16.mxu0 0
          %5268 = vmatpush1.bf16.msra.mxu0 0
          %5269 = vmatprep.subr.bf16.mxu0 0
          %5270 = vmatpush1.bf16.msra.mxu0 0
          %5271 = vmatprep.subr.bf16.mxu0 0
          %5272 = vmatpush1.bf16.msra.mxu0 0
          %5273 = vmatprep.subr.bf16.mxu0 0
          %5274 = vmatpush1.bf16.msra.mxu0 0
          %5275 = vmatprep.subr.bf16.mxu0 0
          %5276 = vmatpush1.bf16.msra.mxu0 0
          %5277 = vmatprep.subr.bf16.mxu0 0
          %5278 = vmatpush1.bf16.msra.mxu0 0
          %5279 = vmatprep.subr.bf16.mxu0 0
          %5280 = vmatpush1.bf16.msra.mxu0 0
          %5281 = vmatprep.mubr.bf16.mxu0 0
          %5282 = vmatmul.mubr.bf16.gmra.mrb[0].mxu0 %v5229
          %v5283 = vpop.f32.mrb[0].mxu0
          %v5284 = vadd.f32 0.0, %v5283
          %v5285 = vpop.f32.mrb[0].mxu0
          %v5286 = vpop.f32.mrb[0].mxu0
          %v5287 = vadd.f32 0.0, %v5286
          %v5288 = vpop.f32.mrb[0].mxu0
          %5289 = vmatprep.mubr.bf16.mxu0 0
          %5290 = vmatmul.mubr.bf16.gmra.mrb[0].mxu0 %v5232
          %v5291 = vpop.f32.mrb[0].mxu0
          %v5292 = vadd.f32 0.0, %v5291
          %v5293 = vpop.f32.mrb[0].mxu0
          %v5294 = vpop.f32.mrb[0].mxu0
          %v5295 = vadd.f32 0.0, %v5294
          %v5296 = vpop.f32.mrb[0].mxu0
          %5297 = vmatprep.mubr.bf16.mxu0 0
          %5298 = vmatmul.mubr.bf16.gmra.mrb[0].mxu0 %v5235
          %v5299 = vpop.f32.mrb[0].mxu0
          %v5300 = vadd.f32 0.0, %v5299
          %v5301 = vpop.f32.mrb[0].mxu0
          %v5302 = vpop.f32.mrb[0].mxu0
          %v5303 = vadd.f32 0.0, %v5302
          %v5304 = vpop.f32.mrb[0].mxu0
          %5305 = vmatprep.mubr.bf16.mxu0 0
          %5306 = vmatmul.mubr.bf16.gmra.mrb[0].mxu0 %v5238
          %v5307 = vpop.f32.mrb[0].mxu0
          %v5308 = vadd.f32 0.0, %v5307
          %v5309 = vpop.f32.mrb[0].mxu0
          %v5310 = vpop.f32.mrb[0].mxu0
          %v5311 = vadd.f32 0.0, %v5310
          %v5312 = vpop.f32.mrb[0].mxu0
          %5313 = vmatprep.mubr.bf16.mxu0 0
          %5314 = vmatmul.mubr.bf16.gmra.mrb[0].mxu0 %v5241
          %v5315 = vpop.f32.mrb[0].mxu0
          %v5316 = vadd.f32 0.0, %v5315
          %v5317 = vpop.f32.mrb[0].mxu0
          %v5318 = vpop.f32.mrb[0].mxu0
          %v5319 = vadd.f32 0.0, %v5318
          %v5320 = vpop.f32.mrb[0].mxu0
          %5321 = vmatprep.mubr.bf16.mxu0 0
          %5322 = vmatmul.mubr.bf16.gmra.mrb[0].mxu0 %v5244
          %v5323 = vpop.f32.mrb[0].mxu0
          %v5324 = vadd.f32 0.0, %v5323
          %v5325 = vpop.f32.mrb[0].mxu0
          %v5326 = vpop.f32.mrb[0].mxu0
          %v5327 = vadd.f32 0.0, %v5326
          %v5328 = vpop.f32.mrb[0].mxu0
          %5329 = vmatprep.mubr.bf16.mxu0 0
          %5330 = vmatmul.mubr.bf16.gmra.mrb[0].mxu0 %v5247
          %v5331 = vpop.f32.mrb[0].mxu0
          %v5332 = vadd.f32 0.0, %v5331
          %v5333 = vpop.f32.mrb[0].mxu0
          %v5334 = vpop.f32.mrb[0].mxu0
          %v5335 = vpop.f32.mrb[0].mxu0
          %5336 = vdwg.mxu0
          %v5337 = vadd.f32 %v5140, %v5284
          %v5338 = vadd.f32 %v5141, %v5287
          %v5339 = vadd.f32 %v5142, %v5292
          %v5340 = vadd.f32 %v5143, %v5295
          %v5341 = vadd.f32 %v5144, %v5300
          %v5342 = vadd.f32 %v5145, %v5303
          %v5343 = vadd.f32 %v5146, %v5308
          %v5344 = vadd.f32 %v5147, %v5311
          %v5345 = vadd.f32 %v5148, %v5316
          %v5346 = vadd.f32 %v5149, %v5319
          %v5347 = vadd.f32 %v5150, %v5324
          %v5348 = vadd.f32 %v5151, %v5327
          %v5349 = vadd.f32 %v5152, %v5332
          %v5350 = vld [vmem:[#allocation3 + $0x4] sm:$0x8]
          %v5351 = vld [vmem:[#allocation3 + $0x8] sm:$0xf]
          %v5352 = vld [vmem:[#allocation3 + $0xc] sm:$0xf]
          %v5353 = vld [vmem:[#allocation3 + $0x10] sm:$0xf]
          %v5354 = vld [vmem:[#allocation3 + $0x14] sm:$0xf]
          %v5355 = vld [vmem:[#allocation3 + $0x18] sm:$0xf]
          %v5356 = vld [vmem:[#allocation3 + $0x1c] sm:$0xf]
          %v5357 = vld [vmem:[#allocation3 + $0x20] sm:$0xf]
          %v5358 = vld [vmem:[#allocation3 + $0x24] sm:$0xf]
          %v5359 = vld [vmem:[#allocation3 + $0x28] sm:$0xf]
          %v5360 = vld [vmem:[#allocation3 + $0x2c] sm:$0xf]
          %v5361 = vld [vmem:[#allocation3 + $0x30] sm:$0xf]
          %v5362 = vld [vmem:[#allocation3 + $0x34] sm:$0xf]
          %v5363 = vld [vmem:[#allocation3 + $0x38] sm:$0xf]
          %s5364 = smul.addr %s3269, 4
          %s5365 = scalar_lea.vmem [#allocation13], %s5364
          %v5366 = vld [vmem:[%s5365] sm:$0xf]
          %v5367 = vld [vmem:[%s5365 + $0x4] sm:$0xf]
          %v5368 = vld [vmem:[%s5365 + $0x8] sm:$0xf]
          %v5369 = vld [vmem:[%s5365 + $0xc] sm:$0xf]
          %v5370 = vld [vmem:[%s5365 + $0x10] sm:$0xf]
          %v5371 = vld [vmem:[%s5365 + $0x14] sm:$0xf]
          %v5372 = vld [vmem:[%s5365 + $0x18] sm:$0xf]
          %v5373 = vld [vmem:[%s5365 + $0x1c] sm:$0xf]
          %v5388 = vunpack.c.l.b16 %v5350
          %v5389 = vunpack.c.l.b16 %v5351
          %v5390 = vunpack.c.l.b16 %v5352
          %v5391 = vunpack.c.l.b16 %v5353
          %v5392 = vunpack.c.l.b16 %v5354
          %v5393 = vunpack.c.l.b16 %v5355
          %v5394 = vunpack.c.l.b16 %v5356
          %v5395 = vunpack.c.l.b16 %v5357
          %v5396 = vunpack.c.l.b16 %v5358
          %v5397 = vunpack.c.l.b16 %v5359
          %v5398 = vunpack.c.l.b16 %v5360
          %v5399 = vunpack.c.l.b16 %v5361
          %v5400 = vunpack.c.l.b16 %v5362
          %v5401 = vunpack.c.l.b16 %v5363
          %v5402 = vpack.c.b16 %v5389, %v5388
          %v5403 = vpack.c.b16 %v5391, %v5390
          %v5404 = vpack.c.b16 %v5393, %v5392
          %v5405 = vpack.c.b16 %v5395, %v5394
          %v5406 = vpack.c.b16 %v5397, %v5396
          %v5407 = vpack.c.b16 %v5399, %v5398
          %v5408 = vpack.c.b16 %v5401, %v5400
          %v5410 = vshrl.u32 %v5402, 16
          %v5412 = vrot.slane %v5410, 3
          %v5413 = vshll.u32 %v5402, 16
          %v5415 = vrot.slane %v5413, 4
          %v5416 = vor.u32 %v5412, %v5415
          %v5418 = vshrl.u32 %v5403, 16
          %v5420 = vrot.slane %v5418, 3
          %v5421 = vshll.u32 %v5403, 16
          %v5423 = vrot.slane %v5421, 4
          %v5424 = vor.u32 %v5420, %v5423
          %v5425 = vsel %vm1047, %v5416, %v5424
          %v5427 = vshrl.u32 %v5404, 16
          %v5429 = vrot.slane %v5427, 3
          %v5430 = vshll.u32 %v5404, 16
          %v5432 = vrot.slane %v5430, 4
          %v5433 = vor.u32 %v5429, %v5432
          %v5434 = vsel %vm1047, %v5424, %v5433
          %v5436 = vshrl.u32 %v5405, 16
          %v5438 = vrot.slane %v5436, 3
          %v5439 = vshll.u32 %v5405, 16
          %v5441 = vrot.slane %v5439, 4
          %v5442 = vor.u32 %v5438, %v5441
          %v5443 = vsel %vm1047, %v5433, %v5442
          %v5445 = vshrl.u32 %v5406, 16
          %v5447 = vrot.slane %v5445, 3
          %v5448 = vshll.u32 %v5406, 16
          %v5450 = vrot.slane %v5448, 4
          %v5451 = vor.u32 %v5447, %v5450
          %v5452 = vsel %vm1047, %v5442, %v5451
          %v5454 = vshrl.u32 %v5407, 16
          %v5456 = vrot.slane %v5454, 3
          %v5457 = vshll.u32 %v5407, 16
          %v5459 = vrot.slane %v5457, 4
          %v5460 = vor.u32 %v5456, %v5459
          %v5461 = vsel %vm1047, %v5451, %v5460
          %v5463 = vshrl.u32 %v5408, 16
          %v5465 = vrot.slane %v5463, 3
          %v5466 = vshll.u32 %v5408, 16
          %v5468 = vrot.slane %v5466, 4
          %v5469 = vor.u32 %v5465, %v5468
          %v5470 = vsel %vm1047, %v5460, %v5469
          %v5479 = vunpack.c.l.b16 %v5366
          %v5480 = vunpack.c.l.b16 %v5367
          %v5481 = vunpack.c.l.b16 %v5368
          %v5482 = vunpack.c.l.b16 %v5369
          %v5483 = vunpack.c.l.b16 %v5370
          %v5484 = vunpack.c.l.b16 %v5371
          %v5485 = vunpack.c.l.b16 %v5372
          %v5486 = vunpack.c.l.b16 %v5373
          %v5487 = vpack.c.b16 %v5480, %v5479
          %v5488 = vpack.c.b16 %v5482, %v5481
          %v5489 = vpack.c.b16 %v5484, %v5483
          %v5490 = vpack.c.b16 %v5486, %v5485
          %v5496 = vsel %vm589, %v5425, 0
          %v5499 = vsel %vm589, %v5434, 0
          %v5502 = vsel %vm589, %v5443, 0
          %v5505 = vsel %vm589, %v5452, 0
          %v5508 = vsel %vm589, %v5461, 0
          %v5511 = vsel %vm589, %v5470, 0
          %v5514 = vsel %vm589, %v5469, 0
          %5516 = vmatprep.subr.bf16.mxu0 0
          %5517 = vmatpush1.bf16.msra.mxu0 %v5487
          %5518 = vmatprep.subr.bf16.mxu0 0
          %5519 = vmatpush1.bf16.msra.mxu0 %v5488
          %5520 = vmatprep.subr.bf16.mxu0 0
          %5521 = vmatpush1.bf16.msra.mxu0 %v5489
          %5522 = vmatprep.subr.bf16.mxu0 0
          %5523 = vmatpush1.bf16.msra.mxu0 %v5490
          %5524 = vmatprep.subr.bf16.mxu0 0
          %5525 = vmatpush1.bf16.msra.mxu0 0
          %5526 = vmatprep.subr.bf16.mxu0 0
          %5527 = vmatpush1.bf16.msra.mxu0 0
          %5528 = vmatprep.subr.bf16.mxu0 0
          %5529 = vmatpush1.bf16.msra.mxu0 0
          %5530 = vmatprep.subr.bf16.mxu0 0
          %5531 = vmatpush1.bf16.msra.mxu0 0
          %5532 = vmatprep.subr.bf16.mxu0 0
          %5533 = vmatpush1.bf16.msra.mxu0 0
          %5534 = vmatprep.subr.bf16.mxu0 0
          %5535 = vmatpush1.bf16.msra.mxu0 0
          %5536 = vmatprep.subr.bf16.mxu0 0
          %5537 = vmatpush1.bf16.msra.mxu0 0
          %5538 = vmatprep.subr.bf16.mxu0 0
          %5539 = vmatpush1.bf16.msra.mxu0 0
          %5540 = vmatprep.subr.bf16.mxu0 0
          %5541 = vmatpush1.bf16.msra.mxu0 0
          %5542 = vmatprep.subr.bf16.mxu0 0
          %5543 = vmatpush1.bf16.msra.mxu0 0
          %5544 = vmatprep.subr.bf16.mxu0 0
          %5545 = vmatpush1.bf16.msra.mxu0 0
          %5546 = vmatprep.subr.bf16.mxu0 0
          %5547 = vmatpush1.bf16.msra.mxu0 0
          %5548 = vmatprep.mubr.bf16.mxu0 0
          %5549 = vmatmul.mubr.bf16.gmra.mrb[0].mxu0 %v5496
          %v5550 = vpop.f32.mrb[0].mxu0
          %v5551 = vadd.f32 0.0, %v5550
          %v5552 = vpop.f32.mrb[0].mxu0
          %v5553 = vpop.f32.mrb[0].mxu0
          %v5554 = vadd.f32 0.0, %v5553
          %v5555 = vpop.f32.mrb[0].mxu0
          %5556 = vmatprep.mubr.bf16.mxu0 0
          %5557 = vmatmul.mubr.bf16.gmra.mrb[0].mxu0 %v5499
          %v5558 = vpop.f32.mrb[0].mxu0
          %v5559 = vadd.f32 0.0, %v5558
          %v5560 = vpop.f32.mrb[0].mxu0
          %v5561 = vpop.f32.mrb[0].mxu0
          %v5562 = vadd.f32 0.0, %v5561
          %v5563 = vpop.f32.mrb[0].mxu0
          %5564 = vmatprep.mubr.bf16.mxu0 0
          %5565 = vmatmul.mubr.bf16.gmra.mrb[0].mxu0 %v5502
          %v5566 = vpop.f32.mrb[0].mxu0
          %v5567 = vadd.f32 0.0, %v5566
          %v5568 = vpop.f32.mrb[0].mxu0
          %v5569 = vpop.f32.mrb[0].mxu0
          %v5570 = vadd.f32 0.0, %v5569
          %v5571 = vpop.f32.mrb[0].mxu0
          %5572 = vmatprep.mubr.bf16.mxu0 0
          %5573 = vmatmul.mubr.bf16.gmra.mrb[0].mxu0 %v5505
          %v5574 = vpop.f32.mrb[0].mxu0
          %v5575 = vadd.f32 0.0, %v5574
          %v5576 = vpop.f32.mrb[0].mxu0
          %v5577 = vpop.f32.mrb[0].mxu0
          %v5578 = vadd.f32 0.0, %v5577
          %v5579 = vpop.f32.mrb[0].mxu0
          %5580 = vmatprep.mubr.bf16.mxu0 0
          %5581 = vmatmul.mubr.bf16.gmra.mrb[0].mxu0 %v5508
          %v5582 = vpop.f32.mrb[0].mxu0
          %v5583 = vadd.f32 0.0, %v5582
          %v5584 = vpop.f32.mrb[0].mxu0
          %v5585 = vpop.f32.mrb[0].mxu0
          %v5586 = vadd.f32 0.0, %v5585
          %v5587 = vpop.f32.mrb[0].mxu0
          %5588 = vmatprep.mubr.bf16.mxu0 0
          %5589 = vmatmul.mubr.bf16.gmra.mrb[0].mxu0 %v5511
          %v5590 = vpop.f32.mrb[0].mxu0
          %v5591 = vadd.f32 0.0, %v5590
          %v5592 = vpop.f32.mrb[0].mxu0
          %v5593 = vpop.f32.mrb[0].mxu0
          %v5594 = vadd.f32 0.0, %v5593
          %v5595 = vpop.f32.mrb[0].mxu0
          %5596 = vmatprep.mubr.bf16.mxu0 0
          %5597 = vmatmul.mubr.bf16.gmra.mrb[0].mxu0 %v5514
          %v5598 = vpop.f32.mrb[0].mxu0
          %v5599 = vadd.f32 0.0, %v5598
          %v5600 = vpop.f32.mrb[0].mxu0
          %v5601 = vpop.f32.mrb[0].mxu0
          %v5602 = vpop.f32.mrb[0].mxu0
          %5603 = vdwg.mxu0
          %v5604 = vadd.f32 %v5337, %v5551
          %v5605 = vadd.f32 %v5338, %v5554
          %v5606 = vadd.f32 %v5339, %v5559
          %v5607 = vadd.f32 %v5340, %v5562
          %v5608 = vadd.f32 %v5341, %v5567
          %v5609 = vadd.f32 %v5342, %v5570
          %v5610 = vadd.f32 %v5343, %v5575
          %v5611 = vadd.f32 %v5344, %v5578
          %v5612 = vadd.f32 %v5345, %v5583
          %v5613 = vadd.f32 %v5346, %v5586
          %v5614 = vadd.f32 %v5347, %v5591
          %v5615 = vadd.f32 %v5348, %v5594
          %v5616 = vadd.f32 %v5349, %v5599
          %s5617 = smul.addr %s3524, 4
          %s5618 = scalar_lea.vmem [#allocation13], %s5617
          %v5619 = vld [vmem:[%s5618] sm:$0xf]
          %v5620 = vld [vmem:[%s5618 + $0x4] sm:$0xf]
          %v5621 = vld [vmem:[%s5618 + $0x8] sm:$0xf]
          %v5622 = vld [vmem:[%s5618 + $0xc] sm:$0xf]
          %v5623 = vld [vmem:[%s5618 + $0x10] sm:$0xf]
          %v5624 = vld [vmem:[%s5618 + $0x14] sm:$0xf]
          %v5625 = vld [vmem:[%s5618 + $0x18] sm:$0xf]
          %v5626 = vld [vmem:[%s5618 + $0x1c] sm:$0xf]
          %v5627 = vpack.c.b16 %v5390, %v5389
          %v5628 = vpack.c.b16 %v5392, %v5391
          %v5629 = vpack.c.b16 %v5394, %v5393
          %v5630 = vpack.c.b16 %v5396, %v5395
          %v5631 = vpack.c.b16 %v5398, %v5397
          %v5632 = vpack.c.b16 %v5400, %v5399
          %v5633 = vpack.c.b16 %v5401, %v5401
          %v5642 = vunpack.c.l.b16 %v5619
          %v5643 = vunpack.c.l.b16 %v5620
          %v5644 = vunpack.c.l.b16 %v5621
          %v5645 = vunpack.c.l.b16 %v5622
          %v5646 = vunpack.c.l.b16 %v5623
          %v5647 = vunpack.c.l.b16 %v5624
          %v5648 = vunpack.c.l.b16 %v5625
          %v5649 = vunpack.c.l.b16 %v5626
          %v5650 = vpack.c.b16 %v5643, %v5642
          %v5651 = vpack.c.b16 %v5645, %v5644
          %v5652 = vpack.c.b16 %v5647, %v5646
          %v5653 = vpack.c.b16 %v5649, %v5648
          %v5659 = vsel %vm589, %v5627, 0
          %v5662 = vsel %vm589, %v5628, 0
          %v5665 = vsel %vm589, %v5629, 0
          %v5668 = vsel %vm589, %v5630, 0
          %v5671 = vsel %vm589, %v5631, 0
          %v5674 = vsel %vm589, %v5632, 0
          %v5677 = vsel %vm589, %v5633, 0
          %5679 = vmatprep.subr.bf16.mxu0 0
          %5680 = vmatpush1.bf16.msra.mxu0 %v5650
          %5681 = vmatprep.subr.bf16.mxu0 0
          %5682 = vmatpush1.bf16.msra.mxu0 %v5651
          %5683 = vmatprep.subr.bf16.mxu0 0
          %5684 = vmatpush1.bf16.msra.mxu0 %v5652
          %5685 = vmatprep.subr.bf16.mxu0 0
          %5686 = vmatpush1.bf16.msra.mxu0 %v5653
          %5687 = vmatprep.subr.bf16.mxu0 0
          %5688 = vmatpush1.bf16.msra.mxu0 0
          %5689 = vmatprep.subr.bf16.mxu0 0
          %5690 = vmatpush1.bf16.msra.mxu0 0
          %5691 = vmatprep.subr.bf16.mxu0 0
          %5692 = vmatpush1.bf16.msra.mxu0 0
          %5693 = vmatprep.subr.bf16.mxu0 0
          %5694 = vmatpush1.bf16.msra.mxu0 0
          %5695 = vmatprep.subr.bf16.mxu0 0
          %5696 = vmatpush1.bf16.msra.mxu0 0
          %5697 = vmatprep.subr.bf16.mxu0 0
          %5698 = vmatpush1.bf16.msra.mxu0 0
          %5699 = vmatprep.subr.bf16.mxu0 0
          %5700 = vmatpush1.bf16.msra.mxu0 0
          %5701 = vmatprep.subr.bf16.mxu0 0
          %5702 = vmatpush1.bf16.msra.mxu0 0
          %5703 = vmatprep.subr.bf16.mxu0 0
          %5704 = vmatpush1.bf16.msra.mxu0 0
          %5705 = vmatprep.subr.bf16.mxu0 0
          %5706 = vmatpush1.bf16.msra.mxu0 0
          %5707 = vmatprep.subr.bf16.mxu0 0
          %5708 = vmatpush1.bf16.msra.mxu0 0
          %5709 = vmatprep.subr.bf16.mxu0 0
          %5710 = vmatpush1.bf16.msra.mxu0 0
          %5711 = vmatprep.mubr.bf16.mxu0 0
          %5712 = vmatmul.mubr.bf16.gmra.mrb[0].mxu0 %v5659
          %v5713 = vpop.f32.mrb[0].mxu0
          %v5714 = vadd.f32 0.0, %v5713
          %v5715 = vpop.f32.mrb[0].mxu0
          %v5716 = vpop.f32.mrb[0].mxu0
          %v5717 = vadd.f32 0.0, %v5716
          %v5718 = vpop.f32.mrb[0].mxu0
          %5719 = vmatprep.mubr.bf16.mxu0 0
          %5720 = vmatmul.mubr.bf16.gmra.mrb[0].mxu0 %v5662
          %v5721 = vpop.f32.mrb[0].mxu0
          %v5722 = vadd.f32 0.0, %v5721
          %v5723 = vpop.f32.mrb[0].mxu0
          %v5724 = vpop.f32.mrb[0].mxu0
          %v5725 = vadd.f32 0.0, %v5724
          %v5726 = vpop.f32.mrb[0].mxu0
          %5727 = vmatprep.mubr.bf16.mxu0 0
          %5728 = vmatmul.mubr.bf16.gmra.mrb[0].mxu0 %v5665
          %v5729 = vpop.f32.mrb[0].mxu0
          %v5730 = vadd.f32 0.0, %v5729
          %v5731 = vpop.f32.mrb[0].mxu0
          %v5732 = vpop.f32.mrb[0].mxu0
          %v5733 = vadd.f32 0.0, %v5732
          %v5734 = vpop.f32.mrb[0].mxu0
          %5735 = vmatprep.mubr.bf16.mxu0 0
          %5736 = vmatmul.mubr.bf16.gmra.mrb[0].mxu0 %v5668
          %v5737 = vpop.f32.mrb[0].mxu0
          %v5738 = vadd.f32 0.0, %v5737
          %v5739 = vpop.f32.mrb[0].mxu0
          %v5740 = vpop.f32.mrb[0].mxu0
          %v5741 = vadd.f32 0.0, %v5740
          %v5742 = vpop.f32.mrb[0].mxu0
          %5743 = vmatprep.mubr.bf16.mxu0 0
          %5744 = vmatmul.mubr.bf16.gmra.mrb[0].mxu0 %v5671
          %v5745 = vpop.f32.mrb[0].mxu0
          %v5746 = vadd.f32 0.0, %v5745
          %v5747 = vpop.f32.mrb[0].mxu0
          %v5748 = vpop.f32.mrb[0].mxu0
          %v5749 = vadd.f32 0.0, %v5748
          %v5750 = vpop.f32.mrb[0].mxu0
          %5751 = vmatprep.mubr.bf16.mxu0 0
          %5752 = vmatmul.mubr.bf16.gmra.mrb[0].mxu0 %v5674
          %v5753 = vpop.f32.mrb[0].mxu0
          %v5754 = vadd.f32 0.0, %v5753
          %v5755 = vpop.f32.mrb[0].mxu0
          %v5756 = vpop.f32.mrb[0].mxu0
          %v5757 = vadd.f32 0.0, %v5756
          %v5758 = vpop.f32.mrb[0].mxu0
          %5759 = vmatprep.mubr.bf16.mxu0 0
          %5760 = vmatmul.mubr.bf16.gmra.mrb[0].mxu0 %v5677
          %v5761 = vpop.f32.mrb[0].mxu0
          %v5762 = vadd.f32 0.0, %v5761
          %v5763 = vpop.f32.mrb[0].mxu0
          %v5764 = vpop.f32.mrb[0].mxu0
          %v5765 = vpop.f32.mrb[0].mxu0
          %5766 = vdwg.mxu0
          %v5767 = vadd.f32 %v5604, %v5714
          %v5768 = vadd.f32 %v5605, %v5717
          %v5769 = vadd.f32 %v5606, %v5722
          %v5770 = vadd.f32 %v5607, %v5725
          %v5771 = vadd.f32 %v5608, %v5730
          %v5772 = vadd.f32 %v5609, %v5733
          %v5773 = vadd.f32 %v5610, %v5738
          %v5774 = vadd.f32 %v5611, %v5741
          %v5775 = vadd.f32 %v5612, %v5746
          %v5776 = vadd.f32 %v5613, %v5749
          %v5777 = vadd.f32 %v5614, %v5754
          %v5778 = vadd.f32 %v5615, %v5757
          %v5779 = vadd.f32 %v5616, %v5762
          %v5780 = vld [vmem:[#allocation3 + $0x8] sm:$0xf]
          %v5781 = vld [vmem:[#allocation3 + $0xc] sm:$0xf]
          %v5782 = vld [vmem:[#allocation3 + $0x10] sm:$0xf]
          %v5783 = vld [vmem:[#allocation3 + $0x14] sm:$0xf]
          %v5784 = vld [vmem:[#allocation3 + $0x18] sm:$0xf]
          %v5785 = vld [vmem:[#allocation3 + $0x1c] sm:$0xf]
          %v5786 = vld [vmem:[#allocation3 + $0x20] sm:$0xf]
          %v5787 = vld [vmem:[#allocation3 + $0x24] sm:$0xf]
          %v5788 = vld [vmem:[#allocation3 + $0x28] sm:$0xf]
          %v5789 = vld [vmem:[#allocation3 + $0x2c] sm:$0xf]
          %v5790 = vld [vmem:[#allocation3 + $0x30] sm:$0xf]
          %v5791 = vld [vmem:[#allocation3 + $0x34] sm:$0xf]
          %v5792 = vld [vmem:[#allocation3 + $0x38] sm:$0xf]
          %v5793 = vld [vmem:[#allocation3 + $0x3c] sm:$0x1]
          %s5794 = smul.addr %s3703, 4
          %s5795 = scalar_lea.vmem [#allocation13], %s5794
          %v5796 = vld [vmem:[%s5795] sm:$0xf]
          %v5797 = vld [vmem:[%s5795 + $0x4] sm:$0xf]
          %v5798 = vld [vmem:[%s5795 + $0x8] sm:$0xf]
          %v5799 = vld [vmem:[%s5795 + $0xc] sm:$0xf]
          %v5800 = vld [vmem:[%s5795 + $0x10] sm:$0xf]
          %v5801 = vld [vmem:[%s5795 + $0x14] sm:$0xf]
          %v5802 = vld [vmem:[%s5795 + $0x18] sm:$0xf]
          %v5803 = vld [vmem:[%s5795 + $0x1c] sm:$0xf]
          %v5818 = vunpack.c.l.b16 %v5780
          %v5819 = vunpack.c.l.b16 %v5781
          %v5820 = vunpack.c.l.b16 %v5782
          %v5821 = vunpack.c.l.b16 %v5783
          %v5822 = vunpack.c.l.b16 %v5784
          %v5823 = vunpack.c.l.b16 %v5785
          %v5824 = vunpack.c.l.b16 %v5786
          %v5825 = vunpack.c.l.b16 %v5787
          %v5826 = vunpack.c.l.b16 %v5788
          %v5827 = vunpack.c.l.b16 %v5789
          %v5828 = vunpack.c.l.b16 %v5790
          %v5829 = vunpack.c.l.b16 %v5791
          %v5830 = vunpack.c.l.b16 %v5792
          %v5831 = vunpack.c.l.b16 %v5793
          %v5832 = vpack.c.b16 %v5819, %v5818
          %v5833 = vpack.c.b16 %v5821, %v5820
          %v5834 = vpack.c.b16 %v5823, %v5822
          %v5835 = vpack.c.b16 %v5825, %v5824
          %v5836 = vpack.c.b16 %v5827, %v5826
          %v5837 = vpack.c.b16 %v5829, %v5828
          %v5838 = vpack.c.b16 %v5831, %v5830
          %v5840 = vshrl.u32 %v5832, 16
          %v5842 = vshll.u32 %v5832, 16
          %v5844 = vrot.slane %v5842, 1
          %v5845 = vor.u32 %v5840, %v5844
          %v5847 = vshll.u32 %v5833, 16
          %v5849 = vrot.slane %v5847, 1
          %v5850 = vsel %vm1666, %v5845, %v5849
          %v5851 = vshrl.u32 %v5833, 16
          %v5853 = vor.u32 %v5851, %v5849
          %v5855 = vshll.u32 %v5834, 16
          %v5857 = vrot.slane %v5855, 1
          %v5858 = vsel %vm1666, %v5853, %v5857
          %v5859 = vshrl.u32 %v5834, 16
          %v5861 = vor.u32 %v5859, %v5857
          %v5863 = vshll.u32 %v5835, 16
          %v5865 = vrot.slane %v5863, 1
          %v5866 = vsel %vm1666, %v5861, %v5865
          %v5867 = vshrl.u32 %v5835, 16
          %v5869 = vor.u32 %v5867, %v5865
          %v5871 = vshll.u32 %v5836, 16
          %v5873 = vrot.slane %v5871, 1
          %v5874 = vsel %vm1666, %v5869, %v5873
          %v5875 = vshrl.u32 %v5836, 16
          %v5877 = vor.u32 %v5875, %v5873
          %v5879 = vshll.u32 %v5837, 16
          %v5881 = vrot.slane %v5879, 1
          %v5882 = vsel %vm1666, %v5877, %v5881
          %v5883 = vshrl.u32 %v5837, 16
          %v5885 = vor.u32 %v5883, %v5881
          %v5887 = vshll.u32 %v5838, 16
          %v5889 = vrot.slane %v5887, 1
          %v5890 = vsel %vm1666, %v5885, %v5889
          %v5891 = vshrl.u32 %v5838, 16
          %v5893 = vor.u32 %v5891, %v5889
          %v5902 = vunpack.c.l.b16 %v5796
          %v5903 = vunpack.c.l.b16 %v5797
          %v5904 = vunpack.c.l.b16 %v5798
          %v5905 = vunpack.c.l.b16 %v5799
          %v5906 = vunpack.c.l.b16 %v5800
          %v5907 = vunpack.c.l.b16 %v5801
          %v5908 = vunpack.c.l.b16 %v5802
          %v5909 = vunpack.c.l.b16 %v5803
          %v5910 = vpack.c.b16 %v5903, %v5902
          %v5911 = vpack.c.b16 %v5905, %v5904
          %v5912 = vpack.c.b16 %v5907, %v5906
          %v5913 = vpack.c.b16 %v5909, %v5908
          %v5919 = vsel %vm589, %v5850, 0
          %v5922 = vsel %vm589, %v5858, 0
          %v5925 = vsel %vm589, %v5866, 0
          %v5928 = vsel %vm589, %v5874, 0
          %v5931 = vsel %vm589, %v5882, 0
          %v5934 = vsel %vm589, %v5890, 0
          %v5937 = vsel %vm589, %v5893, 0
          %5939 = vmatprep.subr.bf16.mxu0 0
          %5940 = vmatpush1.bf16.msra.mxu0 %v5910
          %5941 = vmatprep.subr.bf16.mxu0 0
          %5942 = vmatpush1.bf16.msra.mxu0 %v5911
          %5943 = vmatprep.subr.bf16.mxu0 0
          %5944 = vmatpush1.bf16.msra.mxu0 %v5912
          %5945 = vmatprep.subr.bf16.mxu0 0
          %5946 = vmatpush1.bf16.msra.mxu0 %v5913
          %5947 = vmatprep.subr.bf16.mxu0 0
          %5948 = vmatpush1.bf16.msra.mxu0 0
          %5949 = vmatprep.subr.bf16.mxu0 0
          %5950 = vmatpush1.bf16.msra.mxu0 0
          %5951 = vmatprep.subr.bf16.mxu0 0
          %5952 = vmatpush1.bf16.msra.mxu0 0
          %5953 = vmatprep.subr.bf16.mxu0 0
          %5954 = vmatpush1.bf16.msra.mxu0 0
          %5955 = vmatprep.subr.bf16.mxu0 0
          %5956 = vmatpush1.bf16.msra.mxu0 0
          %5957 = vmatprep.subr.bf16.mxu0 0
          %5958 = vmatpush1.bf16.msra.mxu0 0
          %5959 = vmatprep.subr.bf16.mxu0 0
          %5960 = vmatpush1.bf16.msra.mxu0 0
          %5961 = vmatprep.subr.bf16.mxu0 0
          %5962 = vmatpush1.bf16.msra.mxu0 0
          %5963 = vmatprep.subr.bf16.mxu0 0
          %5964 = vmatpush1.bf16.msra.mxu0 0
          %5965 = vmatprep.subr.bf16.mxu0 0
          %5966 = vmatpush1.bf16.msra.mxu0 0
          %5967 = vmatprep.subr.bf16.mxu0 0
          %5968 = vmatpush1.bf16.msra.mxu0 0
          %5969 = vmatprep.subr.bf16.mxu0 0
          %5970 = vmatpush1.bf16.msra.mxu0 0
          %5971 = vmatprep.mubr.bf16.mxu0 0
          %5972 = vmatmul.mubr.bf16.gmra.mrb[0].mxu0 %v5919
          %v5973 = vpop.f32.mrb[0].mxu0
          %v5974 = vadd.f32 0.0, %v5973
          %v5975 = vpop.f32.mrb[0].mxu0
          %v5976 = vpop.f32.mrb[0].mxu0
          %v5977 = vadd.f32 0.0, %v5976
          %v5978 = vpop.f32.mrb[0].mxu0
          %5979 = vmatprep.mubr.bf16.mxu0 0
          %5980 = vmatmul.mubr.bf16.gmra.mrb[0].mxu0 %v5922
          %v5981 = vpop.f32.mrb[0].mxu0
          %v5982 = vadd.f32 0.0, %v5981
          %v5983 = vpop.f32.mrb[0].mxu0
          %v5984 = vpop.f32.mrb[0].mxu0
          %v5985 = vadd.f32 0.0, %v5984
          %v5986 = vpop.f32.mrb[0].mxu0
          %5987 = vmatprep.mubr.bf16.mxu0 0
          %5988 = vmatmul.mubr.bf16.gmra.mrb[0].mxu0 %v5925
          %v5989 = vpop.f32.mrb[0].mxu0
          %v5990 = vadd.f32 0.0, %v5989
          %v5991 = vpop.f32.mrb[0].mxu0
          %v5992 = vpop.f32.mrb[0].mxu0
          %v5993 = vadd.f32 0.0, %v5992
          %v5994 = vpop.f32.mrb[0].mxu0
          %5995 = vmatprep.mubr.bf16.mxu0 0
          %5996 = vmatmul.mubr.bf16.gmra.mrb[0].mxu0 %v5928
          %v5997 = vpop.f32.mrb[0].mxu0
          %v5998 = vadd.f32 0.0, %v5997
          %v5999 = vpop.f32.mrb[0].mxu0
          %v6000 = vpop.f32.mrb[0].mxu0
          %v6001 = vadd.f32 0.0, %v6000
          %v6002 = vpop.f32.mrb[0].mxu0
          %6003 = vmatprep.mubr.bf16.mxu0 0
          %6004 = vmatmul.mubr.bf16.gmra.mrb[0].mxu0 %v5931
          %v6005 = vpop.f32.mrb[0].mxu0
          %v6006 = vadd.f32 0.0, %v6005
          %v6007 = vpop.f32.mrb[0].mxu0
          %v6008 = vpop.f32.mrb[0].mxu0
          %v6009 = vadd.f32 0.0, %v6008
          %v6010 = vpop.f32.mrb[0].mxu0
          %6011 = vmatprep.mubr.bf16.mxu0 0
          %6012 = vmatmul.mubr.bf16.gmra.mrb[0].mxu0 %v5934
          %v6013 = vpop.f32.mrb[0].mxu0
          %v6014 = vadd.f32 0.0, %v6013
          %v6015 = vpop.f32.mrb[0].mxu0
          %v6016 = vpop.f32.mrb[0].mxu0
          %v6017 = vadd.f32 0.0, %v6016
          %v6018 = vpop.f32.mrb[0].mxu0
          %6019 = vmatprep.mubr.bf16.mxu0 0
          %6020 = vmatmul.mubr.bf16.gmra.mrb[0].mxu0 %v5937
          %v6021 = vpop.f32.mrb[0].mxu0
          %v6022 = vadd.f32 0.0, %v6021
          %v6023 = vpop.f32.mrb[0].mxu0
          %v6024 = vpop.f32.mrb[0].mxu0
          %v6025 = vpop.f32.mrb[0].mxu0
          %6026 = vdwg.mxu0
          %v6027 = vadd.f32 %v5767, %v5974
          %v6028 = vadd.f32 %v5768, %v5977
          %v6029 = vadd.f32 %v5769, %v5982
          %v6030 = vadd.f32 %v5770, %v5985
          %v6031 = vadd.f32 %v5771, %v5990
          %v6032 = vadd.f32 %v5772, %v5993
          %v6033 = vadd.f32 %v5773, %v5998
          %v6034 = vadd.f32 %v5774, %v6001
          %v6035 = vadd.f32 %v5775, %v6006
          %v6036 = vadd.f32 %v5776, %v6009
          %v6037 = vadd.f32 %v5777, %v6014
          %v6038 = vadd.f32 %v5778, %v6017
          %v6039 = vadd.f32 %v5779, %v6022
          %v6040 = vld [vmem:[#allocation3 + $0xc] sm:$0xf]
          %v6041 = vld [vmem:[#allocation3 + $0x10] sm:$0xf]
          %v6042 = vld [vmem:[#allocation3 + $0x14] sm:$0xf]
          %v6043 = vld [vmem:[#allocation3 + $0x18] sm:$0xf]
          %v6044 = vld [vmem:[#allocation3 + $0x1c] sm:$0xf]
          %v6045 = vld [vmem:[#allocation3 + $0x20] sm:$0xf]
          %v6046 = vld [vmem:[#allocation3 + $0x24] sm:$0xf]
          %v6047 = vld [vmem:[#allocation3 + $0x28] sm:$0xf]
          %v6048 = vld [vmem:[#allocation3 + $0x2c] sm:$0xf]
          %v6049 = vld [vmem:[#allocation3 + $0x30] sm:$0xf]
          %v6050 = vld [vmem:[#allocation3 + $0x34] sm:$0xf]
          %v6051 = vld [vmem:[#allocation3 + $0x38] sm:$0xf]
          %v6052 = vld [vmem:[#allocation3 + $0x3c] sm:$0xf]
          %v6053 = vld [vmem:[#allocation3 + $0x40] sm:$0x1]
          %s6054 = smul.addr %s3965, 4
          %s6055 = scalar_lea.vmem [#allocation13], %s6054
          %v6056 = vld [vmem:[%s6055] sm:$0xf]
          %v6057 = vld [vmem:[%s6055 + $0x4] sm:$0xf]
          %v6058 = vld [vmem:[%s6055 + $0x8] sm:$0xf]
          %v6059 = vld [vmem:[%s6055 + $0xc] sm:$0xf]
          %v6060 = vld [vmem:[%s6055 + $0x10] sm:$0xf]
          %v6061 = vld [vmem:[%s6055 + $0x14] sm:$0xf]
          %v6062 = vld [vmem:[%s6055 + $0x18] sm:$0xf]
          %v6063 = vld [vmem:[%s6055 + $0x1c] sm:$0xf]
          %v6078 = vunpack.c.l.b16 %v6040
          %v6079 = vunpack.c.l.b16 %v6041
          %v6080 = vunpack.c.l.b16 %v6042
          %v6081 = vunpack.c.l.b16 %v6043
          %v6082 = vunpack.c.l.b16 %v6044
          %v6083 = vunpack.c.l.b16 %v6045
          %v6084 = vunpack.c.l.b16 %v6046
          %v6085 = vunpack.c.l.b16 %v6047
          %v6086 = vunpack.c.l.b16 %v6048
          %v6087 = vunpack.c.l.b16 %v6049
          %v6088 = vunpack.c.l.b16 %v6050
          %v6089 = vunpack.c.l.b16 %v6051
          %v6090 = vunpack.c.l.b16 %v6052
          %v6091 = vunpack.c.l.b16 %v6053
          %v6092 = vpack.c.b16 %v6079, %v6078
          %v6093 = vpack.c.b16 %v6081, %v6080
          %v6094 = vpack.c.b16 %v6083, %v6082
          %v6095 = vpack.c.b16 %v6085, %v6084
          %v6096 = vpack.c.b16 %v6087, %v6086
          %v6097 = vpack.c.b16 %v6089, %v6088
          %v6098 = vpack.c.b16 %v6091, %v6090
          %v6100 = vshrl.u32 %v6092, 16
          %v6102 = vshll.u32 %v6092, 16
          %v6104 = vrot.slane %v6102, 1
          %v6105 = vor.u32 %v6100, %v6104
          %v6107 = vshll.u32 %v6093, 16
          %v6109 = vrot.slane %v6107, 1
          %v6110 = vsel %vm1666, %v6105, %v6109
          %v6111 = vshrl.u32 %v6093, 16
          %v6113 = vor.u32 %v6111, %v6109
          %v6115 = vshll.u32 %v6094, 16
          %v6117 = vrot.slane %v6115, 1
          %v6118 = vsel %vm1666, %v6113, %v6117
          %v6119 = vshrl.u32 %v6094, 16
          %v6121 = vor.u32 %v6119, %v6117
          %v6123 = vshll.u32 %v6095, 16
          %v6125 = vrot.slane %v6123, 1
          %v6126 = vsel %vm1666, %v6121, %v6125
          %v6127 = vshrl.u32 %v6095, 16
          %v6129 = vor.u32 %v6127, %v6125
          %v6131 = vshll.u32 %v6096, 16
          %v6133 = vrot.slane %v6131, 1
          %v6134 = vsel %vm1666, %v6129, %v6133
          %v6135 = vshrl.u32 %v6096, 16
          %v6137 = vor.u32 %v6135, %v6133
          %v6139 = vshll.u32 %v6097, 16
          %v6141 = vrot.slane %v6139, 1
          %v6142 = vsel %vm1666, %v6137, %v6141
          %v6143 = vshrl.u32 %v6097, 16
          %v6145 = vor.u32 %v6143, %v6141
          %v6147 = vshll.u32 %v6098, 16
          %v6149 = vrot.slane %v6147, 1
          %v6150 = vsel %vm1666, %v6145, %v6149
          %v6151 = vshrl.u32 %v6098, 16
          %v6153 = vor.u32 %v6151, %v6149
          %v6162 = vunpack.c.l.b16 %v6056
          %v6163 = vunpack.c.l.b16 %v6057
          %v6164 = vunpack.c.l.b16 %v6058
          %v6165 = vunpack.c.l.b16 %v6059
          %v6166 = vunpack.c.l.b16 %v6060
          %v6167 = vunpack.c.l.b16 %v6061
          %v6168 = vunpack.c.l.b16 %v6062
          %v6169 = vunpack.c.l.b16 %v6063
          %v6170 = vpack.c.b16 %v6163, %v6162
          %v6171 = vpack.c.b16 %v6165, %v6164
          %v6172 = vpack.c.b16 %v6167, %v6166
          %v6173 = vpack.c.b16 %v6169, %v6168
          %v6179 = vsel %vm589, %v6110, 0
          %v6182 = vsel %vm589, %v6118, 0
          %v6185 = vsel %vm589, %v6126, 0
          %v6188 = vsel %vm589, %v6134, 0
          %v6191 = vsel %vm589, %v6142, 0
          %v6194 = vsel %vm589, %v6150, 0
          %v6197 = vsel %vm589, %v6153, 0
          %6199 = vmatprep.subr.bf16.mxu0 0
          %6200 = vmatpush1.bf16.msra.mxu0 %v6170
          %6201 = vmatprep.subr.bf16.mxu0 0
          %6202 = vmatpush1.bf16.msra.mxu0 %v6171
          %6203 = vmatprep.subr.bf16.mxu0 0
          %6204 = vmatpush1.bf16.msra.mxu0 %v6172
          %6205 = vmatprep.subr.bf16.mxu0 0
          %6206 = vmatpush1.bf16.msra.mxu0 %v6173
          %6207 = vmatprep.subr.bf16.mxu0 0
          %6208 = vmatpush1.bf16.msra.mxu0 0
          %6209 = vmatprep.subr.bf16.mxu0 0
          %6210 = vmatpush1.bf16.msra.mxu0 0
          %6211 = vmatprep.subr.bf16.mxu0 0
          %6212 = vmatpush1.bf16.msra.mxu0 0
          %6213 = vmatprep.subr.bf16.mxu0 0
          %6214 = vmatpush1.bf16.msra.mxu0 0
          %6215 = vmatprep.subr.bf16.mxu0 0
          %6216 = vmatpush1.bf16.msra.mxu0 0
          %6217 = vmatprep.subr.bf16.mxu0 0
          %6218 = vmatpush1.bf16.msra.mxu0 0
          %6219 = vmatprep.subr.bf16.mxu0 0
          %6220 = vmatpush1.bf16.msra.mxu0 0
          %6221 = vmatprep.subr.bf16.mxu0 0
          %6222 = vmatpush1.bf16.msra.mxu0 0
          %6223 = vmatprep.subr.bf16.mxu0 0
          %6224 = vmatpush1.bf16.msra.mxu0 0
          %6225 = vmatprep.subr.bf16.mxu0 0
          %6226 = vmatpush1.bf16.msra.mxu0 0
          %6227 = vmatprep.subr.bf16.mxu0 0
          %6228 = vmatpush1.bf16.msra.mxu0 0
          %6229 = vmatprep.subr.bf16.mxu0 0
          %6230 = vmatpush1.bf16.msra.mxu0 0
          %6231 = vmatprep.mubr.bf16.mxu0 0
          %6232 = vmatmul.mubr.bf16.gmra.mrb[0].mxu0 %v6179
          %v6233 = vpop.f32.mrb[0].mxu0
          %v6234 = vadd.f32 0.0, %v6233
          %v6235 = vpop.f32.mrb[0].mxu0
          %v6236 = vpop.f32.mrb[0].mxu0
          %v6237 = vadd.f32 0.0, %v6236
          %v6238 = vpop.f32.mrb[0].mxu0
          %6239 = vmatprep.mubr.bf16.mxu0 0
          %6240 = vmatmul.mubr.bf16.gmra.mrb[0].mxu0 %v6182
          %v6241 = vpop.f32.mrb[0].mxu0
          %v6242 = vadd.f32 0.0, %v6241
          %v6243 = vpop.f32.mrb[0].mxu0
          %v6244 = vpop.f32.mrb[0].mxu0
          %v6245 = vadd.f32 0.0, %v6244
          %v6246 = vpop.f32.mrb[0].mxu0
          %6247 = vmatprep.mubr.bf16.mxu0 0
          %6248 = vmatmul.mubr.bf16.gmra.mrb[0].mxu0 %v6185
          %v6249 = vpop.f32.mrb[0].mxu0
          %v6250 = vadd.f32 0.0, %v6249
          %v6251 = vpop.f32.mrb[0].mxu0
          %v6252 = vpop.f32.mrb[0].mxu0
          %v6253 = vadd.f32 0.0, %v6252
          %v6254 = vpop.f32.mrb[0].mxu0
          %6255 = vmatprep.mubr.bf16.mxu0 0
          %6256 = vmatmul.mubr.bf16.gmra.mrb[0].mxu0 %v6188
          %v6257 = vpop.f32.mrb[0].mxu0
          %v6258 = vadd.f32 0.0, %v6257
          %v6259 = vpop.f32.mrb[0].mxu0
          %v6260 = vpop.f32.mrb[0].mxu0
          %v6261 = vadd.f32 0.0, %v6260
          %v6262 = vpop.f32.mrb[0].mxu0
          %6263 = vmatprep.mubr.bf16.mxu0 0
          %6264 = vmatmul.mubr.bf16.gmra.mrb[0].mxu0 %v6191
          %v6265 = vpop.f32.mrb[0].mxu0
          %v6266 = vadd.f32 0.0, %v6265
          %v6267 = vpop.f32.mrb[0].mxu0
          %v6268 = vpop.f32.mrb[0].mxu0
          %v6269 = vadd.f32 0.0, %v6268
          %v6270 = vpop.f32.mrb[0].mxu0
          %6271 = vmatprep.mubr.bf16.mxu0 0
          %6272 = vmatmul.mubr.bf16.gmra.mrb[0].mxu0 %v6194
          %v6273 = vpop.f32.mrb[0].mxu0
          %v6274 = vadd.f32 0.0, %v6273
          %v6275 = vpop.f32.mrb[0].mxu0
          %v6276 = vpop.f32.mrb[0].mxu0
          %v6277 = vadd.f32 0.0, %v6276
          %v6278 = vpop.f32.mrb[0].mxu0
          %6279 = vmatprep.mubr.bf16.mxu0 0
          %6280 = vmatmul.mubr.bf16.gmra.mrb[0].mxu0 %v6197
          %v6281 = vpop.f32.mrb[0].mxu0
          %v6282 = vadd.f32 0.0, %v6281
          %v6283 = vpop.f32.mrb[0].mxu0
          %v6284 = vpop.f32.mrb[0].mxu0
          %v6285 = vpop.f32.mrb[0].mxu0
          %6286 = vdwg.mxu0
          %v6287 = vadd.f32 %v6027, %v6234
          %v6288 = vadd.f32 %v6028, %v6237
          %v6289 = vadd.f32 %v6029, %v6242
          %v6290 = vadd.f32 %v6030, %v6245
          %v6291 = vadd.f32 %v6031, %v6250
          %v6292 = vadd.f32 %v6032, %v6253
          %v6293 = vadd.f32 %v6033, %v6258
          %v6294 = vadd.f32 %v6034, %v6261
          %v6295 = vadd.f32 %v6035, %v6266
          %v6296 = vadd.f32 %v6036, %v6269
          %v6297 = vadd.f32 %v6037, %v6274
          %v6298 = vadd.f32 %v6038, %v6277
          %v6299 = vadd.f32 %v6039, %v6282
          %v6300 = vld [vmem:[#allocation3 + $0xc] sm:$0xe]
          %s6301 = smul.addr %s4214, 4
          %s6302 = scalar_lea.vmem [#allocation13], %s6301
          %v6303 = vld [vmem:[%s6302] sm:$0xf]
          %v6304 = vld [vmem:[%s6302 + $0x4] sm:$0xf]
          %v6305 = vld [vmem:[%s6302 + $0x8] sm:$0xf]
          %v6306 = vld [vmem:[%s6302 + $0xc] sm:$0xf]
          %v6307 = vld [vmem:[%s6302 + $0x10] sm:$0xf]
          %v6308 = vld [vmem:[%s6302 + $0x14] sm:$0xf]
          %v6309 = vld [vmem:[%s6302 + $0x18] sm:$0xf]
          %v6310 = vld [vmem:[%s6302 + $0x1c] sm:$0xf]
          %v6312 = vunpack.c.l.b16 %v6300
          %v6313 = vpack.c.b16 %v6079, %v6312
          %v6314 = vrot.slane %v6313, 1
          %v6315 = vrot.slane %v6093, 1
          %v6316 = vsel %vm2106, %v6314, %v6315
          %v6317 = vrot.slane %v6094, 1
          %v6318 = vsel %vm2106, %v6315, %v6317
          %v6319 = vrot.slane %v6095, 1
          %v6320 = vsel %vm2106, %v6317, %v6319
          %v6321 = vrot.slane %v6096, 1
          %v6322 = vsel %vm2106, %v6319, %v6321
          %v6323 = vrot.slane %v6097, 1
          %v6324 = vsel %vm2106, %v6321, %v6323
          %v6325 = vrot.slane %v6098, 1
          %v6326 = vsel %vm2106, %v6323, %v6325
          %v6335 = vunpack.c.l.b16 %v6303
          %v6336 = vunpack.c.l.b16 %v6304
          %v6337 = vunpack.c.l.b16 %v6305
          %v6338 = vunpack.c.l.b16 %v6306
          %v6339 = vunpack.c.l.b16 %v6307
          %v6340 = vunpack.c.l.b16 %v6308
          %v6341 = vunpack.c.l.b16 %v6309
          %v6342 = vunpack.c.l.b16 %v6310
          %v6343 = vpack.c.b16 %v6336, %v6335
          %v6344 = vpack.c.b16 %v6338, %v6337
          %v6345 = vpack.c.b16 %v6340, %v6339
          %v6346 = vpack.c.b16 %v6342, %v6341
          %v6352 = vsel %vm589, %v6316, 0
          %v6355 = vsel %vm589, %v6318, 0
          %v6358 = vsel %vm589, %v6320, 0
          %v6361 = vsel %vm589, %v6322, 0
          %v6364 = vsel %vm589, %v6324, 0
          %v6367 = vsel %vm589, %v6326, 0
          %v6370 = vsel %vm589, %v6325, 0
          %6372 = vmatprep.subr.bf16.mxu0 0
          %6373 = vmatpush1.bf16.msra.mxu0 %v6343
          %6374 = vmatprep.subr.bf16.mxu0 0
          %6375 = vmatpush1.bf16.msra.mxu0 %v6344
          %6376 = vmatprep.subr.bf16.mxu0 0
          %6377 = vmatpush1.bf16.msra.mxu0 %v6345
          %6378 = vmatprep.subr.bf16.mxu0 0
          %6379 = vmatpush1.bf16.msra.mxu0 %v6346
          %6380 = vmatprep.subr.bf16.mxu0 0
          %6381 = vmatpush1.bf16.msra.mxu0 0
          %6382 = vmatprep.subr.bf16.mxu0 0
          %6383 = vmatpush1.bf16.msra.mxu0 0
          %6384 = vmatprep.subr.bf16.mxu0 0
          %6385 = vmatpush1.bf16.msra.mxu0 0
          %6386 = vmatprep.subr.bf16.mxu0 0
          %6387 = vmatpush1.bf16.msra.mxu0 0
          %6388 = vmatprep.subr.bf16.mxu0 0
          %6389 = vmatpush1.bf16.msra.mxu0 0
          %6390 = vmatprep.subr.bf16.mxu0 0
          %6391 = vmatpush1.bf16.msra.mxu0 0
          %6392 = vmatprep.subr.bf16.mxu0 0
          %6393 = vmatpush1.bf16.msra.mxu0 0
          %6394 = vmatprep.subr.bf16.mxu0 0
          %6395 = vmatpush1.bf16.msra.mxu0 0
          %6396 = vmatprep.subr.bf16.mxu0 0
          %6397 = vmatpush1.bf16.msra.mxu0 0
          %6398 = vmatprep.subr.bf16.mxu0 0
          %6399 = vmatpush1.bf16.msra.mxu0 0
          %6400 = vmatprep.subr.bf16.mxu0 0
          %6401 = vmatpush1.bf16.msra.mxu0 0
          %6402 = vmatprep.subr.bf16.mxu0 0
          %6403 = vmatpush1.bf16.msra.mxu0 0
          %6404 = vmatprep.mubr.bf16.mxu0 0
          %6405 = vmatmul.mubr.bf16.gmra.mrb[0].mxu0 %v6352
          %v6406 = vpop.f32.mrb[0].mxu0
          %v6407 = vadd.f32 0.0, %v6406
          %v6408 = vpop.f32.mrb[0].mxu0
          %v6409 = vpop.f32.mrb[0].mxu0
          %v6410 = vadd.f32 0.0, %v6409
          %v6411 = vpop.f32.mrb[0].mxu0
          %6412 = vmatprep.mubr.bf16.mxu0 0
          %6413 = vmatmul.mubr.bf16.gmra.mrb[0].mxu0 %v6355
          %v6414 = vpop.f32.mrb[0].mxu0
          %v6415 = vadd.f32 0.0, %v6414
          %v6416 = vpop.f32.mrb[0].mxu0
          %v6417 = vpop.f32.mrb[0].mxu0
          %v6418 = vadd.f32 0.0, %v6417
          %v6419 = vpop.f32.mrb[0].mxu0
          %6420 = vmatprep.mubr.bf16.mxu0 0
          %6421 = vmatmul.mubr.bf16.gmra.mrb[0].mxu0 %v6358
          %v6422 = vpop.f32.mrb[0].mxu0
          %v6423 = vadd.f32 0.0, %v6422
          %v6424 = vpop.f32.mrb[0].mxu0
          %v6425 = vpop.f32.mrb[0].mxu0
          %v6426 = vadd.f32 0.0, %v6425
          %v6427 = vpop.f32.mrb[0].mxu0
          %6428 = vmatprep.mubr.bf16.mxu0 0
          %6429 = vmatmul.mubr.bf16.gmra.mrb[0].mxu0 %v6361
          %v6430 = vpop.f32.mrb[0].mxu0
          %v6431 = vadd.f32 0.0, %v6430
          %v6432 = vpop.f32.mrb[0].mxu0
          %v6433 = vpop.f32.mrb[0].mxu0
          %v6434 = vadd.f32 0.0, %v6433
          %v6435 = vpop.f32.mrb[0].mxu0
          %6436 = vmatprep.mubr.bf16.mxu0 0
          %6437 = vmatmul.mubr.bf16.gmra.mrb[0].mxu0 %v6364
          %v6438 = vpop.f32.mrb[0].mxu0
          %v6439 = vadd.f32 0.0, %v6438
          %v6440 = vpop.f32.mrb[0].mxu0
          %v6441 = vpop.f32.mrb[0].mxu0
          %v6442 = vadd.f32 0.0, %v6441
          %v6443 = vpop.f32.mrb[0].mxu0
          %6444 = vmatprep.mubr.bf16.mxu0 0
          %6445 = vmatmul.mubr.bf16.gmra.mrb[0].mxu0 %v6367
          %v6446 = vpop.f32.mrb[0].mxu0
          %v6447 = vadd.f32 0.0, %v6446
          %v6448 = vpop.f32.mrb[0].mxu0
          %v6449 = vpop.f32.mrb[0].mxu0
          %v6450 = vadd.f32 0.0, %v6449
          %v6451 = vpop.f32.mrb[0].mxu0
          %6452 = vmatprep.mubr.bf16.mxu0 0
          %6453 = vmatmul.mubr.bf16.gmra.mrb[0].mxu0 %v6370
          %v6454 = vpop.f32.mrb[0].mxu0
          %v6455 = vadd.f32 0.0, %v6454
          %v6456 = vpop.f32.mrb[0].mxu0
          %v6457 = vpop.f32.mrb[0].mxu0
          %v6458 = vpop.f32.mrb[0].mxu0
          %6459 = vdwg.mxu0
          %v6460 = vadd.f32 %v6287, %v6407
          %v6461 = vadd.f32 %v6288, %v6410
          %v6462 = vadd.f32 %v6289, %v6415
          %v6463 = vadd.f32 %v6290, %v6418
          %v6464 = vadd.f32 %v6291, %v6423
          %v6465 = vadd.f32 %v6292, %v6426
          %v6466 = vadd.f32 %v6293, %v6431
          %v6467 = vadd.f32 %v6294, %v6434
          %v6468 = vadd.f32 %v6295, %v6439
          %v6469 = vadd.f32 %v6296, %v6442
          %v6470 = vadd.f32 %v6297, %v6447
          %v6471 = vadd.f32 %v6298, %v6450
          %v6472 = vadd.f32 %v6299, %v6455
          %v6473 = vld [vmem:[#allocation3 + $0x40] sm:$0x3]
          %s6474 = smul.addr %s4389, 4
          %s6475 = scalar_lea.vmem [#allocation13], %s6474
          %v6476 = vld [vmem:[%s6475] sm:$0xf]
          %v6477 = vld [vmem:[%s6475 + $0x4] sm:$0xf]
          %v6478 = vld [vmem:[%s6475 + $0x8] sm:$0xf]
          %v6479 = vld [vmem:[%s6475 + $0xc] sm:$0xf]
          %v6480 = vld [vmem:[%s6475 + $0x10] sm:$0xf]
          %v6481 = vld [vmem:[%s6475 + $0x14] sm:$0xf]
          %v6482 = vld [vmem:[%s6475 + $0x18] sm:$0xf]
          %v6483 = vld [vmem:[%s6475 + $0x1c] sm:$0xf]
          %v6485 = vunpack.c.l.b16 %v6473
          %v6486 = vpack.c.b16 %v6485, %v6090
          %v6488 = vshrl.u32 %v6313, 16
          %v6490 = vrot.slane %v6488, 1
          %v6491 = vshll.u32 %v6313, 16
          %v6493 = vrot.slane %v6491, 2
          %v6494 = vor.u32 %v6490, %v6493
          %v6495 = vrot.slane %v6111, 1
          %v6496 = vrot.slane %v6107, 2
          %v6497 = vor.u32 %v6495, %v6496
          %v6498 = vsel %vm2262, %v6494, %v6497
          %v6499 = vrot.slane %v6119, 1
          %v6500 = vrot.slane %v6115, 2
          %v6501 = vor.u32 %v6499, %v6500
          %v6502 = vsel %vm2262, %v6497, %v6501
          %v6503 = vrot.slane %v6127, 1
          %v6504 = vrot.slane %v6123, 2
          %v6505 = vor.u32 %v6503, %v6504
          %v6506 = vsel %vm2262, %v6501, %v6505
          %v6507 = vrot.slane %v6135, 1
          %v6508 = vrot.slane %v6131, 2
          %v6509 = vor.u32 %v6507, %v6508
          %v6510 = vsel %vm2262, %v6505, %v6509
          %v6511 = vrot.slane %v6143, 1
          %v6512 = vrot.slane %v6139, 2
          %v6513 = vor.u32 %v6511, %v6512
          %v6514 = vsel %vm2262, %v6509, %v6513
          %v6516 = vshrl.u32 %v6486, 16
          %v6518 = vrot.slane %v6516, 1
          %v6519 = vshll.u32 %v6486, 16
          %v6521 = vrot.slane %v6519, 2
          %v6522 = vor.u32 %v6518, %v6521
          %v6523 = vsel %vm2262, %v6513, %v6522
          %v6532 = vunpack.c.l.b16 %v6476
          %v6533 = vunpack.c.l.b16 %v6477
          %v6534 = vunpack.c.l.b16 %v6478
          %v6535 = vunpack.c.l.b16 %v6479
          %v6536 = vunpack.c.l.b16 %v6480
          %v6537 = vunpack.c.l.b16 %v6481
          %v6538 = vunpack.c.l.b16 %v6482
          %v6539 = vunpack.c.l.b16 %v6483
          %v6540 = vpack.c.b16 %v6533, %v6532
          %v6541 = vpack.c.b16 %v6535, %v6534
          %v6542 = vpack.c.b16 %v6537, %v6536
          %v6543 = vpack.c.b16 %v6539, %v6538
          %v6549 = vsel %vm589, %v6498, 0
          %v6552 = vsel %vm589, %v6502, 0
          %v6555 = vsel %vm589, %v6506, 0
          %v6558 = vsel %vm589, %v6510, 0
          %v6561 = vsel %vm589, %v6514, 0
          %v6564 = vsel %vm589, %v6523, 0
          %v6567 = vsel %vm589, %v6522, 0
          %6569 = vmatprep.subr.bf16.mxu0 0
          %6570 = vmatpush1.bf16.msra.mxu0 %v6540
          %6571 = vmatprep.subr.bf16.mxu0 0
          %6572 = vmatpush1.bf16.msra.mxu0 %v6541
          %6573 = vmatprep.subr.bf16.mxu0 0
          %6574 = vmatpush1.bf16.msra.mxu0 %v6542
          %6575 = vmatprep.subr.bf16.mxu0 0
          %6576 = vmatpush1.bf16.msra.mxu0 %v6543
          %6577 = vmatprep.subr.bf16.mxu0 0
          %6578 = vmatpush1.bf16.msra.mxu0 0
          %6579 = vmatprep.subr.bf16.mxu0 0
          %6580 = vmatpush1.bf16.msra.mxu0 0
          %6581 = vmatprep.subr.bf16.mxu0 0
          %6582 = vmatpush1.bf16.msra.mxu0 0
          %6583 = vmatprep.subr.bf16.mxu0 0
          %6584 = vmatpush1.bf16.msra.mxu0 0
          %6585 = vmatprep.subr.bf16.mxu0 0
          %6586 = vmatpush1.bf16.msra.mxu0 0
          %6587 = vmatprep.subr.bf16.mxu0 0
          %6588 = vmatpush1.bf16.msra.mxu0 0
          %6589 = vmatprep.subr.bf16.mxu0 0
          %6590 = vmatpush1.bf16.msra.mxu0 0
          %6591 = vmatprep.subr.bf16.mxu0 0
          %6592 = vmatpush1.bf16.msra.mxu0 0
          %6593 = vmatprep.subr.bf16.mxu0 0
          %6594 = vmatpush1.bf16.msra.mxu0 0
          %6595 = vmatprep.subr.bf16.mxu0 0
          %6596 = vmatpush1.bf16.msra.mxu0 0
          %6597 = vmatprep.subr.bf16.mxu0 0
          %6598 = vmatpush1.bf16.msra.mxu0 0
          %6599 = vmatprep.subr.bf16.mxu0 0
          %6600 = vmatpush1.bf16.msra.mxu0 0
          %6601 = vmatprep.mubr.bf16.mxu0 0
          %6602 = vmatmul.mubr.bf16.gmra.mrb[0].mxu0 %v6549
          %v6603 = vpop.f32.mrb[0].mxu0
          %v6604 = vadd.f32 0.0, %v6603
          %v6605 = vpop.f32.mrb[0].mxu0
          %v6606 = vpop.f32.mrb[0].mxu0
          %v6607 = vadd.f32 0.0, %v6606
          %v6608 = vpop.f32.mrb[0].mxu0
          %6609 = vmatprep.mubr.bf16.mxu0 0
          %6610 = vmatmul.mubr.bf16.gmra.mrb[0].mxu0 %v6552
          %v6611 = vpop.f32.mrb[0].mxu0
          %v6612 = vadd.f32 0.0, %v6611
          %v6613 = vpop.f32.mrb[0].mxu0
          %v6614 = vpop.f32.mrb[0].mxu0
          %v6615 = vadd.f32 0.0, %v6614
          %v6616 = vpop.f32.mrb[0].mxu0
          %6617 = vmatprep.mubr.bf16.mxu0 0
          %6618 = vmatmul.mubr.bf16.gmra.mrb[0].mxu0 %v6555
          %v6619 = vpop.f32.mrb[0].mxu0
          %v6620 = vadd.f32 0.0, %v6619
          %v6621 = vpop.f32.mrb[0].mxu0
          %v6622 = vpop.f32.mrb[0].mxu0
          %v6623 = vadd.f32 0.0, %v6622
          %v6624 = vpop.f32.mrb[0].mxu0
          %6625 = vmatprep.mubr.bf16.mxu0 0
          %6626 = vmatmul.mubr.bf16.gmra.mrb[0].mxu0 %v6558
          %v6627 = vpop.f32.mrb[0].mxu0
          %v6628 = vadd.f32 0.0, %v6627
          %v6629 = vpop.f32.mrb[0].mxu0
          %v6630 = vpop.f32.mrb[0].mxu0
          %v6631 = vadd.f32 0.0, %v6630
          %v6632 = vpop.f32.mrb[0].mxu0
          %6633 = vmatprep.mubr.bf16.mxu0 0
          %6634 = vmatmul.mubr.bf16.gmra.mrb[0].mxu0 %v6561
          %v6635 = vpop.f32.mrb[0].mxu0
          %v6636 = vadd.f32 0.0, %v6635
          %v6637 = vpop.f32.mrb[0].mxu0
          %v6638 = vpop.f32.mrb[0].mxu0
          %v6639 = vadd.f32 0.0, %v6638
          %v6640 = vpop.f32.mrb[0].mxu0
          %6641 = vmatprep.mubr.bf16.mxu0 0
          %6642 = vmatmul.mubr.bf16.gmra.mrb[0].mxu0 %v6564
          %v6643 = vpop.f32.mrb[0].mxu0
          %v6644 = vadd.f32 0.0, %v6643
          %v6645 = vpop.f32.mrb[0].mxu0
          %v6646 = vpop.f32.mrb[0].mxu0
          %v6647 = vadd.f32 0.0, %v6646
          %v6648 = vpop.f32.mrb[0].mxu0
          %6649 = vmatprep.mubr.bf16.mxu0 0
          %6650 = vmatmul.mubr.bf16.gmra.mrb[0].mxu0 %v6567
          %v6651 = vpop.f32.mrb[0].mxu0
          %v6652 = vadd.f32 0.0, %v6651
          %v6653 = vpop.f32.mrb[0].mxu0
          %v6654 = vpop.f32.mrb[0].mxu0
          %v6655 = vpop.f32.mrb[0].mxu0
          %6656 = vdwg.mxu0
          %v6657 = vadd.f32 %v6460, %v6604
          %v6658 = vadd.f32 %v6461, %v6607
          %v6659 = vadd.f32 %v6462, %v6612
          %v6660 = vadd.f32 %v6463, %v6615
          %v6661 = vadd.f32 %v6464, %v6620
          %v6662 = vadd.f32 %v6465, %v6623
          %v6663 = vadd.f32 %v6466, %v6628
          %v6664 = vadd.f32 %v6467, %v6631
          %v6665 = vadd.f32 %v6468, %v6636
          %v6666 = vadd.f32 %v6469, %v6639
          %v6667 = vadd.f32 %v6470, %v6644
          %v6668 = vadd.f32 %v6471, %v6647
          %v6669 = vadd.f32 %v6472, %v6652
          %vm6670 = vcmp.ge.f32.partialorder %v6657, 0.0
          %vm6671 = vcmp.ge.f32.partialorder %v6658, 0.0
          %vm6672 = vcmp.ge.f32.partialorder %v6659, 0.0
          %vm6673 = vcmp.ge.f32.partialorder %v6660, 0.0
          %vm6674 = vcmp.ge.f32.partialorder %v6661, 0.0
          %vm6675 = vcmp.ge.f32.partialorder %v6662, 0.0
          %vm6676 = vcmp.ge.f32.partialorder %v6663, 0.0
          %vm6677 = vcmp.ge.f32.partialorder %v6664, 0.0
          %vm6678 = vcmp.ge.f32.partialorder %v6665, 0.0
          %vm6679 = vcmp.ge.f32.partialorder %v6666, 0.0
          %vm6680 = vcmp.ge.f32.partialorder %v6667, 0.0
          %vm6681 = vcmp.ge.f32.partialorder %v6668, 0.0
          %vm6682 = vcmp.ge.f32.partialorder %v6669, 0.0
          %v6683 = vstv %s2600
          %v6684 = vmul.f32 %v6683, %v6657
          %v6685 = vmul.f32 %v6683, %v6658
          %v6686 = vmul.f32 %v6683, %v6659
          %v6687 = vmul.f32 %v6683, %v6660
          %v6688 = vmul.f32 %v6683, %v6661
          %v6689 = vmul.f32 %v6683, %v6662
          %v6690 = vmul.f32 %v6683, %v6663
          %v6691 = vmul.f32 %v6683, %v6664
          %v6692 = vmul.f32 %v6683, %v6665
          %v6693 = vmul.f32 %v6683, %v6666
          %v6694 = vmul.f32 %v6683, %v6667
          %v6695 = vmul.f32 %v6683, %v6668
          %v6696 = vmul.f32 %v6683, %v6669
          %v6697 = vsel %vm6670, %v6657, %v6684
          %v6698 = vsel %vm6671, %v6658, %v6685
          %v6699 = vsel %vm6672, %v6659, %v6686
          %v6700 = vsel %vm6673, %v6660, %v6687
          %v6701 = vsel %vm6674, %v6661, %v6688
          %v6702 = vsel %vm6675, %v6662, %v6689
          %v6703 = vsel %vm6676, %v6663, %v6690
          %v6704 = vsel %vm6677, %v6664, %v6691
          %v6705 = vsel %vm6678, %v6665, %v6692
          %v6706 = vsel %vm6679, %v6666, %v6693
          %v6707 = vsel %vm6680, %v6667, %v6694
          %v6708 = vsel %vm6681, %v6668, %v6695
          %v6709 = vsel %vm6682, %v6669, %v6696
          %vm6710 = vcmp.ge.f32.partialorder %v6697, 0.0
          %vm6711 = vcmp.ge.f32.partialorder %v6698, 0.0
          %vm6712 = vcmp.ge.f32.partialorder %v6699, 0.0
          %vm6713 = vcmp.ge.f32.partialorder %v6700, 0.0
          %vm6714 = vcmp.ge.f32.partialorder %v6701, 0.0
          %vm6715 = vcmp.ge.f32.partialorder %v6702, 0.0
          %vm6716 = vcmp.ge.f32.partialorder %v6703, 0.0
          %vm6717 = vcmp.ge.f32.partialorder %v6704, 0.0
          %vm6718 = vcmp.ge.f32.partialorder %v6705, 0.0
          %vm6719 = vcmp.ge.f32.partialorder %v6706, 0.0
          %vm6720 = vcmp.ge.f32.partialorder %v6707, 0.0
          %vm6721 = vcmp.ge.f32.partialorder %v6708, 0.0
          %vm6722 = vcmp.ge.f32.partialorder %v6709, 0.0
          %v6723 = vstv %s2602
          %v6724 = vmul.f32 %v6723, %v6697
          %v6725 = vmul.f32 %v6723, %v6698
          %v6726 = vmul.f32 %v6723, %v6699
          %v6727 = vmul.f32 %v6723, %v6700
          %v6728 = vmul.f32 %v6723, %v6701
          %v6729 = vmul.f32 %v6723, %v6702
          %v6730 = vmul.f32 %v6723, %v6703
          %v6731 = vmul.f32 %v6723, %v6704
          %v6732 = vmul.f32 %v6723, %v6705
          %v6733 = vmul.f32 %v6723, %v6706
          %v6734 = vmul.f32 %v6723, %v6707
          %v6735 = vmul.f32 %v6723, %v6708
          %v6736 = vmul.f32 %v6723, %v6709
          %v6737 = vsel %vm6710, %v6697, %v6724
          %v6738 = vsel %vm6711, %v6698, %v6725
          %v6739 = vsel %vm6712, %v6699, %v6726
          %v6740 = vsel %vm6713, %v6700, %v6727
          %v6741 = vsel %vm6714, %v6701, %v6728
          %v6742 = vsel %vm6715, %v6702, %v6729
          %v6743 = vsel %vm6716, %v6703, %v6730
          %v6744 = vsel %vm6717, %v6704, %v6731
          %v6745 = vsel %vm6718, %v6705, %v6732
          %v6746 = vsel %vm6719, %v6706, %v6733
          %v6747 = vsel %vm6720, %v6707, %v6734
          %v6748 = vsel %vm6721, %v6708, %v6735
          %v6749 = vsel %vm6722, %v6709, %v6736
          %v6750 = vld [vmem:[#allocation2 + $0x10] sm:$0xff]
          %v6751 = vld [vmem:[#allocation2 + $0x18] sm:$0xff]
          %v6752 = vld [vmem:[#allocation2 + $0x20] sm:$0xff]
          %v6753 = vld [vmem:[#allocation2 + $0x28] sm:$0xff]
          %v6754 = vld [vmem:[#allocation2 + $0x30] sm:$0xff]
          %v6755 = vld [vmem:[#allocation2 + $0x38] sm:$0xff]
          %v6756 = vld [vmem:[#allocation2 + $0x40] sm:$0xff]
          %v6757 = vld [vmem:[#allocation2 + $0x48] sm:$0xff]
          %v6758 = vld [vmem:[#allocation2 + $0x50] sm:$0xff]
          %v6759 = vld [vmem:[#allocation2 + $0x58] sm:$0xff]
          %v6760 = vld [vmem:[#allocation2 + $0x60] sm:$0xff]
          %v6761 = vld [vmem:[#allocation2 + $0x68] sm:$0xff]
          %v6762 = vld [vmem:[#allocation2 + $0x70] sm:$0xff]
          %v6763 = vadd.f32 %v6737, %v6750
          %v6764 = vadd.f32 %v6738, %v6751
          %v6765 = vadd.f32 %v6739, %v6752
          %v6766 = vadd.f32 %v6740, %v6753
          %v6767 = vadd.f32 %v6741, %v6754
          %v6768 = vadd.f32 %v6742, %v6755
          %v6769 = vadd.f32 %v6743, %v6756
          %v6770 = vadd.f32 %v6744, %v6757
          %v6771 = vadd.f32 %v6745, %v6758
          %v6772 = vadd.f32 %v6746, %v6759
          %v6773 = vadd.f32 %v6747, %v6760
          %v6774 = vadd.f32 %v6748, %v6761
          %v6775 = vadd.f32 %v6749, %v6762
          %v6776 = vmul.f32 %v6763, %v2437
          %v6777 = vmul.f32 %v6764, %v2442
          %v6778 = vmul.f32 %v6765, %v2447
          %v6779 = vmul.f32 %v6766, %v2452
          %v6780 = vmul.f32 %v6767, %v2457
          %v6781 = vmul.f32 %v6768, %v2462
          %v6782 = vmul.f32 %v6769, %v2467
          %v6783 = vmul.f32 %v6770, %v2472
          %v6784 = vmul.f32 %v6771, %v2477
          %v6785 = vmul.f32 %v6772, %v2482
          %v6786 = vmul.f32 %v6773, %v2487
          %v6787 = vmul.f32 %v6774, %v2492
          %v6788 = vmul.f32 %v6775, %v2497
          %6789 = vst.msk [vmem:[#allocation2 + $0x10] sm:$0xff] %vm589, %v6776
          %6790 = vst.msk [vmem:[#allocation2 + $0x18] sm:$0xff] %vm589, %v6777
          %6791 = vst.msk [vmem:[#allocation2 + $0x20] sm:$0xff] %vm589, %v6778
          %6792 = vst.msk [vmem:[#allocation2 + $0x28] sm:$0xff] %vm589, %v6779
          %6793 = vst.msk [vmem:[#allocation2 + $0x30] sm:$0xff] %vm589, %v6780
          %6794 = vst.msk [vmem:[#allocation2 + $0x38] sm:$0xff] %vm589, %v6781
          %6795 = vst.msk [vmem:[#allocation2 + $0x40] sm:$0xff] %vm589, %v6782
          %6796 = vst.msk [vmem:[#allocation2 + $0x48] sm:$0xff] %vm589, %v6783
          %6797 = vst.msk [vmem:[#allocation2 + $0x50] sm:$0xff] %vm589, %v6784
          %6798 = vst.msk [vmem:[#allocation2 + $0x58] sm:$0xff] %vm589, %v6785
          %6799 = vst.msk [vmem:[#allocation2 + $0x60] sm:$0xff] %vm589, %v6786
          %6800 = vst.msk [vmem:[#allocation2 + $0x68] sm:$0xff] %vm589, %v6787
          %6801 = vst.msk [vmem:[#allocation2 + $0x70] sm:$0xff] %vm589, %v6788
          %v6802 = vpack.c.bf16 %v6777, %v6776
          %v6803 = vpack.c.bf16 %v6779, %v6778
          %v6804 = vpack.c.bf16 %v6781, %v6780
          %v6805 = vpack.c.bf16 %v6783, %v6782
          %v6806 = vpack.c.bf16 %v6785, %v6784
          %v6807 = vpack.c.bf16 %v6787, %v6786
          %v6808 = vpack.c.bf16 %v6788, %v6788
          %v6816 = vunpack.c.l.b16 %v6802
          %v6817 = vunpack.c.h.b16 %v6802
          %v6818 = vunpack.c.l.b16 %v6803
          %v6819 = vunpack.c.h.b16 %v6803
          %v6820 = vunpack.c.l.b16 %v6804
          %v6821 = vunpack.c.h.b16 %v6804
          %v6822 = vunpack.c.l.b16 %v6805
          %v6823 = vunpack.c.h.b16 %v6805
          %v6824 = vunpack.c.l.b16 %v6806
          %v6825 = vunpack.c.h.b16 %v6806
          %v6826 = vunpack.c.l.b16 %v6807
          %v6827 = vunpack.c.h.b16 %v6807
          %v6828 = vunpack.c.l.b16 %v6808
          %v6829 = vpack.c.b16 %v6816, %v6816
          %v6830 = vpack.c.b16 %v6817, %v6817
          %v6831 = vpack.c.b16 %v6818, %v6818
          %v6832 = vpack.c.b16 %v6819, %v6819
          %v6833 = vpack.c.b16 %v6820, %v6820
          %v6834 = vpack.c.b16 %v6821, %v6821
          %v6835 = vpack.c.b16 %v6822, %v6822
          %v6836 = vpack.c.b16 %v6823, %v6823
          %v6837 = vpack.c.b16 %v6824, %v6824
          %v6838 = vpack.c.b16 %v6825, %v6825
          %v6839 = vpack.c.b16 %v6826, %v6826
          %v6840 = vpack.c.b16 %v6827, %v6827
          %v6841 = vpack.c.b16 %v6828, %v6828
          %6855 = vst.msk [vmem:[#allocation3 + $0x8] sm:$0xf] %vm607, %v6829
          %6856 = vst.msk [vmem:[#allocation3 + $0xc] sm:$0xf] %vm607, %v6830
          %6857 = vst.msk [vmem:[#allocation3 + $0x10] sm:$0xf] %vm607, %v6831
          %6858 = vst.msk [vmem:[#allocation3 + $0x14] sm:$0xf] %vm607, %v6832
          %6859 = vst.msk [vmem:[#allocation3 + $0x18] sm:$0xf] %vm607, %v6833
          %6860 = vst.msk [vmem:[#allocation3 + $0x1c] sm:$0xf] %vm607, %v6834
          %6861 = vst.msk [vmem:[#allocation3 + $0x20] sm:$0xf] %vm607, %v6835
          %6862 = vst.msk [vmem:[#allocation3 + $0x24] sm:$0xf] %vm607, %v6836
          %6863 = vst.msk [vmem:[#allocation3 + $0x28] sm:$0xf] %vm607, %v6837
          %6864 = vst.msk [vmem:[#allocation3 + $0x2c] sm:$0xf] %vm607, %v6838
          %6865 = vst.msk [vmem:[#allocation3 + $0x30] sm:$0xf] %vm607, %v6839
          %6866 = vst.msk [vmem:[#allocation3 + $0x34] sm:$0xf] %vm607, %v6840
          %6867 = vst.msk [vmem:[#allocation3 + $0x38] sm:$0xf] %vm607, %v6841
        $region113: #{_lambda_.1} parent=67 // loop_footer
          %s2596 = sadd.s32 1, %s2592
        $region114: #{_lambda_.1} parent=67 // loop_footer_branch
          %2591 = sbr.rel target = $region110
        $region115: #{_lambda_.1} parent=67 // loop_exit
          _
        %v6868 = vld [vmem:[#allocation17] sm:$0x1]
        %v6870 = vlaneseq
        %v6871 = vshrl.u32 %v6870, 7
        %v6872 = vsub.s32 0, %v6871
        %v6873 = vrot.slane %v6868, %v6872
        %v6875 = vld [vmem:[#allocation3] sm:$0xc]
        %v6876 = vld [vmem:[#allocation3 + $0x4] sm:$0xf]
        %v6877 = vld [vmem:[#allocation3 + $0x8] sm:$0xf]
        %v6878 = vld [vmem:[#allocation3 + $0xc] sm:$0xf]
        %v6879 = vld [vmem:[#allocation3 + $0x10] sm:$0xf]
        %v6880 = vld [vmem:[#allocation3 + $0x14] sm:$0xf]
        %v6881 = vld [vmem:[#allocation3 + $0x18] sm:$0xf]
        %v6882 = vld [vmem:[#allocation3 + $0x1c] sm:$0xf]
        %v6883 = vld [vmem:[#allocation3 + $0x20] sm:$0xf]
        %v6884 = vld [vmem:[#allocation3 + $0x24] sm:$0xf]
        %v6885 = vld [vmem:[#allocation3 + $0x28] sm:$0xf]
        %v6886 = vld [vmem:[#allocation3 + $0x2c] sm:$0xf]
        %v6887 = vld [vmem:[#allocation3 + $0x30] sm:$0xf]
        %v6888 = vld [vmem:[#allocation3 + $0x34] sm:$0x7]
        %v6889 = vld [vmem:[#allocation16] sm:$0xf]
        %v6890 = vld [vmem:[#allocation16 + $0x4] sm:$0xf]
        %v6891 = vld [vmem:[#allocation16 + $0x8] sm:$0xf]
        %v6892 = vld [vmem:[#allocation16 + $0xc] sm:$0xf]
        %v6893 = vld [vmem:[#allocation16 + $0x10] sm:$0xf]
        %v6894 = vld [vmem:[#allocation16 + $0x14] sm:$0xf]
        %v6895 = vld [vmem:[#allocation16 + $0x18] sm:$0xf]
        %v6896 = vld [vmem:[#allocation16 + $0x1c] sm:$0xf]
        %v6911 = vunpack.c.l.b16 %v6875
        %v6912 = vunpack.c.l.b16 %v6876
        %v6913 = vunpack.c.l.b16 %v6877
        %v6914 = vunpack.c.l.b16 %v6878
        %v6915 = vunpack.c.l.b16 %v6879
        %v6916 = vunpack.c.l.b16 %v6880
        %v6917 = vunpack.c.l.b16 %v6881
        %v6918 = vunpack.c.l.b16 %v6882
        %v6919 = vunpack.c.l.b16 %v6883
        %v6920 = vunpack.c.l.b16 %v6884
        %v6921 = vunpack.c.l.b16 %v6885
        %v6922 = vunpack.c.l.b16 %v6886
        %v6923 = vunpack.c.l.b16 %v6887
        %v6924 = vunpack.c.l.b16 %v6888
        %v6925 = vpack.c.b16 %v6912, %v6911
        %v6926 = vpack.c.b16 %v6914, %v6913
        %v6927 = vpack.c.b16 %v6916, %v6915
        %v6928 = vpack.c.b16 %v6918, %v6917
        %v6929 = vpack.c.b16 %v6920, %v6919
        %v6930 = vpack.c.b16 %v6922, %v6921
        %v6931 = vpack.c.b16 %v6924, %v6923
        %v6933 = vshrl.u32 %v6925, 16
        %v6935 = vrot.slane %v6933, 2
        %v6936 = vshll.u32 %v6925, 16
        %v6938 = vrot.slane %v6936, 3
        %v6939 = vor.u32 %v6935, %v6938
        %v6941 = vshrl.u32 %v6926, 16
        %v6943 = vrot.slane %v6941, 2
        %v6944 = vshll.u32 %v6926, 16
        %v6946 = vrot.slane %v6944, 3
        %v6947 = vor.u32 %v6943, %v6946
        %v6948 = vsel %vm684, %v6939, %v6947
        %v6950 = vshrl.u32 %v6927, 16
        %v6952 = vrot.slane %v6950, 2
        %v6953 = vshll.u32 %v6927, 16
        %v6955 = vrot.slane %v6953, 3
        %v6956 = vor.u32 %v6952, %v6955
        %v6957 = vsel %vm684, %v6947, %v6956
        %v6959 = vshrl.u32 %v6928, 16
        %v6961 = vrot.slane %v6959, 2
        %v6962 = vshll.u32 %v6928, 16
        %v6964 = vrot.slane %v6962, 3
        %v6965 = vor.u32 %v6961, %v6964
        %v6966 = vsel %vm684, %v6956, %v6965
        %v6968 = vshrl.u32 %v6929, 16
        %v6970 = vrot.slane %v6968, 2
        %v6971 = vshll.u32 %v6929, 16
        %v6973 = vrot.slane %v6971, 3
        %v6974 = vor.u32 %v6970, %v6973
        %v6975 = vsel %vm684, %v6965, %v6974
        %v6977 = vshrl.u32 %v6930, 16
        %v6979 = vrot.slane %v6977, 2
        %v6980 = vshll.u32 %v6930, 16
        %v6982 = vrot.slane %v6980, 3
        %v6983 = vor.u32 %v6979, %v6982
        %v6984 = vsel %vm684, %v6974, %v6983
        %v6986 = vshrl.u32 %v6931, 16
        %v6988 = vrot.slane %v6986, 2
        %v6989 = vshll.u32 %v6931, 16
        %v6991 = vrot.slane %v6989, 3
        %v6992 = vor.u32 %v6988, %v6991
        %v6993 = vsel %vm684, %v6983, %v6992
        %v7002 = vunpack.c.l.b16 %v6889
        %v7003 = vunpack.c.l.b16 %v6890
        %v7004 = vunpack.c.l.b16 %v6891
        %v7005 = vunpack.c.l.b16 %v6892
        %v7006 = vunpack.c.l.b16 %v6893
        %v7007 = vunpack.c.l.b16 %v6894
        %v7008 = vunpack.c.l.b16 %v6895
        %v7009 = vunpack.c.l.b16 %v6896
        %v7010 = vpack.c.b16 %v7003, %v7002
        %v7011 = vpack.c.b16 %v7005, %v7004
        %v7012 = vpack.c.b16 %v7007, %v7006
        %v7013 = vpack.c.b16 %v7009, %v7008
        %v7019 = vsel %vm589, %v6948, 0
        %v7022 = vsel %vm589, %v6957, 0
        %v7025 = vsel %vm589, %v6966, 0
        %v7028 = vsel %vm589, %v6975, 0
        %v7031 = vsel %vm589, %v6984, 0
        %v7034 = vsel %vm589, %v6993, 0
        %v7037 = vsel %vm589, %v6992, 0
        %7039 = vmatprep.subr.bf16.mxu0 0
        %7040 = vmatpush1.bf16.msra.mxu0 %v7010
        %7041 = vmatprep.subr.bf16.mxu0 0
        %7042 = vmatpush1.bf16.msra.mxu0 %v7011
        %7043 = vmatprep.subr.bf16.mxu0 0
        %7044 = vmatpush1.bf16.msra.mxu0 %v7012
        %7045 = vmatprep.subr.bf16.mxu0 0
        %7046 = vmatpush1.bf16.msra.mxu0 %v7013
        %7047 = vmatprep.subr.bf16.mxu0 0
        %7048 = vmatpush1.bf16.msra.mxu0 0
        %7049 = vmatprep.subr.bf16.mxu0 0
        %7050 = vmatpush1.bf16.msra.mxu0 0
        %7051 = vmatprep.subr.bf16.mxu0 0
        %7052 = vmatpush1.bf16.msra.mxu0 0
        %7053 = vmatprep.subr.bf16.mxu0 0
        %7054 = vmatpush1.bf16.msra.mxu0 0
        %7055 = vmatprep.subr.bf16.mxu0 0
        %7056 = vmatpush1.bf16.msra.mxu0 0
        %7057 = vmatprep.subr.bf16.mxu0 0
        %7058 = vmatpush1.bf16.msra.mxu0 0
        %7059 = vmatprep.subr.bf16.mxu0 0
        %7060 = vmatpush1.bf16.msra.mxu0 0
        %7061 = vmatprep.subr.bf16.mxu0 0
        %7062 = vmatpush1.bf16.msra.mxu0 0
        %7063 = vmatprep.subr.bf16.mxu0 0
        %7064 = vmatpush1.bf16.msra.mxu0 0
        %7065 = vmatprep.subr.bf16.mxu0 0
        %7066 = vmatpush1.bf16.msra.mxu0 0
        %7067 = vmatprep.subr.bf16.mxu0 0
        %7068 = vmatpush1.bf16.msra.mxu0 0
        %7069 = vmatprep.subr.bf16.mxu0 0
        %7070 = vmatpush1.bf16.msra.mxu0 0
        %7071 = vmatprep.mubr.bf16.mxu0 0
        %7072 = vmatmul.mubr.bf16.gmra.mrb[0].mxu0 %v7019
        %v7073 = vpop.f32.mrb[0].mxu0
        %v7074 = vadd.f32 0.0, %v7073
        %v7075 = vpop.f32.mrb[0].mxu0
        %v7076 = vpop.f32.mrb[0].mxu0
        %v7077 = vadd.f32 0.0, %v7076
        %v7078 = vpop.f32.mrb[0].mxu0
        %7079 = vmatprep.mubr.bf16.mxu0 0
        %7080 = vmatmul.mubr.bf16.gmra.mrb[0].mxu0 %v7022
        %v7081 = vpop.f32.mrb[0].mxu0
        %v7082 = vadd.f32 0.0, %v7081
        %v7083 = vpop.f32.mrb[0].mxu0
        %v7084 = vpop.f32.mrb[0].mxu0
        %v7085 = vadd.f32 0.0, %v7084
        %v7086 = vpop.f32.mrb[0].mxu0
        %7087 = vmatprep.mubr.bf16.mxu0 0
        %7088 = vmatmul.mubr.bf16.gmra.mrb[0].mxu0 %v7025
        %v7089 = vpop.f32.mrb[0].mxu0
        %v7090 = vadd.f32 0.0, %v7089
        %v7091 = vpop.f32.mrb[0].mxu0
        %v7092 = vpop.f32.mrb[0].mxu0
        %v7093 = vadd.f32 0.0, %v7092
        %v7094 = vpop.f32.mrb[0].mxu0
        %7095 = vmatprep.mubr.bf16.mxu0 0
        %7096 = vmatmul.mubr.bf16.gmra.mrb[0].mxu0 %v7028
        %v7097 = vpop.f32.mrb[0].mxu0
        %v7098 = vadd.f32 0.0, %v7097
        %v7099 = vpop.f32.mrb[0].mxu0
        %v7100 = vpop.f32.mrb[0].mxu0
        %v7101 = vadd.f32 0.0, %v7100
        %v7102 = vpop.f32.mrb[0].mxu0
        %7103 = vmatprep.mubr.bf16.mxu0 0
        %7104 = vmatmul.mubr.bf16.gmra.mrb[0].mxu0 %v7031
        %v7105 = vpop.f32.mrb[0].mxu0
        %v7106 = vadd.f32 0.0, %v7105
        %v7107 = vpop.f32.mrb[0].mxu0
        %v7108 = vpop.f32.mrb[0].mxu0
        %v7109 = vadd.f32 0.0, %v7108
        %v7110 = vpop.f32.mrb[0].mxu0
        %7111 = vmatprep.mubr.bf16.mxu0 0
        %7112 = vmatmul.mubr.bf16.gmra.mrb[0].mxu0 %v7034
        %v7113 = vpop.f32.mrb[0].mxu0
        %v7114 = vadd.f32 0.0, %v7113
        %v7115 = vpop.f32.mrb[0].mxu0
        %v7116 = vpop.f32.mrb[0].mxu0
        %v7117 = vadd.f32 0.0, %v7116
        %v7118 = vpop.f32.mrb[0].mxu0
        %7119 = vmatprep.mubr.bf16.mxu0 0
        %7120 = vmatmul.mubr.bf16.gmra.mrb[0].mxu0 %v7037
        %v7121 = vpop.f32.mrb[0].mxu0
        %v7122 = vadd.f32 0.0, %v7121
        %v7123 = vpop.f32.mrb[0].mxu0
        %v7124 = vpop.f32.mrb[0].mxu0
        %v7125 = vpop.f32.mrb[0].mxu0
        %7126 = vdwg.mxu0
        %v7127 = vadd.f32 %v6873, %v7074
        %v7128 = vadd.f32 %v6873, %v7077
        %v7129 = vadd.f32 %v6873, %v7082
        %v7130 = vadd.f32 %v6873, %v7085
        %v7131 = vadd.f32 %v6873, %v7090
        %v7132 = vadd.f32 %v6873, %v7093
        %v7133 = vadd.f32 %v6873, %v7098
        %v7134 = vadd.f32 %v6873, %v7101
        %v7135 = vadd.f32 %v6873, %v7106
        %v7136 = vadd.f32 %v6873, %v7109
        %v7137 = vadd.f32 %v6873, %v7114
        %v7138 = vadd.f32 %v6873, %v7117
        %v7139 = vadd.f32 %v6873, %v7122
        %v7140 = vld [vmem:[#allocation3] sm:$0x8]
        %s7141 = scalar_lea.vmem [#allocation16], 32
        %v7142 = vld [vmem:[%s7141] sm:$0xf]
        %v7143 = vld [vmem:[%s7141 + $0x4] sm:$0xf]
        %v7144 = vld [vmem:[%s7141 + $0x8] sm:$0xf]
        %v7145 = vld [vmem:[%s7141 + $0xc] sm:$0xf]
        %v7146 = vld [vmem:[%s7141 + $0x10] sm:$0xf]
        %v7147 = vld [vmem:[%s7141 + $0x14] sm:$0xf]
        %v7148 = vld [vmem:[%s7141 + $0x18] sm:$0xf]
        %v7149 = vld [vmem:[%s7141 + $0x1c] sm:$0xf]
        %v7151 = vunpack.c.l.b16 %v7140
        %v7152 = vpack.c.b16 %v6912, %v7151
        %v7153 = vrot.slane %v7152, 3
        %v7154 = vrot.slane %v6926, 3
        %v7155 = vsel %vm891, %v7153, %v7154
        %v7156 = vrot.slane %v6927, 3
        %v7157 = vsel %vm891, %v7154, %v7156
        %v7158 = vrot.slane %v6928, 3
        %v7159 = vsel %vm891, %v7156, %v7158
        %v7160 = vrot.slane %v6929, 3
        %v7161 = vsel %vm891, %v7158, %v7160
        %v7162 = vrot.slane %v6930, 3
        %v7163 = vsel %vm891, %v7160, %v7162
        %v7164 = vrot.slane %v6931, 3
        %v7165 = vsel %vm891, %v7162, %v7164
        %v7174 = vunpack.c.l.b16 %v7142
        %v7175 = vunpack.c.l.b16 %v7143
        %v7176 = vunpack.c.l.b16 %v7144
        %v7177 = vunpack.c.l.b16 %v7145
        %v7178 = vunpack.c.l.b16 %v7146
        %v7179 = vunpack.c.l.b16 %v7147
        %v7180 = vunpack.c.l.b16 %v7148
        %v7181 = vunpack.c.l.b16 %v7149
        %v7182 = vpack.c.b16 %v7175, %v7174
        %v7183 = vpack.c.b16 %v7177, %v7176
        %v7184 = vpack.c.b16 %v7179, %v7178
        %v7185 = vpack.c.b16 %v7181, %v7180
        %v7191 = vsel %vm589, %v7155, 0
        %v7194 = vsel %vm589, %v7157, 0
        %v7197 = vsel %vm589, %v7159, 0
        %v7200 = vsel %vm589, %v7161, 0
        %v7203 = vsel %vm589, %v7163, 0
        %v7206 = vsel %vm589, %v7165, 0
        %v7209 = vsel %vm589, %v7164, 0
        %7211 = vmatprep.subr.bf16.mxu0 0
        %7212 = vmatpush1.bf16.msra.mxu0 %v7182
        %7213 = vmatprep.subr.bf16.mxu0 0
        %7214 = vmatpush1.bf16.msra.mxu0 %v7183
        %7215 = vmatprep.subr.bf16.mxu0 0
        %7216 = vmatpush1.bf16.msra.mxu0 %v7184
        %7217 = vmatprep.subr.bf16.mxu0 0
        %7218 = vmatpush1.bf16.msra.mxu0 %v7185
        %7219 = vmatprep.subr.bf16.mxu0 0
        %7220 = vmatpush1.bf16.msra.mxu0 0
        %7221 = vmatprep.subr.bf16.mxu0 0
        %7222 = vmatpush1.bf16.msra.mxu0 0
        %7223 = vmatprep.subr.bf16.mxu0 0
        %7224 = vmatpush1.bf16.msra.mxu0 0
        %7225 = vmatprep.subr.bf16.mxu0 0
        %7226 = vmatpush1.bf16.msra.mxu0 0
        %7227 = vmatprep.subr.bf16.mxu0 0
        %7228 = vmatpush1.bf16.msra.mxu0 0
        %7229 = vmatprep.subr.bf16.mxu0 0
        %7230 = vmatpush1.bf16.msra.mxu0 0
        %7231 = vmatprep.subr.bf16.mxu0 0
        %7232 = vmatpush1.bf16.msra.mxu0 0
        %7233 = vmatprep.subr.bf16.mxu0 0
        %7234 = vmatpush1.bf16.msra.mxu0 0
        %7235 = vmatprep.subr.bf16.mxu0 0
        %7236 = vmatpush1.bf16.msra.mxu0 0
        %7237 = vmatprep.subr.bf16.mxu0 0
        %7238 = vmatpush1.bf16.msra.mxu0 0
        %7239 = vmatprep.subr.bf16.mxu0 0
        %7240 = vmatpush1.bf16.msra.mxu0 0
        %7241 = vmatprep.subr.bf16.mxu0 0
        %7242 = vmatpush1.bf16.msra.mxu0 0
        %7243 = vmatprep.mubr.bf16.mxu0 0
        %7244 = vmatmul.mubr.bf16.gmra.mrb[0].mxu0 %v7191
        %v7245 = vpop.f32.mrb[0].mxu0
        %v7246 = vadd.f32 0.0, %v7245
        %v7247 = vpop.f32.mrb[0].mxu0
        %v7248 = vpop.f32.mrb[0].mxu0
        %v7249 = vadd.f32 0.0, %v7248
        %v7250 = vpop.f32.mrb[0].mxu0
        %7251 = vmatprep.mubr.bf16.mxu0 0
        %7252 = vmatmul.mubr.bf16.gmra.mrb[0].mxu0 %v7194
        %v7253 = vpop.f32.mrb[0].mxu0
        %v7254 = vadd.f32 0.0, %v7253
        %v7255 = vpop.f32.mrb[0].mxu0
        %v7256 = vpop.f32.mrb[0].mxu0
        %v7257 = vadd.f32 0.0, %v7256
        %v7258 = vpop.f32.mrb[0].mxu0
        %7259 = vmatprep.mubr.bf16.mxu0 0
        %7260 = vmatmul.mubr.bf16.gmra.mrb[0].mxu0 %v7197
        %v7261 = vpop.f32.mrb[0].mxu0
        %v7262 = vadd.f32 0.0, %v7261
        %v7263 = vpop.f32.mrb[0].mxu0
        %v7264 = vpop.f32.mrb[0].mxu0
        %v7265 = vadd.f32 0.0, %v7264
        %v7266 = vpop.f32.mrb[0].mxu0
        %7267 = vmatprep.mubr.bf16.mxu0 0
        %7268 = vmatmul.mubr.bf16.gmra.mrb[0].mxu0 %v7200
        %v7269 = vpop.f32.mrb[0].mxu0
        %v7270 = vadd.f32 0.0, %v7269
        %v7271 = vpop.f32.mrb[0].mxu0
        %v7272 = vpop.f32.mrb[0].mxu0
        %v7273 = vadd.f32 0.0, %v7272
        %v7274 = vpop.f32.mrb[0].mxu0
        %7275 = vmatprep.mubr.bf16.mxu0 0
        %7276 = vmatmul.mubr.bf16.gmra.mrb[0].mxu0 %v7203
        %v7277 = vpop.f32.mrb[0].mxu0
        %v7278 = vadd.f32 0.0, %v7277
        %v7279 = vpop.f32.mrb[0].mxu0
        %v7280 = vpop.f32.mrb[0].mxu0
        %v7281 = vadd.f32 0.0, %v7280
        %v7282 = vpop.f32.mrb[0].mxu0
        %7283 = vmatprep.mubr.bf16.mxu0 0
        %7284 = vmatmul.mubr.bf16.gmra.mrb[0].mxu0 %v7206
        %v7285 = vpop.f32.mrb[0].mxu0
        %v7286 = vadd.f32 0.0, %v7285
        %v7287 = vpop.f32.mrb[0].mxu0
        %v7288 = vpop.f32.mrb[0].mxu0
        %v7289 = vadd.f32 0.0, %v7288
        %v7290 = vpop.f32.mrb[0].mxu0
        %7291 = vmatprep.mubr.bf16.mxu0 0
        %7292 = vmatmul.mubr.bf16.gmra.mrb[0].mxu0 %v7209
        %v7293 = vpop.f32.mrb[0].mxu0
        %v7294 = vadd.f32 0.0, %v7293
        %v7295 = vpop.f32.mrb[0].mxu0
        %v7296 = vpop.f32.mrb[0].mxu0
        %v7297 = vpop.f32.mrb[0].mxu0
        %7298 = vdwg.mxu0
        %v7299 = vadd.f32 %v7127, %v7246
        %v7300 = vadd.f32 %v7128, %v7249
        %v7301 = vadd.f32 %v7129, %v7254
        %v7302 = vadd.f32 %v7130, %v7257
        %v7303 = vadd.f32 %v7131, %v7262
        %v7304 = vadd.f32 %v7132, %v7265
        %v7305 = vadd.f32 %v7133, %v7270
        %v7306 = vadd.f32 %v7134, %v7273
        %v7307 = vadd.f32 %v7135, %v7278
        %v7308 = vadd.f32 %v7136, %v7281
        %v7309 = vadd.f32 %v7137, %v7286
        %v7310 = vadd.f32 %v7138, %v7289
        %v7311 = vadd.f32 %v7139, %v7294
        %v7312 = vld [vmem:[#allocation3 + $0x34] sm:$0xf]
        %s7313 = scalar_lea.vmem [#allocation16], 64
        %v7314 = vld [vmem:[%s7313] sm:$0xf]
        %v7315 = vld [vmem:[%s7313 + $0x4] sm:$0xf]
        %v7316 = vld [vmem:[%s7313 + $0x8] sm:$0xf]
        %v7317 = vld [vmem:[%s7313 + $0xc] sm:$0xf]
        %v7318 = vld [vmem:[%s7313 + $0x10] sm:$0xf]
        %v7319 = vld [vmem:[%s7313 + $0x14] sm:$0xf]
        %v7320 = vld [vmem:[%s7313 + $0x18] sm:$0xf]
        %v7321 = vld [vmem:[%s7313 + $0x1c] sm:$0xf]
        %v7323 = vunpack.c.l.b16 %v7312
        %v7324 = vpack.c.b16 %v7323, %v6923
        %v7326 = vshrl.u32 %v7152, 16
        %v7328 = vrot.slane %v7326, 3
        %v7329 = vshll.u32 %v7152, 16
        %v7331 = vrot.slane %v7329, 4
        %v7332 = vor.u32 %v7328, %v7331
        %v7333 = vrot.slane %v6941, 3
        %v7334 = vrot.slane %v6944, 4
        %v7335 = vor.u32 %v7333, %v7334
        %v7336 = vsel %vm1047, %v7332, %v7335
        %v7337 = vrot.slane %v6950, 3
        %v7338 = vrot.slane %v6953, 4
        %v7339 = vor.u32 %v7337, %v7338
        %v7340 = vsel %vm1047, %v7335, %v7339
        %v7341 = vrot.slane %v6959, 3
        %v7342 = vrot.slane %v6962, 4
        %v7343 = vor.u32 %v7341, %v7342
        %v7344 = vsel %vm1047, %v7339, %v7343
        %v7345 = vrot.slane %v6968, 3
        %v7346 = vrot.slane %v6971, 4
        %v7347 = vor.u32 %v7345, %v7346
        %v7348 = vsel %vm1047, %v7343, %v7347
        %v7349 = vrot.slane %v6977, 3
        %v7350 = vrot.slane %v6980, 4
        %v7351 = vor.u32 %v7349, %v7350
        %v7352 = vsel %vm1047, %v7347, %v7351
        %v7354 = vshrl.u32 %v7324, 16
        %v7356 = vrot.slane %v7354, 3
        %v7357 = vshll.u32 %v7324, 16
        %v7359 = vrot.slane %v7357, 4
        %v7360 = vor.u32 %v7356, %v7359
        %v7361 = vsel %vm1047, %v7351, %v7360
        %v7370 = vunpack.c.l.b16 %v7314
        %v7371 = vunpack.c.l.b16 %v7315
        %v7372 = vunpack.c.l.b16 %v7316
        %v7373 = vunpack.c.l.b16 %v7317
        %v7374 = vunpack.c.l.b16 %v7318
        %v7375 = vunpack.c.l.b16 %v7319
        %v7376 = vunpack.c.l.b16 %v7320
        %v7377 = vunpack.c.l.b16 %v7321
        %v7378 = vpack.c.b16 %v7371, %v7370
        %v7379 = vpack.c.b16 %v7373, %v7372
        %v7380 = vpack.c.b16 %v7375, %v7374
        %v7381 = vpack.c.b16 %v7377, %v7376
        %v7387 = vsel %vm589, %v7336, 0
        %v7390 = vsel %vm589, %v7340, 0
        %v7393 = vsel %vm589, %v7344, 0
        %v7396 = vsel %vm589, %v7348, 0
        %v7399 = vsel %vm589, %v7352, 0
        %v7402 = vsel %vm589, %v7361, 0
        %v7405 = vsel %vm589, %v7360, 0
        %7407 = vmatprep.subr.bf16.mxu0 0
        %7408 = vmatpush1.bf16.msra.mxu0 %v7378
        %7409 = vmatprep.subr.bf16.mxu0 0
        %7410 = vmatpush1.bf16.msra.mxu0 %v7379
        %7411 = vmatprep.subr.bf16.mxu0 0
        %7412 = vmatpush1.bf16.msra.mxu0 %v7380
        %7413 = vmatprep.subr.bf16.mxu0 0
        %7414 = vmatpush1.bf16.msra.mxu0 %v7381
        %7415 = vmatprep.subr.bf16.mxu0 0
        %7416 = vmatpush1.bf16.msra.mxu0 0
        %7417 = vmatprep.subr.bf16.mxu0 0
        %7418 = vmatpush1.bf16.msra.mxu0 0
        %7419 = vmatprep.subr.bf16.mxu0 0
        %7420 = vmatpush1.bf16.msra.mxu0 0
        %7421 = vmatprep.subr.bf16.mxu0 0
        %7422 = vmatpush1.bf16.msra.mxu0 0
        %7423 = vmatprep.subr.bf16.mxu0 0
        %7424 = vmatpush1.bf16.msra.mxu0 0
        %7425 = vmatprep.subr.bf16.mxu0 0
        %7426 = vmatpush1.bf16.msra.mxu0 0
        %7427 = vmatprep.subr.bf16.mxu0 0
        %7428 = vmatpush1.bf16.msra.mxu0 0
        %7429 = vmatprep.subr.bf16.mxu0 0
        %7430 = vmatpush1.bf16.msra.mxu0 0
        %7431 = vmatprep.subr.bf16.mxu0 0
        %7432 = vmatpush1.bf16.msra.mxu0 0
        %7433 = vmatprep.subr.bf16.mxu0 0
        %7434 = vmatpush1.bf16.msra.mxu0 0
        %7435 = vmatprep.subr.bf16.mxu0 0
        %7436 = vmatpush1.bf16.msra.mxu0 0
        %7437 = vmatprep.subr.bf16.mxu0 0
        %7438 = vmatpush1.bf16.msra.mxu0 0
        %7439 = vmatprep.mubr.bf16.mxu0 0
        %7440 = vmatmul.mubr.bf16.gmra.mrb[0].mxu0 %v7387
        %v7441 = vpop.f32.mrb[0].mxu0
        %v7442 = vadd.f32 0.0, %v7441
        %v7443 = vpop.f32.mrb[0].mxu0
        %v7444 = vpop.f32.mrb[0].mxu0
        %v7445 = vadd.f32 0.0, %v7444
        %v7446 = vpop.f32.mrb[0].mxu0
        %7447 = vmatprep.mubr.bf16.mxu0 0
        %7448 = vmatmul.mubr.bf16.gmra.mrb[0].mxu0 %v7390
        %v7449 = vpop.f32.mrb[0].mxu0
        %v7450 = vadd.f32 0.0, %v7449
        %v7451 = vpop.f32.mrb[0].mxu0
        %v7452 = vpop.f32.mrb[0].mxu0
        %v7453 = vadd.f32 0.0, %v7452
        %v7454 = vpop.f32.mrb[0].mxu0
        %7455 = vmatprep.mubr.bf16.mxu0 0
        %7456 = vmatmul.mubr.bf16.gmra.mrb[0].mxu0 %v7393
        %v7457 = vpop.f32.mrb[0].mxu0
        %v7458 = vadd.f32 0.0, %v7457
        %v7459 = vpop.f32.mrb[0].mxu0
        %v7460 = vpop.f32.mrb[0].mxu0
        %v7461 = vadd.f32 0.0, %v7460
        %v7462 = vpop.f32.mrb[0].mxu0
        %7463 = vmatprep.mubr.bf16.mxu0 0
        %7464 = vmatmul.mubr.bf16.gmra.mrb[0].mxu0 %v7396
        %v7465 = vpop.f32.mrb[0].mxu0
        %v7466 = vadd.f32 0.0, %v7465
        %v7467 = vpop.f32.mrb[0].mxu0
        %v7468 = vpop.f32.mrb[0].mxu0
        %v7469 = vadd.f32 0.0, %v7468
        %v7470 = vpop.f32.mrb[0].mxu0
        %7471 = vmatprep.mubr.bf16.mxu0 0
        %7472 = vmatmul.mubr.bf16.gmra.mrb[0].mxu0 %v7399
        %v7473 = vpop.f32.mrb[0].mxu0
        %v7474 = vadd.f32 0.0, %v7473
        %v7475 = vpop.f32.mrb[0].mxu0
        %v7476 = vpop.f32.mrb[0].mxu0
        %v7477 = vadd.f32 0.0, %v7476
        %v7478 = vpop.f32.mrb[0].mxu0
        %7479 = vmatprep.mubr.bf16.mxu0 0
        %7480 = vmatmul.mubr.bf16.gmra.mrb[0].mxu0 %v7402
        %v7481 = vpop.f32.mrb[0].mxu0
        %v7482 = vadd.f32 0.0, %v7481
        %v7483 = vpop.f32.mrb[0].mxu0
        %v7484 = vpop.f32.mrb[0].mxu0
        %v7485 = vadd.f32 0.0, %v7484
        %v7486 = vpop.f32.mrb[0].mxu0
        %7487 = vmatprep.mubr.bf16.mxu0 0
        %7488 = vmatmul.mubr.bf16.gmra.mrb[0].mxu0 %v7405
        %v7489 = vpop.f32.mrb[0].mxu0
        %v7490 = vadd.f32 0.0, %v7489
        %v7491 = vpop.f32.mrb[0].mxu0
        %v7492 = vpop.f32.mrb[0].mxu0
        %v7493 = vpop.f32.mrb[0].mxu0
        %7494 = vdwg.mxu0
        %v7495 = vadd.f32 %v7299, %v7442
        %v7496 = vadd.f32 %v7300, %v7445
        %v7497 = vadd.f32 %v7301, %v7450
        %v7498 = vadd.f32 %v7302, %v7453
        %v7499 = vadd.f32 %v7303, %v7458
        %v7500 = vadd.f32 %v7304, %v7461
        %v7501 = vadd.f32 %v7305, %v7466
        %v7502 = vadd.f32 %v7306, %v7469
        %v7503 = vadd.f32 %v7307, %v7474
        %v7504 = vadd.f32 %v7308, %v7477
        %v7505 = vadd.f32 %v7309, %v7482
        %v7506 = vadd.f32 %v7310, %v7485
        %v7507 = vadd.f32 %v7311, %v7490
        %v7508 = vld [vmem:[#allocation3 + $0x4] sm:$0x8]
        %v7509 = vld [vmem:[#allocation3 + $0x8] sm:$0xf]
        %v7510 = vld [vmem:[#allocation3 + $0xc] sm:$0xf]
        %v7511 = vld [vmem:[#allocation3 + $0x10] sm:$0xf]
        %v7512 = vld [vmem:[#allocation3 + $0x14] sm:$0xf]
        %v7513 = vld [vmem:[#allocation3 + $0x18] sm:$0xf]
        %v7514 = vld [vmem:[#allocation3 + $0x1c] sm:$0xf]
        %v7515 = vld [vmem:[#allocation3 + $0x20] sm:$0xf]
        %v7516 = vld [vmem:[#allocation3 + $0x24] sm:$0xf]
        %v7517 = vld [vmem:[#allocation3 + $0x28] sm:$0xf]
        %v7518 = vld [vmem:[#allocation3 + $0x2c] sm:$0xf]
        %v7519 = vld [vmem:[#allocation3 + $0x30] sm:$0xf]
        %v7520 = vld [vmem:[#allocation3 + $0x34] sm:$0xf]
        %v7521 = vld [vmem:[#allocation3 + $0x38] sm:$0xf]
        %s7522 = scalar_lea.vmem [#allocation16], 96
        %v7523 = vld [vmem:[%s7522] sm:$0xf]
        %v7524 = vld [vmem:[%s7522 + $0x4] sm:$0xf]
        %v7525 = vld [vmem:[%s7522 + $0x8] sm:$0xf]
        %v7526 = vld [vmem:[%s7522 + $0xc] sm:$0xf]
        %v7527 = vld [vmem:[%s7522 + $0x10] sm:$0xf]
        %v7528 = vld [vmem:[%s7522 + $0x14] sm:$0xf]
        %v7529 = vld [vmem:[%s7522 + $0x18] sm:$0xf]
        %v7530 = vld [vmem:[%s7522 + $0x1c] sm:$0xf]
        %v7545 = vunpack.c.l.b16 %v7508
        %v7546 = vunpack.c.l.b16 %v7509
        %v7547 = vunpack.c.l.b16 %v7510
        %v7548 = vunpack.c.l.b16 %v7511
        %v7549 = vunpack.c.l.b16 %v7512
        %v7550 = vunpack.c.l.b16 %v7513
        %v7551 = vunpack.c.l.b16 %v7514
        %v7552 = vunpack.c.l.b16 %v7515
        %v7553 = vunpack.c.l.b16 %v7516
        %v7554 = vunpack.c.l.b16 %v7517
        %v7555 = vunpack.c.l.b16 %v7518
        %v7556 = vunpack.c.l.b16 %v7519
        %v7557 = vunpack.c.l.b16 %v7520
        %v7558 = vunpack.c.l.b16 %v7521
        %v7559 = vpack.c.b16 %v7546, %v7545
        %v7560 = vpack.c.b16 %v7548, %v7547
        %v7561 = vpack.c.b16 %v7550, %v7549
        %v7562 = vpack.c.b16 %v7552, %v7551
        %v7563 = vpack.c.b16 %v7554, %v7553
        %v7564 = vpack.c.b16 %v7556, %v7555
        %v7565 = vpack.c.b16 %v7558, %v7557
        %v7567 = vshrl.u32 %v7559, 16
        %v7569 = vrot.slane %v7567, 3
        %v7570 = vshll.u32 %v7559, 16
        %v7572 = vrot.slane %v7570, 4
        %v7573 = vor.u32 %v7569, %v7572
        %v7575 = vshrl.u32 %v7560, 16
        %v7577 = vrot.slane %v7575, 3
        %v7578 = vshll.u32 %v7560, 16
        %v7580 = vrot.slane %v7578, 4
        %v7581 = vor.u32 %v7577, %v7580
        %v7582 = vsel %vm1047, %v7573, %v7581
        %v7584 = vshrl.u32 %v7561, 16
        %v7586 = vrot.slane %v7584, 3
        %v7587 = vshll.u32 %v7561, 16
        %v7589 = vrot.slane %v7587, 4
        %v7590 = vor.u32 %v7586, %v7589
        %v7591 = vsel %vm1047, %v7581, %v7590
        %v7593 = vshrl.u32 %v7562, 16
        %v7595 = vrot.slane %v7593, 3
        %v7596 = vshll.u32 %v7562, 16
        %v7598 = vrot.slane %v7596, 4
        %v7599 = vor.u32 %v7595, %v7598
        %v7600 = vsel %vm1047, %v7590, %v7599
        %v7602 = vshrl.u32 %v7563, 16
        %v7604 = vrot.slane %v7602, 3
        %v7605 = vshll.u32 %v7563, 16
        %v7607 = vrot.slane %v7605, 4
        %v7608 = vor.u32 %v7604, %v7607
        %v7609 = vsel %vm1047, %v7599, %v7608
        %v7611 = vshrl.u32 %v7564, 16
        %v7613 = vrot.slane %v7611, 3
        %v7614 = vshll.u32 %v7564, 16
        %v7616 = vrot.slane %v7614, 4
        %v7617 = vor.u32 %v7613, %v7616
        %v7618 = vsel %vm1047, %v7608, %v7617
        %v7620 = vshrl.u32 %v7565, 16
        %v7622 = vrot.slane %v7620, 3
        %v7623 = vshll.u32 %v7565, 16
        %v7625 = vrot.slane %v7623, 4
        %v7626 = vor.u32 %v7622, %v7625
        %v7627 = vsel %vm1047, %v7617, %v7626
        %v7636 = vunpack.c.l.b16 %v7523
        %v7637 = vunpack.c.l.b16 %v7524
        %v7638 = vunpack.c.l.b16 %v7525
        %v7639 = vunpack.c.l.b16 %v7526
        %v7640 = vunpack.c.l.b16 %v7527
        %v7641 = vunpack.c.l.b16 %v7528
        %v7642 = vunpack.c.l.b16 %v7529
        %v7643 = vunpack.c.l.b16 %v7530
        %v7644 = vpack.c.b16 %v7637, %v7636
        %v7645 = vpack.c.b16 %v7639, %v7638
        %v7646 = vpack.c.b16 %v7641, %v7640
        %v7647 = vpack.c.b16 %v7643, %v7642
        %v7653 = vsel %vm589, %v7582, 0
        %v7656 = vsel %vm589, %v7591, 0
        %v7659 = vsel %vm589, %v7600, 0
        %v7662 = vsel %vm589, %v7609, 0
        %v7665 = vsel %vm589, %v7618, 0
        %v7668 = vsel %vm589, %v7627, 0
        %v7671 = vsel %vm589, %v7626, 0
        %7673 = vmatprep.subr.bf16.mxu0 0
        %7674 = vmatpush1.bf16.msra.mxu0 %v7644
        %7675 = vmatprep.subr.bf16.mxu0 0
        %7676 = vmatpush1.bf16.msra.mxu0 %v7645
        %7677 = vmatprep.subr.bf16.mxu0 0
        %7678 = vmatpush1.bf16.msra.mxu0 %v7646
        %7679 = vmatprep.subr.bf16.mxu0 0
        %7680 = vmatpush1.bf16.msra.mxu0 %v7647
        %7681 = vmatprep.subr.bf16.mxu0 0
        %7682 = vmatpush1.bf16.msra.mxu0 0
        %7683 = vmatprep.subr.bf16.mxu0 0
        %7684 = vmatpush1.bf16.msra.mxu0 0
        %7685 = vmatprep.subr.bf16.mxu0 0
        %7686 = vmatpush1.bf16.msra.mxu0 0
        %7687 = vmatprep.subr.bf16.mxu0 0
        %7688 = vmatpush1.bf16.msra.mxu0 0
        %7689 = vmatprep.subr.bf16.mxu0 0
        %7690 = vmatpush1.bf16.msra.mxu0 0
        %7691 = vmatprep.subr.bf16.mxu0 0
        %7692 = vmatpush1.bf16.msra.mxu0 0
        %7693 = vmatprep.subr.bf16.mxu0 0
        %7694 = vmatpush1.bf16.msra.mxu0 0
        %7695 = vmatprep.subr.bf16.mxu0 0
        %7696 = vmatpush1.bf16.msra.mxu0 0
        %7697 = vmatprep.subr.bf16.mxu0 0
        %7698 = vmatpush1.bf16.msra.mxu0 0
        %7699 = vmatprep.subr.bf16.mxu0 0
        %7700 = vmatpush1.bf16.msra.mxu0 0
        %7701 = vmatprep.subr.bf16.mxu0 0
        %7702 = vmatpush1.bf16.msra.mxu0 0
        %7703 = vmatprep.subr.bf16.mxu0 0
        %7704 = vmatpush1.bf16.msra.mxu0 0
        %7705 = vmatprep.mubr.bf16.mxu0 0
        %7706 = vmatmul.mubr.bf16.gmra.mrb[0].mxu0 %v7653
        %v7707 = vpop.f32.mrb[0].mxu0
        %v7708 = vadd.f32 0.0, %v7707
        %v7709 = vpop.f32.mrb[0].mxu0
        %v7710 = vpop.f32.mrb[0].mxu0
        %v7711 = vadd.f32 0.0, %v7710
        %v7712 = vpop.f32.mrb[0].mxu0
        %7713 = vmatprep.mubr.bf16.mxu0 0
        %7714 = vmatmul.mubr.bf16.gmra.mrb[0].mxu0 %v7656
        %v7715 = vpop.f32.mrb[0].mxu0
        %v7716 = vadd.f32 0.0, %v7715
        %v7717 = vpop.f32.mrb[0].mxu0
        %v7718 = vpop.f32.mrb[0].mxu0
        %v7719 = vadd.f32 0.0, %v7718
        %v7720 = vpop.f32.mrb[0].mxu0
        %7721 = vmatprep.mubr.bf16.mxu0 0
        %7722 = vmatmul.mubr.bf16.gmra.mrb[0].mxu0 %v7659
        %v7723 = vpop.f32.mrb[0].mxu0
        %v7724 = vadd.f32 0.0, %v7723
        %v7725 = vpop.f32.mrb[0].mxu0
        %v7726 = vpop.f32.mrb[0].mxu0
        %v7727 = vadd.f32 0.0, %v7726
        %v7728 = vpop.f32.mrb[0].mxu0
        %7729 = vmatprep.mubr.bf16.mxu0 0
        %7730 = vmatmul.mubr.bf16.gmra.mrb[0].mxu0 %v7662
        %v7731 = vpop.f32.mrb[0].mxu0
        %v7732 = vadd.f32 0.0, %v7731
        %v7733 = vpop.f32.mrb[0].mxu0
        %v7734 = vpop.f32.mrb[0].mxu0
        %v7735 = vadd.f32 0.0, %v7734
        %v7736 = vpop.f32.mrb[0].mxu0
        %7737 = vmatprep.mubr.bf16.mxu0 0
        %7738 = vmatmul.mubr.bf16.gmra.mrb[0].mxu0 %v7665
        %v7739 = vpop.f32.mrb[0].mxu0
        %v7740 = vadd.f32 0.0, %v7739
        %v7741 = vpop.f32.mrb[0].mxu0
        %v7742 = vpop.f32.mrb[0].mxu0
        %v7743 = vadd.f32 0.0, %v7742
        %v7744 = vpop.f32.mrb[0].mxu0
        %7745 = vmatprep.mubr.bf16.mxu0 0
        %7746 = vmatmul.mubr.bf16.gmra.mrb[0].mxu0 %v7668
        %v7747 = vpop.f32.mrb[0].mxu0
        %v7748 = vadd.f32 0.0, %v7747
        %v7749 = vpop.f32.mrb[0].mxu0
        %v7750 = vpop.f32.mrb[0].mxu0
        %v7751 = vadd.f32 0.0, %v7750
        %v7752 = vpop.f32.mrb[0].mxu0
        %7753 = vmatprep.mubr.bf16.mxu0 0
        %7754 = vmatmul.mubr.bf16.gmra.mrb[0].mxu0 %v7671
        %v7755 = vpop.f32.mrb[0].mxu0
        %v7756 = vadd.f32 0.0, %v7755
        %v7757 = vpop.f32.mrb[0].mxu0
        %v7758 = vpop.f32.mrb[0].mxu0
        %v7759 = vpop.f32.mrb[0].mxu0
        %7760 = vdwg.mxu0
        %v7761 = vadd.f32 %v7495, %v7708
        %v7762 = vadd.f32 %v7496, %v7711
        %v7763 = vadd.f32 %v7497, %v7716
        %v7764 = vadd.f32 %v7498, %v7719
        %v7765 = vadd.f32 %v7499, %v7724
        %v7766 = vadd.f32 %v7500, %v7727
        %v7767 = vadd.f32 %v7501, %v7732
        %v7768 = vadd.f32 %v7502, %v7735
        %v7769 = vadd.f32 %v7503, %v7740
        %v7770 = vadd.f32 %v7504, %v7743
        %v7771 = vadd.f32 %v7505, %v7748
        %v7772 = vadd.f32 %v7506, %v7751
        %v7773 = vadd.f32 %v7507, %v7756
        %s7774 = scalar_lea.vmem [#allocation16], 128
        %v7775 = vld [vmem:[%s7774] sm:$0xf]
        %v7776 = vld [vmem:[%s7774 + $0x4] sm:$0xf]
        %v7777 = vld [vmem:[%s7774 + $0x8] sm:$0xf]
        %v7778 = vld [vmem:[%s7774 + $0xc] sm:$0xf]
        %v7779 = vld [vmem:[%s7774 + $0x10] sm:$0xf]
        %v7780 = vld [vmem:[%s7774 + $0x14] sm:$0xf]
        %v7781 = vld [vmem:[%s7774 + $0x18] sm:$0xf]
        %v7782 = vld [vmem:[%s7774 + $0x1c] sm:$0xf]
        %v7783 = vpack.c.b16 %v7547, %v7546
        %v7784 = vpack.c.b16 %v7549, %v7548
        %v7785 = vpack.c.b16 %v7551, %v7550
        %v7786 = vpack.c.b16 %v7553, %v7552
        %v7787 = vpack.c.b16 %v7555, %v7554
        %v7788 = vpack.c.b16 %v7557, %v7556
        %v7789 = vpack.c.b16 %v7558, %v7558
        %v7798 = vunpack.c.l.b16 %v7775
        %v7799 = vunpack.c.l.b16 %v7776
        %v7800 = vunpack.c.l.b16 %v7777
        %v7801 = vunpack.c.l.b16 %v7778
        %v7802 = vunpack.c.l.b16 %v7779
        %v7803 = vunpack.c.l.b16 %v7780
        %v7804 = vunpack.c.l.b16 %v7781
        %v7805 = vunpack.c.l.b16 %v7782
        %v7806 = vpack.c.b16 %v7799, %v7798
        %v7807 = vpack.c.b16 %v7801, %v7800
        %v7808 = vpack.c.b16 %v7803, %v7802
        %v7809 = vpack.c.b16 %v7805, %v7804
        %v7815 = vsel %vm589, %v7783, 0
        %v7818 = vsel %vm589, %v7784, 0
        %v7821 = vsel %vm589, %v7785, 0
        %v7824 = vsel %vm589, %v7786, 0
        %v7827 = vsel %vm589, %v7787, 0
        %v7830 = vsel %vm589, %v7788, 0
        %v7833 = vsel %vm589, %v7789, 0
        %7835 = vmatprep.subr.bf16.mxu0 0
        %7836 = vmatpush1.bf16.msra.mxu0 %v7806
        %7837 = vmatprep.subr.bf16.mxu0 0
        %7838 = vmatpush1.bf16.msra.mxu0 %v7807
        %7839 = vmatprep.subr.bf16.mxu0 0
        %7840 = vmatpush1.bf16.msra.mxu0 %v7808
        %7841 = vmatprep.subr.bf16.mxu0 0
        %7842 = vmatpush1.bf16.msra.mxu0 %v7809
        %7843 = vmatprep.subr.bf16.mxu0 0
        %7844 = vmatpush1.bf16.msra.mxu0 0
        %7845 = vmatprep.subr.bf16.mxu0 0
        %7846 = vmatpush1.bf16.msra.mxu0 0
        %7847 = vmatprep.subr.bf16.mxu0 0
        %7848 = vmatpush1.bf16.msra.mxu0 0
        %7849 = vmatprep.subr.bf16.mxu0 0
        %7850 = vmatpush1.bf16.msra.mxu0 0
        %7851 = vmatprep.subr.bf16.mxu0 0
        %7852 = vmatpush1.bf16.msra.mxu0 0
        %7853 = vmatprep.subr.bf16.mxu0 0
        %7854 = vmatpush1.bf16.msra.mxu0 0
        %7855 = vmatprep.subr.bf16.mxu0 0
        %7856 = vmatpush1.bf16.msra.mxu0 0
        %7857 = vmatprep.subr.bf16.mxu0 0
        %7858 = vmatpush1.bf16.msra.mxu0 0
        %7859 = vmatprep.subr.bf16.mxu0 0
        %7860 = vmatpush1.bf16.msra.mxu0 0
        %7861 = vmatprep.subr.bf16.mxu0 0
        %7862 = vmatpush1.bf16.msra.mxu0 0
        %7863 = vmatprep.subr.bf16.mxu0 0
        %7864 = vmatpush1.bf16.msra.mxu0 0
        %7865 = vmatprep.subr.bf16.mxu0 0
        %7866 = vmatpush1.bf16.msra.mxu0 0
        %7867 = vmatprep.mubr.bf16.mxu0 0
        %7868 = vmatmul.mubr.bf16.gmra.mrb[0].mxu0 %v7815
        %v7869 = vpop.f32.mrb[0].mxu0
        %v7870 = vadd.f32 0.0, %v7869
        %v7871 = vpop.f32.mrb[0].mxu0
        %v7872 = vpop.f32.mrb[0].mxu0
        %v7873 = vadd.f32 0.0, %v7872
        %v7874 = vpop.f32.mrb[0].mxu0
        %7875 = vmatprep.mubr.bf16.mxu0 0
        %7876 = vmatmul.mubr.bf16.gmra.mrb[0].mxu0 %v7818
        %v7877 = vpop.f32.mrb[0].mxu0
        %v7878 = vadd.f32 0.0, %v7877
        %v7879 = vpop.f32.mrb[0].mxu0
        %v7880 = vpop.f32.mrb[0].mxu0
        %v7881 = vadd.f32 0.0, %v7880
        %v7882 = vpop.f32.mrb[0].mxu0
        %7883 = vmatprep.mubr.bf16.mxu0 0
        %7884 = vmatmul.mubr.bf16.gmra.mrb[0].mxu0 %v7821
        %v7885 = vpop.f32.mrb[0].mxu0
        %v7886 = vadd.f32 0.0, %v7885
        %v7887 = vpop.f32.mrb[0].mxu0
        %v7888 = vpop.f32.mrb[0].mxu0
        %v7889 = vadd.f32 0.0, %v7888
        %v7890 = vpop.f32.mrb[0].mxu0
        %7891 = vmatprep.mubr.bf16.mxu0 0
        %7892 = vmatmul.mubr.bf16.gmra.mrb[0].mxu0 %v7824
        %v7893 = vpop.f32.mrb[0].mxu0
        %v7894 = vadd.f32 0.0, %v7893
        %v7895 = vpop.f32.mrb[0].mxu0
        %v7896 = vpop.f32.mrb[0].mxu0
        %v7897 = vadd.f32 0.0, %v7896
        %v7898 = vpop.f32.mrb[0].mxu0
        %7899 = vmatprep.mubr.bf16.mxu0 0
        %7900 = vmatmul.mubr.bf16.gmra.mrb[0].mxu0 %v7827
        %v7901 = vpop.f32.mrb[0].mxu0
        %v7902 = vadd.f32 0.0, %v7901
        %v7903 = vpop.f32.mrb[0].mxu0
        %v7904 = vpop.f32.mrb[0].mxu0
        %v7905 = vadd.f32 0.0, %v7904
        %v7906 = vpop.f32.mrb[0].mxu0
        %7907 = vmatprep.mubr.bf16.mxu0 0
        %7908 = vmatmul.mubr.bf16.gmra.mrb[0].mxu0 %v7830
        %v7909 = vpop.f32.mrb[0].mxu0
        %v7910 = vadd.f32 0.0, %v7909
        %v7911 = vpop.f32.mrb[0].mxu0
        %v7912 = vpop.f32.mrb[0].mxu0
        %v7913 = vadd.f32 0.0, %v7912
        %v7914 = vpop.f32.mrb[0].mxu0
        %7915 = vmatprep.mubr.bf16.mxu0 0
        %7916 = vmatmul.mubr.bf16.gmra.mrb[0].mxu0 %v7833
        %v7917 = vpop.f32.mrb[0].mxu0
        %v7918 = vadd.f32 0.0, %v7917
        %v7919 = vpop.f32.mrb[0].mxu0
        %v7920 = vpop.f32.mrb[0].mxu0
        %v7921 = vpop.f32.mrb[0].mxu0
        %7922 = vdwg.mxu0
        %v7923 = vadd.f32 %v7761, %v7870
        %v7924 = vadd.f32 %v7762, %v7873
        %v7925 = vadd.f32 %v7763, %v7878
        %v7926 = vadd.f32 %v7764, %v7881
        %v7927 = vadd.f32 %v7765, %v7886
        %v7928 = vadd.f32 %v7766, %v7889
        %v7929 = vadd.f32 %v7767, %v7894
        %v7930 = vadd.f32 %v7768, %v7897
        %v7931 = vadd.f32 %v7769, %v7902
        %v7932 = vadd.f32 %v7770, %v7905
        %v7933 = vadd.f32 %v7771, %v7910
        %v7934 = vadd.f32 %v7772, %v7913
        %v7935 = vadd.f32 %v7773, %v7918
        %v7936 = vld [vmem:[#allocation3 + $0x8] sm:$0xf]
        %v7937 = vld [vmem:[#allocation3 + $0xc] sm:$0xf]
        %v7938 = vld [vmem:[#allocation3 + $0x10] sm:$0xf]
        %v7939 = vld [vmem:[#allocation3 + $0x14] sm:$0xf]
        %v7940 = vld [vmem:[#allocation3 + $0x18] sm:$0xf]
        %v7941 = vld [vmem:[#allocation3 + $0x1c] sm:$0xf]
        %v7942 = vld [vmem:[#allocation3 + $0x20] sm:$0xf]
        %v7943 = vld [vmem:[#allocation3 + $0x24] sm:$0xf]
        %v7944 = vld [vmem:[#allocation3 + $0x28] sm:$0xf]
        %v7945 = vld [vmem:[#allocation3 + $0x2c] sm:$0xf]
        %v7946 = vld [vmem:[#allocation3 + $0x30] sm:$0xf]
        %v7947 = vld [vmem:[#allocation3 + $0x34] sm:$0xf]
        %v7948 = vld [vmem:[#allocation3 + $0x38] sm:$0xf]
        %v7949 = vld [vmem:[#allocation3 + $0x3c] sm:$0x1]
        %s7950 = scalar_lea.vmem [#allocation16], 160
        %v7951 = vld [vmem:[%s7950] sm:$0xf]
        %v7952 = vld [vmem:[%s7950 + $0x4] sm:$0xf]
        %v7953 = vld [vmem:[%s7950 + $0x8] sm:$0xf]
        %v7954 = vld [vmem:[%s7950 + $0xc] sm:$0xf]
        %v7955 = vld [vmem:[%s7950 + $0x10] sm:$0xf]
        %v7956 = vld [vmem:[%s7950 + $0x14] sm:$0xf]
        %v7957 = vld [vmem:[%s7950 + $0x18] sm:$0xf]
        %v7958 = vld [vmem:[%s7950 + $0x1c] sm:$0xf]
        %v7973 = vunpack.c.l.b16 %v7936
        %v7974 = vunpack.c.l.b16 %v7937
        %v7975 = vunpack.c.l.b16 %v7938
        %v7976 = vunpack.c.l.b16 %v7939
        %v7977 = vunpack.c.l.b16 %v7940
        %v7978 = vunpack.c.l.b16 %v7941
        %v7979 = vunpack.c.l.b16 %v7942
        %v7980 = vunpack.c.l.b16 %v7943
        %v7981 = vunpack.c.l.b16 %v7944
        %v7982 = vunpack.c.l.b16 %v7945
        %v7983 = vunpack.c.l.b16 %v7946
        %v7984 = vunpack.c.l.b16 %v7947
        %v7985 = vunpack.c.l.b16 %v7948
        %v7986 = vunpack.c.l.b16 %v7949
        %v7987 = vpack.c.b16 %v7974, %v7973
        %v7988 = vpack.c.b16 %v7976, %v7975
        %v7989 = vpack.c.b16 %v7978, %v7977
        %v7990 = vpack.c.b16 %v7980, %v7979
        %v7991 = vpack.c.b16 %v7982, %v7981
        %v7992 = vpack.c.b16 %v7984, %v7983
        %v7993 = vpack.c.b16 %v7986, %v7985
        %v7995 = vshrl.u32 %v7987, 16
        %v7997 = vshll.u32 %v7987, 16
        %v7999 = vrot.slane %v7997, 1
        %v8000 = vor.u32 %v7995, %v7999
        %v8002 = vshll.u32 %v7988, 16
        %v8004 = vrot.slane %v8002, 1
        %v8005 = vsel %vm1666, %v8000, %v8004
        %v8006 = vshrl.u32 %v7988, 16
        %v8008 = vor.u32 %v8006, %v8004
        %v8010 = vshll.u32 %v7989, 16
        %v8012 = vrot.slane %v8010, 1
        %v8013 = vsel %vm1666, %v8008, %v8012
        %v8014 = vshrl.u32 %v7989, 16
        %v8016 = vor.u32 %v8014, %v8012
        %v8018 = vshll.u32 %v7990, 16
        %v8020 = vrot.slane %v8018, 1
        %v8021 = vsel %vm1666, %v8016, %v8020
        %v8022 = vshrl.u32 %v7990, 16
        %v8024 = vor.u32 %v8022, %v8020
        %v8026 = vshll.u32 %v7991, 16
        %v8028 = vrot.slane %v8026, 1
        %v8029 = vsel %vm1666, %v8024, %v8028
        %v8030 = vshrl.u32 %v7991, 16
        %v8032 = vor.u32 %v8030, %v8028
        %v8034 = vshll.u32 %v7992, 16
        %v8036 = vrot.slane %v8034, 1
        %v8037 = vsel %vm1666, %v8032, %v8036
        %v8038 = vshrl.u32 %v7992, 16
        %v8040 = vor.u32 %v8038, %v8036
        %v8042 = vshll.u32 %v7993, 16
        %v8044 = vrot.slane %v8042, 1
        %v8045 = vsel %vm1666, %v8040, %v8044
        %v8046 = vshrl.u32 %v7993, 16
        %v8048 = vor.u32 %v8046, %v8044
        %v8057 = vunpack.c.l.b16 %v7951
        %v8058 = vunpack.c.l.b16 %v7952
        %v8059 = vunpack.c.l.b16 %v7953
        %v8060 = vunpack.c.l.b16 %v7954
        %v8061 = vunpack.c.l.b16 %v7955
        %v8062 = vunpack.c.l.b16 %v7956
        %v8063 = vunpack.c.l.b16 %v7957
        %v8064 = vunpack.c.l.b16 %v7958
        %v8065 = vpack.c.b16 %v8058, %v8057
        %v8066 = vpack.c.b16 %v8060, %v8059
        %v8067 = vpack.c.b16 %v8062, %v8061
        %v8068 = vpack.c.b16 %v8064, %v8063
        %v8074 = vsel %vm589, %v8005, 0
        %v8077 = vsel %vm589, %v8013, 0
        %v8080 = vsel %vm589, %v8021, 0
        %v8083 = vsel %vm589, %v8029, 0
        %v8086 = vsel %vm589, %v8037, 0
        %v8089 = vsel %vm589, %v8045, 0
        %v8092 = vsel %vm589, %v8048, 0
        %8094 = vmatprep.subr.bf16.mxu0 0
        %8095 = vmatpush1.bf16.msra.mxu0 %v8065
        %8096 = vmatprep.subr.bf16.mxu0 0
        %8097 = vmatpush1.bf16.msra.mxu0 %v8066
        %8098 = vmatprep.subr.bf16.mxu0 0
        %8099 = vmatpush1.bf16.msra.mxu0 %v8067
        %8100 = vmatprep.subr.bf16.mxu0 0
        %8101 = vmatpush1.bf16.msra.mxu0 %v8068
        %8102 = vmatprep.subr.bf16.mxu0 0
        %8103 = vmatpush1.bf16.msra.mxu0 0
        %8104 = vmatprep.subr.bf16.mxu0 0
        %8105 = vmatpush1.bf16.msra.mxu0 0
        %8106 = vmatprep.subr.bf16.mxu0 0
        %8107 = vmatpush1.bf16.msra.mxu0 0
        %8108 = vmatprep.subr.bf16.mxu0 0
        %8109 = vmatpush1.bf16.msra.mxu0 0
        %8110 = vmatprep.subr.bf16.mxu0 0
        %8111 = vmatpush1.bf16.msra.mxu0 0
        %8112 = vmatprep.subr.bf16.mxu0 0
        %8113 = vmatpush1.bf16.msra.mxu0 0
        %8114 = vmatprep.subr.bf16.mxu0 0
        %8115 = vmatpush1.bf16.msra.mxu0 0
        %8116 = vmatprep.subr.bf16.mxu0 0
        %8117 = vmatpush1.bf16.msra.mxu0 0
        %8118 = vmatprep.subr.bf16.mxu0 0
        %8119 = vmatpush1.bf16.msra.mxu0 0
        %8120 = vmatprep.subr.bf16.mxu0 0
        %8121 = vmatpush1.bf16.msra.mxu0 0
        %8122 = vmatprep.subr.bf16.mxu0 0
        %8123 = vmatpush1.bf16.msra.mxu0 0
        %8124 = vmatprep.subr.bf16.mxu0 0
        %8125 = vmatpush1.bf16.msra.mxu0 0
        %8126 = vmatprep.mubr.bf16.mxu0 0
        %8127 = vmatmul.mubr.bf16.gmra.mrb[0].mxu0 %v8074
        %v8128 = vpop.f32.mrb[0].mxu0
        %v8129 = vadd.f32 0.0, %v8128
        %v8130 = vpop.f32.mrb[0].mxu0
        %v8131 = vpop.f32.mrb[0].mxu0
        %v8132 = vadd.f32 0.0, %v8131
        %v8133 = vpop.f32.mrb[0].mxu0
        %8134 = vmatprep.mubr.bf16.mxu0 0
        %8135 = vmatmul.mubr.bf16.gmra.mrb[0].mxu0 %v8077
        %v8136 = vpop.f32.mrb[0].mxu0
        %v8137 = vadd.f32 0.0, %v8136
        %v8138 = vpop.f32.mrb[0].mxu0
        %v8139 = vpop.f32.mrb[0].mxu0
        %v8140 = vadd.f32 0.0, %v8139
        %v8141 = vpop.f32.mrb[0].mxu0
        %8142 = vmatprep.mubr.bf16.mxu0 0
        %8143 = vmatmul.mubr.bf16.gmra.mrb[0].mxu0 %v8080
        %v8144 = vpop.f32.mrb[0].mxu0
        %v8145 = vadd.f32 0.0, %v8144
        %v8146 = vpop.f32.mrb[0].mxu0
        %v8147 = vpop.f32.mrb[0].mxu0
        %v8148 = vadd.f32 0.0, %v8147
        %v8149 = vpop.f32.mrb[0].mxu0
        %8150 = vmatprep.mubr.bf16.mxu0 0
        %8151 = vmatmul.mubr.bf16.gmra.mrb[0].mxu0 %v8083
        %v8152 = vpop.f32.mrb[0].mxu0
        %v8153 = vadd.f32 0.0, %v8152
        %v8154 = vpop.f32.mrb[0].mxu0
        %v8155 = vpop.f32.mrb[0].mxu0
        %v8156 = vadd.f32 0.0, %v8155
        %v8157 = vpop.f32.mrb[0].mxu0
        %8158 = vmatprep.mubr.bf16.mxu0 0
        %8159 = vmatmul.mubr.bf16.gmra.mrb[0].mxu0 %v8086
        %v8160 = vpop.f32.mrb[0].mxu0
        %v8161 = vadd.f32 0.0, %v8160
        %v8162 = vpop.f32.mrb[0].mxu0
        %v8163 = vpop.f32.mrb[0].mxu0
        %v8164 = vadd.f32 0.0, %v8163
        %v8165 = vpop.f32.mrb[0].mxu0
        %8166 = vmatprep.mubr.bf16.mxu0 0
        %8167 = vmatmul.mubr.bf16.gmra.mrb[0].mxu0 %v8089
        %v8168 = vpop.f32.mrb[0].mxu0
        %v8169 = vadd.f32 0.0, %v8168
        %v8170 = vpop.f32.mrb[0].mxu0
        %v8171 = vpop.f32.mrb[0].mxu0
        %v8172 = vadd.f32 0.0, %v8171
        %v8173 = vpop.f32.mrb[0].mxu0
        %8174 = vmatprep.mubr.bf16.mxu0 0
        %8175 = vmatmul.mubr.bf16.gmra.mrb[0].mxu0 %v8092
        %v8176 = vpop.f32.mrb[0].mxu0
        %v8177 = vadd.f32 0.0, %v8176
        %v8178 = vpop.f32.mrb[0].mxu0
        %v8179 = vpop.f32.mrb[0].mxu0
        %v8180 = vpop.f32.mrb[0].mxu0
        %8181 = vdwg.mxu0
        %v8182 = vadd.f32 %v7923, %v8129
        %v8183 = vadd.f32 %v7924, %v8132
        %v8184 = vadd.f32 %v7925, %v8137
        %v8185 = vadd.f32 %v7926, %v8140
        %v8186 = vadd.f32 %v7927, %v8145
        %v8187 = vadd.f32 %v7928, %v8148
        %v8188 = vadd.f32 %v7929, %v8153
        %v8189 = vadd.f32 %v7930, %v8156
        %v8190 = vadd.f32 %v7931, %v8161
        %v8191 = vadd.f32 %v7932, %v8164
        %v8192 = vadd.f32 %v7933, %v8169
        %v8193 = vadd.f32 %v7934, %v8172
        %v8194 = vadd.f32 %v7935, %v8177
        %v8195 = vld [vmem:[#allocation3 + $0xc] sm:$0xf]
        %v8196 = vld [vmem:[#allocation3 + $0x10] sm:$0xf]
        %v8197 = vld [vmem:[#allocation3 + $0x14] sm:$0xf]
        %v8198 = vld [vmem:[#allocation3 + $0x18] sm:$0xf]
        %v8199 = vld [vmem:[#allocation3 + $0x1c] sm:$0xf]
        %v8200 = vld [vmem:[#allocation3 + $0x20] sm:$0xf]
        %v8201 = vld [vmem:[#allocation3 + $0x24] sm:$0xf]
        %v8202 = vld [vmem:[#allocation3 + $0x28] sm:$0xf]
        %v8203 = vld [vmem:[#allocation3 + $0x2c] sm:$0xf]
        %v8204 = vld [vmem:[#allocation3 + $0x30] sm:$0xf]
        %v8205 = vld [vmem:[#allocation3 + $0x34] sm:$0xf]
        %v8206 = vld [vmem:[#allocation3 + $0x38] sm:$0xf]
        %v8207 = vld [vmem:[#allocation3 + $0x3c] sm:$0xf]
        %v8208 = vld [vmem:[#allocation3 + $0x40] sm:$0x1]
        %s8209 = scalar_lea.vmem [#allocation16], 192
        %v8210 = vld [vmem:[%s8209] sm:$0xf]
        %v8211 = vld [vmem:[%s8209 + $0x4] sm:$0xf]
        %v8212 = vld [vmem:[%s8209 + $0x8] sm:$0xf]
        %v8213 = vld [vmem:[%s8209 + $0xc] sm:$0xf]
        %v8214 = vld [vmem:[%s8209 + $0x10] sm:$0xf]
        %v8215 = vld [vmem:[%s8209 + $0x14] sm:$0xf]
        %v8216 = vld [vmem:[%s8209 + $0x18] sm:$0xf]
        %v8217 = vld [vmem:[%s8209 + $0x1c] sm:$0xf]
        %v8232 = vunpack.c.l.b16 %v8195
        %v8233 = vunpack.c.l.b16 %v8196
        %v8234 = vunpack.c.l.b16 %v8197
        %v8235 = vunpack.c.l.b16 %v8198
        %v8236 = vunpack.c.l.b16 %v8199
        %v8237 = vunpack.c.l.b16 %v8200
        %v8238 = vunpack.c.l.b16 %v8201
        %v8239 = vunpack.c.l.b16 %v8202
        %v8240 = vunpack.c.l.b16 %v8203
        %v8241 = vunpack.c.l.b16 %v8204
        %v8242 = vunpack.c.l.b16 %v8205
        %v8243 = vunpack.c.l.b16 %v8206
        %v8244 = vunpack.c.l.b16 %v8207
        %v8245 = vunpack.c.l.b16 %v8208
        %v8246 = vpack.c.b16 %v8233, %v8232
        %v8247 = vpack.c.b16 %v8235, %v8234
        %v8248 = vpack.c.b16 %v8237, %v8236
        %v8249 = vpack.c.b16 %v8239, %v8238
        %v8250 = vpack.c.b16 %v8241, %v8240
        %v8251 = vpack.c.b16 %v8243, %v8242
        %v8252 = vpack.c.b16 %v8245, %v8244
        %v8254 = vshrl.u32 %v8246, 16
        %v8256 = vshll.u32 %v8246, 16
        %v8258 = vrot.slane %v8256, 1
        %v8259 = vor.u32 %v8254, %v8258
        %v8261 = vshll.u32 %v8247, 16
        %v8263 = vrot.slane %v8261, 1
        %v8264 = vsel %vm1666, %v8259, %v8263
        %v8265 = vshrl.u32 %v8247, 16
        %v8267 = vor.u32 %v8265, %v8263
        %v8269 = vshll.u32 %v8248, 16
        %v8271 = vrot.slane %v8269, 1
        %v8272 = vsel %vm1666, %v8267, %v8271
        %v8273 = vshrl.u32 %v8248, 16
        %v8275 = vor.u32 %v8273, %v8271
        %v8277 = vshll.u32 %v8249, 16
        %v8279 = vrot.slane %v8277, 1
        %v8280 = vsel %vm1666, %v8275, %v8279
        %v8281 = vshrl.u32 %v8249, 16
        %v8283 = vor.u32 %v8281, %v8279
        %v8285 = vshll.u32 %v8250, 16
        %v8287 = vrot.slane %v8285, 1
        %v8288 = vsel %vm1666, %v8283, %v8287
        %v8289 = vshrl.u32 %v8250, 16
        %v8291 = vor.u32 %v8289, %v8287
        %v8293 = vshll.u32 %v8251, 16
        %v8295 = vrot.slane %v8293, 1
        %v8296 = vsel %vm1666, %v8291, %v8295
        %v8297 = vshrl.u32 %v8251, 16
        %v8299 = vor.u32 %v8297, %v8295
        %v8301 = vshll.u32 %v8252, 16
        %v8303 = vrot.slane %v8301, 1
        %v8304 = vsel %vm1666, %v8299, %v8303
        %v8305 = vshrl.u32 %v8252, 16
        %v8307 = vor.u32 %v8305, %v8303
        %v8316 = vunpack.c.l.b16 %v8210
        %v8317 = vunpack.c.l.b16 %v8211
        %v8318 = vunpack.c.l.b16 %v8212
        %v8319 = vunpack.c.l.b16 %v8213
        %v8320 = vunpack.c.l.b16 %v8214
        %v8321 = vunpack.c.l.b16 %v8215
        %v8322 = vunpack.c.l.b16 %v8216
        %v8323 = vunpack.c.l.b16 %v8217
        %v8324 = vpack.c.b16 %v8317, %v8316
        %v8325 = vpack.c.b16 %v8319, %v8318
        %v8326 = vpack.c.b16 %v8321, %v8320
        %v8327 = vpack.c.b16 %v8323, %v8322
        %v8333 = vsel %vm589, %v8264, 0
        %v8336 = vsel %vm589, %v8272, 0
        %v8339 = vsel %vm589, %v8280, 0
        %v8342 = vsel %vm589, %v8288, 0
        %v8345 = vsel %vm589, %v8296, 0
        %v8348 = vsel %vm589, %v8304, 0
        %v8351 = vsel %vm589, %v8307, 0
        %8353 = vmatprep.subr.bf16.mxu0 0
        %8354 = vmatpush1.bf16.msra.mxu0 %v8324
        %8355 = vmatprep.subr.bf16.mxu0 0
        %8356 = vmatpush1.bf16.msra.mxu0 %v8325
        %8357 = vmatprep.subr.bf16.mxu0 0
        %8358 = vmatpush1.bf16.msra.mxu0 %v8326
        %8359 = vmatprep.subr.bf16.mxu0 0
        %8360 = vmatpush1.bf16.msra.mxu0 %v8327
        %8361 = vmatprep.subr.bf16.mxu0 0
        %8362 = vmatpush1.bf16.msra.mxu0 0
        %8363 = vmatprep.subr.bf16.mxu0 0
        %8364 = vmatpush1.bf16.msra.mxu0 0
        %8365 = vmatprep.subr.bf16.mxu0 0
        %8366 = vmatpush1.bf16.msra.mxu0 0
        %8367 = vmatprep.subr.bf16.mxu0 0
        %8368 = vmatpush1.bf16.msra.mxu0 0
        %8369 = vmatprep.subr.bf16.mxu0 0
        %8370 = vmatpush1.bf16.msra.mxu0 0
        %8371 = vmatprep.subr.bf16.mxu0 0
        %8372 = vmatpush1.bf16.msra.mxu0 0
        %8373 = vmatprep.subr.bf16.mxu0 0
        %8374 = vmatpush1.bf16.msra.mxu0 0
        %8375 = vmatprep.subr.bf16.mxu0 0
        %8376 = vmatpush1.bf16.msra.mxu0 0
        %8377 = vmatprep.subr.bf16.mxu0 0
        %8378 = vmatpush1.bf16.msra.mxu0 0
        %8379 = vmatprep.subr.bf16.mxu0 0
        %8380 = vmatpush1.bf16.msra.mxu0 0
        %8381 = vmatprep.subr.bf16.mxu0 0
        %8382 = vmatpush1.bf16.msra.mxu0 0
        %8383 = vmatprep.subr.bf16.mxu0 0
        %8384 = vmatpush1.bf16.msra.mxu0 0
        %8385 = vmatprep.mubr.bf16.mxu0 0
        %8386 = vmatmul.mubr.bf16.gmra.mrb[0].mxu0 %v8333
        %v8387 = vpop.f32.mrb[0].mxu0
        %v8388 = vadd.f32 0.0, %v8387
        %v8389 = vpop.f32.mrb[0].mxu0
        %v8390 = vpop.f32.mrb[0].mxu0
        %v8391 = vadd.f32 0.0, %v8390
        %v8392 = vpop.f32.mrb[0].mxu0
        %8393 = vmatprep.mubr.bf16.mxu0 0
        %8394 = vmatmul.mubr.bf16.gmra.mrb[0].mxu0 %v8336
        %v8395 = vpop.f32.mrb[0].mxu0
        %v8396 = vadd.f32 0.0, %v8395
        %v8397 = vpop.f32.mrb[0].mxu0
        %v8398 = vpop.f32.mrb[0].mxu0
        %v8399 = vadd.f32 0.0, %v8398
        %v8400 = vpop.f32.mrb[0].mxu0
        %8401 = vmatprep.mubr.bf16.mxu0 0
        %8402 = vmatmul.mubr.bf16.gmra.mrb[0].mxu0 %v8339
        %v8403 = vpop.f32.mrb[0].mxu0
        %v8404 = vadd.f32 0.0, %v8403
        %v8405 = vpop.f32.mrb[0].mxu0
        %v8406 = vpop.f32.mrb[0].mxu0
        %v8407 = vadd.f32 0.0, %v8406
        %v8408 = vpop.f32.mrb[0].mxu0
        %8409 = vmatprep.mubr.bf16.mxu0 0
        %8410 = vmatmul.mubr.bf16.gmra.mrb[0].mxu0 %v8342
        %v8411 = vpop.f32.mrb[0].mxu0
        %v8412 = vadd.f32 0.0, %v8411
        %v8413 = vpop.f32.mrb[0].mxu0
        %v8414 = vpop.f32.mrb[0].mxu0
        %v8415 = vadd.f32 0.0, %v8414
        %v8416 = vpop.f32.mrb[0].mxu0
        %8417 = vmatprep.mubr.bf16.mxu0 0
        %8418 = vmatmul.mubr.bf16.gmra.mrb[0].mxu0 %v8345
        %v8419 = vpop.f32.mrb[0].mxu0
        %v8420 = vadd.f32 0.0, %v8419
        %v8421 = vpop.f32.mrb[0].mxu0
        %v8422 = vpop.f32.mrb[0].mxu0
        %v8423 = vadd.f32 0.0, %v8422
        %v8424 = vpop.f32.mrb[0].mxu0
        %8425 = vmatprep.mubr.bf16.mxu0 0
        %8426 = vmatmul.mubr.bf16.gmra.mrb[0].mxu0 %v8348
        %v8427 = vpop.f32.mrb[0].mxu0
        %v8428 = vadd.f32 0.0, %v8427
        %v8429 = vpop.f32.mrb[0].mxu0
        %v8430 = vpop.f32.mrb[0].mxu0
        %v8431 = vadd.f32 0.0, %v8430
        %v8432 = vpop.f32.mrb[0].mxu0
        %8433 = vmatprep.mubr.bf16.mxu0 0
        %8434 = vmatmul.mubr.bf16.gmra.mrb[0].mxu0 %v8351
        %v8435 = vpop.f32.mrb[0].mxu0
        %v8436 = vadd.f32 0.0, %v8435
        %v8437 = vpop.f32.mrb[0].mxu0
        %v8438 = vpop.f32.mrb[0].mxu0
        %v8439 = vpop.f32.mrb[0].mxu0
        %8440 = vdwg.mxu0
        %v8441 = vadd.f32 %v8182, %v8388
        %v8442 = vadd.f32 %v8183, %v8391
        %v8443 = vadd.f32 %v8184, %v8396
        %v8444 = vadd.f32 %v8185, %v8399
        %v8445 = vadd.f32 %v8186, %v8404
        %v8446 = vadd.f32 %v8187, %v8407
        %v8447 = vadd.f32 %v8188, %v8412
        %v8448 = vadd.f32 %v8189, %v8415
        %v8449 = vadd.f32 %v8190, %v8420
        %v8450 = vadd.f32 %v8191, %v8423
        %v8451 = vadd.f32 %v8192, %v8428
        %v8452 = vadd.f32 %v8193, %v8431
        %v8453 = vadd.f32 %v8194, %v8436
        %v8454 = vld [vmem:[#allocation3 + $0xc] sm:$0xe]
        %s8455 = scalar_lea.vmem [#allocation16], 224
        %v8456 = vld [vmem:[%s8455] sm:$0xf]
        %v8457 = vld [vmem:[%s8455 + $0x4] sm:$0xf]
        %v8458 = vld [vmem:[%s8455 + $0x8] sm:$0xf]
        %v8459 = vld [vmem:[%s8455 + $0xc] sm:$0xf]
        %v8460 = vld [vmem:[%s8455 + $0x10] sm:$0xf]
        %v8461 = vld [vmem:[%s8455 + $0x14] sm:$0xf]
        %v8462 = vld [vmem:[%s8455 + $0x18] sm:$0xf]
        %v8463 = vld [vmem:[%s8455 + $0x1c] sm:$0xf]
        %v8465 = vunpack.c.l.b16 %v8454
        %v8466 = vpack.c.b16 %v8233, %v8465
        %v8467 = vrot.slane %v8466, 1
        %v8468 = vrot.slane %v8247, 1
        %v8469 = vsel %vm2106, %v8467, %v8468
        %v8470 = vrot.slane %v8248, 1
        %v8471 = vsel %vm2106, %v8468, %v8470
        %v8472 = vrot.slane %v8249, 1
        %v8473 = vsel %vm2106, %v8470, %v8472
        %v8474 = vrot.slane %v8250, 1
        %v8475 = vsel %vm2106, %v8472, %v8474
        %v8476 = vrot.slane %v8251, 1
        %v8477 = vsel %vm2106, %v8474, %v8476
        %v8478 = vrot.slane %v8252, 1
        %v8479 = vsel %vm2106, %v8476, %v8478
        %v8488 = vunpack.c.l.b16 %v8456
        %v8489 = vunpack.c.l.b16 %v8457
        %v8490 = vunpack.c.l.b16 %v8458
        %v8491 = vunpack.c.l.b16 %v8459
        %v8492 = vunpack.c.l.b16 %v8460
        %v8493 = vunpack.c.l.b16 %v8461
        %v8494 = vunpack.c.l.b16 %v8462
        %v8495 = vunpack.c.l.b16 %v8463
        %v8496 = vpack.c.b16 %v8489, %v8488
        %v8497 = vpack.c.b16 %v8491, %v8490
        %v8498 = vpack.c.b16 %v8493, %v8492
        %v8499 = vpack.c.b16 %v8495, %v8494
        %v8505 = vsel %vm589, %v8469, 0
        %v8508 = vsel %vm589, %v8471, 0
        %v8511 = vsel %vm589, %v8473, 0
        %v8514 = vsel %vm589, %v8475, 0
        %v8517 = vsel %vm589, %v8477, 0
        %v8520 = vsel %vm589, %v8479, 0
        %v8523 = vsel %vm589, %v8478, 0
        %8525 = vmatprep.subr.bf16.mxu0 0
        %8526 = vmatpush1.bf16.msra.mxu0 %v8496
        %8527 = vmatprep.subr.bf16.mxu0 0
        %8528 = vmatpush1.bf16.msra.mxu0 %v8497
        %8529 = vmatprep.subr.bf16.mxu0 0
        %8530 = vmatpush1.bf16.msra.mxu0 %v8498
        %8531 = vmatprep.subr.bf16.mxu0 0
        %8532 = vmatpush1.bf16.msra.mxu0 %v8499
        %8533 = vmatprep.subr.bf16.mxu0 0
        %8534 = vmatpush1.bf16.msra.mxu0 0
        %8535 = vmatprep.subr.bf16.mxu0 0
        %8536 = vmatpush1.bf16.msra.mxu0 0
        %8537 = vmatprep.subr.bf16.mxu0 0
        %8538 = vmatpush1.bf16.msra.mxu0 0
        %8539 = vmatprep.subr.bf16.mxu0 0
        %8540 = vmatpush1.bf16.msra.mxu0 0
        %8541 = vmatprep.subr.bf16.mxu0 0
        %8542 = vmatpush1.bf16.msra.mxu0 0
        %8543 = vmatprep.subr.bf16.mxu0 0
        %8544 = vmatpush1.bf16.msra.mxu0 0
        %8545 = vmatprep.subr.bf16.mxu0 0
        %8546 = vmatpush1.bf16.msra.mxu0 0
        %8547 = vmatprep.subr.bf16.mxu0 0
        %8548 = vmatpush1.bf16.msra.mxu0 0
        %8549 = vmatprep.subr.bf16.mxu0 0
        %8550 = vmatpush1.bf16.msra.mxu0 0
        %8551 = vmatprep.subr.bf16.mxu0 0
        %8552 = vmatpush1.bf16.msra.mxu0 0
        %8553 = vmatprep.subr.bf16.mxu0 0
        %8554 = vmatpush1.bf16.msra.mxu0 0
        %8555 = vmatprep.subr.bf16.mxu0 0
        %8556 = vmatpush1.bf16.msra.mxu0 0
        %8557 = vmatprep.mubr.bf16.mxu0 0
        %8558 = vmatmul.mubr.bf16.gmra.mrb[0].mxu0 %v8505
        %v8559 = vpop.f32.mrb[0].mxu0
        %v8560 = vadd.f32 0.0, %v8559
        %v8561 = vpop.f32.mrb[0].mxu0
        %v8562 = vpop.f32.mrb[0].mxu0
        %v8563 = vadd.f32 0.0, %v8562
        %v8564 = vpop.f32.mrb[0].mxu0
        %8565 = vmatprep.mubr.bf16.mxu0 0
        %8566 = vmatmul.mubr.bf16.gmra.mrb[0].mxu0 %v8508
        %v8567 = vpop.f32.mrb[0].mxu0
        %v8568 = vadd.f32 0.0, %v8567
        %v8569 = vpop.f32.mrb[0].mxu0
        %v8570 = vpop.f32.mrb[0].mxu0
        %v8571 = vadd.f32 0.0, %v8570
        %v8572 = vpop.f32.mrb[0].mxu0
        %8573 = vmatprep.mubr.bf16.mxu0 0
        %8574 = vmatmul.mubr.bf16.gmra.mrb[0].mxu0 %v8511
        %v8575 = vpop.f32.mrb[0].mxu0
        %v8576 = vadd.f32 0.0, %v8575
        %v8577 = vpop.f32.mrb[0].mxu0
        %v8578 = vpop.f32.mrb[0].mxu0
        %v8579 = vadd.f32 0.0, %v8578
        %v8580 = vpop.f32.mrb[0].mxu0
        %8581 = vmatprep.mubr.bf16.mxu0 0
        %8582 = vmatmul.mubr.bf16.gmra.mrb[0].mxu0 %v8514
        %v8583 = vpop.f32.mrb[0].mxu0
        %v8584 = vadd.f32 0.0, %v8583
        %v8585 = vpop.f32.mrb[0].mxu0
        %v8586 = vpop.f32.mrb[0].mxu0
        %v8587 = vadd.f32 0.0, %v8586
        %v8588 = vpop.f32.mrb[0].mxu0
        %8589 = vmatprep.mubr.bf16.mxu0 0
        %8590 = vmatmul.mubr.bf16.gmra.mrb[0].mxu0 %v8517
        %v8591 = vpop.f32.mrb[0].mxu0
        %v8592 = vadd.f32 0.0, %v8591
        %v8593 = vpop.f32.mrb[0].mxu0
        %v8594 = vpop.f32.mrb[0].mxu0
        %v8595 = vadd.f32 0.0, %v8594
        %v8596 = vpop.f32.mrb[0].mxu0
        %8597 = vmatprep.mubr.bf16.mxu0 0
        %8598 = vmatmul.mubr.bf16.gmra.mrb[0].mxu0 %v8520
        %v8599 = vpop.f32.mrb[0].mxu0
        %v8600 = vadd.f32 0.0, %v8599
        %v8601 = vpop.f32.mrb[0].mxu0
        %v8602 = vpop.f32.mrb[0].mxu0
        %v8603 = vadd.f32 0.0, %v8602
        %v8604 = vpop.f32.mrb[0].mxu0
        %8605 = vmatprep.mubr.bf16.mxu0 0
        %8606 = vmatmul.mubr.bf16.gmra.mrb[0].mxu0 %v8523
        %v8607 = vpop.f32.mrb[0].mxu0
        %v8608 = vadd.f32 0.0, %v8607
        %v8609 = vpop.f32.mrb[0].mxu0
        %v8610 = vpop.f32.mrb[0].mxu0
        %v8611 = vpop.f32.mrb[0].mxu0
        %8612 = vdwg.mxu0
        %v8613 = vadd.f32 %v8441, %v8560
        %v8614 = vadd.f32 %v8442, %v8563
        %v8615 = vadd.f32 %v8443, %v8568
        %v8616 = vadd.f32 %v8444, %v8571
        %v8617 = vadd.f32 %v8445, %v8576
        %v8618 = vadd.f32 %v8446, %v8579
        %v8619 = vadd.f32 %v8447, %v8584
        %v8620 = vadd.f32 %v8448, %v8587
        %v8621 = vadd.f32 %v8449, %v8592
        %v8622 = vadd.f32 %v8450, %v8595
        %v8623 = vadd.f32 %v8451, %v8600
        %v8624 = vadd.f32 %v8452, %v8603
        %v8625 = vadd.f32 %v8453, %v8608
        %v8626 = vld [vmem:[#allocation3 + $0x40] sm:$0x3]
        %s8627 = scalar_lea.vmem [#allocation16], 256
        %v8628 = vld [vmem:[%s8627] sm:$0xf]
        %v8629 = vld [vmem:[%s8627 + $0x4] sm:$0xf]
        %v8630 = vld [vmem:[%s8627 + $0x8] sm:$0xf]
        %v8631 = vld [vmem:[%s8627 + $0xc] sm:$0xf]
        %v8632 = vld [vmem:[%s8627 + $0x10] sm:$0xf]
        %v8633 = vld [vmem:[%s8627 + $0x14] sm:$0xf]
        %v8634 = vld [vmem:[%s8627 + $0x18] sm:$0xf]
        %v8635 = vld [vmem:[%s8627 + $0x1c] sm:$0xf]
        %v8637 = vunpack.c.l.b16 %v8626
        %v8638 = vpack.c.b16 %v8637, %v8244
        %v8640 = vshrl.u32 %v8466, 16
        %v8642 = vrot.slane %v8640, 1
        %v8643 = vshll.u32 %v8466, 16
        %v8645 = vrot.slane %v8643, 2
        %v8646 = vor.u32 %v8642, %v8645
        %v8647 = vrot.slane %v8265, 1
        %v8648 = vrot.slane %v8261, 2
        %v8649 = vor.u32 %v8647, %v8648
        %v8650 = vsel %vm2262, %v8646, %v8649
        %v8651 = vrot.slane %v8273, 1
        %v8652 = vrot.slane %v8269, 2
        %v8653 = vor.u32 %v8651, %v8652
        %v8654 = vsel %vm2262, %v8649, %v8653
        %v8655 = vrot.slane %v8281, 1
        %v8656 = vrot.slane %v8277, 2
        %v8657 = vor.u32 %v8655, %v8656
        %v8658 = vsel %vm2262, %v8653, %v8657
        %v8659 = vrot.slane %v8289, 1
        %v8660 = vrot.slane %v8285, 2
        %v8661 = vor.u32 %v8659, %v8660
        %v8662 = vsel %vm2262, %v8657, %v8661
        %v8663 = vrot.slane %v8297, 1
        %v8664 = vrot.slane %v8293, 2
        %v8665 = vor.u32 %v8663, %v8664
        %v8666 = vsel %vm2262, %v8661, %v8665
        %v8668 = vshrl.u32 %v8638, 16
        %v8670 = vrot.slane %v8668, 1
        %v8671 = vshll.u32 %v8638, 16
        %v8673 = vrot.slane %v8671, 2
        %v8674 = vor.u32 %v8670, %v8673
        %v8675 = vsel %vm2262, %v8665, %v8674
        %v8684 = vunpack.c.l.b16 %v8628
        %v8685 = vunpack.c.l.b16 %v8629
        %v8686 = vunpack.c.l.b16 %v8630
        %v8687 = vunpack.c.l.b16 %v8631
        %v8688 = vunpack.c.l.b16 %v8632
        %v8689 = vunpack.c.l.b16 %v8633
        %v8690 = vunpack.c.l.b16 %v8634
        %v8691 = vunpack.c.l.b16 %v8635
        %v8692 = vpack.c.b16 %v8685, %v8684
        %v8693 = vpack.c.b16 %v8687, %v8686
        %v8694 = vpack.c.b16 %v8689, %v8688
        %v8695 = vpack.c.b16 %v8691, %v8690
        %v8701 = vsel %vm589, %v8650, 0
        %v8704 = vsel %vm589, %v8654, 0
        %v8707 = vsel %vm589, %v8658, 0
        %v8710 = vsel %vm589, %v8662, 0
        %v8713 = vsel %vm589, %v8666, 0
        %v8716 = vsel %vm589, %v8675, 0
        %v8719 = vsel %vm589, %v8674, 0
        %8721 = vmatprep.subr.bf16.mxu0 0
        %8722 = vmatpush1.bf16.msra.mxu0 %v8692
        %8723 = vmatprep.subr.bf16.mxu0 0
        %8724 = vmatpush1.bf16.msra.mxu0 %v8693
        %8725 = vmatprep.subr.bf16.mxu0 0
        %8726 = vmatpush1.bf16.msra.mxu0 %v8694
        %8727 = vmatprep.subr.bf16.mxu0 0
        %8728 = vmatpush1.bf16.msra.mxu0 %v8695
        %8729 = vmatprep.subr.bf16.mxu0 0
        %8730 = vmatpush1.bf16.msra.mxu0 0
        %8731 = vmatprep.subr.bf16.mxu0 0
        %8732 = vmatpush1.bf16.msra.mxu0 0
        %8733 = vmatprep.subr.bf16.mxu0 0
        %8734 = vmatpush1.bf16.msra.mxu0 0
        %8735 = vmatprep.subr.bf16.mxu0 0
        %8736 = vmatpush1.bf16.msra.mxu0 0
        %8737 = vmatprep.subr.bf16.mxu0 0
        %8738 = vmatpush1.bf16.msra.mxu0 0
        %8739 = vmatprep.subr.bf16.mxu0 0
        %8740 = vmatpush1.bf16.msra.mxu0 0
        %8741 = vmatprep.subr.bf16.mxu0 0
        %8742 = vmatpush1.bf16.msra.mxu0 0
        %8743 = vmatprep.subr.bf16.mxu0 0
        %8744 = vmatpush1.bf16.msra.mxu0 0
        %8745 = vmatprep.subr.bf16.mxu0 0
        %8746 = vmatpush1.bf16.msra.mxu0 0
        %8747 = vmatprep.subr.bf16.mxu0 0
        %8748 = vmatpush1.bf16.msra.mxu0 0
        %8749 = vmatprep.subr.bf16.mxu0 0
        %8750 = vmatpush1.bf16.msra.mxu0 0
        %8751 = vmatprep.subr.bf16.mxu0 0
        %8752 = vmatpush1.bf16.msra.mxu0 0
        %8753 = vmatprep.mubr.bf16.mxu0 0
        %8754 = vmatmul.mubr.bf16.gmra.mrb[0].mxu0 %v8701
        %v8755 = vpop.f32.mrb[0].mxu0
        %v8756 = vadd.f32 0.0, %v8755
        %v8757 = vpop.f32.mrb[0].mxu0
        %v8758 = vpop.f32.mrb[0].mxu0
        %v8759 = vadd.f32 0.0, %v8758
        %v8760 = vpop.f32.mrb[0].mxu0
        %8761 = vmatprep.mubr.bf16.mxu0 0
        %8762 = vmatmul.mubr.bf16.gmra.mrb[0].mxu0 %v8704
        %v8763 = vpop.f32.mrb[0].mxu0
        %v8764 = vadd.f32 0.0, %v8763
        %v8765 = vpop.f32.mrb[0].mxu0
        %v8766 = vpop.f32.mrb[0].mxu0
        %v8767 = vadd.f32 0.0, %v8766
        %v8768 = vpop.f32.mrb[0].mxu0
        %8769 = vmatprep.mubr.bf16.mxu0 0
        %8770 = vmatmul.mubr.bf16.gmra.mrb[0].mxu0 %v8707
        %v8771 = vpop.f32.mrb[0].mxu0
        %v8772 = vadd.f32 0.0, %v8771
        %v8773 = vpop.f32.mrb[0].mxu0
        %v8774 = vpop.f32.mrb[0].mxu0
        %v8775 = vadd.f32 0.0, %v8774
        %v8776 = vpop.f32.mrb[0].mxu0
        %8777 = vmatprep.mubr.bf16.mxu0 0
        %8778 = vmatmul.mubr.bf16.gmra.mrb[0].mxu0 %v8710
        %v8779 = vpop.f32.mrb[0].mxu0
        %v8780 = vadd.f32 0.0, %v8779
        %v8781 = vpop.f32.mrb[0].mxu0
        %v8782 = vpop.f32.mrb[0].mxu0
        %v8783 = vadd.f32 0.0, %v8782
        %v8784 = vpop.f32.mrb[0].mxu0
        %8785 = vmatprep.mubr.bf16.mxu0 0
        %8786 = vmatmul.mubr.bf16.gmra.mrb[0].mxu0 %v8713
        %v8787 = vpop.f32.mrb[0].mxu0
        %v8788 = vadd.f32 0.0, %v8787
        %v8789 = vpop.f32.mrb[0].mxu0
        %v8790 = vpop.f32.mrb[0].mxu0
        %v8791 = vadd.f32 0.0, %v8790
        %v8792 = vpop.f32.mrb[0].mxu0
        %8793 = vmatprep.mubr.bf16.mxu0 0
        %8794 = vmatmul.mubr.bf16.gmra.mrb[0].mxu0 %v8716
        %v8795 = vpop.f32.mrb[0].mxu0
        %v8796 = vadd.f32 0.0, %v8795
        %v8797 = vpop.f32.mrb[0].mxu0
        %v8798 = vpop.f32.mrb[0].mxu0
        %v8799 = vadd.f32 0.0, %v8798
        %v8800 = vpop.f32.mrb[0].mxu0
        %8801 = vmatprep.mubr.bf16.mxu0 0
        %8802 = vmatmul.mubr.bf16.gmra.mrb[0].mxu0 %v8719
        %v8803 = vpop.f32.mrb[0].mxu0
        %v8804 = vadd.f32 0.0, %v8803
        %v8805 = vpop.f32.mrb[0].mxu0
        %v8806 = vpop.f32.mrb[0].mxu0
        %v8807 = vpop.f32.mrb[0].mxu0
        %8808 = vdwg.mxu0
        %v8809 = vadd.f32 %v8613, %v8756
        %v8810 = vadd.f32 %v8614, %v8759
        %v8811 = vadd.f32 %v8615, %v8764
        %v8812 = vadd.f32 %v8616, %v8767
        %v8813 = vadd.f32 %v8617, %v8772
        %v8814 = vadd.f32 %v8618, %v8775
        %v8815 = vadd.f32 %v8619, %v8780
        %v8816 = vadd.f32 %v8620, %v8783
        %v8817 = vadd.f32 %v8621, %v8788
        %v8818 = vadd.f32 %v8622, %v8791
        %v8819 = vadd.f32 %v8623, %v8796
        %v8820 = vadd.f32 %v8624, %v8799
        %v8821 = vadd.f32 %v8625, %v8804
        %v8822 = vld [vmem:[%s569] sm:$0xff]
        %v8823 = vld [vmem:[%s569 + $0x8] sm:$0xff]
        %v8824 = vld [vmem:[%s569 + $0x10] sm:$0xff]
        %v8825 = vld [vmem:[%s569 + $0x18] sm:$0xff]
        %v8826 = vld [vmem:[%s569 + $0x20] sm:$0xff]
        %v8827 = vld [vmem:[%s569 + $0x28] sm:$0xff]
        %v8828 = vld [vmem:[%s569 + $0x30] sm:$0xff]
        %v8829 = vld [vmem:[%s569 + $0x38] sm:$0xff]
        %v8830 = vld [vmem:[%s569 + $0x40] sm:$0xff]
        %v8831 = vld [vmem:[%s569 + $0x48] sm:$0xff]
        %v8832 = vld [vmem:[%s569 + $0x50] sm:$0xff]
        %v8833 = vld [vmem:[%s569 + $0x58] sm:$0xff]
        %v8834 = vld [vmem:[%s569 + $0x60] sm:$0xff]
        %v8835 = vadd.f32 %v8809, %v8822
        %v8836 = vadd.f32 %v8810, %v8823
        %v8837 = vadd.f32 %v8811, %v8824
        %v8838 = vadd.f32 %v8812, %v8825
        %v8839 = vadd.f32 %v8813, %v8826
        %v8840 = vadd.f32 %v8814, %v8827
        %v8841 = vadd.f32 %v8815, %v8828
        %v8842 = vadd.f32 %v8816, %v8829
        %v8843 = vadd.f32 %v8817, %v8830
        %v8844 = vadd.f32 %v8818, %v8831
        %v8845 = vadd.f32 %v8819, %v8832
        %v8846 = vadd.f32 %v8820, %v8833
        %v8847 = vadd.f32 %v8821, %v8834
        %8848 = vst [vmem:[%s574] sm:$0xff] %v8835
        %8849 = vst [vmem:[%s574 + $0x8] sm:$0xff] %v8836
        %8850 = vst [vmem:[%s574 + $0x10] sm:$0xff] %v8837
        %8851 = vst [vmem:[%s574 + $0x18] sm:$0xff] %v8838
        %8852 = vst [vmem:[%s574 + $0x20] sm:$0xff] %v8839
        %8853 = vst [vmem:[%s574 + $0x28] sm:$0xff] %v8840
        %8854 = vst [vmem:[%s574 + $0x30] sm:$0xff] %v8841
        %8855 = vst [vmem:[%s574 + $0x38] sm:$0xff] %v8842
        %8856 = vst [vmem:[%s574 + $0x40] sm:$0xff] %v8843
        %8857 = vst [vmem:[%s574 + $0x48] sm:$0xff] %v8844
        %8858 = vst [vmem:[%s574 + $0x50] sm:$0xff] %v8845
        %8859 = vst [vmem:[%s574 + $0x58] sm:$0xff] %v8846
        %8860 = vst [vmem:[%s574 + $0x60] sm:$0xff] %v8847
        %p8861 = scmp.lt.s32.totalorder %s29, 1
        %s8862 = scalar_select %p8861, %s29, 1
        %s8863 = smul.addr %s8862, 13
        %s8864 = smul.addr %s8863, 8
        %s8865 = scalar_lea.vmem %s12, %s8864
        // Predicated region
        $region116: #{_lambda_.1} parent=67 // pred_check
          %p8866 = pneg %p309
        $region117: #{_lambda_.1} parent=67 // pred_check_branch
          %8868 = sbr.rel (%p8866) target = $region119
        $region118: #{_lambda_.1} parent=67 // pred_region
          _
        $region119: #{_lambda_.1} parent=67 // pred_fallthru
          _
      $region68: #{_lambda_.1} parent=5 // pred_fallthru
        _
      %p8869 = scmp.le.s32.totalorder 2, %s24
      // Predicated region
      $region120: #{_lambda_.1} parent=5 // pred_check
        %p8870 = pneg %p8869
      $region121: #{_lambda_.1} parent=5 // pred_check_branch
        %8872 = sbr.rel (%p8870) target = $region123
      $region122: #{_lambda_.1} parent=5 // pred_region
        %s8873 = ssub.s32 %s24, 2
        // Predicated region
        $region124: #{_lambda_.1} parent=122 // pred_check
          %p8874 = pneg %p315
        $region125: #{_lambda_.1} parent=122 // pred_check_branch
          %8876 = sbr.rel (%p8874) target = $region127
        $region126: #{_lambda_.1} parent=122 // pred_region
          %p8877 = scmp.lt.s32.totalorder %s30, 1
          %s8878 = scalar_select %p8877, %s30, 1
          %s8879 = smul.addr %s8878, 13
          %s8880 = smul.addr %s8879, 8
          %s8881 = scalar_lea.vmem %s12, %s8880
        $region127: #{_lambda_.1} parent=122 // pred_fallthru
          _
      $region123: #{_lambda_.1} parent=5 // pred_fallthru
        _
    $region6: #{_lambda_.1} parent=1 // loop_footer
      %s28 = sadd.s32 1, %s24
    $region7: #{_lambda_.1} parent=1 // loop_footer_branch
      %23 = sbr.rel target = $region3
    $region8: #{_lambda_.1} parent=1 // loop_exit
      _
    %8882 = vsyncpa [#allocation5], 1
    %s8883 = scalar_lea.sflag [#allocation5], 1
    %8884 = vsyncpa %s8883, 1
    %8885 = vsyncpa [#allocation9], 1
    %8886 = vsyncpa [#allocation12], 1
    %8887 = vsyncpa [#allocation15], 1
    %8888 = vsyncpa [#allocation18], 1
    %8889 = vsyncpa [#allocation6], 1
    %s8890 = scalar_lea.sflag [#allocation6], 1
    %8891 = vsyncpa %s8890, 1

</llo_original>
